<compile_context>
chip_gen: v6e
topology: v6e:2x2x1
jax: 0.10.0
libtpu: 0.0.40
codegen_flags: <defaults>
</compile_context>

<pallas_src>
import functools

import jax
import jax.numpy as jnp
from jax.experimental import pallas as pl
from jax.experimental.pallas import tpu as pltpu

F_SIZE = 1024   # Fusion.f_size == embed_size (hard-coded 1024 in the module)
D_CNN = 128     # scaled-down stand-in for VGG19's 4096-dim classifier output
EPS = 1e-8      # eps of l2norm()


# ---------------------------- Pallas kernels ----------------------------

def _conv_mm_kernel(w_ref, x_ref, b_ref, o_ref):
    # (Cout, K) @ (K, TN) -> (Cout, TN), bias + ReLU.  Lane-dense output.
    y = jnp.dot(w_ref[...], x_ref[...], preferred_element_type=jnp.float32)
    o_ref[...] = jnp.maximum(y + b_ref[...], 0.0)


def conv_matmul(w2d, cols_t, b_col):
    """ReLU(w2d @ cols_t + b). w2d: (Cout, K), cols_t: (K, N), b: (Cout, 1)."""
    cout, k = w2d.shape
    n = cols_t.shape[1]
    tn = 128 if n % 128 == 0 else n          # N-tile on lanes
    return pl.pallas_call(
        _conv_mm_kernel,
        out_shape=jax.ShapeDtypeStruct((cout, n), jnp.float32),
        grid=(n // tn,),
        in_specs=[pl.BlockSpec((cout, k), lambda j: (0, 0)),   # weights resident
                  pl.BlockSpec((k, tn), lambda j: (0, j)),     # stream spatial tiles
                  pl.BlockSpec((cout, 1), lambda j: (0, 0))],
        out_specs=pl.BlockSpec((cout, tn), lambda j: (0, j)),
        compiler_params=pltpu.CompilerParams(
            dimension_semantics=("parallel",)),
    )(w2d, cols_t, b_col)


def _encoder_head_kernel(flat_ref, local_ref,
                         c1w_ref, c1b_ref, c2w_ref, c2b_ref,
                         fcw_ref, fcb_ref, atw_ref, atb_ref,
                         gw_ref, gb_ref, o_ref, *, f_size):
    bf16 = jnp.bfloat16
    # classifier[:-1]: Linear+ReLU (+Dropout: eval no-op), Linear+ReLU
    h = jnp.dot(flat_ref[...].astype(bf16), c1w_ref[...],
                preferred_element_type=jnp.float32) + c1b_ref[...]
    h = jnp.maximum(h, 0.0)
    feat = jnp.dot(h.astype(bf16), c2w_ref[...],
                   preferred_element_type=jnp.float32) + c2b_ref[...]
    feat = jnp.maximum(feat, 0.0)
    # features = l2norm(cnn(images))
    inv = pl.reciprocal(
        jnp.sqrt(jnp.sum(feat * feat, axis=-1, keepdims=True)) + EPS,
        approx=True)
    featn = (feat * inv).astype(bf16)
    # features = self.fc(features)
    vec1 = jnp.dot(featn, fcw_ref[...],
                   preferred_element_type=jnp.float32) + fcb_ref[...]
    # features_1 = self.fc_attn_i(local_image)
    vec2 = jnp.dot(local_ref[...].astype(bf16), atw_ref[...],
                   preferred_element_type=jnp.float32) + atb_ref[...]
    # Fusion.gate0(cat(vec1, vec2)) == vec1 @ Wg[:F] + vec2 @ Wg[F:]
    g = (jnp.dot(vec1.astype(bf16), gw_ref[0:f_size, :],
                 preferred_element_type=jnp.float32)
         + jnp.dot(vec2.astype(bf16), gw_ref[f_size:2 * f_size, :],
                   preferred_element_type=jnp.float32)
         + gb_ref[...])
    t = jax.nn.sigmoid(g)
    f = t * vec1 + (1.0 - t) * vec2
    # features = l2norm(fused)
    inv2 = pl.reciprocal(
        jnp.sqrt(jnp.sum(f * f, axis=-1, keepdims=True)) + EPS,
        approx=True)
    o_ref[...] = f * inv2


def encoder_head(flat, local, p):
    """Fused classifier -> l2norm -> fc / fc_attn_i -> Fusion -> l2norm."""
    bsz = flat.shape[0]
    args = (flat, local,
            p['cls1_w_t'], p['cls1_b'],
            p['cls2_w_t'], p['cls2_b'],
            p['fc_w_t'], p['fc_b'],
            p['attn_w_t'], p['attn_b'],
            p['gate0_w_t'], p['gate0_b'])
    # Grid-less, single-buffered: ~6.3 MiB bf16 weights stay VMEM-resident.
    # At B=2 the kernel is weight-streaming bound regardless of tiling; for
    # large batches, grid over batch tiles with constant-index weight blocks.
    return pl.pallas_call(
        functools.partial(_encoder_head_kernel, f_size=F_SIZE),
        out_shape=jax.ShapeDtypeStruct((bsz, F_SIZE), jnp.float32),
        in_specs=[pl.BlockSpec(memory_space=pltpu.MemorySpace.VMEM)] * len(args),
        out_specs=pl.BlockSpec(memory_space=pltpu.MemorySpace.VMEM),
    )(*args)


# ---------------------------- glue: conv / pool ----------------------------

def im2col_T(x_cbhw):
    """(C, B, H, W) -> (C*9, B*H*W) patch matrix for 3x3/pad=1/stride=1."""
    # TODO(synk): move the 9x patch expansion into the kernel as 9 shifted
    # pl.ds-sliced matmuls to cut conv-path HBM traffic ~9x at real VGG scale.
    c, b, h, w = x_cbhw.shape
    xp = jnp.pad(x_cbhw, ((0, 0), (0, 0), (1, 1), (1, 1)))
    patches = jnp.stack([xp[:, :, dy:dy + h, dx:dx + w]
                         for dy in range(3) for dx in range(3)], axis=1)  # (C,9,B,H,W)
    return patches.reshape(c * 9, b * h * w)


def conv3x3_relu(x_cbhw, w2d, b_col):
    """3x3 conv (pad=1, stride=1) + ReLU; stays in CNHW layout."""
    c, b, h, w = x_cbhw.shape
    cols_t = im2col_T(x_cbhw)
    cout = w2d.shape[0]
    y = conv_matmul(w2d, cols_t, b_col)          # (Cout, B*H*W), lane-dense
    return y.reshape(cout, b, h, w)


def maxpool2x2(x_cbhw):
    c, b, h, w = x_cbhw.shape
    return x_cbhw.reshape(c, b, h // 2, 2, w // 2, 2).max(axis=(3, 5))


# ---------------------------- parameters ----------------------------

def init_params(key):
    ks = jax.random.split(key, 14)
    bf16 = jnp.bfloat16

    def u(k, shape, scale):
        return jax.random.uniform(k, shape, jnp.float32, -scale, scale)

    p = {}
    # scaled-down VGG-style "features"; conv weights stored as (Cout, Cin*9)
    # (PyTorch OIHW reshape; feeds the matmul directly, no transpose).
    p['conv1_w2d'] = u(ks[0], (8, 3, 3, 3), 0.2).reshape(8, 27)
    p['conv1_b'] = u(ks[1], (8, 1), 0.1)
    p['conv2_w2d'] = u(ks[2], (8, 8, 3, 3), 0.2).reshape(8, 72)
    p['conv2_b'] = u(ks[3], (8, 1), 0.1)
    p['conv3_w2d'] = u(ks[4], (16, 8, 3, 3), 0.2).reshape(16, 72)
    p['conv3_b'] = u(ks[5], (16, 1), 0.1)
    # "classifier[:-1]" stand-in and head weights: pre-transposed (in, out), bf16.
    p['cls1_w_t'] = u(ks[6], (128, 256), 0.05).T.astype(bf16)          # (256,128)
    p['cls1_b'] = u(ks[7], (1, 128), 0.05)
    p['cls2_w_t'] = u(ks[8], (D_CNN, 128), 0.05).T.astype(bf16)        # (128,D_CNN)
    p['cls2_b'] = u(ks[9], (1, D_CNN), 0.05)
    # self.fc : Linear(cnn_feat, embed_size), Xavier-uniform, zero bias
    r = (6.0 / (D_CNN + F_SIZE)) ** 0.5
    p['fc_w_t'] = u(ks[10], (F_SIZE, D_CNN), r).T.astype(bf16)         # (D_CNN,F)
    p['fc_b'] = jnp.zeros((1, F_SIZE), jnp.float32)
    # self.fc_attn_i : Linear(1024, 1024), Xavier-uniform, zero bias
    r2 = (6.0 / (F_SIZE + F_SIZE)) ** 0.5
    p['attn_w_t'] = u(ks[11], (F_SIZE, F_SIZE), r2).T.astype(bf16)     # (F,F)
    p['attn_b'] = jnp.zeros((1, F_SIZE), jnp.float32)
    # Fusion.gate0 : Linear(2048, 1024), PyTorch default init
    r3 = 1.0 / (2 * F_SIZE) ** 0.5
    p['gate0_w_t'] = u(ks[12], (F_SIZE, 2 * F_SIZE), r3).T.astype(bf16)  # (2F,F)
    p['gate0_b'] = u(ks[13], (1, F_SIZE), r3)
    # NOTE: Fusion.fusion0 / Fusion.fusion1 are defined but unused in forward().
    return p


# ---------------------------- forward ----------------------------

def encoder_image_forward(params, images, local_image):
    # --- self.cnn(images) ---
    # TODO(synk): the pretrained torchvision VGG19 backbone (16 conv layers,
    # 224x224 input, 4096-dim classifier, nn.DataParallel) is not reproduced;
    # a small VGG-style stack with identical op semantics stands in.
    x = jnp.transpose(images, (1, 0, 2, 3))              # NCHW -> CNHW (once)
    x = conv3x3_relu(x, params['conv1_w2d'], params['conv1_b'])
    x = conv3x3_relu(x, params['conv2_w2d'], params['conv2_b'])
    x = maxpool2x2(x)
    x = conv3x3_relu(x, params['conv3_w2d'], params['conv3_b'])
    x = maxpool2x2(x)
    bsz = x.shape[1]
    flat = jnp.transpose(x, (1, 0, 2, 3)).reshape(bsz, -1)   # torch NCHW flatten
    # --- classifier -> l2norm -> fc / fc_attn_i -> Fusion -> l2norm (ONE kernel) ---
    return encoder_head(flat, local_image, params)


# ---------------------------- pure-JAX reference ----------------------------

def reference_forward(p, images, local_image):
    def l2n(v):
        return v / (jnp.sqrt(jnp.sum(v * v, axis=-1, keepdims=True)) + EPS)

    def conv(x, w2d, b_col, cin):
        cout = w2d.shape[0]
        w = w2d.reshape(cout, cin, 3, 3)
        y = jax.lax.conv_general_dilated(
            x, w, (1, 1), 'SAME', dimension_numbers=('NCHW', 'OIHW', 'NCHW'))
        return jax.nn.relu(y + b_col.reshape(1, cout, 1, 1))

    def pool(x):
        b_, c, h, w = x.shape
        return x.reshape(b_, c, h // 2, 2, w // 2, 2).max(axis=(3, 5))

    f32 = jnp.float32
    x = conv(images, p['conv1_w2d'], p['conv1_b'], 3)
    x = conv(x, p['conv2_w2d'], p['conv2_b'], 8); x = pool(x)
    x = conv(x, p['conv3_w2d'], p['conv3_b'], 8); x = pool(x)
    flat = x.reshape(x.shape[0], -1)
    h = jax.nn.relu(flat @ p['cls1_w_t'].astype(f32) + p['cls1_b'])
    feat = jax.nn.relu(h @ p['cls2_w_t'].astype(f32) + p['cls2_b'])
    v1 = l2n(feat) @ p['fc_w_t'].astype(f32) + p['fc_b']
    v2 = local_image @ p['attn_w_t'].astype(f32) + p['attn_b']
    gw = p['gate0_w_t'].astype(f32)
    t = jax.nn.sigmoid(jnp.concatenate([v1, v2], axis=1) @ gw + p['gate0_b'])
    return l2n(t * v1 + (1.0 - t) * v2)


if __name__ == "__main__":
    key = jax.random.PRNGKey(0)
    kp, ki, kl = jax.random.split(key, 3)
    params = init_params(kp)
    images = jax.random.normal(ki, (2, 3, 16, 16), jnp.float32)   # NCHW
    local_image = jax.random.normal(kl, (2, F_SIZE), jnp.float32)

    fwd = jax.jit(encoder_image_forward)
    out = jax.block_until_ready(fwd(params, images, local_image))
    ref = reference_forward(params, images, local_image)

    assert out.shape == (2, F_SIZE) and out.dtype == jnp.float32
    # bf16 matmul operands (f32 accumulation) + approx reciprocal -> loosened tol.
    err = float(jnp.max(jnp.abs(out - ref)))
    assert jnp.allclose(out, ref, atol=5e-3, rtol=5e-3), err
    print("KERNEL_OK")
</pallas_src>

<mosaic_0001>
module attributes {stable_mosaic.version = 11 : i64} {
  func.func @_conv_mm_kernel(%arg0: i32, %arg1: memref<8x27xf32, #tpu.memory_space<vmem>>, %arg2: memref<27x128xf32, #tpu.memory_space<vmem>>, %arg3: memref<8x1xf32, #tpu.memory_space<vmem>>, %arg4: memref<8x128xf32, #tpu.memory_space<vmem>>) attributes {dimension_semantics = [#tpu.dimension_semantics<parallel>], iteration_bounds = array<i64: 4>, scalar_prefetch = 0 : i64, scratch_operands = 0 : i64, tpu.core_type = #tpu.core_type<tc>, window_params = [{pipeline_mode = #tpu.pipeline_mode<synchronous>, transform_indices = @transform_0, window_bounds = array<i64: 8, 27>}, {transform_indices = @transform_1, window_bounds = array<i64: 27, 128>}, {pipeline_mode = #tpu.pipeline_mode<synchronous>, transform_indices = @transform_2, window_bounds = array<i64: 8, 1>}, {transform_indices = @transform_3, window_bounds = array<i64: 8, 128>}]} {
    %c0 = arith.constant 0 : index
    %c0_0 = arith.constant 0 : index
    %0 = vector.load %arg1[%c0, %c0_0] : memref<8x27xf32, #tpu.memory_space<vmem>>, vector<8x27xf32>
    %c0_1 = arith.constant 0 : index
    %c0_2 = arith.constant 0 : index
    %1 = vector.load %arg2[%c0_1, %c0_2] : memref<27x128xf32, #tpu.memory_space<vmem>>, vector<27x128xf32>
    %cst = arith.constant dense<0.000000e+00> : vector<8x128xf32>
    %2 = tpu.matmul %0, %1, %cst {dimension_numbers = #tpu.dot_dimension_numbers<[1], [0], [0], [1], [0, 0, 1, 1], [], []>} : vector<8x27xf32>, vector<27x128xf32>, vector<8x128xf32> -> vector<8x128xf32>
    %c0_3 = arith.constant 0 : index
    %c0_4 = arith.constant 0 : index
    %3 = vector.load %arg3[%c0_3, %c0_4] : memref<8x1xf32, #tpu.memory_space<vmem>>, vector<8x1xf32>
    %4 = vector.broadcast %3 : vector<8x1xf32> to vector<8x128xf32>
    %5 = arith.addf %2, %4 : vector<8x128xf32>
    %cst_5 = arith.constant 0.000000e+00 : f32
    %6 = vector.broadcast %cst_5 : f32 to vector<8x128xf32>
    %7 = arith.maximumf %5, %6 : vector<8x128xf32>
    %c0_6 = arith.constant 0 : index
    %c0_7 = arith.constant 0 : index
    %8 = vector.load %arg4[%c0_6, %c0_7] : memref<8x128xf32, #tpu.memory_space<vmem>>, vector<8x128xf32>
    tpu.vector_store %arg4[%c0_6, %c0_7], %7 {strides = array<i32>} : memref<8x128xf32, #tpu.memory_space<vmem>>, vector<8x128xf32>,
    return
  }
  func.func @transform_0(%arg0: i32) -> (i32, i32) {
    %c0_i32 = arith.constant 0 : i32
    %c0_i32_0 = arith.constant 0 : i32
    %c0_i32_1 = arith.constant 0 : i32
    return %c0_i32, %c0_i32_0 : i32, i32
  }
  func.func @transform_1(%arg0: i32) -> (i32, i32) {
    %c0_i32 = arith.constant 0 : i32
    %c0_i32_0 = arith.constant 0 : i32
    return %c0_i32, %arg0 : i32, i32
  }
  func.func @transform_2(%arg0: i32) -> (i32, i32) {
    %c0_i32 = arith.constant 0 : i32
    %c0_i32_0 = arith.constant 0 : i32
    %c0_i32_1 = arith.constant 0 : i32
    return %c0_i32, %c0_i32_0 : i32, i32
  }
  func.func @transform_3(%arg0: i32) -> (i32, i32) {
    %c0_i32 = arith.constant 0 : i32
    %c0_i32_0 = arith.constant 0 : i32
    return %c0_i32, %arg0 : i32, i32
  }
}

module attributes {stable_mosaic.version = 11 : i64} {
  func.func @_conv_mm_kernel(%arg0: i32, %arg1: memref<8x72xf32, #tpu.memory_space<vmem>>, %arg2: memref<72x128xf32, #tpu.memory_space<vmem>>, %arg3: memref<8x1xf32, #tpu.memory_space<vmem>>, %arg4: memref<8x128xf32, #tpu.memory_space<vmem>>) attributes {dimension_semantics = [#tpu.dimension_semantics<parallel>], iteration_bounds = array<i64: 4>, scalar_prefetch = 0 : i64, scratch_operands = 0 : i64, tpu.core_type = #tpu.core_type<tc>, window_params = [{pipeline_mode = #tpu.pipeline_mode<synchronous>, transform_indices = @transform_0, window_bounds = array<i64: 8, 72>}, {transform_indices = @transform_1, window_bounds = array<i64: 72, 128>}, {pipeline_mode = #tpu.pipeline_mode<synchronous>, transform_indices = @transform_2, window_bounds = array<i64: 8, 1>}, {transform_indices = @transform_3, window_bounds = array<i64: 8, 128>}]} {
    %c0 = arith.constant 0 : index
    %c0_0 = arith.constant 0 : index
    %0 = vector.load %arg1[%c0, %c0_0] : memref<8x72xf32, #tpu.memory_space<vmem>>, vector<8x72xf32>
    %c0_1 = arith.constant 0 : index
    %c0_2 = arith.constant 0 : index
    %1 = vector.load %arg2[%c0_1, %c0_2] : memref<72x128xf32, #tpu.memory_space<vmem>>, vector<72x128xf32>
    %cst = arith.constant dense<0.000000e+00> : vector<8x128xf32>
    %2 = tpu.matmul %0, %1, %cst {dimension_numbers = #tpu.dot_dimension_numbers<[1], [0], [0], [1], [0, 0, 1, 1], [], []>} : vector<8x72xf32>, vector<72x128xf32>, vector<8x128xf32> -> vector<8x128xf32>
    %c0_3 = arith.constant 0 : index
    %c0_4 = arith.constant 0 : index
    %3 = vector.load %arg3[%c0_3, %c0_4] : memref<8x1xf32, #tpu.memory_space<vmem>>, vector<8x1xf32>
    %4 = vector.broadcast %3 : vector<8x1xf32> to vector<8x128xf32>
    %5 = arith.addf %2, %4 : vector<8x128xf32>
    %cst_5 = arith.constant 0.000000e+00 : f32
    %6 = vector.broadcast %cst_5 : f32 to vector<8x128xf32>
    %7 = arith.maximumf %5, %6 : vector<8x128xf32>
    %c0_6 = arith.constant 0 : index
    %c0_7 = arith.constant 0 : index
    %8 = vector.load %arg4[%c0_6, %c0_7] : memref<8x128xf32, #tpu.memory_space<vmem>>, vector<8x128xf32>
    tpu.vector_store %arg4[%c0_6, %c0_7], %7 {strides = array<i32>} : memref<8x128xf32, #tpu.memory_space<vmem>>, vector<8x128xf32>,
    return
  }
  func.func @transform_0(%arg0: i32) -> (i32, i32) {
    %c0_i32 = arith.constant 0 : i32
    %c0_i32_0 = arith.constant 0 : i32
    %c0_i32_1 = arith.constant 0 : i32
    return %c0_i32, %c0_i32_0 : i32, i32
  }
  func.func @transform_1(%arg0: i32) -> (i32, i32) {
    %c0_i32 = arith.constant 0 : i32
    %c0_i32_0 = arith.constant 0 : i32
    return %c0_i32, %arg0 : i32, i32
  }
  func.func @transform_2(%arg0: i32) -> (i32, i32) {
    %c0_i32 = arith.constant 0 : i32
    %c0_i32_0 = arith.constant 0 : i32
    %c0_i32_1 = arith.constant 0 : i32
    return %c0_i32, %c0_i32_0 : i32, i32
  }
  func.func @transform_3(%arg0: i32) -> (i32, i32) {
    %c0_i32 = arith.constant 0 : i32
    %c0_i32_0 = arith.constant 0 : i32
    return %c0_i32, %arg0 : i32, i32
  }
}

module attributes {stable_mosaic.version = 11 : i64} {
  func.func @_conv_mm_kernel(%arg0: i32, %arg1: memref<16x72xf32, #tpu.memory_space<vmem>>, %arg2: memref<72x128xf32, #tpu.memory_space<vmem>>, %arg3: memref<16x1xf32, #tpu.memory_space<vmem>>, %arg4: memref<16x128xf32, #tpu.memory_space<vmem>>) attributes {dimension_semantics = [#tpu.dimension_semantics<parallel>], iteration_bounds = array<i64: 1>, scalar_prefetch = 0 : i64, scratch_operands = 0 : i64, tpu.core_type = #tpu.core_type<tc>, window_params = [{pipeline_mode = #tpu.pipeline_mode<synchronous>, transform_indices = @transform_0, window_bounds = array<i64: 16, 72>}, {transform_indices = @transform_1, window_bounds = array<i64: 72, 128>}, {pipeline_mode = #tpu.pipeline_mode<synchronous>, transform_indices = @transform_2, window_bounds = array<i64: 16, 1>}, {transform_indices = @transform_3, window_bounds = array<i64: 16, 128>}]} {
    %c0 = arith.constant 0 : index
    %c0_0 = arith.constant 0 : index
    %0 = vector.load %arg1[%c0, %c0_0] : memref<16x72xf32, #tpu.memory_space<vmem>>, vector<16x72xf32>
    %c0_1 = arith.constant 0 : index
    %c0_2 = arith.constant 0 : index
    %1 = vector.load %arg2[%c0_1, %c0_2] : memref<72x128xf32, #tpu.memory_space<vmem>>, vector<72x128xf32>
    %cst = arith.constant dense<0.000000e+00> : vector<16x128xf32>
    %2 = tpu.matmul %0, %1, %cst {dimension_numbers = #tpu.dot_dimension_numbers<[1], [0], [0], [1], [0, 0, 1, 1], [], []>} : vector<16x72xf32>, vector<72x128xf32>, vector<16x128xf32> -> vector<16x128xf32>
    %c0_3 = arith.constant 0 : index
    %c0_4 = arith.constant 0 : index
    %3 = vector.load %arg3[%c0_3, %c0_4] : memref<16x1xf32, #tpu.memory_space<vmem>>, vector<16x1xf32>
    %4 = vector.broadcast %3 : vector<16x1xf32> to vector<16x128xf32>
    %5 = arith.addf %2, %4 : vector<16x128xf32>
    %cst_5 = arith.constant 0.000000e+00 : f32
    %6 = vector.broadcast %cst_5 : f32 to vector<16x128xf32>
    %7 = arith.maximumf %5, %6 : vector<16x128xf32>
    %c0_6 = arith.constant 0 : index
    %c0_7 = arith.constant 0 : index
    %8 = vector.load %arg4[%c0_6, %c0_7] : memref<16x128xf32, #tpu.memory_space<vmem>>, vector<16x128xf32>
    tpu.vector_store %arg4[%c0_6, %c0_7], %7 {strides = array<i32>} : memref<16x128xf32, #tpu.memory_space<vmem>>, vector<16x128xf32>,
    return
  }
  func.func @transform_0(%arg0: i32) -> (i32, i32) {
    %c0_i32 = arith.constant 0 : i32
    %c0_i32_0 = arith.constant 0 : i32
    %c0_i32_1 = arith.constant 0 : i32
    return %c0_i32, %c0_i32_0 : i32, i32
  }
  func.func @transform_1(%arg0: i32) -> (i32, i32) {
    %c0_i32 = arith.constant 0 : i32
    %c0_i32_0 = arith.constant 0 : i32
    return %c0_i32, %arg0 : i32, i32
  }
  func.func @transform_2(%arg0: i32) -> (i32, i32) {
    %c0_i32 = arith.constant 0 : i32
    %c0_i32_0 = arith.constant 0 : i32
    %c0_i32_1 = arith.constant 0 : i32
    return %c0_i32, %c0_i32_0 : i32, i32
  }
  func.func @transform_3(%arg0: i32) -> (i32, i32) {
    %c0_i32 = arith.constant 0 : i32
    %c0_i32_0 = arith.constant 0 : i32
    return %c0_i32, %arg0 : i32, i32
  }
}

module attributes {stable_mosaic.version = 11 : i64} {
  func.func @_encoder_head_kernel(%arg0: memref<2x256xf32, #tpu.memory_space<vmem>>, %arg1: memref<2x1024xf32, #tpu.memory_space<vmem>>, %arg2: memref<256x128xbf16, #tpu.memory_space<vmem>>, %arg3: memref<1x128xf32, #tpu.memory_space<vmem>>, %arg4: memref<128x128xbf16, #tpu.memory_space<vmem>>, %arg5: memref<1x128xf32, #tpu.memory_space<vmem>>, %arg6: memref<128x1024xbf16, #tpu.memory_space<vmem>>, %arg7: memref<1x1024xf32, #tpu.memory_space<vmem>>, %arg8: memref<1024x1024xbf16, #tpu.memory_space<vmem>>, %arg9: memref<1x1024xf32, #tpu.memory_space<vmem>>, %arg10: memref<2048x1024xbf16, #tpu.memory_space<vmem>>, %arg11: memref<1x1024xf32, #tpu.memory_space<vmem>>, %arg12: memref<2x1024xf32, #tpu.memory_space<vmem>>) attributes {dimension_semantics = [], scalar_prefetch = 0 : i64, scratch_operands = 0 : i64, tpu.core_type = #tpu.core_type<tc>} {
    %c0 = arith.constant 0 : index
    %c0_0 = arith.constant 0 : index
    %0 = vector.load %arg0[%c0, %c0_0] : memref<2x256xf32, #tpu.memory_space<vmem>>, vector<2x256xf32>
    %1 = arith.truncf %0 : vector<2x256xf32> to vector<2x256xbf16>
    %c0_1 = arith.constant 0 : index
    %c0_2 = arith.constant 0 : index
    %2 = vector.load %arg2[%c0_1, %c0_2] : memref<256x128xbf16, #tpu.memory_space<vmem>>, vector<256x128xbf16>
    %cst = arith.constant dense<0.000000e+00> : vector<2x128xf32>
    %3 = tpu.matmul %1, %2, %cst {dimension_numbers = #tpu.dot_dimension_numbers<[1], [0], [0], [1], [0, 0, 1, 1], [], []>} : vector<2x256xbf16>, vector<256x128xbf16>, vector<2x128xf32> -> vector<2x128xf32>
    %c0_3 = arith.constant 0 : index
    %c0_4 = arith.constant 0 : index
    %4 = vector.load %arg3[%c0_3, %c0_4] : memref<1x128xf32, #tpu.memory_space<vmem>>, vector<1x128xf32>
    %5 = vector.broadcast %4 : vector<1x128xf32> to vector<2x128xf32>
    %6 = arith.addf %3, %5 : vector<2x128xf32>
    %cst_5 = arith.constant 0.000000e+00 : f32
    %7 = vector.broadcast %cst_5 : f32 to vector<2x128xf32>
    %8 = arith.maximumf %6, %7 : vector<2x128xf32>
    %9 = arith.truncf %8 : vector<2x128xf32> to vector<2x128xbf16>
    %c0_6 = arith.constant 0 : index
    %c0_7 = arith.constant 0 : index
    %10 = vector.load %arg4[%c0_6, %c0_7] : memref<128x128xbf16, #tpu.memory_space<vmem>>, vector<128x128xbf16>
    %cst_8 = arith.constant dense<0.000000e+00> : vector<2x128xf32>
    %11 = tpu.matmul %9, %10, %cst_8 {dimension_numbers = #tpu.dot_dimension_numbers<[1], [0], [0], [1], [0, 0, 1, 1], [], []>} : vector<2x128xbf16>, vector<128x128xbf16>, vector<2x128xf32> -> vector<2x128xf32>
    %c0_9 = arith.constant 0 : index
    %c0_10 = arith.constant 0 : index
    %12 = vector.load %arg5[%c0_9, %c0_10] : memref<1x128xf32, #tpu.memory_space<vmem>>, vector<1x128xf32>
    %13 = vector.broadcast %12 : vector<1x128xf32> to vector<2x128xf32>
    %14 = arith.addf %11, %13 : vector<2x128xf32>
    %cst_11 = arith.constant 0.000000e+00 : f32
    %15 = vector.broadcast %cst_11 : f32 to vector<2x128xf32>
    %16 = arith.maximumf %14, %15 : vector<2x128xf32>
    %17 = arith.mulf %16, %16 : vector<2x128xf32>
    %cst_12 = arith.constant dense<0.000000e+00> : vector<2xf32>
    %18 = vector.multi_reduction <add>, %17, %cst_12 [1] : vector<2x128xf32> to vector<2xf32>
    %19 = vector.shape_cast %18 : vector<2xf32> to vector<2x1xf32>
    %20 = math.sqrt %19 : vector<2x1xf32>
    %cst_13 = arith.constant 9.99999993E-9 : f32
    %21 = vector.broadcast %cst_13 : f32 to vector<2x1xf32>
    %22 = arith.addf %20, %21 : vector<2x1xf32>
    %23 = tpu.reciprocal %22 {approx = true} : vector<2x1xf32> -> vector<2x1xf32>
    %24 = vector.broadcast %23 : vector<2x1xf32> to vector<2x128xf32>
    %25 = arith.mulf %16, %24 : vector<2x128xf32>
    %26 = arith.truncf %25 : vector<2x128xf32> to vector<2x128xbf16>
    %c0_14 = arith.constant 0 : index
    %c0_15 = arith.constant 0 : index
    %27 = vector.load %arg6[%c0_14, %c0_15] : memref<128x1024xbf16, #tpu.memory_space<vmem>>, vector<128x1024xbf16>
    %cst_16 = arith.constant dense<0.000000e+00> : vector<2x1024xf32>
    %28 = tpu.matmul %26, %27, %cst_16 {dimension_numbers = #tpu.dot_dimension_numbers<[1], [0], [0], [1], [0, 0, 1, 1], [], []>} : vector<2x128xbf16>, vector<128x1024xbf16>, vector<2x1024xf32> -> vector<2x1024xf32>
    %c0_17 = arith.constant 0 : index
    %c0_18 = arith.constant 0 : index
    %29 = vector.load %arg7[%c0_17, %c0_18] : memref<1x1024xf32, #tpu.memory_space<vmem>>, vector<1x1024xf32>
    %30 = vector.broadcast %29 : vector<1x1024xf32> to vector<2x1024xf32>
    %31 = arith.addf %28, %30 : vector<2x1024xf32>
    %c0_19 = arith.constant 0 : index
    %c0_20 = arith.constant 0 : index
    %32 = vector.load %arg1[%c0_19, %c0_20] : memref<2x1024xf32, #tpu.memory_space<vmem>>, vector<2x1024xf32>
    %33 = arith.truncf %32 : vector<2x1024xf32> to vector<2x1024xbf16>
    %c0_21 = arith.constant 0 : index
    %c0_22 = arith.constant 0 : index
    %34 = vector.load %arg8[%c0_21, %c0_22] : memref<1024x1024xbf16, #tpu.memory_space<vmem>>, vector<1024x1024xbf16>
    %cst_23 = arith.constant dense<0.000000e+00> : vector<2x1024xf32>
    %35 = tpu.matmul %33, %34, %cst_23 {dimension_numbers = #tpu.dot_dimension_numbers<[1], [0], [0], [1], [0, 0, 1, 1], [], []>} : vector<2x1024xbf16>, vector<1024x1024xbf16>, vector<2x1024xf32> -> vector<2x1024xf32>
    %c0_24 = arith.constant 0 : index
    %c0_25 = arith.constant 0 : index
    %36 = vector.load %arg9[%c0_24, %c0_25] : memref<1x1024xf32, #tpu.memory_space<vmem>>, vector<1x1024xf32>
    %37 = vector.broadcast %36 : vector<1x1024xf32> to vector<2x1024xf32>
    %38 = arith.addf %35, %37 : vector<2x1024xf32>
    %39 = arith.truncf %31 : vector<2x1024xf32> to vector<2x1024xbf16>
    %c0_26 = arith.constant 0 : index
    %c0_27 = arith.constant 0 : index
    %40 = vector.load %arg10[%c0_26, %c0_27] : memref<2048x1024xbf16, #tpu.memory_space<vmem>>, vector<1024x1024xbf16>
    %cst_28 = arith.constant dense<0.000000e+00> : vector<2x1024xf32>
    %41 = tpu.matmul %39, %40, %cst_28 {dimension_numbers = #tpu.dot_dimension_numbers<[1], [0], [0], [1], [0, 0, 1, 1], [], []>} : vector<2x1024xbf16>, vector<1024x1024xbf16>, vector<2x1024xf32> -> vector<2x1024xf32>
    %42 = arith.truncf %38 : vector<2x1024xf32> to vector<2x1024xbf16>
    %c1024 = arith.constant 1024 : index
    %c0_29 = arith.constant 0 : index
    %43 = vector.load %arg10[%c1024, %c0_29] : memref<2048x1024xbf16, #tpu.memory_space<vmem>>, vector<1024x1024xbf16>
    %cst_30 = arith.constant dense<0.000000e+00> : vector<2x1024xf32>
    %44 = tpu.matmul %42, %43, %cst_30 {dimension_numbers = #tpu.dot_dimension_numbers<[1], [0], [0], [1], [0, 0, 1, 1], [], []>} : vector<2x1024xbf16>, vector<1024x1024xbf16>, vector<2x1024xf32> -> vector<2x1024xf32>
    %45 = arith.addf %41, %44 : vector<2x1024xf32>
    %c0_31 = arith.constant 0 : index
    %c0_32 = arith.constant 0 : index
    %46 = vector.load %arg11[%c0_31, %c0_32] : memref<1x1024xf32, #tpu.memory_space<vmem>>, vector<1x1024xf32>
    %47 = vector.broadcast %46 : vector<1x1024xf32> to vector<2x1024xf32>
    %48 = arith.addf %45, %47 : vector<2x1024xf32>
    %49 = arith.negf %48 : vector<2x1024xf32>
    %50 = math.exp %49 : vector<2x1024xf32>
    %cst_33 = arith.constant 1.000000e+00 : f32
    %51 = vector.broadcast %cst_33 : f32 to vector<2x1024xf32>
    %52 = arith.addf %51, %50 : vector<2x1024xf32>
    %53 = arith.divf %51, %52 : vector<2x1024xf32>
    %54 = arith.mulf %53, %31 : vector<2x1024xf32>
    %cst_34 = arith.constant 1.000000e+00 : f32
    %55 = vector.broadcast %cst_34 : f32 to vector<2x1024xf32>
    %56 = arith.subf %55, %53 : vector<2x1024xf32>
    %57 = arith.mulf %56, %38 : vector<2x1024xf32>
    %58 = arith.addf %54, %57 : vector<2x1024xf32>
    %59 = arith.mulf %58, %58 : vector<2x1024xf32>
    %cst_35 = arith.constant dense<0.000000e+00> : vector<2xf32>
    %60 = vector.multi_reduction <add>, %59, %cst_35 [1] : vector<2x1024xf32> to vector<2xf32>
    %61 = vector.shape_cast %60 : vector<2xf32> to vector<2x1xf32>
    %62 = math.sqrt %61 : vector<2x1xf32>
    %cst_36 = arith.constant 9.99999993E-9 : f32
    %63 = vector.broadcast %cst_36 : f32 to vector<2x1xf32>
    %64 = arith.addf %62, %63 : vector<2x1xf32>
    %65 = tpu.reciprocal %64 {approx = true} : vector<2x1xf32> -> vector<2x1xf32>
    %66 = vector.broadcast %65 : vector<2x1xf32> to vector<2x1024xf32>
    %67 = arith.mulf %58, %66 : vector<2x1024xf32>
    %c0_37 = arith.constant 0 : index
    %c0_38 = arith.constant 0 : index
    %68 = vector.load %arg12[%c0_37, %c0_38] : memref<2x1024xf32, #tpu.memory_space<vmem>>, vector<2x1024xf32>
    tpu.vector_store %arg12[%c0_37, %c0_38], %67 {strides = array<i32>} : memref<2x1024xf32, #tpu.memory_space<vmem>>, vector<2x1024xf32>,
    return
  }
}

</mosaic_0001>

<llo_original>
// kernel: encoder_image_forward.4
$region0: #{encoder_image_forward.4}
  #allocation0 [shape = 'u32[]', space=smem, size = 0x4, offset = 0x4, fixed_abs, tag = 'smem constant byte address 0x4 - core index']
  #allocation1 [shape = 'u32[144,128]{1,0:T(1,128)}', space=vmem, size = 0x12000, scoped, tag = 'internal scratch']
  %s0 = inlined_call_operand.vmem [shape: f32[8,27], index: 0, kind: input, shape index: {}]
  %s1 = inlined_call_operand.vmem [shape: f32[27,512], index: 1, kind: input, shape index: {}]
  %s2 = inlined_call_operand.vmem [shape: f32[8,1], index: 2, kind: input, shape index: {}]
  %s3 = inlined_call_operand.vmem [shape: f32[8,512], index: 3, kind: output, shape index: {}]
  %s4 = sld [smem:[#allocation0]]
  $region83: #{encoder_image_forward.4} parent=0
    _
  %s6 = ssub.s32 1, %s4
  %s7 = scalar_select 0, %s6, %s4
  $region1: #{encoder_image_forward.4} parent=0
    #allocation2 [shape = 'u8[32768]{0}', space=vmem, size = 0x8000, scoped, tag = 'input window, operand 1']
    loop: start=0, step=1, limit=6
    $region2: #{encoder_image_forward.4} parent=1 // loop_pre_header
      _
    $region3: #{encoder_image_forward.4} parent=1 // loop_header
      %s9 = sphi 0, %s13
      %p10 = scmp.ge.s32.totalorder %s9, 6
      %s17 = sphi 0, %s17
      %s19 = sphi 0, %s17
      %s20 = sphi 0, %s19
      %s34 = sphi 0, %s20
      %s40 = sphi 0, %s42
      %s43 = sphi 0, %s40
      %s44 = sphi 0, %s43
      %s60 = sphi 0, %s44
      %s64 = sphi 0, %s64
      %s66 = sphi 0, %s64
      %s67 = sphi 0, %s66
      %s81 = sphi 0, %s67
      %s87 = sphi 0, %s89
      %s90 = sphi 0, %s87
      %s91 = sphi 0, %s90
      %s107 = sphi 0, %s91
    $region4: #{encoder_image_forward.4} parent=1 // loop_header_branch
      %12 = sbr.rel (%p10) target = $region8
    $region5: #{encoder_image_forward.4} parent=1 // loop_body
      %s14 = ssub.s32 %s9, 1
      %s15 = ssub.s32 %s9, 2
      %s16 = sadd.s32 %s9, 1
      %s18 = sadd.s32 %s17, 1
      %p21 = scmp.eq.s32.totalorder %s9, 3
      %p22 = scmp.ne.s32.totalorder %s17, %s19
      %p23 = scmp.eq.s32.totalorder %s9, 0
      %p24 = por %p22, %p23
      %p25 = scmp.ne.s32.totalorder %s17, %s19
      %p26 = scmp.eq.s32.totalorder %s14, 3
      %p27 = por %p25, %p26
      %p28 = scmp.ne.s32.totalorder %s19, %s20
      %p29 = scmp.eq.s32.totalorder %s14, 0
      %p30 = por %p28, %p29
      %p31 = scmp.ne.s32.totalorder %s19, %s20
      %p32 = scmp.eq.s32.totalorder %s15, 3
      %p33 = por %p31, %p32
      %p35 = scmp.ne.s32.totalorder %s20, %s34
      %p36 = scmp.eq.s32.totalorder %s15, 0
      %p37 = por %p35, %p36
      %s38 = ssub.s32 %s9, %s16
      %p39 = scmp.eq.s32.totalorder %s38, 0
      %s41 = sadd.s32 %s40, 1
      %s42 = scalar_select %p39, %s40, %s41
      %p45 = pneg %p39
      %p46 = scmp.eq.s32.totalorder %s9, 3
      %p47 = por %p45, %p46
      %p48 = scmp.ne.s32.totalorder %s40, %s43
      %p49 = scmp.eq.s32.totalorder %s9, 0
      %p50 = por %p48, %p49
      %p51 = scmp.ne.s32.totalorder %s40, %s43
      %p52 = scmp.eq.s32.totalorder %s14, 3
      %p53 = por %p51, %p52
      %p54 = scmp.ne.s32.totalorder %s43, %s44
      %p55 = scmp.eq.s32.totalorder %s14, 0
      %p56 = por %p54, %p55
      %p57 = scmp.ne.s32.totalorder %s43, %s44
      %p58 = scmp.eq.s32.totalorder %s15, 3
      %p59 = por %p57, %p58
      %p61 = scmp.ne.s32.totalorder %s44, %s60
      %p62 = scmp.eq.s32.totalorder %s15, 0
      %p63 = por %p61, %p62
      %s65 = sadd.s32 %s64, 1
      %p68 = scmp.eq.s32.totalorder %s9, 3
      %p69 = scmp.ne.s32.totalorder %s64, %s66
      %p70 = scmp.eq.s32.totalorder %s9, 0
      %p71 = por %p69, %p70
      %p72 = scmp.ne.s32.totalorder %s64, %s66
      %p73 = scmp.eq.s32.totalorder %s14, 3
      %p74 = por %p72, %p73
      %p75 = scmp.ne.s32.totalorder %s66, %s67
      %p76 = scmp.eq.s32.totalorder %s14, 0
      %p77 = por %p75, %p76
      %p78 = scmp.ne.s32.totalorder %s66, %s67
      %p79 = scmp.eq.s32.totalorder %s15, 3
      %p80 = por %p78, %p79
      %p82 = scmp.ne.s32.totalorder %s67, %s81
      %p83 = scmp.eq.s32.totalorder %s15, 0
      %p84 = por %p82, %p83
      %s85 = ssub.s32 %s9, %s16
      %p86 = scmp.eq.s32.totalorder %s85, 0
      %s88 = sadd.s32 %s87, 1
      %s89 = scalar_select %p86, %s87, %s88
      %p92 = pneg %p86
      %p93 = scmp.eq.s32.totalorder %s9, 3
      %p94 = por %p92, %p93
      %p95 = scmp.ne.s32.totalorder %s87, %s90
      %p96 = scmp.eq.s32.totalorder %s9, 0
      %p97 = por %p95, %p96
      %p98 = scmp.ne.s32.totalorder %s87, %s90
      %p99 = scmp.eq.s32.totalorder %s14, 3
      %p100 = por %p98, %p99
      %p101 = scmp.ne.s32.totalorder %s90, %s91
      %p102 = scmp.eq.s32.totalorder %s14, 0
      %p103 = por %p101, %p102
      %p104 = scmp.ne.s32.totalorder %s90, %s91
      %p105 = scmp.eq.s32.totalorder %s15, 3
      %p106 = por %p104, %p105
      %p108 = scmp.ne.s32.totalorder %s91, %s107
      %p109 = scmp.eq.s32.totalorder %s15, 0
      %p110 = por %p108, %p109
      %p111 = scmp.le.s32.totalorder 1, %s9
      %p112 = scmp.lt.s32.totalorder %s9, 5
      %p113 = pnand %p111, %p112
      %p114 = pneg %p113
      // Predicated region
      $region9: #{encoder_image_forward.4} parent=5 // pred_check
        _
      $region10: #{encoder_image_forward.4} parent=5 // pred_check_branch
        %116 = sbr.rel (%p113) target = $region12
      $region11: #{encoder_image_forward.4} parent=5 // pred_region
        %s117 = ssub.s32 %s9, 1
        // Predicated region
        $region13: #{encoder_image_forward.4} parent=11 // pred_check
          %p118 = pneg %p30
        $region14: #{encoder_image_forward.4} parent=11 // pred_check_branch
          %120 = sbr.rel (%p118) target = $region16
        $region15: #{encoder_image_forward.4} parent=11 // pred_region
          _
        $region16: #{encoder_image_forward.4} parent=11 // pred_fallthru
          _
        // Predicated region
        $region17: #{encoder_image_forward.4} parent=11 // pred_check
          %p121 = pneg %p77
        $region18: #{encoder_image_forward.4} parent=11 // pred_check_branch
          %123 = sbr.rel (%p121) target = $region20
        $region19: #{encoder_image_forward.4} parent=11 // pred_region
          _
        $region20: #{encoder_image_forward.4} parent=11 // pred_fallthru
          _
      $region12: #{encoder_image_forward.4} parent=5 // pred_fallthru
        _
      %p124 = scmp.lt.s32.totalorder %s9, 4
      // Predicated region
      $region21: #{encoder_image_forward.4} parent=5 // pred_check
        %p125 = pneg %p124
      $region22: #{encoder_image_forward.4} parent=5 // pred_check_branch
        %127 = sbr.rel (%p125) target = $region24
      $region23: #{encoder_image_forward.4} parent=5 // pred_region
        // Predicated region
        $region25: #{encoder_image_forward.4} parent=23 // pred_check
          %p128 = pneg %p50
        $region26: #{encoder_image_forward.4} parent=23 // pred_check_branch
          %130 = sbr.rel (%p128) target = $region28
        $region27: #{encoder_image_forward.4} parent=23 // pred_region
          %s131 = sand.u32 %s40, 1
          %s132 = sand.u32 %s40, 1
          %s133 = smul.addr %s132, 32
          %s134 = scalar_lea.vmem [#allocation2], %s133
          %s135 = smul.addr %s9, 8
          %s136 = scalar_lea.vmem %s1, %s135
          // Predicated region
          $region29: #{encoder_image_forward.4} parent=27 // pred_check
            _
          $region30: #{encoder_image_forward.4} parent=27 // pred_check_branch
            %138 = sbr.rel (0) target = $region32
          $region31: #{encoder_image_forward.4} parent=27 // pred_region
            // Predicated region
            $region33: #{encoder_image_forward.4} parent=31 // pred_check
              _
            $region34: #{encoder_image_forward.4} parent=31 // pred_check_branch
              %140 = sbr.rel (0) target = $region36
            $region35: #{encoder_image_forward.4} parent=31 // pred_region
              // Predicated region
              $region48: #{encoder_image_forward.4} parent=35 // pred_check
                _
              $region49: #{encoder_image_forward.4} parent=35 // pred_check_branch
                %162 = sbr.rel (0) target = $region51
              $region50: #{encoder_image_forward.4} parent=35 // pred_region
                loop: start=0, step=1, limit=1
                $region52: #{encoder_image_forward.4} parent=50 // loop_pre_header
                  _
                $region53: #{encoder_image_forward.4} parent=50 // loop_header
                  %s164 = sphi 0, %s168
                  %p165 = scmp.ge.s32.totalorder %s164, 1
                  %s169 = sphi %s136, %s136
                  %s170 = sphi %s134, %s134
                $region54: #{encoder_image_forward.4} parent=50 // loop_header_branch
                  %167 = sbr.rel (%p165) target = $region58
                $region55: #{encoder_image_forward.4} parent=50 // loop_body
                  %v171 = vld [vmem:[%s169] sm:$0xff]
                  %172 = vst [vmem:[%s170] sm:$0xff] %v171
                  %v173 = vld [vmem:[%s169 + $0x20] sm:$0xff]
                  %174 = vst [vmem:[%s170 + $0x8] sm:$0xff] %v173
                  %v175 = vld [vmem:[%s169 + $0x40] sm:$0xff]
                  %176 = vst [vmem:[%s170 + $0x10] sm:$0xff] %v175
                  %v177 = vld [vmem:[%s169 + $0x60] sm:$0xff]
                  %178 = vst [vmem:[%s170 + $0x18] sm:$0xff] %v177
                $region56: #{encoder_image_forward.4} parent=50 // loop_footer
                  %s168 = sadd.s32 1, %s164
                $region57: #{encoder_image_forward.4} parent=50 // loop_footer_branch
                  %163 = sbr.rel target = $region53
                $region58: #{encoder_image_forward.4} parent=50 // loop_exit
                  _
              $region51: #{encoder_image_forward.4} parent=35 // pred_fallthru
                _
              // Predicated region
              $region59: #{encoder_image_forward.4} parent=35 // pred_check
                _
              $region60: #{encoder_image_forward.4} parent=35 // pred_check_branch
                %180 = sbr.rel target = $region62
              $region61: #{encoder_image_forward.4} parent=35 // pred_region
                _
              $region62: #{encoder_image_forward.4} parent=35 // pred_fallthru
                _
            $region36: #{encoder_image_forward.4} parent=31 // pred_fallthru
              _
            // Predicated region
            $region37: #{encoder_image_forward.4} parent=31 // pred_check
              _
            $region38: #{encoder_image_forward.4} parent=31 // pred_check_branch
              %142 = sbr.rel target = $region40
            $region39: #{encoder_image_forward.4} parent=31 // pred_region
              %s144 = ssub.s32 256, 1
              loop: start=0, step=1, limit=1
              $region41: #{encoder_image_forward.4} parent=39 // loop_pre_header
                _
              $region42: #{encoder_image_forward.4} parent=39 // loop_header
                %s146 = sphi 0, %s150
                %p147 = scmp.ge.s32.totalorder %s146, 1
                %s151 = sphi %s136, %s136
                %s152 = sphi %s134, %s134
              $region43: #{encoder_image_forward.4} parent=39 // loop_header_branch
                %149 = sbr.rel (%p147) target = $region47
              $region44: #{encoder_image_forward.4} parent=39 // loop_body
                %v153 = vld [vmem:[%s151] sm:%s144]
                %154 = vst [vmem:[%s152] sm:%s144] %v153
                %v155 = vld [vmem:[%s151 + $0x20] sm:%s144]
                %156 = vst [vmem:[%s152 + $0x8] sm:%s144] %v155
                %v157 = vld [vmem:[%s151 + $0x40] sm:%s144]
                %158 = vst [vmem:[%s152 + $0x10] sm:%s144] %v157
                %v159 = vld [vmem:[%s151 + $0x60] sm:%s144]
                %160 = vst [vmem:[%s152 + $0x18] sm:%s144] %v159
              $region45: #{encoder_image_forward.4} parent=39 // loop_footer
                %s150 = sadd.s32 1, %s146
              $region46: #{encoder_image_forward.4} parent=39 // loop_footer_branch
                %145 = sbr.rel target = $region42
              $region47: #{encoder_image_forward.4} parent=39 // loop_exit
                _
            $region40: #{encoder_image_forward.4} parent=31 // pred_fallthru
              _
          $region32: #{encoder_image_forward.4} parent=27 // pred_fallthru
            _
          %181 = vnop
        $region28: #{encoder_image_forward.4} parent=23 // pred_fallthru
          _
      $region24: #{encoder_image_forward.4} parent=5 // pred_fallthru
        _
      %p182 = scmp.le.s32.totalorder 1, %s9
      %p183 = scmp.lt.s32.totalorder %s9, 5
      %p184 = pnand %p182, %p183
      %p185 = pneg %p184
      // Predicated region
      $region63: #{encoder_image_forward.4} parent=5 // pred_check
        _
      $region64: #{encoder_image_forward.4} parent=5 // pred_check_branch
        %187 = sbr.rel (%p184) target = $region66
      $region65: #{encoder_image_forward.4} parent=5 // pred_region
        %s188 = ssub.s32 %s9, 1
        %s189 = sand.u32 %s43, 1
        %s190 = sand.u32 %s43, 1
        %s191 = smul.addr %s190, 32
        %s192 = scalar_lea.vmem [#allocation2], %s191
        // Predicated region
        $region67: #{encoder_image_forward.4} parent=65 // pred_check
          %p193 = pneg %p56
        $region68: #{encoder_image_forward.4} parent=65 // pred_check_branch
          %195 = sbr.rel (%p193) target = $region70
        $region69: #{encoder_image_forward.4} parent=65 // pred_region
          _
        $region70: #{encoder_image_forward.4} parent=65 // pred_fallthru
          _
        %p196 = pneg %p30
        %p197 = pneg %p27
        %s198 = sand.u32 %s43, 1
        %s199 = sand.u32 %s43, 1
        %s200 = smul.addr %s199, 32
        %s201 = scalar_lea.vmem [#allocation2], %s200
        %p202 = pneg %p56
        %p203 = pneg %p53
        %p204 = pneg %p77
        %p205 = pneg %p74
        %p206 = pneg %p103
        %p207 = pneg %p100
        %p208 = scmp.lt.s32.totalorder %s14, 3
        %s209 = scalar_select %p208, %s14, 3
        %s210 = smul.addr %s209, 8
        %s211 = scalar_lea.vmem %s3, %s210
        %p212 = scmp.lt.s32.totalorder %s14, 3
        %s213 = scalar_select %p212, %s14, 3
        %s214 = smul.addr %s213, 8
        %s215 = scalar_lea.vmem %s3, %s214
        %v216 = vld [vmem:[%s0] sm:$0xff]
        %v217 = vld [vmem:[%s192] sm:$0xff]
        %v218 = vld [vmem:[%s192 + $0x8] sm:$0xff]
        %v219 = vld [vmem:[%s192 + $0x10] sm:$0xff]
        %v220 = vld [vmem:[%s192 + $0x18] sm:$0x7]
        %v221 = vld [vmem:[%s2] sm:$0xff]
        %223 = vset.pattern.permute.xlu0 0
        %224 = vperm.xlu0 %223, %v221
        %v225 = vpop.permute.xlu0 %224
        %vm227 = vcmask 220160
        %v229 = vsel %vm227, %v216, 0
        %vm231 = vcmask 1042432
        %v233 = vsel %vm231, %v220, 0
        %235 = vmatprep.subr.mxu0 0.0
        %236 = vmatpush1.msra.mxu0 0.0
        %237 = vmatprep.subr.mxu0 0.0
        %238 = vmatpush1.msra.mxu0 0.0
        %239 = vmatprep.subr.mxu0 0.0
        %240 = vmatpush1.msra.mxu0 0.0
        %241 = vmatprep.subr.mxu0 0.0
        %242 = vmatpush1.msra.mxu0 0.0
        %243 = vmatprep.subr.mxu0 0.0
        %244 = vmatpush1.msra.mxu0 0.0
        %245 = vmatprep.subr.mxu0 0.0
        %246 = vmatpush1.msra.mxu0 0.0
        %247 = vmatprep.subr.mxu0 0.0
        %248 = vmatpush1.msra.mxu0 0.0
        %249 = vmatprep.subr.mxu0 0.0
        %250 = vmatpush1.msra.mxu0 0.0
        %251 = vmatprep.subr.mxu0 0.0
        %252 = vmatpush1.msra.mxu0 0.0
        %253 = vmatprep.subr.mxu0 0.0
        %254 = vmatpush1.msra.mxu0 0.0
        %255 = vmatprep.subr.mxu0 0.0
        %256 = vmatpush1.msra.mxu0 0.0
        %257 = vmatprep.subr.mxu0 0.0
        %258 = vmatpush1.msra.mxu0 0.0
        %259 = vmatprep.subr.mxu0 0.0
        %260 = vmatpush1.msra.mxu0 %v233
        %261 = vmatprep.subr.mxu0 0.0
        %262 = vmatpush1.msra.mxu0 %v219
        %263 = vmatprep.subr.mxu0 0.0
        %264 = vmatpush1.msra.mxu0 %v218
        %265 = vmatprep.subr.mxu0 0.0
        %266 = vmatpush1.msra.mxu0 %v217
        %267 = vmatprep.subr.mxu0 0.0
        %268 = vmatpush2.msra.mxu0 0.0
        %269 = vmatprep.subr.mxu0 0.0
        %270 = vmatpush2.msra.mxu0 0.0
        %271 = vmatprep.subr.mxu0 0.0
        %272 = vmatpush2.msra.mxu0 0.0
        %273 = vmatprep.subr.mxu0 0.0
        %274 = vmatpush2.msra.mxu0 0.0
        %275 = vmatprep.subr.mxu0 0.0
        %276 = vmatpush2.msra.mxu0 0.0
        %277 = vmatprep.subr.mxu0 0.0
        %278 = vmatpush2.msra.mxu0 0.0
        %279 = vmatprep.subr.mxu0 0.0
        %280 = vmatpush2.msra.mxu0 0.0
        %281 = vmatprep.subr.mxu0 0.0
        %282 = vmatpush2.msra.mxu0 0.0
        %283 = vmatprep.subr.mxu0 0.0
        %284 = vmatpush2.msra.mxu0 0.0
        %285 = vmatprep.subr.mxu0 0.0
        %286 = vmatpush2.msra.mxu0 0.0
        %287 = vmatprep.subr.mxu0 0.0
        %288 = vmatpush2.msra.mxu0 0.0
        %289 = vmatprep.subr.mxu0 0.0
        %290 = vmatpush2.msra.mxu0 0.0
        %291 = vmatprep.subr.mxu0 0.0
        %292 = vmatpush2.msra.mxu0 0.0
        %293 = vmatprep.subr.mxu0 0.0
        %294 = vmatpush2.msra.mxu0 0.0
        %295 = vmatprep.subr.mxu0 0.0
        %296 = vmatpush2.msra.mxu0 0.0
        %297 = vmatprep.subr.mxu0 0.0
        %298 = vmatpush2.msra.mxu0 0.0
        %299 = vmatprep.mubr.f32.mxu0 0.0
        %300 = vmatmul.mubr.f32.gmra.mxu0 %v229
        %v301 = vpop.f32.mrf.mxu0
        %v302 = vadd.f32 %v225, %v301
        %v303 = vpop.f32.mrf.mxu0
        %304 = vdwg.mxu0
        %v305 = vmax.f32 %v302, 0.0
        %306 = vst [vmem:[%s215] sm:$0xff] %v305
        %p307 = scmp.lt.s32.totalorder %s14, 3
        %s308 = scalar_select %p307, %s14, 3
        %s309 = smul.addr %s308, 8
        %s310 = scalar_lea.vmem %s3, %s309
        // Predicated region
        $region71: #{encoder_image_forward.4} parent=65 // pred_check
          %p311 = pneg %p100
        $region72: #{encoder_image_forward.4} parent=65 // pred_check_branch
          %313 = sbr.rel (%p311) target = $region74
        $region73: #{encoder_image_forward.4} parent=65 // pred_region
          _
        $region74: #{encoder_image_forward.4} parent=65 // pred_fallthru
          _
      $region66: #{encoder_image_forward.4} parent=5 // pred_fallthru
        _
      %p314 = scmp.le.s32.totalorder 2, %s9
      // Predicated region
      $region75: #{encoder_image_forward.4} parent=5 // pred_check
        %p315 = pneg %p314
      $region76: #{encoder_image_forward.4} parent=5 // pred_check_branch
        %317 = sbr.rel (%p315) target = $region78
      $region77: #{encoder_image_forward.4} parent=5 // pred_region
        %s318 = ssub.s32 %s9, 2
        // Predicated region
        $region79: #{encoder_image_forward.4} parent=77 // pred_check
          %p319 = pneg %p106
        $region80: #{encoder_image_forward.4} parent=77 // pred_check_branch
          %321 = sbr.rel (%p319) target = $region82
        $region81: #{encoder_image_forward.4} parent=77 // pred_region
          %p322 = scmp.lt.s32.totalorder %s15, 3
          %s323 = scalar_select %p322, %s15, 3
          %s324 = smul.addr %s323, 8
          %s325 = scalar_lea.vmem %s3, %s324
        $region82: #{encoder_image_forward.4} parent=77 // pred_fallthru
          _
      $region78: #{encoder_image_forward.4} parent=5 // pred_fallthru
        _
    $region6: #{encoder_image_forward.4} parent=1 // loop_footer
      %s13 = sadd.s32 1, %s9
    $region7: #{encoder_image_forward.4} parent=1 // loop_footer_branch
      %8 = sbr.rel target = $region3
    $region8: #{encoder_image_forward.4} parent=1 // loop_exit
      _

// kernel: encoder_image_forward.5
$region0: #{encoder_image_forward.5}
  #allocation0 [shape = 'u32[]', space=smem, size = 0x4, offset = 0x4, fixed_abs, tag = 'smem constant byte address 0x4 - core index']
  #allocation1 [shape = 'u32[144,128]{1,0:T(1,128)}', space=vmem, size = 0x12000, scoped, tag = 'internal scratch']
  %s0 = inlined_call_operand.vmem [shape: f32[8,72], index: 0, kind: input, shape index: {}]
  %s1 = inlined_call_operand.vmem [shape: f32[72,512], index: 1, kind: input, shape index: {}]
  %s2 = inlined_call_operand.vmem [shape: f32[8,1], index: 2, kind: input, shape index: {}]
  %s3 = inlined_call_operand.vmem [shape: f32[8,512], index: 3, kind: output, shape index: {}]
  %s4 = sld [smem:[#allocation0]]
  $region83: #{encoder_image_forward.5} parent=0
    _
  %s6 = ssub.s32 1, %s4
  %s7 = scalar_select 0, %s6, %s4
  $region1: #{encoder_image_forward.5} parent=0
    #allocation2 [shape = 'u8[73728]{0}', space=vmem, size = 0x12000, scoped, tag = 'input window, operand 1']
    loop: start=0, step=1, limit=6
    $region2: #{encoder_image_forward.5} parent=1 // loop_pre_header
      _
    $region3: #{encoder_image_forward.5} parent=1 // loop_header
      %s9 = sphi 0, %s13
      %p10 = scmp.ge.s32.totalorder %s9, 6
      %s17 = sphi 0, %s17
      %s19 = sphi 0, %s17
      %s20 = sphi 0, %s19
      %s34 = sphi 0, %s20
      %s40 = sphi 0, %s42
      %s43 = sphi 0, %s40
      %s44 = sphi 0, %s43
      %s60 = sphi 0, %s44
      %s64 = sphi 0, %s64
      %s66 = sphi 0, %s64
      %s67 = sphi 0, %s66
      %s81 = sphi 0, %s67
      %s87 = sphi 0, %s89
      %s90 = sphi 0, %s87
      %s91 = sphi 0, %s90
      %s107 = sphi 0, %s91
    $region4: #{encoder_image_forward.5} parent=1 // loop_header_branch
      %12 = sbr.rel (%p10) target = $region8
    $region5: #{encoder_image_forward.5} parent=1 // loop_body
      %s14 = ssub.s32 %s9, 1
      %s15 = ssub.s32 %s9, 2
      %s16 = sadd.s32 %s9, 1
      %s18 = sadd.s32 %s17, 1
      %p21 = scmp.eq.s32.totalorder %s9, 3
      %p22 = scmp.ne.s32.totalorder %s17, %s19
      %p23 = scmp.eq.s32.totalorder %s9, 0
      %p24 = por %p22, %p23
      %p25 = scmp.ne.s32.totalorder %s17, %s19
      %p26 = scmp.eq.s32.totalorder %s14, 3
      %p27 = por %p25, %p26
      %p28 = scmp.ne.s32.totalorder %s19, %s20
      %p29 = scmp.eq.s32.totalorder %s14, 0
      %p30 = por %p28, %p29
      %p31 = scmp.ne.s32.totalorder %s19, %s20
      %p32 = scmp.eq.s32.totalorder %s15, 3
      %p33 = por %p31, %p32
      %p35 = scmp.ne.s32.totalorder %s20, %s34
      %p36 = scmp.eq.s32.totalorder %s15, 0
      %p37 = por %p35, %p36
      %s38 = ssub.s32 %s9, %s16
      %p39 = scmp.eq.s32.totalorder %s38, 0
      %s41 = sadd.s32 %s40, 1
      %s42 = scalar_select %p39, %s40, %s41
      %p45 = pneg %p39
      %p46 = scmp.eq.s32.totalorder %s9, 3
      %p47 = por %p45, %p46
      %p48 = scmp.ne.s32.totalorder %s40, %s43
      %p49 = scmp.eq.s32.totalorder %s9, 0
      %p50 = por %p48, %p49
      %p51 = scmp.ne.s32.totalorder %s40, %s43
      %p52 = scmp.eq.s32.totalorder %s14, 3
      %p53 = por %p51, %p52
      %p54 = scmp.ne.s32.totalorder %s43, %s44
      %p55 = scmp.eq.s32.totalorder %s14, 0
      %p56 = por %p54, %p55
      %p57 = scmp.ne.s32.totalorder %s43, %s44
      %p58 = scmp.eq.s32.totalorder %s15, 3
      %p59 = por %p57, %p58
      %p61 = scmp.ne.s32.totalorder %s44, %s60
      %p62 = scmp.eq.s32.totalorder %s15, 0
      %p63 = por %p61, %p62
      %s65 = sadd.s32 %s64, 1
      %p68 = scmp.eq.s32.totalorder %s9, 3
      %p69 = scmp.ne.s32.totalorder %s64, %s66
      %p70 = scmp.eq.s32.totalorder %s9, 0
      %p71 = por %p69, %p70
      %p72 = scmp.ne.s32.totalorder %s64, %s66
      %p73 = scmp.eq.s32.totalorder %s14, 3
      %p74 = por %p72, %p73
      %p75 = scmp.ne.s32.totalorder %s66, %s67
      %p76 = scmp.eq.s32.totalorder %s14, 0
      %p77 = por %p75, %p76
      %p78 = scmp.ne.s32.totalorder %s66, %s67
      %p79 = scmp.eq.s32.totalorder %s15, 3
      %p80 = por %p78, %p79
      %p82 = scmp.ne.s32.totalorder %s67, %s81
      %p83 = scmp.eq.s32.totalorder %s15, 0
      %p84 = por %p82, %p83
      %s85 = ssub.s32 %s9, %s16
      %p86 = scmp.eq.s32.totalorder %s85, 0
      %s88 = sadd.s32 %s87, 1
      %s89 = scalar_select %p86, %s87, %s88
      %p92 = pneg %p86
      %p93 = scmp.eq.s32.totalorder %s9, 3
      %p94 = por %p92, %p93
      %p95 = scmp.ne.s32.totalorder %s87, %s90
      %p96 = scmp.eq.s32.totalorder %s9, 0
      %p97 = por %p95, %p96
      %p98 = scmp.ne.s32.totalorder %s87, %s90
      %p99 = scmp.eq.s32.totalorder %s14, 3
      %p100 = por %p98, %p99
      %p101 = scmp.ne.s32.totalorder %s90, %s91
      %p102 = scmp.eq.s32.totalorder %s14, 0
      %p103 = por %p101, %p102
      %p104 = scmp.ne.s32.totalorder %s90, %s91
      %p105 = scmp.eq.s32.totalorder %s15, 3
      %p106 = por %p104, %p105
      %p108 = scmp.ne.s32.totalorder %s91, %s107
      %p109 = scmp.eq.s32.totalorder %s15, 0
      %p110 = por %p108, %p109
      %p111 = scmp.le.s32.totalorder 1, %s9
      %p112 = scmp.lt.s32.totalorder %s9, 5
      %p113 = pnand %p111, %p112
      %p114 = pneg %p113
      // Predicated region
      $region9: #{encoder_image_forward.5} parent=5 // pred_check
        _
      $region10: #{encoder_image_forward.5} parent=5 // pred_check_branch
        %116 = sbr.rel (%p113) target = $region12
      $region11: #{encoder_image_forward.5} parent=5 // pred_region
        %s117 = ssub.s32 %s9, 1
        // Predicated region
        $region13: #{encoder_image_forward.5} parent=11 // pred_check
          %p118 = pneg %p30
        $region14: #{encoder_image_forward.5} parent=11 // pred_check_branch
          %120 = sbr.rel (%p118) target = $region16
        $region15: #{encoder_image_forward.5} parent=11 // pred_region
          _
        $region16: #{encoder_image_forward.5} parent=11 // pred_fallthru
          _
        // Predicated region
        $region17: #{encoder_image_forward.5} parent=11 // pred_check
          %p121 = pneg %p77
        $region18: #{encoder_image_forward.5} parent=11 // pred_check_branch
          %123 = sbr.rel (%p121) target = $region20
        $region19: #{encoder_image_forward.5} parent=11 // pred_region
          _
        $region20: #{encoder_image_forward.5} parent=11 // pred_fallthru
          _
      $region12: #{encoder_image_forward.5} parent=5 // pred_fallthru
        _
      %p124 = scmp.lt.s32.totalorder %s9, 4
      // Predicated region
      $region21: #{encoder_image_forward.5} parent=5 // pred_check
        %p125 = pneg %p124
      $region22: #{encoder_image_forward.5} parent=5 // pred_check_branch
        %127 = sbr.rel (%p125) target = $region24
      $region23: #{encoder_image_forward.5} parent=5 // pred_region
        // Predicated region
        $region25: #{encoder_image_forward.5} parent=23 // pred_check
          %p128 = pneg %p50
        $region26: #{encoder_image_forward.5} parent=23 // pred_check_branch
          %130 = sbr.rel (%p128) target = $region28
        $region27: #{encoder_image_forward.5} parent=23 // pred_region
          %s131 = sand.u32 %s40, 1
          %s132 = sand.u32 %s40, 1
          %s133 = smul.addr %s132, 72
          %s134 = scalar_lea.vmem [#allocation2], %s133
          %s135 = smul.addr %s9, 8
          %s136 = scalar_lea.vmem %s1, %s135
          // Predicated region
          $region29: #{encoder_image_forward.5} parent=27 // pred_check
            _
          $region30: #{encoder_image_forward.5} parent=27 // pred_check_branch
            %138 = sbr.rel (0) target = $region32
          $region31: #{encoder_image_forward.5} parent=27 // pred_region
            // Predicated region
            $region33: #{encoder_image_forward.5} parent=31 // pred_check
              _
            $region34: #{encoder_image_forward.5} parent=31 // pred_check_branch
              %140 = sbr.rel (0) target = $region36
            $region35: #{encoder_image_forward.5} parent=31 // pred_region
              // Predicated region
              $region48: #{encoder_image_forward.5} parent=35 // pred_check
                _
              $region49: #{encoder_image_forward.5} parent=35 // pred_check_branch
                %172 = sbr.rel (0) target = $region51
              $region50: #{encoder_image_forward.5} parent=35 // pred_region
                loop: start=0, step=1, limit=1
                $region52: #{encoder_image_forward.5} parent=50 // loop_pre_header
                  _
                $region53: #{encoder_image_forward.5} parent=50 // loop_header
                  %s174 = sphi 0, %s178
                  %p175 = scmp.ge.s32.totalorder %s174, 1
                  %s179 = sphi %s136, %s136
                  %s180 = sphi %s134, %s134
                $region54: #{encoder_image_forward.5} parent=50 // loop_header_branch
                  %177 = sbr.rel (%p175) target = $region58
                $region55: #{encoder_image_forward.5} parent=50 // loop_body
                  %v181 = vld [vmem:[%s179] sm:$0xff]
                  %182 = vst [vmem:[%s180] sm:$0xff] %v181
                  %v183 = vld [vmem:[%s179 + $0x20] sm:$0xff]
                  %184 = vst [vmem:[%s180 + $0x8] sm:$0xff] %v183
                  %v185 = vld [vmem:[%s179 + $0x40] sm:$0xff]
                  %186 = vst [vmem:[%s180 + $0x10] sm:$0xff] %v185
                  %v187 = vld [vmem:[%s179 + $0x60] sm:$0xff]
                  %188 = vst [vmem:[%s180 + $0x18] sm:$0xff] %v187
                  %v189 = vld [vmem:[%s179 + $0x80] sm:$0xff]
                  %190 = vst [vmem:[%s180 + $0x20] sm:$0xff] %v189
                  %v191 = vld [vmem:[%s179 + $0xa0] sm:$0xff]
                  %192 = vst [vmem:[%s180 + $0x28] sm:$0xff] %v191
                  %v193 = vld [vmem:[%s179 + $0xc0] sm:$0xff]
                  %194 = vst [vmem:[%s180 + $0x30] sm:$0xff] %v193
                  %v195 = vld [vmem:[%s179 + $0xe0] sm:$0xff]
                  %196 = vst [vmem:[%s180 + $0x38] sm:$0xff] %v195
                  %v197 = vld [vmem:[%s179 + $0x100] sm:$0xff]
                  %198 = vst [vmem:[%s180 + $0x40] sm:$0xff] %v197
                $region56: #{encoder_image_forward.5} parent=50 // loop_footer
                  %s178 = sadd.s32 1, %s174
                $region57: #{encoder_image_forward.5} parent=50 // loop_footer_branch
                  %173 = sbr.rel target = $region53
                $region58: #{encoder_image_forward.5} parent=50 // loop_exit
                  _
              $region51: #{encoder_image_forward.5} parent=35 // pred_fallthru
                _
              // Predicated region
              $region59: #{encoder_image_forward.5} parent=35 // pred_check
                _
              $region60: #{encoder_image_forward.5} parent=35 // pred_check_branch
                %200 = sbr.rel target = $region62
              $region61: #{encoder_image_forward.5} parent=35 // pred_region
                _
              $region62: #{encoder_image_forward.5} parent=35 // pred_fallthru
                _
            $region36: #{encoder_image_forward.5} parent=31 // pred_fallthru
              _
            // Predicated region
            $region37: #{encoder_image_forward.5} parent=31 // pred_check
              _
            $region38: #{encoder_image_forward.5} parent=31 // pred_check_branch
              %142 = sbr.rel target = $region40
            $region39: #{encoder_image_forward.5} parent=31 // pred_region
              %s144 = ssub.s32 256, 1
              loop: start=0, step=1, limit=1
              $region41: #{encoder_image_forward.5} parent=39 // loop_pre_header
                _
              $region42: #{encoder_image_forward.5} parent=39 // loop_header
                %s146 = sphi 0, %s150
                %p147 = scmp.ge.s32.totalorder %s146, 1
                %s151 = sphi %s136, %s136
                %s152 = sphi %s134, %s134
              $region43: #{encoder_image_forward.5} parent=39 // loop_header_branch
                %149 = sbr.rel (%p147) target = $region47
              $region44: #{encoder_image_forward.5} parent=39 // loop_body
                %v153 = vld [vmem:[%s151] sm:%s144]
                %154 = vst [vmem:[%s152] sm:%s144] %v153
                %v155 = vld [vmem:[%s151 + $0x20] sm:%s144]
                %156 = vst [vmem:[%s152 + $0x8] sm:%s144] %v155
                %v157 = vld [vmem:[%s151 + $0x40] sm:%s144]
                %158 = vst [vmem:[%s152 + $0x10] sm:%s144] %v157
                %v159 = vld [vmem:[%s151 + $0x60] sm:%s144]
                %160 = vst [vmem:[%s152 + $0x18] sm:%s144] %v159
                %v161 = vld [vmem:[%s151 + $0x80] sm:%s144]
                %162 = vst [vmem:[%s152 + $0x20] sm:%s144] %v161
                %v163 = vld [vmem:[%s151 + $0xa0] sm:%s144]
                %164 = vst [vmem:[%s152 + $0x28] sm:%s144] %v163
                %v165 = vld [vmem:[%s151 + $0xc0] sm:%s144]
                %166 = vst [vmem:[%s152 + $0x30] sm:%s144] %v165
                %v167 = vld [vmem:[%s151 + $0xe0] sm:%s144]
                %168 = vst [vmem:[%s152 + $0x38] sm:%s144] %v167
                %v169 = vld [vmem:[%s151 + $0x100] sm:%s144]
                %170 = vst [vmem:[%s152 + $0x40] sm:%s144] %v169
              $region45: #{encoder_image_forward.5} parent=39 // loop_footer
                %s150 = sadd.s32 1, %s146
              $region46: #{encoder_image_forward.5} parent=39 // loop_footer_branch
                %145 = sbr.rel target = $region42
              $region47: #{encoder_image_forward.5} parent=39 // loop_exit
                _
            $region40: #{encoder_image_forward.5} parent=31 // pred_fallthru
              _
          $region32: #{encoder_image_forward.5} parent=27 // pred_fallthru
            _
          %201 = vnop
        $region28: #{encoder_image_forward.5} parent=23 // pred_fallthru
          _
      $region24: #{encoder_image_forward.5} parent=5 // pred_fallthru
        _
      %p202 = scmp.le.s32.totalorder 1, %s9
      %p203 = scmp.lt.s32.totalorder %s9, 5
      %p204 = pnand %p202, %p203
      %p205 = pneg %p204
      // Predicated region
      $region63: #{encoder_image_forward.5} parent=5 // pred_check
        _
      $region64: #{encoder_image_forward.5} parent=5 // pred_check_branch
        %207 = sbr.rel (%p204) target = $region66
      $region65: #{encoder_image_forward.5} parent=5 // pred_region
        %s208 = ssub.s32 %s9, 1
        %s209 = sand.u32 %s43, 1
        %s210 = sand.u32 %s43, 1
        %s211 = smul.addr %s210, 72
        %s212 = scalar_lea.vmem [#allocation2], %s211
        // Predicated region
        $region67: #{encoder_image_forward.5} parent=65 // pred_check
          %p213 = pneg %p56
        $region68: #{encoder_image_forward.5} parent=65 // pred_check_branch
          %215 = sbr.rel (%p213) target = $region70
        $region69: #{encoder_image_forward.5} parent=65 // pred_region
          _
        $region70: #{encoder_image_forward.5} parent=65 // pred_fallthru
          _
        %p216 = pneg %p30
        %p217 = pneg %p27
        %s218 = sand.u32 %s43, 1
        %s219 = sand.u32 %s43, 1
        %s220 = smul.addr %s219, 72
        %s221 = scalar_lea.vmem [#allocation2], %s220
        %p222 = pneg %p56
        %p223 = pneg %p53
        %p224 = pneg %p77
        %p225 = pneg %p74
        %p226 = pneg %p103
        %p227 = pneg %p100
        %p228 = scmp.lt.s32.totalorder %s14, 3
        %s229 = scalar_select %p228, %s14, 3
        %s230 = smul.addr %s229, 8
        %s231 = scalar_lea.vmem %s3, %s230
        %p232 = scmp.lt.s32.totalorder %s14, 3
        %s233 = scalar_select %p232, %s14, 3
        %s234 = smul.addr %s233, 8
        %s235 = scalar_lea.vmem %s3, %s234
        %v236 = vld [vmem:[%s0] sm:$0xff]
        %v237 = vld [vmem:[%s212] sm:$0xff]
        %v238 = vld [vmem:[%s212 + $0x8] sm:$0xff]
        %v239 = vld [vmem:[%s212 + $0x10] sm:$0xff]
        %v240 = vld [vmem:[%s212 + $0x18] sm:$0xff]
        %v241 = vld [vmem:[%s212 + $0x20] sm:$0xff]
        %v242 = vld [vmem:[%s212 + $0x28] sm:$0xff]
        %v243 = vld [vmem:[%s212 + $0x30] sm:$0xff]
        %v244 = vld [vmem:[%s212 + $0x38] sm:$0xff]
        %v245 = vld [vmem:[%s212 + $0x40] sm:$0xff]
        %v246 = vld [vmem:[%s2] sm:$0xff]
        %248 = vset.pattern.permute.xlu0 0
        %249 = vperm.xlu0 %248, %v246
        %v250 = vpop.permute.xlu0 %249
        %vm252 = vcmask 588800
        %v254 = vsel %vm252, %v236, 0
        %256 = vmatprep.subr.mxu0 0.0
        %257 = vmatpush1.msra.mxu0 0.0
        %258 = vmatprep.subr.mxu0 0.0
        %259 = vmatpush1.msra.mxu0 0.0
        %260 = vmatprep.subr.mxu0 0.0
        %261 = vmatpush1.msra.mxu0 0.0
        %262 = vmatprep.subr.mxu0 0.0
        %263 = vmatpush1.msra.mxu0 0.0
        %264 = vmatprep.subr.mxu0 0.0
        %265 = vmatpush1.msra.mxu0 0.0
        %266 = vmatprep.subr.mxu0 0.0
        %267 = vmatpush1.msra.mxu0 0.0
        %268 = vmatprep.subr.mxu0 0.0
        %269 = vmatpush1.msra.mxu0 0.0
        %270 = vmatprep.subr.mxu0 0.0
        %271 = vmatpush1.msra.mxu0 %v245
        %272 = vmatprep.subr.mxu0 0.0
        %273 = vmatpush1.msra.mxu0 %v244
        %274 = vmatprep.subr.mxu0 0.0
        %275 = vmatpush1.msra.mxu0 %v243
        %276 = vmatprep.subr.mxu0 0.0
        %277 = vmatpush1.msra.mxu0 %v242
        %278 = vmatprep.subr.mxu0 0.0
        %279 = vmatpush1.msra.mxu0 %v241
        %280 = vmatprep.subr.mxu0 0.0
        %281 = vmatpush1.msra.mxu0 %v240
        %282 = vmatprep.subr.mxu0 0.0
        %283 = vmatpush1.msra.mxu0 %v239
        %284 = vmatprep.subr.mxu0 0.0
        %285 = vmatpush1.msra.mxu0 %v238
        %286 = vmatprep.subr.mxu0 0.0
        %287 = vmatpush1.msra.mxu0 %v237
        %288 = vmatprep.subr.mxu0 0.0
        %289 = vmatpush2.msra.mxu0 0.0
        %290 = vmatprep.subr.mxu0 0.0
        %291 = vmatpush2.msra.mxu0 0.0
        %292 = vmatprep.subr.mxu0 0.0
        %293 = vmatpush2.msra.mxu0 0.0
        %294 = vmatprep.subr.mxu0 0.0
        %295 = vmatpush2.msra.mxu0 0.0
        %296 = vmatprep.subr.mxu0 0.0
        %297 = vmatpush2.msra.mxu0 0.0
        %298 = vmatprep.subr.mxu0 0.0
        %299 = vmatpush2.msra.mxu0 0.0
        %300 = vmatprep.subr.mxu0 0.0
        %301 = vmatpush2.msra.mxu0 0.0
        %302 = vmatprep.subr.mxu0 0.0
        %303 = vmatpush2.msra.mxu0 0.0
        %304 = vmatprep.subr.mxu0 0.0
        %305 = vmatpush2.msra.mxu0 0.0
        %306 = vmatprep.subr.mxu0 0.0
        %307 = vmatpush2.msra.mxu0 0.0
        %308 = vmatprep.subr.mxu0 0.0
        %309 = vmatpush2.msra.mxu0 0.0
        %310 = vmatprep.subr.mxu0 0.0
        %311 = vmatpush2.msra.mxu0 0.0
        %312 = vmatprep.subr.mxu0 0.0
        %313 = vmatpush2.msra.mxu0 0.0
        %314 = vmatprep.subr.mxu0 0.0
        %315 = vmatpush2.msra.mxu0 0.0
        %316 = vmatprep.subr.mxu0 0.0
        %317 = vmatpush2.msra.mxu0 0.0
        %318 = vmatprep.subr.mxu0 0.0
        %319 = vmatpush2.msra.mxu0 0.0
        %320 = vmatprep.mubr.f32.mxu0 0.0
        %321 = vmatmul.mubr.f32.gmra.mxu0 %v254
        %v322 = vpop.f32.mrf.mxu0
        %v323 = vadd.f32 %v250, %v322
        %v324 = vpop.f32.mrf.mxu0
        %325 = vdwg.mxu0
        %v326 = vmax.f32 %v323, 0.0
        %327 = vst [vmem:[%s235] sm:$0xff] %v326
        %p328 = scmp.lt.s32.totalorder %s14, 3
        %s329 = scalar_select %p328, %s14, 3
        %s330 = smul.addr %s329, 8
        %s331 = scalar_lea.vmem %s3, %s330
        // Predicated region
        $region71: #{encoder_image_forward.5} parent=65 // pred_check
          %p332 = pneg %p100
        $region72: #{encoder_image_forward.5} parent=65 // pred_check_branch
          %334 = sbr.rel (%p332) target = $region74
        $region73: #{encoder_image_forward.5} parent=65 // pred_region
          _
        $region74: #{encoder_image_forward.5} parent=65 // pred_fallthru
          _
      $region66: #{encoder_image_forward.5} parent=5 // pred_fallthru
        _
      %p335 = scmp.le.s32.totalorder 2, %s9
      // Predicated region
      $region75: #{encoder_image_forward.5} parent=5 // pred_check
        %p336 = pneg %p335
      $region76: #{encoder_image_forward.5} parent=5 // pred_check_branch
        %338 = sbr.rel (%p336) target = $region78
      $region77: #{encoder_image_forward.5} parent=5 // pred_region
        %s339 = ssub.s32 %s9, 2
        // Predicated region
        $region79: #{encoder_image_forward.5} parent=77 // pred_check
          %p340 = pneg %p106
        $region80: #{encoder_image_forward.5} parent=77 // pred_check_branch
          %342 = sbr.rel (%p340) target = $region82
        $region81: #{encoder_image_forward.5} parent=77 // pred_region
          %p343 = scmp.lt.s32.totalorder %s15, 3
          %s344 = scalar_select %p343, %s15, 3
          %s345 = smul.addr %s344, 8
          %s346 = scalar_lea.vmem %s3, %s345
        $region82: #{encoder_image_forward.5} parent=77 // pred_fallthru
          _
      $region78: #{encoder_image_forward.5} parent=5 // pred_fallthru
        _
    $region6: #{encoder_image_forward.5} parent=1 // loop_footer
      %s13 = sadd.s32 1, %s9
    $region7: #{encoder_image_forward.5} parent=1 // loop_footer_branch
      %8 = sbr.rel target = $region3
    $region8: #{encoder_image_forward.5} parent=1 // loop_exit
      _

// kernel: encoder_image_forward.6
$region0: #{encoder_image_forward.6}
  #allocation0 [shape = 'u32[]', space=smem, size = 0x4, offset = 0x4, fixed_abs, tag = 'smem constant byte address 0x4 - core index']
  #allocation1 [shape = 'u32[144,128]{1,0:T(1,128)}', space=vmem, size = 0x12000, scoped, tag = 'internal scratch']
  %s0 = inlined_call_operand.vmem [shape: f32[16,72], index: 0, kind: input, shape index: {}]
  %s1 = inlined_call_operand.vmem [shape: f32[72,128], index: 1, kind: input, shape index: {}]
  %s2 = inlined_call_operand.vmem [shape: f32[16,1], index: 2, kind: input, shape index: {}]
  %s3 = inlined_call_operand.vmem [shape: f32[16,128], index: 3, kind: output, shape index: {}]
  %s4 = sld [smem:[#allocation0]]
  $region22: #{encoder_image_forward.6} parent=0
    _
  %s6 = ssub.s32 1, %s4
  %s7 = scalar_select 0, %s6, %s4
  // Predicated region
  $region2: #{encoder_image_forward.6} parent=0 // pred_check
    _
  $region3: #{encoder_image_forward.6} parent=0 // pred_check_branch
    %9 = sbr.rel (0) target = $region5
  $region4: #{encoder_image_forward.6} parent=0 // pred_region
    _
  $region5: #{encoder_image_forward.6} parent=0 // pred_fallthru
    _
  // Predicated region
  $region6: #{encoder_image_forward.6} parent=0 // pred_check
    _
  $region7: #{encoder_image_forward.6} parent=0 // pred_check_branch
    %11 = sbr.rel (0) target = $region9
  $region8: #{encoder_image_forward.6} parent=0 // pred_region
    _
  $region9: #{encoder_image_forward.6} parent=0 // pred_fallthru
    _
  // Predicated region
  $region10: #{encoder_image_forward.6} parent=0 // pred_check
    _
  $region11: #{encoder_image_forward.6} parent=0 // pred_check_branch
    %13 = sbr.rel (0) target = $region13
  $region12: #{encoder_image_forward.6} parent=0 // pred_region
    _
  $region13: #{encoder_image_forward.6} parent=0 // pred_fallthru
    _
  %v14 = vld [vmem:[%s0] sm:$0xff]
  %v15 = vld [vmem:[%s0 + $0x8] sm:$0xff]
  %v16 = vld [vmem:[%s1] sm:$0xff]
  %v17 = vld [vmem:[%s1 + $0x8] sm:$0xff]
  %v18 = vld [vmem:[%s1 + $0x10] sm:$0xff]
  %v19 = vld [vmem:[%s1 + $0x18] sm:$0xff]
  %v20 = vld [vmem:[%s1 + $0x20] sm:$0xff]
  %v21 = vld [vmem:[%s1 + $0x28] sm:$0xff]
  %v22 = vld [vmem:[%s1 + $0x30] sm:$0xff]
  %v23 = vld [vmem:[%s1 + $0x38] sm:$0xff]
  %v24 = vld [vmem:[%s1 + $0x40] sm:$0xff]
  %v25 = vld [vmem:[%s2] sm:$0xff]
  %v26 = vld [vmem:[%s2 + $0x8] sm:$0xff]
  %28 = vset.pattern.permute.xlu0 0
  %29 = vperm.xlu0 %28, %v25
  %v30 = vpop.permute.xlu0 %29
  %33 = vset.pattern.permute.xlu0 0
  %34 = vperm.xlu0 %33, %v26
  %v35 = vpop.permute.xlu0 %34
  %vm37 = vcmask 588800
  %v39 = vsel %vm37, %v14, 0
  %v42 = vsel %vm37, %v15, 0
  %44 = vmatprep.subr.mxu0 0.0
  %45 = vmatpush1.msra.mxu0 0.0
  %46 = vmatprep.subr.mxu0 0.0
  %47 = vmatpush1.msra.mxu0 0.0
  %48 = vmatprep.subr.mxu0 0.0
  %49 = vmatpush1.msra.mxu0 0.0
  %50 = vmatprep.subr.mxu0 0.0
  %51 = vmatpush1.msra.mxu0 0.0
  %52 = vmatprep.subr.mxu0 0.0
  %53 = vmatpush1.msra.mxu0 0.0
  %54 = vmatprep.subr.mxu0 0.0
  %55 = vmatpush1.msra.mxu0 0.0
  %56 = vmatprep.subr.mxu0 0.0
  %57 = vmatpush1.msra.mxu0 0.0
  %58 = vmatprep.subr.mxu0 0.0
  %59 = vmatpush1.msra.mxu0 %v24
  %60 = vmatprep.subr.mxu0 0.0
  %61 = vmatpush1.msra.mxu0 %v23
  %62 = vmatprep.subr.mxu0 0.0
  %63 = vmatpush1.msra.mxu0 %v22
  %64 = vmatprep.subr.mxu0 0.0
  %65 = vmatpush1.msra.mxu0 %v21
  %66 = vmatprep.subr.mxu0 0.0
  %67 = vmatpush1.msra.mxu0 %v20
  %68 = vmatprep.subr.mxu0 0.0
  %69 = vmatpush1.msra.mxu0 %v19
  %70 = vmatprep.subr.mxu0 0.0
  %71 = vmatpush1.msra.mxu0 %v18
  %72 = vmatprep.subr.mxu0 0.0
  %73 = vmatpush1.msra.mxu0 %v17
  %74 = vmatprep.subr.mxu0 0.0
  %75 = vmatpush1.msra.mxu0 %v16
  %76 = vmatprep.subr.mxu0 0.0
  %77 = vmatpush2.msra.mxu0 0.0
  %78 = vmatprep.subr.mxu0 0.0
  %79 = vmatpush2.msra.mxu0 0.0
  %80 = vmatprep.subr.mxu0 0.0
  %81 = vmatpush2.msra.mxu0 0.0
  %82 = vmatprep.subr.mxu0 0.0
  %83 = vmatpush2.msra.mxu0 0.0
  %84 = vmatprep.subr.mxu0 0.0
  %85 = vmatpush2.msra.mxu0 0.0
  %86 = vmatprep.subr.mxu0 0.0
  %87 = vmatpush2.msra.mxu0 0.0
  %88 = vmatprep.subr.mxu0 0.0
  %89 = vmatpush2.msra.mxu0 0.0
  %90 = vmatprep.subr.mxu0 0.0
  %91 = vmatpush2.msra.mxu0 0.0
  %92 = vmatprep.subr.mxu0 0.0
  %93 = vmatpush2.msra.mxu0 0.0
  %94 = vmatprep.subr.mxu0 0.0
  %95 = vmatpush2.msra.mxu0 0.0
  %96 = vmatprep.subr.mxu0 0.0
  %97 = vmatpush2.msra.mxu0 0.0
  %98 = vmatprep.subr.mxu0 0.0
  %99 = vmatpush2.msra.mxu0 0.0
  %100 = vmatprep.subr.mxu0 0.0
  %101 = vmatpush2.msra.mxu0 0.0
  %102 = vmatprep.subr.mxu0 0.0
  %103 = vmatpush2.msra.mxu0 0.0
  %104 = vmatprep.subr.mxu0 0.0
  %105 = vmatpush2.msra.mxu0 0.0
  %106 = vmatprep.subr.mxu0 0.0
  %107 = vmatpush2.msra.mxu0 0.0
  %108 = vmatprep.mubr.f32.mxu0 0.0
  %109 = vmatmul.mubr.f32.gmra.mxu0 %v39
  %v110 = vpop.f32.mrf.mxu0
  %v111 = vadd.f32 %v30, %v110
  %v112 = vpop.f32.mrf.mxu0
  %113 = vmatprep.mubr.f32.mxu0 0.0
  %114 = vmatmul.mubr.f32.gmra.mxu0 %v42
  %v115 = vpop.f32.mrf.mxu0
  %v116 = vadd.f32 %v35, %v115
  %v117 = vpop.f32.mrf.mxu0
  %118 = vdwg.mxu0
  %v119 = vmax.f32 %v111, 0.0
  %v120 = vmax.f32 %v116, 0.0
  %121 = vst [vmem:[%s3] sm:$0xff] %v119
  %122 = vst [vmem:[%s3 + $0x8] sm:$0xff] %v120
  // Predicated region
  $region14: #{encoder_image_forward.6} parent=0 // pred_check
    _
  $region15: #{encoder_image_forward.6} parent=0 // pred_check_branch
    %124 = sbr.rel (0) target = $region17
  $region16: #{encoder_image_forward.6} parent=0 // pred_region
    _
  $region17: #{encoder_image_forward.6} parent=0 // pred_fallthru
    _
  // Predicated region
  $region18: #{encoder_image_forward.6} parent=0 // pred_check
    _
  $region19: #{encoder_image_forward.6} parent=0 // pred_check_branch
    %126 = sbr.rel (0) target = $region21
  $region20: #{encoder_image_forward.6} parent=0 // pred_region
    _
  $region21: #{encoder_image_forward.6} parent=0 // pred_fallthru
    _

// kernel: encoder_image_forward.7
$region0: #{encoder_image_forward.7}
  #allocation0 [shape = 'u32[]', space=smem, size = 0x4, offset = 0x4, fixed_abs, tag = 'smem constant byte address 0x4 - core index']
  #allocation1 [shape = 'u32[144,128]{1,0:T(1,128)}', space=vmem, size = 0x12000, scoped, tag = 'internal scratch']
  %s0 = inlined_call_operand.vmem [shape: f32[2,256], index: 0, kind: input, shape index: {}]
  %s1 = inlined_call_operand.vmem [shape: f32[2,1024], index: 1, kind: input, shape index: {}]
  %s2 = inlined_call_operand.vmem [shape: bf16[256,128], index: 2, kind: input, shape index: {}]
  %s3 = inlined_call_operand.vmem [shape: f32[1,128], index: 3, kind: input, shape index: {}]
  %s4 = inlined_call_operand.vmem [shape: bf16[128,128], index: 4, kind: input, shape index: {}]
  %s5 = inlined_call_operand.vmem [shape: f32[1,128], index: 5, kind: input, shape index: {}]
  %s6 = inlined_call_operand.vmem [shape: bf16[128,1024], index: 6, kind: input, shape index: {}]
  %s7 = inlined_call_operand.vmem [shape: f32[1,1024], index: 7, kind: input, shape index: {}]
  %s8 = inlined_call_operand.vmem [shape: bf16[1024,1024], index: 8, kind: input, shape index: {}]
  %s9 = inlined_call_operand.vmem [shape: f32[1,1024], index: 9, kind: input, shape index: {}]
  %s10 = inlined_call_operand.vmem [shape: bf16[2048,1024], index: 10, kind: input, shape index: {}]
  %s11 = inlined_call_operand.vmem [shape: f32[1,1024], index: 11, kind: input, shape index: {}]
  %s12 = inlined_call_operand.hbm [shape: f32[2,1024], index: 12, kind: output, shape index: {}]
  %s13 = sld [smem:[#allocation0]]
  $region58: #{encoder_image_forward.7} parent=0
    _
  %s15 = ssub.s32 1, %s13
  %s16 = scalar_select 0, %s15, %s13
  $region1: #{encoder_image_forward.7} parent=0
    #allocation2 [shape = 'u8[8192]{0}', space=vmem, size = 0x2000, scoped, tag = 'output window, operand 0, single buffered']
    #allocation3 [shape = 's32[1]{0}', space=sflag, size = 0x4, scoped, tag = 'scoped memory for encoder_image_forward.7']
    %17 = vsyncpa [#allocation3], 0
    // Predicated region
    $region2: #{encoder_image_forward.7} parent=1 // pred_check
      _
    $region3: #{encoder_image_forward.7} parent=1 // pred_check_branch
      %19 = sbr.rel (0) target = $region5
    $region4: #{encoder_image_forward.7} parent=1 // pred_region
      _
    $region5: #{encoder_image_forward.7} parent=1 // pred_fallthru
      _
    // Predicated region
    $region6: #{encoder_image_forward.7} parent=1 // pred_check
      _
    $region7: #{encoder_image_forward.7} parent=1 // pred_check_branch
      %21 = sbr.rel (0) target = $region9
    $region8: #{encoder_image_forward.7} parent=1 // pred_region
      _
    $region9: #{encoder_image_forward.7} parent=1 // pred_fallthru
      _
    // Predicated region
    $region10: #{encoder_image_forward.7} parent=1 // pred_check
      _
    $region11: #{encoder_image_forward.7} parent=1 // pred_check_branch
      %23 = sbr.rel (0) target = $region13
    $region12: #{encoder_image_forward.7} parent=1 // pred_region
      _
    $region13: #{encoder_image_forward.7} parent=1 // pred_fallthru
      _
    // Predicated region
    $region14: #{encoder_image_forward.7} parent=1 // pred_check
      _
    $region15: #{encoder_image_forward.7} parent=1 // pred_check_branch
      %25 = sbr.rel (0) target = $region17
    $region16: #{encoder_image_forward.7} parent=1 // pred_region
      _
    $region17: #{encoder_image_forward.7} parent=1 // pred_fallthru
      _
    // Predicated region
    $region18: #{encoder_image_forward.7} parent=1 // pred_check
      _
    $region19: #{encoder_image_forward.7} parent=1 // pred_check_branch
      %27 = sbr.rel (0) target = $region21
    $region20: #{encoder_image_forward.7} parent=1 // pred_region
      _
    $region21: #{encoder_image_forward.7} parent=1 // pred_fallthru
      _
    // Predicated region
    $region22: #{encoder_image_forward.7} parent=1 // pred_check
      _
    $region23: #{encoder_image_forward.7} parent=1 // pred_check_branch
      %29 = sbr.rel (0) target = $region25
    $region24: #{encoder_image_forward.7} parent=1 // pred_region
      _
    $region25: #{encoder_image_forward.7} parent=1 // pred_fallthru
      _
    // Predicated region
    $region26: #{encoder_image_forward.7} parent=1 // pred_check
      _
    $region27: #{encoder_image_forward.7} parent=1 // pred_check_branch
      %31 = sbr.rel (0) target = $region29
    $region28: #{encoder_image_forward.7} parent=1 // pred_region
      _
    $region29: #{encoder_image_forward.7} parent=1 // pred_fallthru
      _
    // Predicated region
    $region30: #{encoder_image_forward.7} parent=1 // pred_check
      _
    $region31: #{encoder_image_forward.7} parent=1 // pred_check_branch
      %33 = sbr.rel (0) target = $region33
    $region32: #{encoder_image_forward.7} parent=1 // pred_region
      _
    $region33: #{encoder_image_forward.7} parent=1 // pred_fallthru
      _
    // Predicated region
    $region34: #{encoder_image_forward.7} parent=1 // pred_check
      _
    $region35: #{encoder_image_forward.7} parent=1 // pred_check_branch
      %35 = sbr.rel (0) target = $region37
    $region36: #{encoder_image_forward.7} parent=1 // pred_region
      _
    $region37: #{encoder_image_forward.7} parent=1 // pred_fallthru
      _
    // Predicated region
    $region38: #{encoder_image_forward.7} parent=1 // pred_check
      _
    $region39: #{encoder_image_forward.7} parent=1 // pred_check_branch
      %37 = sbr.rel (0) target = $region41
    $region40: #{encoder_image_forward.7} parent=1 // pred_region
      _
    $region41: #{encoder_image_forward.7} parent=1 // pred_fallthru
      _
    // Predicated region
    $region42: #{encoder_image_forward.7} parent=1 // pred_check
      _
    $region43: #{encoder_image_forward.7} parent=1 // pred_check_branch
      %39 = sbr.rel (0) target = $region45
    $region44: #{encoder_image_forward.7} parent=1 // pred_region
      _
    $region45: #{encoder_image_forward.7} parent=1 // pred_fallthru
      _
    // Predicated region
    $region46: #{encoder_image_forward.7} parent=1 // pred_check
      _
    $region47: #{encoder_image_forward.7} parent=1 // pred_check_branch
      %41 = sbr.rel (0) target = $region49
    $region48: #{encoder_image_forward.7} parent=1 // pred_region
      _
    $region49: #{encoder_image_forward.7} parent=1 // pred_fallthru
      _
    %v43 = vld [vmem:[%s0] sm:$0xf]
    %v46 = vunpack.c.l.s4 1983009808
    %v47 = vunpack.c.0.s8 %v46
    %v48 = vlaneseq
    %v49 = vshrl.u32 %v48, 7
    %v50 = vsub.s32 %v47, %v49
    %v51 = vrot.slane %v43, %v50
    %v52 = vcombine.high %v51, %v51
    %v55 = vpack.c.bf16 %v51, %v51
    %v56 = vpack.c.bf16 %v52, %v52
    %v57 = vld [vmem:[%s2] sm:$0xf]
    %v58 = vld [vmem:[%s2 + $0x4] sm:$0xf]
    %v59 = vld [vmem:[%s2 + $0x8] sm:$0xf]
    %v60 = vld [vmem:[%s2 + $0xc] sm:$0xf]
    %v61 = vld [vmem:[%s2 + $0x10] sm:$0xf]
    %v62 = vld [vmem:[%s2 + $0x14] sm:$0xf]
    %v63 = vld [vmem:[%s2 + $0x18] sm:$0xf]
    %v64 = vld [vmem:[%s2 + $0x1c] sm:$0xf]
    %v65 = vld [vmem:[%s2 + $0x20] sm:$0xf]
    %v66 = vld [vmem:[%s2 + $0x24] sm:$0xf]
    %v67 = vld [vmem:[%s2 + $0x28] sm:$0xf]
    %v68 = vld [vmem:[%s2 + $0x2c] sm:$0xf]
    %v69 = vld [vmem:[%s2 + $0x30] sm:$0xf]
    %v70 = vld [vmem:[%s2 + $0x34] sm:$0xf]
    %v71 = vld [vmem:[%s2 + $0x38] sm:$0xf]
    %v72 = vld [vmem:[%s2 + $0x3c] sm:$0xf]
    %v73 = vld [vmem:[%s2 + $0x40] sm:$0xf]
    %v74 = vld [vmem:[%s2 + $0x44] sm:$0xf]
    %v75 = vld [vmem:[%s2 + $0x48] sm:$0xf]
    %v76 = vld [vmem:[%s2 + $0x4c] sm:$0xf]
    %v77 = vld [vmem:[%s2 + $0x50] sm:$0xf]
    %v78 = vld [vmem:[%s2 + $0x54] sm:$0xf]
    %v79 = vld [vmem:[%s2 + $0x58] sm:$0xf]
    %v80 = vld [vmem:[%s2 + $0x5c] sm:$0xf]
    %v81 = vld [vmem:[%s2 + $0x60] sm:$0xf]
    %v82 = vld [vmem:[%s2 + $0x64] sm:$0xf]
    %v83 = vld [vmem:[%s2 + $0x68] sm:$0xf]
    %v84 = vld [vmem:[%s2 + $0x6c] sm:$0xf]
    %v85 = vld [vmem:[%s2 + $0x70] sm:$0xf]
    %v86 = vld [vmem:[%s2 + $0x74] sm:$0xf]
    %v87 = vld [vmem:[%s2 + $0x78] sm:$0xf]
    %v88 = vld [vmem:[%s2 + $0x7c] sm:$0xf]
    %v89 = vld [vmem:[%s3] sm:$0x1]
    %v91 = vlaneseq
    %v92 = vshrl.u32 %v91, 7
    %v93 = vsub.s32 0, %v92
    %v94 = vrot.slane %v89, %v93
    %v128 = vunpack.c.l.b16 %v57
    %v129 = vunpack.c.l.b16 %v58
    %v130 = vunpack.c.l.b16 %v59
    %v131 = vunpack.c.l.b16 %v60
    %v132 = vunpack.c.l.b16 %v61
    %v133 = vunpack.c.l.b16 %v62
    %v134 = vunpack.c.l.b16 %v63
    %v135 = vunpack.c.l.b16 %v64
    %v136 = vunpack.c.l.b16 %v65
    %v137 = vunpack.c.l.b16 %v66
    %v138 = vunpack.c.l.b16 %v67
    %v139 = vunpack.c.l.b16 %v68
    %v140 = vunpack.c.l.b16 %v69
    %v141 = vunpack.c.l.b16 %v70
    %v142 = vunpack.c.l.b16 %v71
    %v143 = vunpack.c.l.b16 %v72
    %v144 = vunpack.c.l.b16 %v73
    %v145 = vunpack.c.l.b16 %v74
    %v146 = vunpack.c.l.b16 %v75
    %v147 = vunpack.c.l.b16 %v76
    %v148 = vunpack.c.l.b16 %v77
    %v149 = vunpack.c.l.b16 %v78
    %v150 = vunpack.c.l.b16 %v79
    %v151 = vunpack.c.l.b16 %v80
    %v152 = vunpack.c.l.b16 %v81
    %v153 = vunpack.c.l.b16 %v82
    %v154 = vunpack.c.l.b16 %v83
    %v155 = vunpack.c.l.b16 %v84
    %v156 = vunpack.c.l.b16 %v85
    %v157 = vunpack.c.l.b16 %v86
    %v158 = vunpack.c.l.b16 %v87
    %v159 = vunpack.c.l.b16 %v88
    %v160 = vpack.c.b16 %v129, %v128
    %v161 = vpack.c.b16 %v131, %v130
    %v162 = vpack.c.b16 %v133, %v132
    %v163 = vpack.c.b16 %v135, %v134
    %v164 = vpack.c.b16 %v137, %v136
    %v165 = vpack.c.b16 %v139, %v138
    %v166 = vpack.c.b16 %v141, %v140
    %v167 = vpack.c.b16 %v143, %v142
    %v168 = vpack.c.b16 %v145, %v144
    %v169 = vpack.c.b16 %v147, %v146
    %v170 = vpack.c.b16 %v149, %v148
    %v171 = vpack.c.b16 %v151, %v150
    %v172 = vpack.c.b16 %v153, %v152
    %v173 = vpack.c.b16 %v155, %v154
    %v174 = vpack.c.b16 %v157, %v156
    %v175 = vpack.c.b16 %v159, %v158
    %192 = vmatprep.subr.bf16.mxu0 0
    %193 = vmatpush1.bf16.msra.mxu0 %v167
    %194 = vmatprep.subr.bf16.mxu0 0
    %195 = vmatpush1.bf16.msra.mxu0 %v166
    %196 = vmatprep.subr.bf16.mxu0 0
    %197 = vmatpush1.bf16.msra.mxu0 %v165
    %198 = vmatprep.subr.bf16.mxu0 0
    %199 = vmatpush1.bf16.msra.mxu0 %v164
    %200 = vmatprep.subr.bf16.mxu0 0
    %201 = vmatpush1.bf16.msra.mxu0 %v163
    %202 = vmatprep.subr.bf16.mxu0 0
    %203 = vmatpush1.bf16.msra.mxu0 %v162
    %204 = vmatprep.subr.bf16.mxu0 0
    %205 = vmatpush1.bf16.msra.mxu0 %v161
    %206 = vmatprep.subr.bf16.mxu0 0
    %207 = vmatpush1.bf16.msra.mxu0 %v160
    %208 = vmatprep.subr.bf16.mxu0 0
    %209 = vmatpush2.bf16.msra.mxu0 %v175
    %210 = vmatprep.subr.bf16.mxu0 0
    %211 = vmatpush2.bf16.msra.mxu0 %v174
    %212 = vmatprep.subr.bf16.mxu0 0
    %213 = vmatpush2.bf16.msra.mxu0 %v173
    %214 = vmatprep.subr.bf16.mxu0 0
    %215 = vmatpush2.bf16.msra.mxu0 %v172
    %216 = vmatprep.subr.bf16.mxu0 0
    %217 = vmatpush2.bf16.msra.mxu0 %v171
    %218 = vmatprep.subr.bf16.mxu0 0
    %219 = vmatpush2.bf16.msra.mxu0 %v170
    %220 = vmatprep.subr.bf16.mxu0 0
    %221 = vmatpush2.bf16.msra.mxu0 %v169
    %222 = vmatprep.subr.bf16.mxu0 0
    %223 = vmatpush2.bf16.msra.mxu0 %v168
    %224 = vmatprep.mubr.bf16.mxu0 %v56
    %225 = vmatmul.mubr.bf16.gmra.mxu0 %v55
    %v226 = vpop.f32.mrf.mxu0
    %v227 = vadd.f32 %v94, %v226
    %v228 = vpop.f32.mrf.mxu0
    %v229 = vpop.f32.mrf.mxu0
    %v230 = vpop.f32.mrf.mxu0
    %231 = vdwg.mxu0
    %v232 = vmax.f32 %v227, 0.0
    %v233 = vpack.c.bf16 %v232, %v232
    %v234 = vld [vmem:[%s4] sm:$0xf]
    %v235 = vld [vmem:[%s4 + $0x4] sm:$0xf]
    %v236 = vld [vmem:[%s4 + $0x8] sm:$0xf]
    %v237 = vld [vmem:[%s4 + $0xc] sm:$0xf]
    %v238 = vld [vmem:[%s4 + $0x10] sm:$0xf]
    %v239 = vld [vmem:[%s4 + $0x14] sm:$0xf]
    %v240 = vld [vmem:[%s4 + $0x18] sm:$0xf]
    %v241 = vld [vmem:[%s4 + $0x1c] sm:$0xf]
    %v242 = vld [vmem:[%s4 + $0x20] sm:$0xf]
    %v243 = vld [vmem:[%s4 + $0x24] sm:$0xf]
    %v244 = vld [vmem:[%s4 + $0x28] sm:$0xf]
    %v245 = vld [vmem:[%s4 + $0x2c] sm:$0xf]
    %v246 = vld [vmem:[%s4 + $0x30] sm:$0xf]
    %v247 = vld [vmem:[%s4 + $0x34] sm:$0xf]
    %v248 = vld [vmem:[%s4 + $0x38] sm:$0xf]
    %v249 = vld [vmem:[%s4 + $0x3c] sm:$0xf]
    %v250 = vld [vmem:[%s5] sm:$0x1]
    %v252 = vlaneseq
    %v253 = vshrl.u32 %v252, 7
    %v254 = vsub.s32 0, %v253
    %v255 = vrot.slane %v250, %v254
    %v273 = vunpack.c.l.b16 %v234
    %v274 = vunpack.c.l.b16 %v235
    %v275 = vunpack.c.l.b16 %v236
    %v276 = vunpack.c.l.b16 %v237
    %v277 = vunpack.c.l.b16 %v238
    %v278 = vunpack.c.l.b16 %v239
    %v279 = vunpack.c.l.b16 %v240
    %v280 = vunpack.c.l.b16 %v241
    %v281 = vunpack.c.l.b16 %v242
    %v282 = vunpack.c.l.b16 %v243
    %v283 = vunpack.c.l.b16 %v244
    %v284 = vunpack.c.l.b16 %v245
    %v285 = vunpack.c.l.b16 %v246
    %v286 = vunpack.c.l.b16 %v247
    %v287 = vunpack.c.l.b16 %v248
    %v288 = vunpack.c.l.b16 %v249
    %v289 = vpack.c.b16 %v274, %v273
    %v290 = vpack.c.b16 %v276, %v275
    %v291 = vpack.c.b16 %v278, %v277
    %v292 = vpack.c.b16 %v280, %v279
    %v293 = vpack.c.b16 %v282, %v281
    %v294 = vpack.c.b16 %v284, %v283
    %v295 = vpack.c.b16 %v286, %v285
    %v296 = vpack.c.b16 %v288, %v287
    %305 = vmatprep.subr.bf16.mxu0 0
    %306 = vmatpush1.bf16.msra.mxu0 %v296
    %307 = vmatprep.subr.bf16.mxu0 0
    %308 = vmatpush1.bf16.msra.mxu0 %v295
    %309 = vmatprep.subr.bf16.mxu0 0
    %310 = vmatpush1.bf16.msra.mxu0 %v294
    %311 = vmatprep.subr.bf16.mxu0 0
    %312 = vmatpush1.bf16.msra.mxu0 %v293
    %313 = vmatprep.subr.bf16.mxu0 0
    %314 = vmatpush1.bf16.msra.mxu0 %v292
    %315 = vmatprep.subr.bf16.mxu0 0
    %316 = vmatpush1.bf16.msra.mxu0 %v291
    %317 = vmatprep.subr.bf16.mxu0 0
    %318 = vmatpush1.bf16.msra.mxu0 %v290
    %319 = vmatprep.subr.bf16.mxu0 0
    %320 = vmatpush1.bf16.msra.mxu0 %v289
    %321 = vmatprep.subr.bf16.mxu0 0
    %322 = vmatpush2.bf16.msra.mxu0 0
    %323 = vmatprep.subr.bf16.mxu0 0
    %324 = vmatpush2.bf16.msra.mxu0 0
    %325 = vmatprep.subr.bf16.mxu0 0
    %326 = vmatpush2.bf16.msra.mxu0 0
    %327 = vmatprep.subr.bf16.mxu0 0
    %328 = vmatpush2.bf16.msra.mxu0 0
    %329 = vmatprep.subr.bf16.mxu0 0
    %330 = vmatpush2.bf16.msra.mxu0 0
    %331 = vmatprep.subr.bf16.mxu0 0
    %332 = vmatpush2.bf16.msra.mxu0 0
    %333 = vmatprep.subr.bf16.mxu0 0
    %334 = vmatpush2.bf16.msra.mxu0 0
    %335 = vmatprep.subr.bf16.mxu0 0
    %336 = vmatpush2.bf16.msra.mxu0 0
    %337 = vmatprep.mubr.bf16.mxu0 0
    %338 = vmatmul.mubr.bf16.gmra.mxu0 %v233
    %v339 = vpop.f32.mrf.mxu0
    %v340 = vadd.f32 %v255, %v339
    %v341 = vpop.f32.mrf.mxu0
    %v342 = vpop.f32.mrf.mxu0
    %v343 = vpop.f32.mrf.mxu0
    %344 = vdwg.mxu0
    %v345 = vmax.f32 %v340, 0.0
    %v346 = vmul.f32 %v345, %v345
    %vm347 = vcmask 1041408
    %v348 = vsel %vm347, %v346, 0.0
    %349 = vadd.xlane.f32.xlu0 %v348
    %v350 = vpop.xlane.xlu0 %349
    %v351 = vrsqrt.pop %v350
    %v352 = vmul.f32 %v350, %v351
    %vm353 = vcmp.eq.f32.partialorder %v350, inf
    %v354 = vsel %vm353, %v350, %v352
    %vm355 = vcmp.eq.f32.partialorder %v350, 0.0
    %v356 = vand.u32 %v350, 2147483648
    %v357 = vsel %vm355, %v356, %v354
    %v358 = vadd.f32 %v357, 1e-08
    %v359 = vrcp.pop %v358
    %v360 = vmul.f32 %v345, %v359
    %v361 = vpack.c.bf16 %v360, %v360
    %v362 = vld [vmem:[%s6] sm:$0xff]
    %v363 = vld [vmem:[%s6 + $0x8] sm:$0xff]
    %v364 = vld [vmem:[%s6 + $0x10] sm:$0xff]
    %v365 = vld [vmem:[%s6 + $0x18] sm:$0xff]
    %v366 = vld [vmem:[%s6 + $0x20] sm:$0xff]
    %v367 = vld [vmem:[%s6 + $0x28] sm:$0xff]
    %v368 = vld [vmem:[%s6 + $0x30] sm:$0xff]
    %v369 = vld [vmem:[%s6 + $0x38] sm:$0xff]
    %v370 = vld [vmem:[%s6 + $0x40] sm:$0xff]
    %v371 = vld [vmem:[%s6 + $0x48] sm:$0xff]
    %v372 = vld [vmem:[%s6 + $0x50] sm:$0xff]
    %v373 = vld [vmem:[%s6 + $0x58] sm:$0xff]
    %v374 = vld [vmem:[%s6 + $0x60] sm:$0xff]
    %v375 = vld [vmem:[%s6 + $0x68] sm:$0xff]
    %v376 = vld [vmem:[%s6 + $0x70] sm:$0xff]
    %v377 = vld [vmem:[%s6 + $0x78] sm:$0xff]
    %v378 = vld [vmem:[%s6 + $0x80] sm:$0xff]
    %v379 = vld [vmem:[%s6 + $0x88] sm:$0xff]
    %v380 = vld [vmem:[%s6 + $0x90] sm:$0xff]
    %v381 = vld [vmem:[%s6 + $0x98] sm:$0xff]
    %v382 = vld [vmem:[%s6 + $0xa0] sm:$0xff]
    %v383 = vld [vmem:[%s6 + $0xa8] sm:$0xff]
    %v384 = vld [vmem:[%s6 + $0xb0] sm:$0xff]
    %v385 = vld [vmem:[%s6 + $0xb8] sm:$0xff]
    %v386 = vld [vmem:[%s6 + $0xc0] sm:$0xff]
    %v387 = vld [vmem:[%s6 + $0xc8] sm:$0xff]
    %v388 = vld [vmem:[%s6 + $0xd0] sm:$0xff]
    %v389 = vld [vmem:[%s6 + $0xd8] sm:$0xff]
    %v390 = vld [vmem:[%s6 + $0xe0] sm:$0xff]
    %v391 = vld [vmem:[%s6 + $0xe8] sm:$0xff]
    %v392 = vld [vmem:[%s6 + $0xf0] sm:$0xff]
    %v393 = vld [vmem:[%s6 + $0xf8] sm:$0xff]
    %v394 = vld [vmem:[%s6 + $0x100] sm:$0xff]
    %v395 = vld [vmem:[%s6 + $0x108] sm:$0xff]
    %v396 = vld [vmem:[%s6 + $0x110] sm:$0xff]
    %v397 = vld [vmem:[%s6 + $0x118] sm:$0xff]
    %v398 = vld [vmem:[%s6 + $0x120] sm:$0xff]
    %v399 = vld [vmem:[%s6 + $0x128] sm:$0xff]
    %v400 = vld [vmem:[%s6 + $0x130] sm:$0xff]
    %v401 = vld [vmem:[%s6 + $0x138] sm:$0xff]
    %v402 = vld [vmem:[%s6 + $0x140] sm:$0xff]
    %v403 = vld [vmem:[%s6 + $0x148] sm:$0xff]
    %v404 = vld [vmem:[%s6 + $0x150] sm:$0xff]
    %v405 = vld [vmem:[%s6 + $0x158] sm:$0xff]
    %v406 = vld [vmem:[%s6 + $0x160] sm:$0xff]
    %v407 = vld [vmem:[%s6 + $0x168] sm:$0xff]
    %v408 = vld [vmem:[%s6 + $0x170] sm:$0xff]
    %v409 = vld [vmem:[%s6 + $0x178] sm:$0xff]
    %v410 = vld [vmem:[%s6 + $0x180] sm:$0xff]
    %v411 = vld [vmem:[%s6 + $0x188] sm:$0xff]
    %v412 = vld [vmem:[%s6 + $0x190] sm:$0xff]
    %v413 = vld [vmem:[%s6 + $0x198] sm:$0xff]
    %v414 = vld [vmem:[%s6 + $0x1a0] sm:$0xff]
    %v415 = vld [vmem:[%s6 + $0x1a8] sm:$0xff]
    %v416 = vld [vmem:[%s6 + $0x1b0] sm:$0xff]
    %v417 = vld [vmem:[%s6 + $0x1b8] sm:$0xff]
    %v418 = vld [vmem:[%s6 + $0x1c0] sm:$0xff]
    %v419 = vld [vmem:[%s6 + $0x1c8] sm:$0xff]
    %v420 = vld [vmem:[%s6 + $0x1d0] sm:$0xff]
    %v421 = vld [vmem:[%s6 + $0x1d8] sm:$0xff]
    %v422 = vld [vmem:[%s6 + $0x1e0] sm:$0xff]
    %v423 = vld [vmem:[%s6 + $0x1e8] sm:$0xff]
    %v424 = vld [vmem:[%s6 + $0x1f0] sm:$0xff]
    %v425 = vld [vmem:[%s6 + $0x1f8] sm:$0xff]
    %v426 = vld [vmem:[%s7] sm:$0xff]
    %v428 = vlaneseq
    %v429 = vshrl.u32 %v428, 7
    %v430 = vsub.s32 0, %v429
    %v431 = vrot.slane %v426, %v430
    %v432 = vlaneseq
    %v433 = vshrl.u32 %v432, 7
    %v434 = vsub.s32 1, %v433
    %v435 = vrot.slane %v426, %v434
    %v436 = vlaneseq
    %v437 = vshrl.u32 %v436, 7
    %v438 = vsub.s32 2, %v437
    %v439 = vrot.slane %v426, %v438
    %v440 = vlaneseq
    %v441 = vshrl.u32 %v440, 7
    %v442 = vsub.s32 3, %v441
    %v443 = vrot.slane %v426, %v442
    %v444 = vlaneseq
    %v445 = vshrl.u32 %v444, 7
    %v446 = vsub.s32 4, %v445
    %v447 = vrot.slane %v426, %v446
    %v448 = vlaneseq
    %v449 = vshrl.u32 %v448, 7
    %v450 = vsub.s32 5, %v449
    %v451 = vrot.slane %v426, %v450
    %v452 = vlaneseq
    %v453 = vshrl.u32 %v452, 7
    %v454 = vsub.s32 6, %v453
    %v455 = vrot.slane %v426, %v454
    %v456 = vlaneseq
    %v457 = vshrl.u32 %v456, 7
    %v458 = vsub.s32 7, %v457
    %v459 = vrot.slane %v426, %v458
    %v532 = vunpack.c.l.b16 %v362
    %v533 = vunpack.c.h.b16 %v362
    %v534 = vunpack.c.l.b16 %v363
    %v535 = vunpack.c.h.b16 %v363
    %v536 = vunpack.c.l.b16 %v364
    %v537 = vunpack.c.h.b16 %v364
    %v538 = vunpack.c.l.b16 %v365
    %v539 = vunpack.c.h.b16 %v365
    %v540 = vunpack.c.l.b16 %v366
    %v541 = vunpack.c.h.b16 %v366
    %v542 = vunpack.c.l.b16 %v367
    %v543 = vunpack.c.h.b16 %v367
    %v544 = vunpack.c.l.b16 %v368
    %v545 = vunpack.c.h.b16 %v368
    %v546 = vunpack.c.l.b16 %v369
    %v547 = vunpack.c.h.b16 %v369
    %v548 = vunpack.c.l.b16 %v370
    %v549 = vunpack.c.h.b16 %v370
    %v550 = vunpack.c.l.b16 %v371
    %v551 = vunpack.c.h.b16 %v371
    %v552 = vunpack.c.l.b16 %v372
    %v553 = vunpack.c.h.b16 %v372
    %v554 = vunpack.c.l.b16 %v373
    %v555 = vunpack.c.h.b16 %v373
    %v556 = vunpack.c.l.b16 %v374
    %v557 = vunpack.c.h.b16 %v374
    %v558 = vunpack.c.l.b16 %v375
    %v559 = vunpack.c.h.b16 %v375
    %v560 = vunpack.c.l.b16 %v376
    %v561 = vunpack.c.h.b16 %v376
    %v562 = vunpack.c.l.b16 %v377
    %v563 = vunpack.c.h.b16 %v377
    %v564 = vunpack.c.l.b16 %v378
    %v565 = vunpack.c.h.b16 %v378
    %v566 = vunpack.c.l.b16 %v379
    %v567 = vunpack.c.h.b16 %v379
    %v568 = vunpack.c.l.b16 %v380
    %v569 = vunpack.c.h.b16 %v380
    %v570 = vunpack.c.l.b16 %v381
    %v571 = vunpack.c.h.b16 %v381
    %v572 = vunpack.c.l.b16 %v382
    %v573 = vunpack.c.h.b16 %v382
    %v574 = vunpack.c.l.b16 %v383
    %v575 = vunpack.c.h.b16 %v383
    %v576 = vunpack.c.l.b16 %v384
    %v577 = vunpack.c.h.b16 %v384
    %v578 = vunpack.c.l.b16 %v385
    %v579 = vunpack.c.h.b16 %v385
    %v580 = vunpack.c.l.b16 %v386
    %v581 = vunpack.c.h.b16 %v386
    %v582 = vunpack.c.l.b16 %v387
    %v583 = vunpack.c.h.b16 %v387
    %v584 = vunpack.c.l.b16 %v388
    %v585 = vunpack.c.h.b16 %v388
    %v586 = vunpack.c.l.b16 %v389
    %v587 = vunpack.c.h.b16 %v389
    %v588 = vunpack.c.l.b16 %v390
    %v589 = vunpack.c.h.b16 %v390
    %v590 = vunpack.c.l.b16 %v391
    %v591 = vunpack.c.h.b16 %v391
    %v592 = vunpack.c.l.b16 %v392
    %v593 = vunpack.c.h.b16 %v392
    %v594 = vunpack.c.l.b16 %v393
    %v595 = vunpack.c.h.b16 %v393
    %v596 = vunpack.c.l.b16 %v394
    %v597 = vunpack.c.h.b16 %v394
    %v598 = vunpack.c.l.b16 %v395
    %v599 = vunpack.c.h.b16 %v395
    %v600 = vunpack.c.l.b16 %v396
    %v601 = vunpack.c.h.b16 %v396
    %v602 = vunpack.c.l.b16 %v397
    %v603 = vunpack.c.h.b16 %v397
    %v604 = vunpack.c.l.b16 %v398
    %v605 = vunpack.c.h.b16 %v398
    %v606 = vunpack.c.l.b16 %v399
    %v607 = vunpack.c.h.b16 %v399
    %v608 = vunpack.c.l.b16 %v400
    %v609 = vunpack.c.h.b16 %v400
    %v610 = vunpack.c.l.b16 %v401
    %v611 = vunpack.c.h.b16 %v401
    %v612 = vunpack.c.l.b16 %v402
    %v613 = vunpack.c.h.b16 %v402
    %v614 = vunpack.c.l.b16 %v403
    %v615 = vunpack.c.h.b16 %v403
    %v616 = vunpack.c.l.b16 %v404
    %v617 = vunpack.c.h.b16 %v404
    %v618 = vunpack.c.l.b16 %v405
    %v619 = vunpack.c.h.b16 %v405
    %v620 = vunpack.c.l.b16 %v406
    %v621 = vunpack.c.h.b16 %v406
    %v622 = vunpack.c.l.b16 %v407
    %v623 = vunpack.c.h.b16 %v407
    %v624 = vunpack.c.l.b16 %v408
    %v625 = vunpack.c.h.b16 %v408
    %v626 = vunpack.c.l.b16 %v409
    %v627 = vunpack.c.h.b16 %v409
    %v628 = vunpack.c.l.b16 %v410
    %v629 = vunpack.c.h.b16 %v410
    %v630 = vunpack.c.l.b16 %v411
    %v631 = vunpack.c.h.b16 %v411
    %v632 = vunpack.c.l.b16 %v412
    %v633 = vunpack.c.h.b16 %v412
    %v634 = vunpack.c.l.b16 %v413
    %v635 = vunpack.c.h.b16 %v413
    %v636 = vunpack.c.l.b16 %v414
    %v637 = vunpack.c.h.b16 %v414
    %v638 = vunpack.c.l.b16 %v415
    %v639 = vunpack.c.h.b16 %v415
    %v640 = vunpack.c.l.b16 %v416
    %v641 = vunpack.c.h.b16 %v416
    %v642 = vunpack.c.l.b16 %v417
    %v643 = vunpack.c.h.b16 %v417
    %v644 = vunpack.c.l.b16 %v418
    %v645 = vunpack.c.h.b16 %v418
    %v646 = vunpack.c.l.b16 %v419
    %v647 = vunpack.c.h.b16 %v419
    %v648 = vunpack.c.l.b16 %v420
    %v649 = vunpack.c.h.b16 %v420
    %v650 = vunpack.c.l.b16 %v421
    %v651 = vunpack.c.h.b16 %v421
    %v652 = vunpack.c.l.b16 %v422
    %v653 = vunpack.c.h.b16 %v422
    %v654 = vunpack.c.l.b16 %v423
    %v655 = vunpack.c.h.b16 %v423
    %v656 = vunpack.c.l.b16 %v424
    %v657 = vunpack.c.h.b16 %v424
    %v658 = vunpack.c.l.b16 %v425
    %v659 = vunpack.c.h.b16 %v425
    %v660 = vpack.c.b16 %v540, %v532
    %v661 = vpack.c.b16 %v541, %v533
    %v662 = vpack.c.b16 %v542, %v534
    %v663 = vpack.c.b16 %v543, %v535
    %v664 = vpack.c.b16 %v544, %v536
    %v665 = vpack.c.b16 %v545, %v537
    %v666 = vpack.c.b16 %v546, %v538
    %v667 = vpack.c.b16 %v547, %v539
    %v668 = vpack.c.b16 %v556, %v548
    %v669 = vpack.c.b16 %v557, %v549
    %v670 = vpack.c.b16 %v558, %v550
    %v671 = vpack.c.b16 %v559, %v551
    %v672 = vpack.c.b16 %v560, %v552
    %v673 = vpack.c.b16 %v561, %v553
    %v674 = vpack.c.b16 %v562, %v554
    %v675 = vpack.c.b16 %v563, %v555
    %v676 = vpack.c.b16 %v572, %v564
    %v677 = vpack.c.b16 %v573, %v565
    %v678 = vpack.c.b16 %v574, %v566
    %v679 = vpack.c.b16 %v575, %v567
    %v680 = vpack.c.b16 %v576, %v568
    %v681 = vpack.c.b16 %v577, %v569
    %v682 = vpack.c.b16 %v578, %v570
    %v683 = vpack.c.b16 %v579, %v571
    %v684 = vpack.c.b16 %v588, %v580
    %v685 = vpack.c.b16 %v589, %v581
    %v686 = vpack.c.b16 %v590, %v582
    %v687 = vpack.c.b16 %v591, %v583
    %v688 = vpack.c.b16 %v592, %v584
    %v689 = vpack.c.b16 %v593, %v585
    %v690 = vpack.c.b16 %v594, %v586
    %v691 = vpack.c.b16 %v595, %v587
    %v692 = vpack.c.b16 %v604, %v596
    %v693 = vpack.c.b16 %v605, %v597
    %v694 = vpack.c.b16 %v606, %v598
    %v695 = vpack.c.b16 %v607, %v599
    %v696 = vpack.c.b16 %v608, %v600
    %v697 = vpack.c.b16 %v609, %v601
    %v698 = vpack.c.b16 %v610, %v602
    %v699 = vpack.c.b16 %v611, %v603
    %v700 = vpack.c.b16 %v620, %v612
    %v701 = vpack.c.b16 %v621, %v613
    %v702 = vpack.c.b16 %v622, %v614
    %v703 = vpack.c.b16 %v623, %v615
    %v704 = vpack.c.b16 %v624, %v616
    %v705 = vpack.c.b16 %v625, %v617
    %v706 = vpack.c.b16 %v626, %v618
    %v707 = vpack.c.b16 %v627, %v619
    %v708 = vpack.c.b16 %v636, %v628
    %v709 = vpack.c.b16 %v637, %v629
    %v710 = vpack.c.b16 %v638, %v630
    %v711 = vpack.c.b16 %v639, %v631
    %v712 = vpack.c.b16 %v640, %v632
    %v713 = vpack.c.b16 %v641, %v633
    %v714 = vpack.c.b16 %v642, %v634
    %v715 = vpack.c.b16 %v643, %v635
    %v716 = vpack.c.b16 %v652, %v644
    %v717 = vpack.c.b16 %v653, %v645
    %v718 = vpack.c.b16 %v654, %v646
    %v719 = vpack.c.b16 %v655, %v647
    %v720 = vpack.c.b16 %v656, %v648
    %v721 = vpack.c.b16 %v657, %v649
    %v722 = vpack.c.b16 %v658, %v650
    %v723 = vpack.c.b16 %v659, %v651
    %788 = vmatprep.subr.bf16.mxu0 %v717
    %789 = vmatpush1.bf16.msra.mxu0 %v716
    %790 = vmatprep.subr.bf16.mxu0 %v709
    %791 = vmatpush1.bf16.msra.mxu0 %v708
    %792 = vmatprep.subr.bf16.mxu0 %v701
    %793 = vmatpush1.bf16.msra.mxu0 %v700
    %794 = vmatprep.subr.bf16.mxu0 %v693
    %795 = vmatpush1.bf16.msra.mxu0 %v692
    %796 = vmatprep.subr.bf16.mxu0 %v685
    %797 = vmatpush1.bf16.msra.mxu0 %v684
    %798 = vmatprep.subr.bf16.mxu0 %v677
    %799 = vmatpush1.bf16.msra.mxu0 %v676
    %800 = vmatprep.subr.bf16.mxu0 %v669
    %801 = vmatpush1.bf16.msra.mxu0 %v668
    %802 = vmatprep.subr.bf16.mxu0 %v661
    %803 = vmatpush1.bf16.msra.mxu0 %v660
    %804 = vmatprep.subr.bf16.mxu0 0
    %805 = vmatpush2.bf16.msra.mxu0 0
    %806 = vmatprep.subr.bf16.mxu0 0
    %807 = vmatpush2.bf16.msra.mxu0 0
    %808 = vmatprep.subr.bf16.mxu0 0
    %809 = vmatpush2.bf16.msra.mxu0 0
    %810 = vmatprep.subr.bf16.mxu0 0
    %811 = vmatpush2.bf16.msra.mxu0 0
    %812 = vmatprep.subr.bf16.mxu0 0
    %813 = vmatpush2.bf16.msra.mxu0 0
    %814 = vmatprep.subr.bf16.mxu0 0
    %815 = vmatpush2.bf16.msra.mxu0 0
    %816 = vmatprep.subr.bf16.mxu0 0
    %817 = vmatpush2.bf16.msra.mxu0 0
    %818 = vmatprep.subr.bf16.mxu0 0
    %819 = vmatpush2.bf16.msra.mxu0 0
    %820 = vmatprep.mubr.bf16.mxu0 0
    %821 = vmatmul.mubr.bf16.gmra.mxu0 %v361
    %v822 = vpop.f32.mrf.mxu0
    %v823 = vadd.f32 %v431, %v822
    %v824 = vpop.f32.mrf.mxu0
    %v825 = vadd.f32 %v435, %v824
    %v826 = vpop.f32.mrf.mxu0
    %v827 = vpop.f32.mrf.mxu0
    %828 = vdwg.mxu0
    %829 = vmatprep.subr.bf16.mxu0 %v719
    %830 = vmatpush1.bf16.msra.mxu0 %v718
    %831 = vmatprep.subr.bf16.mxu0 %v711
    %832 = vmatpush1.bf16.msra.mxu0 %v710
    %833 = vmatprep.subr.bf16.mxu0 %v703
    %834 = vmatpush1.bf16.msra.mxu0 %v702
    %835 = vmatprep.subr.bf16.mxu0 %v695
    %836 = vmatpush1.bf16.msra.mxu0 %v694
    %837 = vmatprep.subr.bf16.mxu0 %v687
    %838 = vmatpush1.bf16.msra.mxu0 %v686
    %839 = vmatprep.subr.bf16.mxu0 %v679
    %840 = vmatpush1.bf16.msra.mxu0 %v678
    %841 = vmatprep.subr.bf16.mxu0 %v671
    %842 = vmatpush1.bf16.msra.mxu0 %v670
    %843 = vmatprep.subr.bf16.mxu0 %v663
    %844 = vmatpush1.bf16.msra.mxu0 %v662
    %845 = vmatprep.subr.bf16.mxu0 0
    %846 = vmatpush2.bf16.msra.mxu0 0
    %847 = vmatprep.subr.bf16.mxu0 0
    %848 = vmatpush2.bf16.msra.mxu0 0
    %849 = vmatprep.subr.bf16.mxu0 0
    %850 = vmatpush2.bf16.msra.mxu0 0
    %851 = vmatprep.subr.bf16.mxu0 0
    %852 = vmatpush2.bf16.msra.mxu0 0
    %853 = vmatprep.subr.bf16.mxu0 0
    %854 = vmatpush2.bf16.msra.mxu0 0
    %855 = vmatprep.subr.bf16.mxu0 0
    %856 = vmatpush2.bf16.msra.mxu0 0
    %857 = vmatprep.subr.bf16.mxu0 0
    %858 = vmatpush2.bf16.msra.mxu0 0
    %859 = vmatprep.subr.bf16.mxu0 0
    %860 = vmatpush2.bf16.msra.mxu0 0
    %861 = vmatprep.mubr.bf16.mxu0 0
    %862 = vmatmul.mubr.bf16.gmra.mxu0 %v361
    %v863 = vpop.f32.mrf.mxu0
    %v864 = vadd.f32 %v439, %v863
    %v865 = vpop.f32.mrf.mxu0
    %v866 = vadd.f32 %v443, %v865
    %v867 = vpop.f32.mrf.mxu0
    %v868 = vpop.f32.mrf.mxu0
    %869 = vdwg.mxu0
    %870 = vmatprep.subr.bf16.mxu0 %v721
    %871 = vmatpush1.bf16.msra.mxu0 %v720
    %872 = vmatprep.subr.bf16.mxu0 %v713
    %873 = vmatpush1.bf16.msra.mxu0 %v712
    %874 = vmatprep.subr.bf16.mxu0 %v705
    %875 = vmatpush1.bf16.msra.mxu0 %v704
    %876 = vmatprep.subr.bf16.mxu0 %v697
    %877 = vmatpush1.bf16.msra.mxu0 %v696
    %878 = vmatprep.subr.bf16.mxu0 %v689
    %879 = vmatpush1.bf16.msra.mxu0 %v688
    %880 = vmatprep.subr.bf16.mxu0 %v681
    %881 = vmatpush1.bf16.msra.mxu0 %v680
    %882 = vmatprep.subr.bf16.mxu0 %v673
    %883 = vmatpush1.bf16.msra.mxu0 %v672
    %884 = vmatprep.subr.bf16.mxu0 %v665
    %885 = vmatpush1.bf16.msra.mxu0 %v664
    %886 = vmatprep.subr.bf16.mxu0 0
    %887 = vmatpush2.bf16.msra.mxu0 0
    %888 = vmatprep.subr.bf16.mxu0 0
    %889 = vmatpush2.bf16.msra.mxu0 0
    %890 = vmatprep.subr.bf16.mxu0 0
    %891 = vmatpush2.bf16.msra.mxu0 0
    %892 = vmatprep.subr.bf16.mxu0 0
    %893 = vmatpush2.bf16.msra.mxu0 0
    %894 = vmatprep.subr.bf16.mxu0 0
    %895 = vmatpush2.bf16.msra.mxu0 0
    %896 = vmatprep.subr.bf16.mxu0 0
    %897 = vmatpush2.bf16.msra.mxu0 0
    %898 = vmatprep.subr.bf16.mxu0 0
    %899 = vmatpush2.bf16.msra.mxu0 0
    %900 = vmatprep.subr.bf16.mxu0 0
    %901 = vmatpush2.bf16.msra.mxu0 0
    %902 = vmatprep.mubr.bf16.mxu0 0
    %903 = vmatmul.mubr.bf16.gmra.mxu0 %v361
    %v904 = vpop.f32.mrf.mxu0
    %v905 = vadd.f32 %v447, %v904
    %v906 = vpop.f32.mrf.mxu0
    %v907 = vadd.f32 %v451, %v906
    %v908 = vpop.f32.mrf.mxu0
    %v909 = vpop.f32.mrf.mxu0
    %910 = vdwg.mxu0
    %911 = vmatprep.subr.bf16.mxu0 %v723
    %912 = vmatpush1.bf16.msra.mxu0 %v722
    %913 = vmatprep.subr.bf16.mxu0 %v715
    %914 = vmatpush1.bf16.msra.mxu0 %v714
    %915 = vmatprep.subr.bf16.mxu0 %v707
    %916 = vmatpush1.bf16.msra.mxu0 %v706
    %917 = vmatprep.subr.bf16.mxu0 %v699
    %918 = vmatpush1.bf16.msra.mxu0 %v698
    %919 = vmatprep.subr.bf16.mxu0 %v691
    %920 = vmatpush1.bf16.msra.mxu0 %v690
    %921 = vmatprep.subr.bf16.mxu0 %v683
    %922 = vmatpush1.bf16.msra.mxu0 %v682
    %923 = vmatprep.subr.bf16.mxu0 %v675
    %924 = vmatpush1.bf16.msra.mxu0 %v674
    %925 = vmatprep.subr.bf16.mxu0 %v667
    %926 = vmatpush1.bf16.msra.mxu0 %v666
    %927 = vmatprep.subr.bf16.mxu0 0
    %928 = vmatpush2.bf16.msra.mxu0 0
    %929 = vmatprep.subr.bf16.mxu0 0
    %930 = vmatpush2.bf16.msra.mxu0 0
    %931 = vmatprep.subr.bf16.mxu0 0
    %932 = vmatpush2.bf16.msra.mxu0 0
    %933 = vmatprep.subr.bf16.mxu0 0
    %934 = vmatpush2.bf16.msra.mxu0 0
    %935 = vmatprep.subr.bf16.mxu0 0
    %936 = vmatpush2.bf16.msra.mxu0 0
    %937 = vmatprep.subr.bf16.mxu0 0
    %938 = vmatpush2.bf16.msra.mxu0 0
    %939 = vmatprep.subr.bf16.mxu0 0
    %940 = vmatpush2.bf16.msra.mxu0 0
    %941 = vmatprep.subr.bf16.mxu0 0
    %942 = vmatpush2.bf16.msra.mxu0 0
    %943 = vmatprep.mubr.bf16.mxu0 0
    %944 = vmatmul.mubr.bf16.gmra.mxu0 %v361
    %v945 = vpop.f32.mrf.mxu0
    %v946 = vadd.f32 %v455, %v945
    %v947 = vpop.f32.mrf.mxu0
    %v948 = vadd.f32 %v459, %v947
    %v949 = vpop.f32.mrf.mxu0
    %v950 = vpop.f32.mrf.mxu0
    %951 = vdwg.mxu0
    %v952 = vld [vmem:[%s1] sm:$0xff]
    %v953 = vld [vmem:[%s1 + $0x8] sm:$0xff]
    %v956 = vcombine.high %v952, %v952
    %v958 = vunpack.c.l.s4 1983009808
    %v959 = vunpack.c.0.s8 %v958
    %v960 = vlaneseq
    %v961 = vshrl.u32 %v960, 7
    %v962 = vsub.s32 %v959, %v961
    %v963 = vrot.slane %v952, %v962
    %v965 = vunpack.c.l.s4 1983009808
    %v966 = vunpack.c.0.s8 %v965
    %v967 = vlaneseq
    %v968 = vshrl.u32 %v967, 7
    %v969 = vsub.s32 %v966, %v968
    %v970 = vrot.slane %v956, %v969
    %v971 = vcombine.high %v963, %v963
    %v972 = vcombine.high %v970, %v970
    %v973 = vcombine.high %v953, %v953
    %v975 = vunpack.c.l.s4 1983009808
    %v976 = vunpack.c.0.s8 %v975
    %v977 = vlaneseq
    %v978 = vshrl.u32 %v977, 7
    %v979 = vsub.s32 %v976, %v978
    %v980 = vrot.slane %v953, %v979
    %v982 = vunpack.c.l.s4 1983009808
    %v983 = vunpack.c.0.s8 %v982
    %v984 = vlaneseq
    %v985 = vshrl.u32 %v984, 7
    %v986 = vsub.s32 %v983, %v985
    %v987 = vrot.slane %v973, %v986
    %v988 = vcombine.high %v980, %v980
    %v989 = vcombine.high %v987, %v987
    %v998 = vpack.c.bf16 %v963, %v963
    %v999 = vpack.c.bf16 %v971, %v971
    %v1000 = vpack.c.bf16 %v970, %v970
    %v1001 = vpack.c.bf16 %v972, %v972
    %v1002 = vpack.c.bf16 %v980, %v980
    %v1003 = vpack.c.bf16 %v988, %v988
    %v1004 = vpack.c.bf16 %v987, %v987
    %v1005 = vpack.c.bf16 %v989, %v989
    %v1006 = vld [vmem:[%s8] sm:$0xff]
    %v1007 = vld [vmem:[%s8 + $0x8] sm:$0xff]
    %v1008 = vld [vmem:[%s8 + $0x10] sm:$0xff]
    %v1009 = vld [vmem:[%s8 + $0x18] sm:$0xff]
    %v1010 = vld [vmem:[%s8 + $0x20] sm:$0xff]
    %v1011 = vld [vmem:[%s8 + $0x28] sm:$0xff]
    %v1012 = vld [vmem:[%s8 + $0x30] sm:$0xff]
    %v1013 = vld [vmem:[%s8 + $0x38] sm:$0xff]
    %v1014 = vld [vmem:[%s8 + $0x40] sm:$0xff]
    %v1015 = vld [vmem:[%s8 + $0x48] sm:$0xff]
    %v1016 = vld [vmem:[%s8 + $0x50] sm:$0xff]
    %v1017 = vld [vmem:[%s8 + $0x58] sm:$0xff]
    %v1018 = vld [vmem:[%s8 + $0x60] sm:$0xff]
    %v1019 = vld [vmem:[%s8 + $0x68] sm:$0xff]
    %v1020 = vld [vmem:[%s8 + $0x70] sm:$0xff]
    %v1021 = vld [vmem:[%s8 + $0x78] sm:$0xff]
    %v1022 = vld [vmem:[%s8 + $0x80] sm:$0xff]
    %v1023 = vld [vmem:[%s8 + $0x88] sm:$0xff]
    %v1024 = vld [vmem:[%s8 + $0x90] sm:$0xff]
    %v1025 = vld [vmem:[%s8 + $0x98] sm:$0xff]
    %v1026 = vld [vmem:[%s8 + $0xa0] sm:$0xff]
    %v1027 = vld [vmem:[%s8 + $0xa8] sm:$0xff]
    %v1028 = vld [vmem:[%s8 + $0xb0] sm:$0xff]
    %v1029 = vld [vmem:[%s8 + $0xb8] sm:$0xff]
    %v1030 = vld [vmem:[%s8 + $0xc0] sm:$0xff]
    %v1031 = vld [vmem:[%s8 + $0xc8] sm:$0xff]
    %v1032 = vld [vmem:[%s8 + $0xd0] sm:$0xff]
    %v1033 = vld [vmem:[%s8 + $0xd8] sm:$0xff]
    %v1034 = vld [vmem:[%s8 + $0xe0] sm:$0xff]
    %v1035 = vld [vmem:[%s8 + $0xe8] sm:$0xff]
    %v1036 = vld [vmem:[%s8 + $0xf0] sm:$0xff]
    %v1037 = vld [vmem:[%s8 + $0xf8] sm:$0xff]
    %v1038 = vld [vmem:[%s8 + $0x100] sm:$0xff]
    %v1039 = vld [vmem:[%s8 + $0x108] sm:$0xff]
    %v1040 = vld [vmem:[%s8 + $0x110] sm:$0xff]
    %v1041 = vld [vmem:[%s8 + $0x118] sm:$0xff]
    %v1042 = vld [vmem:[%s8 + $0x120] sm:$0xff]
    %v1043 = vld [vmem:[%s8 + $0x128] sm:$0xff]
    %v1044 = vld [vmem:[%s8 + $0x130] sm:$0xff]
    %v1045 = vld [vmem:[%s8 + $0x138] sm:$0xff]
    %v1046 = vld [vmem:[%s8 + $0x140] sm:$0xff]
    %v1047 = vld [vmem:[%s8 + $0x148] sm:$0xff]
    %v1048 = vld [vmem:[%s8 + $0x150] sm:$0xff]
    %v1049 = vld [vmem:[%s8 + $0x158] sm:$0xff]
    %v1050 = vld [vmem:[%s8 + $0x160] sm:$0xff]
    %v1051 = vld [vmem:[%s8 + $0x168] sm:$0xff]
    %v1052 = vld [vmem:[%s8 + $0x170] sm:$0xff]
    %v1053 = vld [vmem:[%s8 + $0x178] sm:$0xff]
    %v1054 = vld [vmem:[%s8 + $0x180] sm:$0xff]
    %v1055 = vld [vmem:[%s8 + $0x188] sm:$0xff]
    %v1056 = vld [vmem:[%s8 + $0x190] sm:$0xff]
    %v1057 = vld [vmem:[%s8 + $0x198] sm:$0xff]
    %v1058 = vld [vmem:[%s8 + $0x1a0] sm:$0xff]
    %v1059 = vld [vmem:[%s8 + $0x1a8] sm:$0xff]
    %v1060 = vld [vmem:[%s8 + $0x1b0] sm:$0xff]
    %v1061 = vld [vmem:[%s8 + $0x1b8] sm:$0xff]
    %v1062 = vld [vmem:[%s8 + $0x1c0] sm:$0xff]
    %v1063 = vld [vmem:[%s8 + $0x1c8] sm:$0xff]
    %v1064 = vld [vmem:[%s8 + $0x1d0] sm:$0xff]
    %v1065 = vld [vmem:[%s8 + $0x1d8] sm:$0xff]
    %v1066 = vld [vmem:[%s8 + $0x1e0] sm:$0xff]
    %v1067 = vld [vmem:[%s8 + $0x1e8] sm:$0xff]
    %v1068 = vld [vmem:[%s8 + $0x1f0] sm:$0xff]
    %v1069 = vld [vmem:[%s8 + $0x1f8] sm:$0xff]
    %v1070 = vld [vmem:[%s8 + $0x200] sm:$0xff]
    %v1071 = vld [vmem:[%s8 + $0x208] sm:$0xff]
    %v1072 = vld [vmem:[%s8 + $0x210] sm:$0xff]
    %v1073 = vld [vmem:[%s8 + $0x218] sm:$0xff]
    %v1074 = vld [vmem:[%s8 + $0x220] sm:$0xff]
    %v1075 = vld [vmem:[%s8 + $0x228] sm:$0xff]
    %v1076 = vld [vmem:[%s8 + $0x230] sm:$0xff]
    %v1077 = vld [vmem:[%s8 + $0x238] sm:$0xff]
    %v1078 = vld [vmem:[%s8 + $0x240] sm:$0xff]
    %v1079 = vld [vmem:[%s8 + $0x248] sm:$0xff]
    %v1080 = vld [vmem:[%s8 + $0x250] sm:$0xff]
    %v1081 = vld [vmem:[%s8 + $0x258] sm:$0xff]
    %v1082 = vld [vmem:[%s8 + $0x260] sm:$0xff]
    %v1083 = vld [vmem:[%s8 + $0x268] sm:$0xff]
    %v1084 = vld [vmem:[%s8 + $0x270] sm:$0xff]
    %v1085 = vld [vmem:[%s8 + $0x278] sm:$0xff]
    %v1086 = vld [vmem:[%s8 + $0x280] sm:$0xff]
    %v1087 = vld [vmem:[%s8 + $0x288] sm:$0xff]
    %v1088 = vld [vmem:[%s8 + $0x290] sm:$0xff]
    %v1089 = vld [vmem:[%s8 + $0x298] sm:$0xff]
    %v1090 = vld [vmem:[%s8 + $0x2a0] sm:$0xff]
    %v1091 = vld [vmem:[%s8 + $0x2a8] sm:$0xff]
    %v1092 = vld [vmem:[%s8 + $0x2b0] sm:$0xff]
    %v1093 = vld [vmem:[%s8 + $0x2b8] sm:$0xff]
    %v1094 = vld [vmem:[%s8 + $0x2c0] sm:$0xff]
    %v1095 = vld [vmem:[%s8 + $0x2c8] sm:$0xff]
    %v1096 = vld [vmem:[%s8 + $0x2d0] sm:$0xff]
    %v1097 = vld [vmem:[%s8 + $0x2d8] sm:$0xff]
    %v1098 = vld [vmem:[%s8 + $0x2e0] sm:$0xff]
    %v1099 = vld [vmem:[%s8 + $0x2e8] sm:$0xff]
    %v1100 = vld [vmem:[%s8 + $0x2f0] sm:$0xff]
    %v1101 = vld [vmem:[%s8 + $0x2f8] sm:$0xff]
    %v1102 = vld [vmem:[%s8 + $0x300] sm:$0xff]
    %v1103 = vld [vmem:[%s8 + $0x308] sm:$0xff]
    %v1104 = vld [vmem:[%s8 + $0x310] sm:$0xff]
    %v1105 = vld [vmem:[%s8 + $0x318] sm:$0xff]
    %v1106 = vld [vmem:[%s8 + $0x320] sm:$0xff]
    %v1107 = vld [vmem:[%s8 + $0x328] sm:$0xff]
    %v1108 = vld [vmem:[%s8 + $0x330] sm:$0xff]
    %v1109 = vld [vmem:[%s8 + $0x338] sm:$0xff]
    %v1110 = vld [vmem:[%s8 + $0x340] sm:$0xff]
    %v1111 = vld [vmem:[%s8 + $0x348] sm:$0xff]
    %v1112 = vld [vmem:[%s8 + $0x350] sm:$0xff]
    %v1113 = vld [vmem:[%s8 + $0x358] sm:$0xff]
    %v1114 = vld [vmem:[%s8 + $0x360] sm:$0xff]
    %v1115 = vld [vmem:[%s8 + $0x368] sm:$0xff]
    %v1116 = vld [vmem:[%s8 + $0x370] sm:$0xff]
    %v1117 = vld [vmem:[%s8 + $0x378] sm:$0xff]
    %v1118 = vld [vmem:[%s8 + $0x380] sm:$0xff]
    %v1119 = vld [vmem:[%s8 + $0x388] sm:$0xff]
    %v1120 = vld [vmem:[%s8 + $0x390] sm:$0xff]
    %v1121 = vld [vmem:[%s8 + $0x398] sm:$0xff]
    %v1122 = vld [vmem:[%s8 + $0x3a0] sm:$0xff]
    %v1123 = vld [vmem:[%s8 + $0x3a8] sm:$0xff]
    %v1124 = vld [vmem:[%s8 + $0x3b0] sm:$0xff]
    %v1125 = vld [vmem:[%s8 + $0x3b8] sm:$0xff]
    %v1126 = vld [vmem:[%s8 + $0x3c0] sm:$0xff]
    %v1127 = vld [vmem:[%s8 + $0x3c8] sm:$0xff]
    %v1128 = vld [vmem:[%s8 + $0x3d0] sm:$0xff]
    %v1129 = vld [vmem:[%s8 + $0x3d8] sm:$0xff]
    %v1130 = vld [vmem:[%s8 + $0x3e0] sm:$0xff]
    %v1131 = vld [vmem:[%s8 + $0x3e8] sm:$0xff]
    %v1132 = vld [vmem:[%s8 + $0x3f0] sm:$0xff]
    %v1133 = vld [vmem:[%s8 + $0x3f8] sm:$0xff]
    %v1134 = vld [vmem:[%s8 + $0x400] sm:$0xff]
    %v1135 = vld [vmem:[%s8 + $0x408] sm:$0xff]
    %v1136 = vld [vmem:[%s8 + $0x410] sm:$0xff]
    %v1137 = vld [vmem:[%s8 + $0x418] sm:$0xff]
    %v1138 = vld [vmem:[%s8 + $0x420] sm:$0xff]
    %v1139 = vld [vmem:[%s8 + $0x428] sm:$0xff]
    %v1140 = vld [vmem:[%s8 + $0x430] sm:$0xff]
    %v1141 = vld [vmem:[%s8 + $0x438] sm:$0xff]
    %v1142 = vld [vmem:[%s8 + $0x440] sm:$0xff]
    %v1143 = vld [vmem:[%s8 + $0x448] sm:$0xff]
    %v1144 = vld [vmem:[%s8 + $0x450] sm:$0xff]
    %v1145 = vld [vmem:[%s8 + $0x458] sm:$0xff]
    %v1146 = vld [vmem:[%s8 + $0x460] sm:$0xff]
    %v1147 = vld [vmem:[%s8 + $0x468] sm:$0xff]
    %v1148 = vld [vmem:[%s8 + $0x470] sm:$0xff]
    %v1149 = vld [vmem:[%s8 + $0x478] sm:$0xff]
    %v1150 = vld [vmem:[%s8 + $0x480] sm:$0xff]
    %v1151 = vld [vmem:[%s8 + $0x488] sm:$0xff]
    %v1152 = vld [vmem:[%s8 + $0x490] sm:$0xff]
    %v1153 = vld [vmem:[%s8 + $0x498] sm:$0xff]
    %v1154 = vld [vmem:[%s8 + $0x4a0] sm:$0xff]
    %v1155 = vld [vmem:[%s8 + $0x4a8] sm:$0xff]
    %v1156 = vld [vmem:[%s8 + $0x4b0] sm:$0xff]
    %v1157 = vld [vmem:[%s8 + $0x4b8] sm:$0xff]
    %v1158 = vld [vmem:[%s8 + $0x4c0] sm:$0xff]
    %v1159 = vld [vmem:[%s8 + $0x4c8] sm:$0xff]
    %v1160 = vld [vmem:[%s8 + $0x4d0] sm:$0xff]
    %v1161 = vld [vmem:[%s8 + $0x4d8] sm:$0xff]
    %v1162 = vld [vmem:[%s8 + $0x4e0] sm:$0xff]
    %v1163 = vld [vmem:[%s8 + $0x4e8] sm:$0xff]
    %v1164 = vld [vmem:[%s8 + $0x4f0] sm:$0xff]
    %v1165 = vld [vmem:[%s8 + $0x4f8] sm:$0xff]
    %v1166 = vld [vmem:[%s8 + $0x500] sm:$0xff]
    %v1167 = vld [vmem:[%s8 + $0x508] sm:$0xff]
    %v1168 = vld [vmem:[%s8 + $0x510] sm:$0xff]
    %v1169 = vld [vmem:[%s8 + $0x518] sm:$0xff]
    %v1170 = vld [vmem:[%s8 + $0x520] sm:$0xff]
    %v1171 = vld [vmem:[%s8 + $0x528] sm:$0xff]
    %v1172 = vld [vmem:[%s8 + $0x530] sm:$0xff]
    %v1173 = vld [vmem:[%s8 + $0x538] sm:$0xff]
    %v1174 = vld [vmem:[%s8 + $0x540] sm:$0xff]
    %v1175 = vld [vmem:[%s8 + $0x548] sm:$0xff]
    %v1176 = vld [vmem:[%s8 + $0x550] sm:$0xff]
    %v1177 = vld [vmem:[%s8 + $0x558] sm:$0xff]
    %v1178 = vld [vmem:[%s8 + $0x560] sm:$0xff]
    %v1179 = vld [vmem:[%s8 + $0x568] sm:$0xff]
    %v1180 = vld [vmem:[%s8 + $0x570] sm:$0xff]
    %v1181 = vld [vmem:[%s8 + $0x578] sm:$0xff]
    %v1182 = vld [vmem:[%s8 + $0x580] sm:$0xff]
    %v1183 = vld [vmem:[%s8 + $0x588] sm:$0xff]
    %v1184 = vld [vmem:[%s8 + $0x590] sm:$0xff]
    %v1185 = vld [vmem:[%s8 + $0x598] sm:$0xff]
    %v1186 = vld [vmem:[%s8 + $0x5a0] sm:$0xff]
    %v1187 = vld [vmem:[%s8 + $0x5a8] sm:$0xff]
    %v1188 = vld [vmem:[%s8 + $0x5b0] sm:$0xff]
    %v1189 = vld [vmem:[%s8 + $0x5b8] sm:$0xff]
    %v1190 = vld [vmem:[%s8 + $0x5c0] sm:$0xff]
    %v1191 = vld [vmem:[%s8 + $0x5c8] sm:$0xff]
    %v1192 = vld [vmem:[%s8 + $0x5d0] sm:$0xff]
    %v1193 = vld [vmem:[%s8 + $0x5d8] sm:$0xff]
    %v1194 = vld [vmem:[%s8 + $0x5e0] sm:$0xff]
    %v1195 = vld [vmem:[%s8 + $0x5e8] sm:$0xff]
    %v1196 = vld [vmem:[%s8 + $0x5f0] sm:$0xff]
    %v1197 = vld [vmem:[%s8 + $0x5f8] sm:$0xff]
    %v1198 = vld [vmem:[%s8 + $0x600] sm:$0xff]
    %v1199 = vld [vmem:[%s8 + $0x608] sm:$0xff]
    %v1200 = vld [vmem:[%s8 + $0x610] sm:$0xff]
    %v1201 = vld [vmem:[%s8 + $0x618] sm:$0xff]
    %v1202 = vld [vmem:[%s8 + $0x620] sm:$0xff]
    %v1203 = vld [vmem:[%s8 + $0x628] sm:$0xff]
    %v1204 = vld [vmem:[%s8 + $0x630] sm:$0xff]
    %v1205 = vld [vmem:[%s8 + $0x638] sm:$0xff]
    %v1206 = vld [vmem:[%s8 + $0x640] sm:$0xff]
    %v1207 = vld [vmem:[%s8 + $0x648] sm:$0xff]
    %v1208 = vld [vmem:[%s8 + $0x650] sm:$0xff]
    %v1209 = vld [vmem:[%s8 + $0x658] sm:$0xff]
    %v1210 = vld [vmem:[%s8 + $0x660] sm:$0xff]
    %v1211 = vld [vmem:[%s8 + $0x668] sm:$0xff]
    %v1212 = vld [vmem:[%s8 + $0x670] sm:$0xff]
    %v1213 = vld [vmem:[%s8 + $0x678] sm:$0xff]
    %v1214 = vld [vmem:[%s8 + $0x680] sm:$0xff]
    %v1215 = vld [vmem:[%s8 + $0x688] sm:$0xff]
    %v1216 = vld [vmem:[%s8 + $0x690] sm:$0xff]
    %v1217 = vld [vmem:[%s8 + $0x698] sm:$0xff]
    %v1218 = vld [vmem:[%s8 + $0x6a0] sm:$0xff]
    %v1219 = vld [vmem:[%s8 + $0x6a8] sm:$0xff]
    %v1220 = vld [vmem:[%s8 + $0x6b0] sm:$0xff]
    %v1221 = vld [vmem:[%s8 + $0x6b8] sm:$0xff]
    %v1222 = vld [vmem:[%s8 + $0x6c0] sm:$0xff]
    %v1223 = vld [vmem:[%s8 + $0x6c8] sm:$0xff]
    %v1224 = vld [vmem:[%s8 + $0x6d0] sm:$0xff]
    %v1225 = vld [vmem:[%s8 + $0x6d8] sm:$0xff]
    %v1226 = vld [vmem:[%s8 + $0x6e0] sm:$0xff]
    %v1227 = vld [vmem:[%s8 + $0x6e8] sm:$0xff]
    %v1228 = vld [vmem:[%s8 + $0x6f0] sm:$0xff]
    %v1229 = vld [vmem:[%s8 + $0x6f8] sm:$0xff]
    %v1230 = vld [vmem:[%s8 + $0x700] sm:$0xff]
    %v1231 = vld [vmem:[%s8 + $0x708] sm:$0xff]
    %v1232 = vld [vmem:[%s8 + $0x710] sm:$0xff]
    %v1233 = vld [vmem:[%s8 + $0x718] sm:$0xff]
    %v1234 = vld [vmem:[%s8 + $0x720] sm:$0xff]
    %v1235 = vld [vmem:[%s8 + $0x728] sm:$0xff]
    %v1236 = vld [vmem:[%s8 + $0x730] sm:$0xff]
    %v1237 = vld [vmem:[%s8 + $0x738] sm:$0xff]
    %v1238 = vld [vmem:[%s8 + $0x740] sm:$0xff]
    %v1239 = vld [vmem:[%s8 + $0x748] sm:$0xff]
    %v1240 = vld [vmem:[%s8 + $0x750] sm:$0xff]
    %v1241 = vld [vmem:[%s8 + $0x758] sm:$0xff]
    %v1242 = vld [vmem:[%s8 + $0x760] sm:$0xff]
    %v1243 = vld [vmem:[%s8 + $0x768] sm:$0xff]
    %v1244 = vld [vmem:[%s8 + $0x770] sm:$0xff]
    %v1245 = vld [vmem:[%s8 + $0x778] sm:$0xff]
    %v1246 = vld [vmem:[%s8 + $0x780] sm:$0xff]
    %v1247 = vld [vmem:[%s8 + $0x788] sm:$0xff]
    %v1248 = vld [vmem:[%s8 + $0x790] sm:$0xff]
    %v1249 = vld [vmem:[%s8 + $0x798] sm:$0xff]
    %v1250 = vld [vmem:[%s8 + $0x7a0] sm:$0xff]
    %v1251 = vld [vmem:[%s8 + $0x7a8] sm:$0xff]
    %v1252 = vld [vmem:[%s8 + $0x7b0] sm:$0xff]
    %v1253 = vld [vmem:[%s8 + $0x7b8] sm:$0xff]
    %v1254 = vld [vmem:[%s8 + $0x7c0] sm:$0xff]
    %v1255 = vld [vmem:[%s8 + $0x7c8] sm:$0xff]
    %v1256 = vld [vmem:[%s8 + $0x7d0] sm:$0xff]
    %v1257 = vld [vmem:[%s8 + $0x7d8] sm:$0xff]
    %v1258 = vld [vmem:[%s8 + $0x7e0] sm:$0xff]
    %v1259 = vld [vmem:[%s8 + $0x7e8] sm:$0xff]
    %v1260 = vld [vmem:[%s8 + $0x7f0] sm:$0xff]
    %v1261 = vld [vmem:[%s8 + $0x7f8] sm:$0xff]
    %v1262 = vld [vmem:[%s8 + $0x800] sm:$0xff]
    %v1263 = vld [vmem:[%s8 + $0x808] sm:$0xff]
    %v1264 = vld [vmem:[%s8 + $0x810] sm:$0xff]
    %v1265 = vld [vmem:[%s8 + $0x818] sm:$0xff]
    %v1266 = vld [vmem:[%s8 + $0x820] sm:$0xff]
    %v1267 = vld [vmem:[%s8 + $0x828] sm:$0xff]
    %v1268 = vld [vmem:[%s8 + $0x830] sm:$0xff]
    %v1269 = vld [vmem:[%s8 + $0x838] sm:$0xff]
    %v1270 = vld [vmem:[%s8 + $0x840] sm:$0xff]
    %v1271 = vld [vmem:[%s8 + $0x848] sm:$0xff]
    %v1272 = vld [vmem:[%s8 + $0x850] sm:$0xff]
    %v1273 = vld [vmem:[%s8 + $0x858] sm:$0xff]
    %v1274 = vld [vmem:[%s8 + $0x860] sm:$0xff]
    %v1275 = vld [vmem:[%s8 + $0x868] sm:$0xff]
    %v1276 = vld [vmem:[%s8 + $0x870] sm:$0xff]
    %v1277 = vld [vmem:[%s8 + $0x878] sm:$0xff]
    %v1278 = vld [vmem:[%s8 + $0x880] sm:$0xff]
    %v1279 = vld [vmem:[%s8 + $0x888] sm:$0xff]
    %v1280 = vld [vmem:[%s8 + $0x890] sm:$0xff]
    %v1281 = vld [vmem:[%s8 + $0x898] sm:$0xff]
    %v1282 = vld [vmem:[%s8 + $0x8a0] sm:$0xff]
    %v1283 = vld [vmem:[%s8 + $0x8a8] sm:$0xff]
    %v1284 = vld [vmem:[%s8 + $0x8b0] sm:$0xff]
    %v1285 = vld [vmem:[%s8 + $0x8b8] sm:$0xff]
    %v1286 = vld [vmem:[%s8 + $0x8c0] sm:$0xff]
    %v1287 = vld [vmem:[%s8 + $0x8c8] sm:$0xff]
    %v1288 = vld [vmem:[%s8 + $0x8d0] sm:$0xff]
    %v1289 = vld [vmem:[%s8 + $0x8d8] sm:$0xff]
    %v1290 = vld [vmem:[%s8 + $0x8e0] sm:$0xff]
    %v1291 = vld [vmem:[%s8 + $0x8e8] sm:$0xff]
    %v1292 = vld [vmem:[%s8 + $0x8f0] sm:$0xff]
    %v1293 = vld [vmem:[%s8 + $0x8f8] sm:$0xff]
    %v1294 = vld [vmem:[%s8 + $0x900] sm:$0xff]
    %v1295 = vld [vmem:[%s8 + $0x908] sm:$0xff]
    %v1296 = vld [vmem:[%s8 + $0x910] sm:$0xff]
    %v1297 = vld [vmem:[%s8 + $0x918] sm:$0xff]
    %v1298 = vld [vmem:[%s8 + $0x920] sm:$0xff]
    %v1299 = vld [vmem:[%s8 + $0x928] sm:$0xff]
    %v1300 = vld [vmem:[%s8 + $0x930] sm:$0xff]
    %v1301 = vld [vmem:[%s8 + $0x938] sm:$0xff]
    %v1302 = vld [vmem:[%s8 + $0x940] sm:$0xff]
    %v1303 = vld [vmem:[%s8 + $0x948] sm:$0xff]
    %v1304 = vld [vmem:[%s8 + $0x950] sm:$0xff]
    %v1305 = vld [vmem:[%s8 + $0x958] sm:$0xff]
    %v1306 = vld [vmem:[%s8 + $0x960] sm:$0xff]
    %v1307 = vld [vmem:[%s8 + $0x968] sm:$0xff]
    %v1308 = vld [vmem:[%s8 + $0x970] sm:$0xff]
    %v1309 = vld [vmem:[%s8 + $0x978] sm:$0xff]
    %v1310 = vld [vmem:[%s8 + $0x980] sm:$0xff]
    %v1311 = vld [vmem:[%s8 + $0x988] sm:$0xff]
    %v1312 = vld [vmem:[%s8 + $0x990] sm:$0xff]
    %v1313 = vld [vmem:[%s8 + $0x998] sm:$0xff]
    %v1314 = vld [vmem:[%s8 + $0x9a0] sm:$0xff]
    %v1315 = vld [vmem:[%s8 + $0x9a8] sm:$0xff]
    %v1316 = vld [vmem:[%s8 + $0x9b0] sm:$0xff]
    %v1317 = vld [vmem:[%s8 + $0x9b8] sm:$0xff]
    %v1318 = vld [vmem:[%s8 + $0x9c0] sm:$0xff]
    %v1319 = vld [vmem:[%s8 + $0x9c8] sm:$0xff]
    %v1320 = vld [vmem:[%s8 + $0x9d0] sm:$0xff]
    %v1321 = vld [vmem:[%s8 + $0x9d8] sm:$0xff]
    %v1322 = vld [vmem:[%s8 + $0x9e0] sm:$0xff]
    %v1323 = vld [vmem:[%s8 + $0x9e8] sm:$0xff]
    %v1324 = vld [vmem:[%s8 + $0x9f0] sm:$0xff]
    %v1325 = vld [vmem:[%s8 + $0x9f8] sm:$0xff]
    %v1326 = vld [vmem:[%s8 + $0xa00] sm:$0xff]
    %v1327 = vld [vmem:[%s8 + $0xa08] sm:$0xff]
    %v1328 = vld [vmem:[%s8 + $0xa10] sm:$0xff]
    %v1329 = vld [vmem:[%s8 + $0xa18] sm:$0xff]
    %v1330 = vld [vmem:[%s8 + $0xa20] sm:$0xff]
    %v1331 = vld [vmem:[%s8 + $0xa28] sm:$0xff]
    %v1332 = vld [vmem:[%s8 + $0xa30] sm:$0xff]
    %v1333 = vld [vmem:[%s8 + $0xa38] sm:$0xff]
    %v1334 = vld [vmem:[%s8 + $0xa40] sm:$0xff]
    %v1335 = vld [vmem:[%s8 + $0xa48] sm:$0xff]
    %v1336 = vld [vmem:[%s8 + $0xa50] sm:$0xff]
    %v1337 = vld [vmem:[%s8 + $0xa58] sm:$0xff]
    %v1338 = vld [vmem:[%s8 + $0xa60] sm:$0xff]
    %v1339 = vld [vmem:[%s8 + $0xa68] sm:$0xff]
    %v1340 = vld [vmem:[%s8 + $0xa70] sm:$0xff]
    %v1341 = vld [vmem:[%s8 + $0xa78] sm:$0xff]
    %v1342 = vld [vmem:[%s8 + $0xa80] sm:$0xff]
    %v1343 = vld [vmem:[%s8 + $0xa88] sm:$0xff]
    %v1344 = vld [vmem:[%s8 + $0xa90] sm:$0xff]
    %v1345 = vld [vmem:[%s8 + $0xa98] sm:$0xff]
    %v1346 = vld [vmem:[%s8 + $0xaa0] sm:$0xff]
    %v1347 = vld [vmem:[%s8 + $0xaa8] sm:$0xff]
    %v1348 = vld [vmem:[%s8 + $0xab0] sm:$0xff]
    %v1349 = vld [vmem:[%s8 + $0xab8] sm:$0xff]
    %v1350 = vld [vmem:[%s8 + $0xac0] sm:$0xff]
    %v1351 = vld [vmem:[%s8 + $0xac8] sm:$0xff]
    %v1352 = vld [vmem:[%s8 + $0xad0] sm:$0xff]
    %v1353 = vld [vmem:[%s8 + $0xad8] sm:$0xff]
    %v1354 = vld [vmem:[%s8 + $0xae0] sm:$0xff]
    %v1355 = vld [vmem:[%s8 + $0xae8] sm:$0xff]
    %v1356 = vld [vmem:[%s8 + $0xaf0] sm:$0xff]
    %v1357 = vld [vmem:[%s8 + $0xaf8] sm:$0xff]
    %v1358 = vld [vmem:[%s8 + $0xb00] sm:$0xff]
    %v1359 = vld [vmem:[%s8 + $0xb08] sm:$0xff]
    %v1360 = vld [vmem:[%s8 + $0xb10] sm:$0xff]
    %v1361 = vld [vmem:[%s8 + $0xb18] sm:$0xff]
    %v1362 = vld [vmem:[%s8 + $0xb20] sm:$0xff]
    %v1363 = vld [vmem:[%s8 + $0xb28] sm:$0xff]
    %v1364 = vld [vmem:[%s8 + $0xb30] sm:$0xff]
    %v1365 = vld [vmem:[%s8 + $0xb38] sm:$0xff]
    %v1366 = vld [vmem:[%s8 + $0xb40] sm:$0xff]
    %v1367 = vld [vmem:[%s8 + $0xb48] sm:$0xff]
    %v1368 = vld [vmem:[%s8 + $0xb50] sm:$0xff]
    %v1369 = vld [vmem:[%s8 + $0xb58] sm:$0xff]
    %v1370 = vld [vmem:[%s8 + $0xb60] sm:$0xff]
    %v1371 = vld [vmem:[%s8 + $0xb68] sm:$0xff]
    %v1372 = vld [vmem:[%s8 + $0xb70] sm:$0xff]
    %v1373 = vld [vmem:[%s8 + $0xb78] sm:$0xff]
    %v1374 = vld [vmem:[%s8 + $0xb80] sm:$0xff]
    %v1375 = vld [vmem:[%s8 + $0xb88] sm:$0xff]
    %v1376 = vld [vmem:[%s8 + $0xb90] sm:$0xff]
    %v1377 = vld [vmem:[%s8 + $0xb98] sm:$0xff]
    %v1378 = vld [vmem:[%s8 + $0xba0] sm:$0xff]
    %v1379 = vld [vmem:[%s8 + $0xba8] sm:$0xff]
    %v1380 = vld [vmem:[%s8 + $0xbb0] sm:$0xff]
    %v1381 = vld [vmem:[%s8 + $0xbb8] sm:$0xff]
    %v1382 = vld [vmem:[%s8 + $0xbc0] sm:$0xff]
    %v1383 = vld [vmem:[%s8 + $0xbc8] sm:$0xff]
    %v1384 = vld [vmem:[%s8 + $0xbd0] sm:$0xff]
    %v1385 = vld [vmem:[%s8 + $0xbd8] sm:$0xff]
    %v1386 = vld [vmem:[%s8 + $0xbe0] sm:$0xff]
    %v1387 = vld [vmem:[%s8 + $0xbe8] sm:$0xff]
    %v1388 = vld [vmem:[%s8 + $0xbf0] sm:$0xff]
    %v1389 = vld [vmem:[%s8 + $0xbf8] sm:$0xff]
    %v1390 = vld [vmem:[%s8 + $0xc00] sm:$0xff]
    %v1391 = vld [vmem:[%s8 + $0xc08] sm:$0xff]
    %v1392 = vld [vmem:[%s8 + $0xc10] sm:$0xff]
    %v1393 = vld [vmem:[%s8 + $0xc18] sm:$0xff]
    %v1394 = vld [vmem:[%s8 + $0xc20] sm:$0xff]
    %v1395 = vld [vmem:[%s8 + $0xc28] sm:$0xff]
    %v1396 = vld [vmem:[%s8 + $0xc30] sm:$0xff]
    %v1397 = vld [vmem:[%s8 + $0xc38] sm:$0xff]
    %v1398 = vld [vmem:[%s8 + $0xc40] sm:$0xff]
    %v1399 = vld [vmem:[%s8 + $0xc48] sm:$0xff]
    %v1400 = vld [vmem:[%s8 + $0xc50] sm:$0xff]
    %v1401 = vld [vmem:[%s8 + $0xc58] sm:$0xff]
    %v1402 = vld [vmem:[%s8 + $0xc60] sm:$0xff]
    %v1403 = vld [vmem:[%s8 + $0xc68] sm:$0xff]
    %v1404 = vld [vmem:[%s8 + $0xc70] sm:$0xff]
    %v1405 = vld [vmem:[%s8 + $0xc78] sm:$0xff]
    %v1406 = vld [vmem:[%s8 + $0xc80] sm:$0xff]
    %v1407 = vld [vmem:[%s8 + $0xc88] sm:$0xff]
    %v1408 = vld [vmem:[%s8 + $0xc90] sm:$0xff]
    %v1409 = vld [vmem:[%s8 + $0xc98] sm:$0xff]
    %v1410 = vld [vmem:[%s8 + $0xca0] sm:$0xff]
    %v1411 = vld [vmem:[%s8 + $0xca8] sm:$0xff]
    %v1412 = vld [vmem:[%s8 + $0xcb0] sm:$0xff]
    %v1413 = vld [vmem:[%s8 + $0xcb8] sm:$0xff]
    %v1414 = vld [vmem:[%s8 + $0xcc0] sm:$0xff]
    %v1415 = vld [vmem:[%s8 + $0xcc8] sm:$0xff]
    %v1416 = vld [vmem:[%s8 + $0xcd0] sm:$0xff]
    %v1417 = vld [vmem:[%s8 + $0xcd8] sm:$0xff]
    %v1418 = vld [vmem:[%s8 + $0xce0] sm:$0xff]
    %v1419 = vld [vmem:[%s8 + $0xce8] sm:$0xff]
    %v1420 = vld [vmem:[%s8 + $0xcf0] sm:$0xff]
    %v1421 = vld [vmem:[%s8 + $0xcf8] sm:$0xff]
    %v1422 = vld [vmem:[%s8 + $0xd00] sm:$0xff]
    %v1423 = vld [vmem:[%s8 + $0xd08] sm:$0xff]
    %v1424 = vld [vmem:[%s8 + $0xd10] sm:$0xff]
    %v1425 = vld [vmem:[%s8 + $0xd18] sm:$0xff]
    %v1426 = vld [vmem:[%s8 + $0xd20] sm:$0xff]
    %v1427 = vld [vmem:[%s8 + $0xd28] sm:$0xff]
    %v1428 = vld [vmem:[%s8 + $0xd30] sm:$0xff]
    %v1429 = vld [vmem:[%s8 + $0xd38] sm:$0xff]
    %v1430 = vld [vmem:[%s8 + $0xd40] sm:$0xff]
    %v1431 = vld [vmem:[%s8 + $0xd48] sm:$0xff]
    %v1432 = vld [vmem:[%s8 + $0xd50] sm:$0xff]
    %v1433 = vld [vmem:[%s8 + $0xd58] sm:$0xff]
    %v1434 = vld [vmem:[%s8 + $0xd60] sm:$0xff]
    %v1435 = vld [vmem:[%s8 + $0xd68] sm:$0xff]
    %v1436 = vld [vmem:[%s8 + $0xd70] sm:$0xff]
    %v1437 = vld [vmem:[%s8 + $0xd78] sm:$0xff]
    %v1438 = vld [vmem:[%s8 + $0xd80] sm:$0xff]
    %v1439 = vld [vmem:[%s8 + $0xd88] sm:$0xff]
    %v1440 = vld [vmem:[%s8 + $0xd90] sm:$0xff]
    %v1441 = vld [vmem:[%s8 + $0xd98] sm:$0xff]
    %v1442 = vld [vmem:[%s8 + $0xda0] sm:$0xff]
    %v1443 = vld [vmem:[%s8 + $0xda8] sm:$0xff]
    %v1444 = vld [vmem:[%s8 + $0xdb0] sm:$0xff]
    %v1445 = vld [vmem:[%s8 + $0xdb8] sm:$0xff]
    %v1446 = vld [vmem:[%s8 + $0xdc0] sm:$0xff]
    %v1447 = vld [vmem:[%s8 + $0xdc8] sm:$0xff]
    %v1448 = vld [vmem:[%s8 + $0xdd0] sm:$0xff]
    %v1449 = vld [vmem:[%s8 + $0xdd8] sm:$0xff]
    %v1450 = vld [vmem:[%s8 + $0xde0] sm:$0xff]
    %v1451 = vld [vmem:[%s8 + $0xde8] sm:$0xff]
    %v1452 = vld [vmem:[%s8 + $0xdf0] sm:$0xff]
    %v1453 = vld [vmem:[%s8 + $0xdf8] sm:$0xff]
    %v1454 = vld [vmem:[%s8 + $0xe00] sm:$0xff]
    %v1455 = vld [vmem:[%s8 + $0xe08] sm:$0xff]
    %v1456 = vld [vmem:[%s8 + $0xe10] sm:$0xff]
    %v1457 = vld [vmem:[%s8 + $0xe18] sm:$0xff]
    %v1458 = vld [vmem:[%s8 + $0xe20] sm:$0xff]
    %v1459 = vld [vmem:[%s8 + $0xe28] sm:$0xff]
    %v1460 = vld [vmem:[%s8 + $0xe30] sm:$0xff]
    %v1461 = vld [vmem:[%s8 + $0xe38] sm:$0xff]
    %v1462 = vld [vmem:[%s8 + $0xe40] sm:$0xff]
    %v1463 = vld [vmem:[%s8 + $0xe48] sm:$0xff]
    %v1464 = vld [vmem:[%s8 + $0xe50] sm:$0xff]
    %v1465 = vld [vmem:[%s8 + $0xe58] sm:$0xff]
    %v1466 = vld [vmem:[%s8 + $0xe60] sm:$0xff]
    %v1467 = vld [vmem:[%s8 + $0xe68] sm:$0xff]
    %v1468 = vld [vmem:[%s8 + $0xe70] sm:$0xff]
    %v1469 = vld [vmem:[%s8 + $0xe78] sm:$0xff]
    %v1470 = vld [vmem:[%s8 + $0xe80] sm:$0xff]
    %v1471 = vld [vmem:[%s8 + $0xe88] sm:$0xff]
    %v1472 = vld [vmem:[%s8 + $0xe90] sm:$0xff]
    %v1473 = vld [vmem:[%s8 + $0xe98] sm:$0xff]
    %v1474 = vld [vmem:[%s8 + $0xea0] sm:$0xff]
    %v1475 = vld [vmem:[%s8 + $0xea8] sm:$0xff]
    %v1476 = vld [vmem:[%s8 + $0xeb0] sm:$0xff]
    %v1477 = vld [vmem:[%s8 + $0xeb8] sm:$0xff]
    %v1478 = vld [vmem:[%s8 + $0xec0] sm:$0xff]
    %v1479 = vld [vmem:[%s8 + $0xec8] sm:$0xff]
    %v1480 = vld [vmem:[%s8 + $0xed0] sm:$0xff]
    %v1481 = vld [vmem:[%s8 + $0xed8] sm:$0xff]
    %v1482 = vld [vmem:[%s8 + $0xee0] sm:$0xff]
    %v1483 = vld [vmem:[%s8 + $0xee8] sm:$0xff]
    %v1484 = vld [vmem:[%s8 + $0xef0] sm:$0xff]
    %v1485 = vld [vmem:[%s8 + $0xef8] sm:$0xff]
    %v1486 = vld [vmem:[%s8 + $0xf00] sm:$0xff]
    %v1487 = vld [vmem:[%s8 + $0xf08] sm:$0xff]
    %v1488 = vld [vmem:[%s8 + $0xf10] sm:$0xff]
    %v1489 = vld [vmem:[%s8 + $0xf18] sm:$0xff]
    %v1490 = vld [vmem:[%s8 + $0xf20] sm:$0xff]
    %v1491 = vld [vmem:[%s8 + $0xf28] sm:$0xff]
    %v1492 = vld [vmem:[%s8 + $0xf30] sm:$0xff]
    %v1493 = vld [vmem:[%s8 + $0xf38] sm:$0xff]
    %v1494 = vld [vmem:[%s8 + $0xf40] sm:$0xff]
    %v1495 = vld [vmem:[%s8 + $0xf48] sm:$0xff]
    %v1496 = vld [vmem:[%s8 + $0xf50] sm:$0xff]
    %v1497 = vld [vmem:[%s8 + $0xf58] sm:$0xff]
    %v1498 = vld [vmem:[%s8 + $0xf60] sm:$0xff]
    %v1499 = vld [vmem:[%s8 + $0xf68] sm:$0xff]
    %v1500 = vld [vmem:[%s8 + $0xf70] sm:$0xff]
    %v1501 = vld [vmem:[%s8 + $0xf78] sm:$0xff]
    %v1502 = vld [vmem:[%s8 + $0xf80] sm:$0xff]
    %v1503 = vld [vmem:[%s8 + $0xf88] sm:$0xff]
    %v1504 = vld [vmem:[%s8 + $0xf90] sm:$0xff]
    %v1505 = vld [vmem:[%s8 + $0xf98] sm:$0xff]
    %v1506 = vld [vmem:[%s8 + $0xfa0] sm:$0xff]
    %v1507 = vld [vmem:[%s8 + $0xfa8] sm:$0xff]
    %v1508 = vld [vmem:[%s8 + $0xfb0] sm:$0xff]
    %v1509 = vld [vmem:[%s8 + $0xfb8] sm:$0xff]
    %v1510 = vld [vmem:[%s8 + $0xfc0] sm:$0xff]
    %v1511 = vld [vmem:[%s8 + $0xfc8] sm:$0xff]
    %v1512 = vld [vmem:[%s8 + $0xfd0] sm:$0xff]
    %v1513 = vld [vmem:[%s8 + $0xfd8] sm:$0xff]
    %v1514 = vld [vmem:[%s8 + $0xfe0] sm:$0xff]
    %v1515 = vld [vmem:[%s8 + $0xfe8] sm:$0xff]
    %v1516 = vld [vmem:[%s8 + $0xff0] sm:$0xff]
    %v1517 = vld [vmem:[%s8 + $0xff8] sm:$0xff]
    %v1518 = vld [vmem:[%s9] sm:$0xff]
    %v1520 = vlaneseq
    %v1521 = vshrl.u32 %v1520, 7
    %v1522 = vsub.s32 0, %v1521
    %v1523 = vrot.slane %v1518, %v1522
    %v1524 = vlaneseq
    %v1525 = vshrl.u32 %v1524, 7
    %v1526 = vsub.s32 1, %v1525
    %v1527 = vrot.slane %v1518, %v1526
    %v1528 = vlaneseq
    %v1529 = vshrl.u32 %v1528, 7
    %v1530 = vsub.s32 2, %v1529
    %v1531 = vrot.slane %v1518, %v1530
    %v1532 = vlaneseq
    %v1533 = vshrl.u32 %v1532, 7
    %v1534 = vsub.s32 3, %v1533
    %v1535 = vrot.slane %v1518, %v1534
    %v1536 = vlaneseq
    %v1537 = vshrl.u32 %v1536, 7
    %v1538 = vsub.s32 4, %v1537
    %v1539 = vrot.slane %v1518, %v1538
    %v1540 = vlaneseq
    %v1541 = vshrl.u32 %v1540, 7
    %v1542 = vsub.s32 5, %v1541
    %v1543 = vrot.slane %v1518, %v1542
    %v1544 = vlaneseq
    %v1545 = vshrl.u32 %v1544, 7
    %v1546 = vsub.s32 6, %v1545
    %v1547 = vrot.slane %v1518, %v1546
    %v1548 = vlaneseq
    %v1549 = vshrl.u32 %v1548, 7
    %v1550 = vsub.s32 7, %v1549
    %v1551 = vrot.slane %v1518, %v1550
    %v2072 = vunpack.c.l.b16 %v1006
    %v2073 = vunpack.c.h.b16 %v1006
    %v2074 = vunpack.c.l.b16 %v1007
    %v2075 = vunpack.c.h.b16 %v1007
    %v2076 = vunpack.c.l.b16 %v1008
    %v2077 = vunpack.c.h.b16 %v1008
    %v2078 = vunpack.c.l.b16 %v1009
    %v2079 = vunpack.c.h.b16 %v1009
    %v2080 = vunpack.c.l.b16 %v1010
    %v2081 = vunpack.c.h.b16 %v1010
    %v2082 = vunpack.c.l.b16 %v1011
    %v2083 = vunpack.c.h.b16 %v1011
    %v2084 = vunpack.c.l.b16 %v1012
    %v2085 = vunpack.c.h.b16 %v1012
    %v2086 = vunpack.c.l.b16 %v1013
    %v2087 = vunpack.c.h.b16 %v1013
    %v2088 = vunpack.c.l.b16 %v1014
    %v2089 = vunpack.c.h.b16 %v1014
    %v2090 = vunpack.c.l.b16 %v1015
    %v2091 = vunpack.c.h.b16 %v1015
    %v2092 = vunpack.c.l.b16 %v1016
    %v2093 = vunpack.c.h.b16 %v1016
    %v2094 = vunpack.c.l.b16 %v1017
    %v2095 = vunpack.c.h.b16 %v1017
    %v2096 = vunpack.c.l.b16 %v1018
    %v2097 = vunpack.c.h.b16 %v1018
    %v2098 = vunpack.c.l.b16 %v1019
    %v2099 = vunpack.c.h.b16 %v1019
    %v2100 = vunpack.c.l.b16 %v1020
    %v2101 = vunpack.c.h.b16 %v1020
    %v2102 = vunpack.c.l.b16 %v1021
    %v2103 = vunpack.c.h.b16 %v1021
    %v2104 = vunpack.c.l.b16 %v1022
    %v2105 = vunpack.c.h.b16 %v1022
    %v2106 = vunpack.c.l.b16 %v1023
    %v2107 = vunpack.c.h.b16 %v1023
    %v2108 = vunpack.c.l.b16 %v1024
    %v2109 = vunpack.c.h.b16 %v1024
    %v2110 = vunpack.c.l.b16 %v1025
    %v2111 = vunpack.c.h.b16 %v1025
    %v2112 = vunpack.c.l.b16 %v1026
    %v2113 = vunpack.c.h.b16 %v1026
    %v2114 = vunpack.c.l.b16 %v1027
    %v2115 = vunpack.c.h.b16 %v1027
    %v2116 = vunpack.c.l.b16 %v1028
    %v2117 = vunpack.c.h.b16 %v1028
    %v2118 = vunpack.c.l.b16 %v1029
    %v2119 = vunpack.c.h.b16 %v1029
    %v2120 = vunpack.c.l.b16 %v1030
    %v2121 = vunpack.c.h.b16 %v1030
    %v2122 = vunpack.c.l.b16 %v1031
    %v2123 = vunpack.c.h.b16 %v1031
    %v2124 = vunpack.c.l.b16 %v1032
    %v2125 = vunpack.c.h.b16 %v1032
    %v2126 = vunpack.c.l.b16 %v1033
    %v2127 = vunpack.c.h.b16 %v1033
    %v2128 = vunpack.c.l.b16 %v1034
    %v2129 = vunpack.c.h.b16 %v1034
    %v2130 = vunpack.c.l.b16 %v1035
    %v2131 = vunpack.c.h.b16 %v1035
    %v2132 = vunpack.c.l.b16 %v1036
    %v2133 = vunpack.c.h.b16 %v1036
    %v2134 = vunpack.c.l.b16 %v1037
    %v2135 = vunpack.c.h.b16 %v1037
    %v2136 = vunpack.c.l.b16 %v1038
    %v2137 = vunpack.c.h.b16 %v1038
    %v2138 = vunpack.c.l.b16 %v1039
    %v2139 = vunpack.c.h.b16 %v1039
    %v2140 = vunpack.c.l.b16 %v1040
    %v2141 = vunpack.c.h.b16 %v1040
    %v2142 = vunpack.c.l.b16 %v1041
    %v2143 = vunpack.c.h.b16 %v1041
    %v2144 = vunpack.c.l.b16 %v1042
    %v2145 = vunpack.c.h.b16 %v1042
    %v2146 = vunpack.c.l.b16 %v1043
    %v2147 = vunpack.c.h.b16 %v1043
    %v2148 = vunpack.c.l.b16 %v1044
    %v2149 = vunpack.c.h.b16 %v1044
    %v2150 = vunpack.c.l.b16 %v1045
    %v2151 = vunpack.c.h.b16 %v1045
    %v2152 = vunpack.c.l.b16 %v1046
    %v2153 = vunpack.c.h.b16 %v1046
    %v2154 = vunpack.c.l.b16 %v1047
    %v2155 = vunpack.c.h.b16 %v1047
    %v2156 = vunpack.c.l.b16 %v1048
    %v2157 = vunpack.c.h.b16 %v1048
    %v2158 = vunpack.c.l.b16 %v1049
    %v2159 = vunpack.c.h.b16 %v1049
    %v2160 = vunpack.c.l.b16 %v1050
    %v2161 = vunpack.c.h.b16 %v1050
    %v2162 = vunpack.c.l.b16 %v1051
    %v2163 = vunpack.c.h.b16 %v1051
    %v2164 = vunpack.c.l.b16 %v1052
    %v2165 = vunpack.c.h.b16 %v1052
    %v2166 = vunpack.c.l.b16 %v1053
    %v2167 = vunpack.c.h.b16 %v1053
    %v2168 = vunpack.c.l.b16 %v1054
    %v2169 = vunpack.c.h.b16 %v1054
    %v2170 = vunpack.c.l.b16 %v1055
    %v2171 = vunpack.c.h.b16 %v1055
    %v2172 = vunpack.c.l.b16 %v1056
    %v2173 = vunpack.c.h.b16 %v1056
    %v2174 = vunpack.c.l.b16 %v1057
    %v2175 = vunpack.c.h.b16 %v1057
    %v2176 = vunpack.c.l.b16 %v1058
    %v2177 = vunpack.c.h.b16 %v1058
    %v2178 = vunpack.c.l.b16 %v1059
    %v2179 = vunpack.c.h.b16 %v1059
    %v2180 = vunpack.c.l.b16 %v1060
    %v2181 = vunpack.c.h.b16 %v1060
    %v2182 = vunpack.c.l.b16 %v1061
    %v2183 = vunpack.c.h.b16 %v1061
    %v2184 = vunpack.c.l.b16 %v1062
    %v2185 = vunpack.c.h.b16 %v1062
    %v2186 = vunpack.c.l.b16 %v1063
    %v2187 = vunpack.c.h.b16 %v1063
    %v2188 = vunpack.c.l.b16 %v1064
    %v2189 = vunpack.c.h.b16 %v1064
    %v2190 = vunpack.c.l.b16 %v1065
    %v2191 = vunpack.c.h.b16 %v1065
    %v2192 = vunpack.c.l.b16 %v1066
    %v2193 = vunpack.c.h.b16 %v1066
    %v2194 = vunpack.c.l.b16 %v1067
    %v2195 = vunpack.c.h.b16 %v1067
    %v2196 = vunpack.c.l.b16 %v1068
    %v2197 = vunpack.c.h.b16 %v1068
    %v2198 = vunpack.c.l.b16 %v1069
    %v2199 = vunpack.c.h.b16 %v1069
    %v2200 = vunpack.c.l.b16 %v1070
    %v2201 = vunpack.c.h.b16 %v1070
    %v2202 = vunpack.c.l.b16 %v1071
    %v2203 = vunpack.c.h.b16 %v1071
    %v2204 = vunpack.c.l.b16 %v1072
    %v2205 = vunpack.c.h.b16 %v1072
    %v2206 = vunpack.c.l.b16 %v1073
    %v2207 = vunpack.c.h.b16 %v1073
    %v2208 = vunpack.c.l.b16 %v1074
    %v2209 = vunpack.c.h.b16 %v1074
    %v2210 = vunpack.c.l.b16 %v1075
    %v2211 = vunpack.c.h.b16 %v1075
    %v2212 = vunpack.c.l.b16 %v1076
    %v2213 = vunpack.c.h.b16 %v1076
    %v2214 = vunpack.c.l.b16 %v1077
    %v2215 = vunpack.c.h.b16 %v1077
    %v2216 = vunpack.c.l.b16 %v1078
    %v2217 = vunpack.c.h.b16 %v1078
    %v2218 = vunpack.c.l.b16 %v1079
    %v2219 = vunpack.c.h.b16 %v1079
    %v2220 = vunpack.c.l.b16 %v1080
    %v2221 = vunpack.c.h.b16 %v1080
    %v2222 = vunpack.c.l.b16 %v1081
    %v2223 = vunpack.c.h.b16 %v1081
    %v2224 = vunpack.c.l.b16 %v1082
    %v2225 = vunpack.c.h.b16 %v1082
    %v2226 = vunpack.c.l.b16 %v1083
    %v2227 = vunpack.c.h.b16 %v1083
    %v2228 = vunpack.c.l.b16 %v1084
    %v2229 = vunpack.c.h.b16 %v1084
    %v2230 = vunpack.c.l.b16 %v1085
    %v2231 = vunpack.c.h.b16 %v1085
    %v2232 = vunpack.c.l.b16 %v1086
    %v2233 = vunpack.c.h.b16 %v1086
    %v2234 = vunpack.c.l.b16 %v1087
    %v2235 = vunpack.c.h.b16 %v1087
    %v2236 = vunpack.c.l.b16 %v1088
    %v2237 = vunpack.c.h.b16 %v1088
    %v2238 = vunpack.c.l.b16 %v1089
    %v2239 = vunpack.c.h.b16 %v1089
    %v2240 = vunpack.c.l.b16 %v1090
    %v2241 = vunpack.c.h.b16 %v1090
    %v2242 = vunpack.c.l.b16 %v1091
    %v2243 = vunpack.c.h.b16 %v1091
    %v2244 = vunpack.c.l.b16 %v1092
    %v2245 = vunpack.c.h.b16 %v1092
    %v2246 = vunpack.c.l.b16 %v1093
    %v2247 = vunpack.c.h.b16 %v1093
    %v2248 = vunpack.c.l.b16 %v1094
    %v2249 = vunpack.c.h.b16 %v1094
    %v2250 = vunpack.c.l.b16 %v1095
    %v2251 = vunpack.c.h.b16 %v1095
    %v2252 = vunpack.c.l.b16 %v1096
    %v2253 = vunpack.c.h.b16 %v1096
    %v2254 = vunpack.c.l.b16 %v1097
    %v2255 = vunpack.c.h.b16 %v1097
    %v2256 = vunpack.c.l.b16 %v1098
    %v2257 = vunpack.c.h.b16 %v1098
    %v2258 = vunpack.c.l.b16 %v1099
    %v2259 = vunpack.c.h.b16 %v1099
    %v2260 = vunpack.c.l.b16 %v1100
    %v2261 = vunpack.c.h.b16 %v1100
    %v2262 = vunpack.c.l.b16 %v1101
    %v2263 = vunpack.c.h.b16 %v1101
    %v2264 = vunpack.c.l.b16 %v1102
    %v2265 = vunpack.c.h.b16 %v1102
    %v2266 = vunpack.c.l.b16 %v1103
    %v2267 = vunpack.c.h.b16 %v1103
    %v2268 = vunpack.c.l.b16 %v1104
    %v2269 = vunpack.c.h.b16 %v1104
    %v2270 = vunpack.c.l.b16 %v1105
    %v2271 = vunpack.c.h.b16 %v1105
    %v2272 = vunpack.c.l.b16 %v1106
    %v2273 = vunpack.c.h.b16 %v1106
    %v2274 = vunpack.c.l.b16 %v1107
    %v2275 = vunpack.c.h.b16 %v1107
    %v2276 = vunpack.c.l.b16 %v1108
    %v2277 = vunpack.c.h.b16 %v1108
    %v2278 = vunpack.c.l.b16 %v1109
    %v2279 = vunpack.c.h.b16 %v1109
    %v2280 = vunpack.c.l.b16 %v1110
    %v2281 = vunpack.c.h.b16 %v1110
    %v2282 = vunpack.c.l.b16 %v1111
    %v2283 = vunpack.c.h.b16 %v1111
    %v2284 = vunpack.c.l.b16 %v1112
    %v2285 = vunpack.c.h.b16 %v1112
    %v2286 = vunpack.c.l.b16 %v1113
    %v2287 = vunpack.c.h.b16 %v1113
    %v2288 = vunpack.c.l.b16 %v1114
    %v2289 = vunpack.c.h.b16 %v1114
    %v2290 = vunpack.c.l.b16 %v1115
    %v2291 = vunpack.c.h.b16 %v1115
    %v2292 = vunpack.c.l.b16 %v1116
    %v2293 = vunpack.c.h.b16 %v1116
    %v2294 = vunpack.c.l.b16 %v1117
    %v2295 = vunpack.c.h.b16 %v1117
    %v2296 = vunpack.c.l.b16 %v1118
    %v2297 = vunpack.c.h.b16 %v1118
    %v2298 = vunpack.c.l.b16 %v1119
    %v2299 = vunpack.c.h.b16 %v1119
    %v2300 = vunpack.c.l.b16 %v1120
    %v2301 = vunpack.c.h.b16 %v1120
    %v2302 = vunpack.c.l.b16 %v1121
    %v2303 = vunpack.c.h.b16 %v1121
    %v2304 = vunpack.c.l.b16 %v1122
    %v2305 = vunpack.c.h.b16 %v1122
    %v2306 = vunpack.c.l.b16 %v1123
    %v2307 = vunpack.c.h.b16 %v1123
    %v2308 = vunpack.c.l.b16 %v1124
    %v2309 = vunpack.c.h.b16 %v1124
    %v2310 = vunpack.c.l.b16 %v1125
    %v2311 = vunpack.c.h.b16 %v1125
    %v2312 = vunpack.c.l.b16 %v1126
    %v2313 = vunpack.c.h.b16 %v1126
    %v2314 = vunpack.c.l.b16 %v1127
    %v2315 = vunpack.c.h.b16 %v1127
    %v2316 = vunpack.c.l.b16 %v1128
    %v2317 = vunpack.c.h.b16 %v1128
    %v2318 = vunpack.c.l.b16 %v1129
    %v2319 = vunpack.c.h.b16 %v1129
    %v2320 = vunpack.c.l.b16 %v1130
    %v2321 = vunpack.c.h.b16 %v1130
    %v2322 = vunpack.c.l.b16 %v1131
    %v2323 = vunpack.c.h.b16 %v1131
    %v2324 = vunpack.c.l.b16 %v1132
    %v2325 = vunpack.c.h.b16 %v1132
    %v2326 = vunpack.c.l.b16 %v1133
    %v2327 = vunpack.c.h.b16 %v1133
    %v2328 = vunpack.c.l.b16 %v1134
    %v2329 = vunpack.c.h.b16 %v1134
    %v2330 = vunpack.c.l.b16 %v1135
    %v2331 = vunpack.c.h.b16 %v1135
    %v2332 = vunpack.c.l.b16 %v1136
    %v2333 = vunpack.c.h.b16 %v1136
    %v2334 = vunpack.c.l.b16 %v1137
    %v2335 = vunpack.c.h.b16 %v1137
    %v2336 = vunpack.c.l.b16 %v1138
    %v2337 = vunpack.c.h.b16 %v1138
    %v2338 = vunpack.c.l.b16 %v1139
    %v2339 = vunpack.c.h.b16 %v1139
    %v2340 = vunpack.c.l.b16 %v1140
    %v2341 = vunpack.c.h.b16 %v1140
    %v2342 = vunpack.c.l.b16 %v1141
    %v2343 = vunpack.c.h.b16 %v1141
    %v2344 = vunpack.c.l.b16 %v1142
    %v2345 = vunpack.c.h.b16 %v1142
    %v2346 = vunpack.c.l.b16 %v1143
    %v2347 = vunpack.c.h.b16 %v1143
    %v2348 = vunpack.c.l.b16 %v1144
    %v2349 = vunpack.c.h.b16 %v1144
    %v2350 = vunpack.c.l.b16 %v1145
    %v2351 = vunpack.c.h.b16 %v1145
    %v2352 = vunpack.c.l.b16 %v1146
    %v2353 = vunpack.c.h.b16 %v1146
    %v2354 = vunpack.c.l.b16 %v1147
    %v2355 = vunpack.c.h.b16 %v1147
    %v2356 = vunpack.c.l.b16 %v1148
    %v2357 = vunpack.c.h.b16 %v1148
    %v2358 = vunpack.c.l.b16 %v1149
    %v2359 = vunpack.c.h.b16 %v1149
    %v2360 = vunpack.c.l.b16 %v1150
    %v2361 = vunpack.c.h.b16 %v1150
    %v2362 = vunpack.c.l.b16 %v1151
    %v2363 = vunpack.c.h.b16 %v1151
    %v2364 = vunpack.c.l.b16 %v1152
    %v2365 = vunpack.c.h.b16 %v1152
    %v2366 = vunpack.c.l.b16 %v1153
    %v2367 = vunpack.c.h.b16 %v1153
    %v2368 = vunpack.c.l.b16 %v1154
    %v2369 = vunpack.c.h.b16 %v1154
    %v2370 = vunpack.c.l.b16 %v1155
    %v2371 = vunpack.c.h.b16 %v1155
    %v2372 = vunpack.c.l.b16 %v1156
    %v2373 = vunpack.c.h.b16 %v1156
    %v2374 = vunpack.c.l.b16 %v1157
    %v2375 = vunpack.c.h.b16 %v1157
    %v2376 = vunpack.c.l.b16 %v1158
    %v2377 = vunpack.c.h.b16 %v1158
    %v2378 = vunpack.c.l.b16 %v1159
    %v2379 = vunpack.c.h.b16 %v1159
    %v2380 = vunpack.c.l.b16 %v1160
    %v2381 = vunpack.c.h.b16 %v1160
    %v2382 = vunpack.c.l.b16 %v1161
    %v2383 = vunpack.c.h.b16 %v1161
    %v2384 = vunpack.c.l.b16 %v1162
    %v2385 = vunpack.c.h.b16 %v1162
    %v2386 = vunpack.c.l.b16 %v1163
    %v2387 = vunpack.c.h.b16 %v1163
    %v2388 = vunpack.c.l.b16 %v1164
    %v2389 = vunpack.c.h.b16 %v1164
    %v2390 = vunpack.c.l.b16 %v1165
    %v2391 = vunpack.c.h.b16 %v1165
    %v2392 = vunpack.c.l.b16 %v1166
    %v2393 = vunpack.c.h.b16 %v1166
    %v2394 = vunpack.c.l.b16 %v1167
    %v2395 = vunpack.c.h.b16 %v1167
    %v2396 = vunpack.c.l.b16 %v1168
    %v2397 = vunpack.c.h.b16 %v1168
    %v2398 = vunpack.c.l.b16 %v1169
    %v2399 = vunpack.c.h.b16 %v1169
    %v2400 = vunpack.c.l.b16 %v1170
    %v2401 = vunpack.c.h.b16 %v1170
    %v2402 = vunpack.c.l.b16 %v1171
    %v2403 = vunpack.c.h.b16 %v1171
    %v2404 = vunpack.c.l.b16 %v1172
    %v2405 = vunpack.c.h.b16 %v1172
    %v2406 = vunpack.c.l.b16 %v1173
    %v2407 = vunpack.c.h.b16 %v1173
    %v2408 = vunpack.c.l.b16 %v1174
    %v2409 = vunpack.c.h.b16 %v1174
    %v2410 = vunpack.c.l.b16 %v1175
    %v2411 = vunpack.c.h.b16 %v1175
    %v2412 = vunpack.c.l.b16 %v1176
    %v2413 = vunpack.c.h.b16 %v1176
    %v2414 = vunpack.c.l.b16 %v1177
    %v2415 = vunpack.c.h.b16 %v1177
    %v2416 = vunpack.c.l.b16 %v1178
    %v2417 = vunpack.c.h.b16 %v1178
    %v2418 = vunpack.c.l.b16 %v1179
    %v2419 = vunpack.c.h.b16 %v1179
    %v2420 = vunpack.c.l.b16 %v1180
    %v2421 = vunpack.c.h.b16 %v1180
    %v2422 = vunpack.c.l.b16 %v1181
    %v2423 = vunpack.c.h.b16 %v1181
    %v2424 = vunpack.c.l.b16 %v1182
    %v2425 = vunpack.c.h.b16 %v1182
    %v2426 = vunpack.c.l.b16 %v1183
    %v2427 = vunpack.c.h.b16 %v1183
    %v2428 = vunpack.c.l.b16 %v1184
    %v2429 = vunpack.c.h.b16 %v1184
    %v2430 = vunpack.c.l.b16 %v1185
    %v2431 = vunpack.c.h.b16 %v1185
    %v2432 = vunpack.c.l.b16 %v1186
    %v2433 = vunpack.c.h.b16 %v1186
    %v2434 = vunpack.c.l.b16 %v1187
    %v2435 = vunpack.c.h.b16 %v1187
    %v2436 = vunpack.c.l.b16 %v1188
    %v2437 = vunpack.c.h.b16 %v1188
    %v2438 = vunpack.c.l.b16 %v1189
    %v2439 = vunpack.c.h.b16 %v1189
    %v2440 = vunpack.c.l.b16 %v1190
    %v2441 = vunpack.c.h.b16 %v1190
    %v2442 = vunpack.c.l.b16 %v1191
    %v2443 = vunpack.c.h.b16 %v1191
    %v2444 = vunpack.c.l.b16 %v1192
    %v2445 = vunpack.c.h.b16 %v1192
    %v2446 = vunpack.c.l.b16 %v1193
    %v2447 = vunpack.c.h.b16 %v1193
    %v2448 = vunpack.c.l.b16 %v1194
    %v2449 = vunpack.c.h.b16 %v1194
    %v2450 = vunpack.c.l.b16 %v1195
    %v2451 = vunpack.c.h.b16 %v1195
    %v2452 = vunpack.c.l.b16 %v1196
    %v2453 = vunpack.c.h.b16 %v1196
    %v2454 = vunpack.c.l.b16 %v1197
    %v2455 = vunpack.c.h.b16 %v1197
    %v2456 = vunpack.c.l.b16 %v1198
    %v2457 = vunpack.c.h.b16 %v1198
    %v2458 = vunpack.c.l.b16 %v1199
    %v2459 = vunpack.c.h.b16 %v1199
    %v2460 = vunpack.c.l.b16 %v1200
    %v2461 = vunpack.c.h.b16 %v1200
    %v2462 = vunpack.c.l.b16 %v1201
    %v2463 = vunpack.c.h.b16 %v1201
    %v2464 = vunpack.c.l.b16 %v1202
    %v2465 = vunpack.c.h.b16 %v1202
    %v2466 = vunpack.c.l.b16 %v1203
    %v2467 = vunpack.c.h.b16 %v1203
    %v2468 = vunpack.c.l.b16 %v1204
    %v2469 = vunpack.c.h.b16 %v1204
    %v2470 = vunpack.c.l.b16 %v1205
    %v2471 = vunpack.c.h.b16 %v1205
    %v2472 = vunpack.c.l.b16 %v1206
    %v2473 = vunpack.c.h.b16 %v1206
    %v2474 = vunpack.c.l.b16 %v1207
    %v2475 = vunpack.c.h.b16 %v1207
    %v2476 = vunpack.c.l.b16 %v1208
    %v2477 = vunpack.c.h.b16 %v1208
    %v2478 = vunpack.c.l.b16 %v1209
    %v2479 = vunpack.c.h.b16 %v1209
    %v2480 = vunpack.c.l.b16 %v1210
    %v2481 = vunpack.c.h.b16 %v1210
    %v2482 = vunpack.c.l.b16 %v1211
    %v2483 = vunpack.c.h.b16 %v1211
    %v2484 = vunpack.c.l.b16 %v1212
    %v2485 = vunpack.c.h.b16 %v1212
    %v2486 = vunpack.c.l.b16 %v1213
    %v2487 = vunpack.c.h.b16 %v1213
    %v2488 = vunpack.c.l.b16 %v1214
    %v2489 = vunpack.c.h.b16 %v1214
    %v2490 = vunpack.c.l.b16 %v1215
    %v2491 = vunpack.c.h.b16 %v1215
    %v2492 = vunpack.c.l.b16 %v1216
    %v2493 = vunpack.c.h.b16 %v1216
    %v2494 = vunpack.c.l.b16 %v1217
    %v2495 = vunpack.c.h.b16 %v1217
    %v2496 = vunpack.c.l.b16 %v1218
    %v2497 = vunpack.c.h.b16 %v1218
    %v2498 = vunpack.c.l.b16 %v1219
    %v2499 = vunpack.c.h.b16 %v1219
    %v2500 = vunpack.c.l.b16 %v1220
    %v2501 = vunpack.c.h.b16 %v1220
    %v2502 = vunpack.c.l.b16 %v1221
    %v2503 = vunpack.c.h.b16 %v1221
    %v2504 = vunpack.c.l.b16 %v1222
    %v2505 = vunpack.c.h.b16 %v1222
    %v2506 = vunpack.c.l.b16 %v1223
    %v2507 = vunpack.c.h.b16 %v1223
    %v2508 = vunpack.c.l.b16 %v1224
    %v2509 = vunpack.c.h.b16 %v1224
    %v2510 = vunpack.c.l.b16 %v1225
    %v2511 = vunpack.c.h.b16 %v1225
    %v2512 = vunpack.c.l.b16 %v1226
    %v2513 = vunpack.c.h.b16 %v1226
    %v2514 = vunpack.c.l.b16 %v1227
    %v2515 = vunpack.c.h.b16 %v1227
    %v2516 = vunpack.c.l.b16 %v1228
    %v2517 = vunpack.c.h.b16 %v1228
    %v2518 = vunpack.c.l.b16 %v1229
    %v2519 = vunpack.c.h.b16 %v1229
    %v2520 = vunpack.c.l.b16 %v1230
    %v2521 = vunpack.c.h.b16 %v1230
    %v2522 = vunpack.c.l.b16 %v1231
    %v2523 = vunpack.c.h.b16 %v1231
    %v2524 = vunpack.c.l.b16 %v1232
    %v2525 = vunpack.c.h.b16 %v1232
    %v2526 = vunpack.c.l.b16 %v1233
    %v2527 = vunpack.c.h.b16 %v1233
    %v2528 = vunpack.c.l.b16 %v1234
    %v2529 = vunpack.c.h.b16 %v1234
    %v2530 = vunpack.c.l.b16 %v1235
    %v2531 = vunpack.c.h.b16 %v1235
    %v2532 = vunpack.c.l.b16 %v1236
    %v2533 = vunpack.c.h.b16 %v1236
    %v2534 = vunpack.c.l.b16 %v1237
    %v2535 = vunpack.c.h.b16 %v1237
    %v2536 = vunpack.c.l.b16 %v1238
    %v2537 = vunpack.c.h.b16 %v1238
    %v2538 = vunpack.c.l.b16 %v1239
    %v2539 = vunpack.c.h.b16 %v1239
    %v2540 = vunpack.c.l.b16 %v1240
    %v2541 = vunpack.c.h.b16 %v1240
    %v2542 = vunpack.c.l.b16 %v1241
    %v2543 = vunpack.c.h.b16 %v1241
    %v2544 = vunpack.c.l.b16 %v1242
    %v2545 = vunpack.c.h.b16 %v1242
    %v2546 = vunpack.c.l.b16 %v1243
    %v2547 = vunpack.c.h.b16 %v1243
    %v2548 = vunpack.c.l.b16 %v1244
    %v2549 = vunpack.c.h.b16 %v1244
    %v2550 = vunpack.c.l.b16 %v1245
    %v2551 = vunpack.c.h.b16 %v1245
    %v2552 = vunpack.c.l.b16 %v1246
    %v2553 = vunpack.c.h.b16 %v1246
    %v2554 = vunpack.c.l.b16 %v1247
    %v2555 = vunpack.c.h.b16 %v1247
    %v2556 = vunpack.c.l.b16 %v1248
    %v2557 = vunpack.c.h.b16 %v1248
    %v2558 = vunpack.c.l.b16 %v1249
    %v2559 = vunpack.c.h.b16 %v1249
    %v2560 = vunpack.c.l.b16 %v1250
    %v2561 = vunpack.c.h.b16 %v1250
    %v2562 = vunpack.c.l.b16 %v1251
    %v2563 = vunpack.c.h.b16 %v1251
    %v2564 = vunpack.c.l.b16 %v1252
    %v2565 = vunpack.c.h.b16 %v1252
    %v2566 = vunpack.c.l.b16 %v1253
    %v2567 = vunpack.c.h.b16 %v1253
    %v2568 = vunpack.c.l.b16 %v1254
    %v2569 = vunpack.c.h.b16 %v1254
    %v2570 = vunpack.c.l.b16 %v1255
    %v2571 = vunpack.c.h.b16 %v1255
    %v2572 = vunpack.c.l.b16 %v1256
    %v2573 = vunpack.c.h.b16 %v1256
    %v2574 = vunpack.c.l.b16 %v1257
    %v2575 = vunpack.c.h.b16 %v1257
    %v2576 = vunpack.c.l.b16 %v1258
    %v2577 = vunpack.c.h.b16 %v1258
    %v2578 = vunpack.c.l.b16 %v1259
    %v2579 = vunpack.c.h.b16 %v1259
    %v2580 = vunpack.c.l.b16 %v1260
    %v2581 = vunpack.c.h.b16 %v1260
    %v2582 = vunpack.c.l.b16 %v1261
    %v2583 = vunpack.c.h.b16 %v1261
    %v2584 = vunpack.c.l.b16 %v1262
    %v2585 = vunpack.c.h.b16 %v1262
    %v2586 = vunpack.c.l.b16 %v1263
    %v2587 = vunpack.c.h.b16 %v1263
    %v2588 = vunpack.c.l.b16 %v1264
    %v2589 = vunpack.c.h.b16 %v1264
    %v2590 = vunpack.c.l.b16 %v1265
    %v2591 = vunpack.c.h.b16 %v1265
    %v2592 = vunpack.c.l.b16 %v1266
    %v2593 = vunpack.c.h.b16 %v1266
    %v2594 = vunpack.c.l.b16 %v1267
    %v2595 = vunpack.c.h.b16 %v1267
    %v2596 = vunpack.c.l.b16 %v1268
    %v2597 = vunpack.c.h.b16 %v1268
    %v2598 = vunpack.c.l.b16 %v1269
    %v2599 = vunpack.c.h.b16 %v1269
    %v2600 = vunpack.c.l.b16 %v1270
    %v2601 = vunpack.c.h.b16 %v1270
    %v2602 = vunpack.c.l.b16 %v1271
    %v2603 = vunpack.c.h.b16 %v1271
    %v2604 = vunpack.c.l.b16 %v1272
    %v2605 = vunpack.c.h.b16 %v1272
    %v2606 = vunpack.c.l.b16 %v1273
    %v2607 = vunpack.c.h.b16 %v1273
    %v2608 = vunpack.c.l.b16 %v1274
    %v2609 = vunpack.c.h.b16 %v1274
    %v2610 = vunpack.c.l.b16 %v1275
    %v2611 = vunpack.c.h.b16 %v1275
    %v2612 = vunpack.c.l.b16 %v1276
    %v2613 = vunpack.c.h.b16 %v1276
    %v2614 = vunpack.c.l.b16 %v1277
    %v2615 = vunpack.c.h.b16 %v1277
    %v2616 = vunpack.c.l.b16 %v1278
    %v2617 = vunpack.c.h.b16 %v1278
    %v2618 = vunpack.c.l.b16 %v1279
    %v2619 = vunpack.c.h.b16 %v1279
    %v2620 = vunpack.c.l.b16 %v1280
    %v2621 = vunpack.c.h.b16 %v1280
    %v2622 = vunpack.c.l.b16 %v1281
    %v2623 = vunpack.c.h.b16 %v1281
    %v2624 = vunpack.c.l.b16 %v1282
    %v2625 = vunpack.c.h.b16 %v1282
    %v2626 = vunpack.c.l.b16 %v1283
    %v2627 = vunpack.c.h.b16 %v1283
    %v2628 = vunpack.c.l.b16 %v1284
    %v2629 = vunpack.c.h.b16 %v1284
    %v2630 = vunpack.c.l.b16 %v1285
    %v2631 = vunpack.c.h.b16 %v1285
    %v2632 = vunpack.c.l.b16 %v1286
    %v2633 = vunpack.c.h.b16 %v1286
    %v2634 = vunpack.c.l.b16 %v1287
    %v2635 = vunpack.c.h.b16 %v1287
    %v2636 = vunpack.c.l.b16 %v1288
    %v2637 = vunpack.c.h.b16 %v1288
    %v2638 = vunpack.c.l.b16 %v1289
    %v2639 = vunpack.c.h.b16 %v1289
    %v2640 = vunpack.c.l.b16 %v1290
    %v2641 = vunpack.c.h.b16 %v1290
    %v2642 = vunpack.c.l.b16 %v1291
    %v2643 = vunpack.c.h.b16 %v1291
    %v2644 = vunpack.c.l.b16 %v1292
    %v2645 = vunpack.c.h.b16 %v1292
    %v2646 = vunpack.c.l.b16 %v1293
    %v2647 = vunpack.c.h.b16 %v1293
    %v2648 = vunpack.c.l.b16 %v1294
    %v2649 = vunpack.c.h.b16 %v1294
    %v2650 = vunpack.c.l.b16 %v1295
    %v2651 = vunpack.c.h.b16 %v1295
    %v2652 = vunpack.c.l.b16 %v1296
    %v2653 = vunpack.c.h.b16 %v1296
    %v2654 = vunpack.c.l.b16 %v1297
    %v2655 = vunpack.c.h.b16 %v1297
    %v2656 = vunpack.c.l.b16 %v1298
    %v2657 = vunpack.c.h.b16 %v1298
    %v2658 = vunpack.c.l.b16 %v1299
    %v2659 = vunpack.c.h.b16 %v1299
    %v2660 = vunpack.c.l.b16 %v1300
    %v2661 = vunpack.c.h.b16 %v1300
    %v2662 = vunpack.c.l.b16 %v1301
    %v2663 = vunpack.c.h.b16 %v1301
    %v2664 = vunpack.c.l.b16 %v1302
    %v2665 = vunpack.c.h.b16 %v1302
    %v2666 = vunpack.c.l.b16 %v1303
    %v2667 = vunpack.c.h.b16 %v1303
    %v2668 = vunpack.c.l.b16 %v1304
    %v2669 = vunpack.c.h.b16 %v1304
    %v2670 = vunpack.c.l.b16 %v1305
    %v2671 = vunpack.c.h.b16 %v1305
    %v2672 = vunpack.c.l.b16 %v1306
    %v2673 = vunpack.c.h.b16 %v1306
    %v2674 = vunpack.c.l.b16 %v1307
    %v2675 = vunpack.c.h.b16 %v1307
    %v2676 = vunpack.c.l.b16 %v1308
    %v2677 = vunpack.c.h.b16 %v1308
    %v2678 = vunpack.c.l.b16 %v1309
    %v2679 = vunpack.c.h.b16 %v1309
    %v2680 = vunpack.c.l.b16 %v1310
    %v2681 = vunpack.c.h.b16 %v1310
    %v2682 = vunpack.c.l.b16 %v1311
    %v2683 = vunpack.c.h.b16 %v1311
    %v2684 = vunpack.c.l.b16 %v1312
    %v2685 = vunpack.c.h.b16 %v1312
    %v2686 = vunpack.c.l.b16 %v1313
    %v2687 = vunpack.c.h.b16 %v1313
    %v2688 = vunpack.c.l.b16 %v1314
    %v2689 = vunpack.c.h.b16 %v1314
    %v2690 = vunpack.c.l.b16 %v1315
    %v2691 = vunpack.c.h.b16 %v1315
    %v2692 = vunpack.c.l.b16 %v1316
    %v2693 = vunpack.c.h.b16 %v1316
    %v2694 = vunpack.c.l.b16 %v1317
    %v2695 = vunpack.c.h.b16 %v1317
    %v2696 = vunpack.c.l.b16 %v1318
    %v2697 = vunpack.c.h.b16 %v1318
    %v2698 = vunpack.c.l.b16 %v1319
    %v2699 = vunpack.c.h.b16 %v1319
    %v2700 = vunpack.c.l.b16 %v1320
    %v2701 = vunpack.c.h.b16 %v1320
    %v2702 = vunpack.c.l.b16 %v1321
    %v2703 = vunpack.c.h.b16 %v1321
    %v2704 = vunpack.c.l.b16 %v1322
    %v2705 = vunpack.c.h.b16 %v1322
    %v2706 = vunpack.c.l.b16 %v1323
    %v2707 = vunpack.c.h.b16 %v1323
    %v2708 = vunpack.c.l.b16 %v1324
    %v2709 = vunpack.c.h.b16 %v1324
    %v2710 = vunpack.c.l.b16 %v1325
    %v2711 = vunpack.c.h.b16 %v1325
    %v2712 = vunpack.c.l.b16 %v1326
    %v2713 = vunpack.c.h.b16 %v1326
    %v2714 = vunpack.c.l.b16 %v1327
    %v2715 = vunpack.c.h.b16 %v1327
    %v2716 = vunpack.c.l.b16 %v1328
    %v2717 = vunpack.c.h.b16 %v1328
    %v2718 = vunpack.c.l.b16 %v1329
    %v2719 = vunpack.c.h.b16 %v1329
    %v2720 = vunpack.c.l.b16 %v1330
    %v2721 = vunpack.c.h.b16 %v1330
    %v2722 = vunpack.c.l.b16 %v1331
    %v2723 = vunpack.c.h.b16 %v1331
    %v2724 = vunpack.c.l.b16 %v1332
    %v2725 = vunpack.c.h.b16 %v1332
    %v2726 = vunpack.c.l.b16 %v1333
    %v2727 = vunpack.c.h.b16 %v1333
    %v2728 = vunpack.c.l.b16 %v1334
    %v2729 = vunpack.c.h.b16 %v1334
    %v2730 = vunpack.c.l.b16 %v1335
    %v2731 = vunpack.c.h.b16 %v1335
    %v2732 = vunpack.c.l.b16 %v1336
    %v2733 = vunpack.c.h.b16 %v1336
    %v2734 = vunpack.c.l.b16 %v1337
    %v2735 = vunpack.c.h.b16 %v1337
    %v2736 = vunpack.c.l.b16 %v1338
    %v2737 = vunpack.c.h.b16 %v1338
    %v2738 = vunpack.c.l.b16 %v1339
    %v2739 = vunpack.c.h.b16 %v1339
    %v2740 = vunpack.c.l.b16 %v1340
    %v2741 = vunpack.c.h.b16 %v1340
    %v2742 = vunpack.c.l.b16 %v1341
    %v2743 = vunpack.c.h.b16 %v1341
    %v2744 = vunpack.c.l.b16 %v1342
    %v2745 = vunpack.c.h.b16 %v1342
    %v2746 = vunpack.c.l.b16 %v1343
    %v2747 = vunpack.c.h.b16 %v1343
    %v2748 = vunpack.c.l.b16 %v1344
    %v2749 = vunpack.c.h.b16 %v1344
    %v2750 = vunpack.c.l.b16 %v1345
    %v2751 = vunpack.c.h.b16 %v1345
    %v2752 = vunpack.c.l.b16 %v1346
    %v2753 = vunpack.c.h.b16 %v1346
    %v2754 = vunpack.c.l.b16 %v1347
    %v2755 = vunpack.c.h.b16 %v1347
    %v2756 = vunpack.c.l.b16 %v1348
    %v2757 = vunpack.c.h.b16 %v1348
    %v2758 = vunpack.c.l.b16 %v1349
    %v2759 = vunpack.c.h.b16 %v1349
    %v2760 = vunpack.c.l.b16 %v1350
    %v2761 = vunpack.c.h.b16 %v1350
    %v2762 = vunpack.c.l.b16 %v1351
    %v2763 = vunpack.c.h.b16 %v1351
    %v2764 = vunpack.c.l.b16 %v1352
    %v2765 = vunpack.c.h.b16 %v1352
    %v2766 = vunpack.c.l.b16 %v1353
    %v2767 = vunpack.c.h.b16 %v1353
    %v2768 = vunpack.c.l.b16 %v1354
    %v2769 = vunpack.c.h.b16 %v1354
    %v2770 = vunpack.c.l.b16 %v1355
    %v2771 = vunpack.c.h.b16 %v1355
    %v2772 = vunpack.c.l.b16 %v1356
    %v2773 = vunpack.c.h.b16 %v1356
    %v2774 = vunpack.c.l.b16 %v1357
    %v2775 = vunpack.c.h.b16 %v1357
    %v2776 = vunpack.c.l.b16 %v1358
    %v2777 = vunpack.c.h.b16 %v1358
    %v2778 = vunpack.c.l.b16 %v1359
    %v2779 = vunpack.c.h.b16 %v1359
    %v2780 = vunpack.c.l.b16 %v1360
    %v2781 = vunpack.c.h.b16 %v1360
    %v2782 = vunpack.c.l.b16 %v1361
    %v2783 = vunpack.c.h.b16 %v1361
    %v2784 = vunpack.c.l.b16 %v1362
    %v2785 = vunpack.c.h.b16 %v1362
    %v2786 = vunpack.c.l.b16 %v1363
    %v2787 = vunpack.c.h.b16 %v1363
    %v2788 = vunpack.c.l.b16 %v1364
    %v2789 = vunpack.c.h.b16 %v1364
    %v2790 = vunpack.c.l.b16 %v1365
    %v2791 = vunpack.c.h.b16 %v1365
    %v2792 = vunpack.c.l.b16 %v1366
    %v2793 = vunpack.c.h.b16 %v1366
    %v2794 = vunpack.c.l.b16 %v1367
    %v2795 = vunpack.c.h.b16 %v1367
    %v2796 = vunpack.c.l.b16 %v1368
    %v2797 = vunpack.c.h.b16 %v1368
    %v2798 = vunpack.c.l.b16 %v1369
    %v2799 = vunpack.c.h.b16 %v1369
    %v2800 = vunpack.c.l.b16 %v1370
    %v2801 = vunpack.c.h.b16 %v1370
    %v2802 = vunpack.c.l.b16 %v1371
    %v2803 = vunpack.c.h.b16 %v1371
    %v2804 = vunpack.c.l.b16 %v1372
    %v2805 = vunpack.c.h.b16 %v1372
    %v2806 = vunpack.c.l.b16 %v1373
    %v2807 = vunpack.c.h.b16 %v1373
    %v2808 = vunpack.c.l.b16 %v1374
    %v2809 = vunpack.c.h.b16 %v1374
    %v2810 = vunpack.c.l.b16 %v1375
    %v2811 = vunpack.c.h.b16 %v1375
    %v2812 = vunpack.c.l.b16 %v1376
    %v2813 = vunpack.c.h.b16 %v1376
    %v2814 = vunpack.c.l.b16 %v1377
    %v2815 = vunpack.c.h.b16 %v1377
    %v2816 = vunpack.c.l.b16 %v1378
    %v2817 = vunpack.c.h.b16 %v1378
    %v2818 = vunpack.c.l.b16 %v1379
    %v2819 = vunpack.c.h.b16 %v1379
    %v2820 = vunpack.c.l.b16 %v1380
    %v2821 = vunpack.c.h.b16 %v1380
    %v2822 = vunpack.c.l.b16 %v1381
    %v2823 = vunpack.c.h.b16 %v1381
    %v2824 = vunpack.c.l.b16 %v1382
    %v2825 = vunpack.c.h.b16 %v1382
    %v2826 = vunpack.c.l.b16 %v1383
    %v2827 = vunpack.c.h.b16 %v1383
    %v2828 = vunpack.c.l.b16 %v1384
    %v2829 = vunpack.c.h.b16 %v1384
    %v2830 = vunpack.c.l.b16 %v1385
    %v2831 = vunpack.c.h.b16 %v1385
    %v2832 = vunpack.c.l.b16 %v1386
    %v2833 = vunpack.c.h.b16 %v1386
    %v2834 = vunpack.c.l.b16 %v1387
    %v2835 = vunpack.c.h.b16 %v1387
    %v2836 = vunpack.c.l.b16 %v1388
    %v2837 = vunpack.c.h.b16 %v1388
    %v2838 = vunpack.c.l.b16 %v1389
    %v2839 = vunpack.c.h.b16 %v1389
    %v2840 = vunpack.c.l.b16 %v1390
    %v2841 = vunpack.c.h.b16 %v1390
    %v2842 = vunpack.c.l.b16 %v1391
    %v2843 = vunpack.c.h.b16 %v1391
    %v2844 = vunpack.c.l.b16 %v1392
    %v2845 = vunpack.c.h.b16 %v1392
    %v2846 = vunpack.c.l.b16 %v1393
    %v2847 = vunpack.c.h.b16 %v1393
    %v2848 = vunpack.c.l.b16 %v1394
    %v2849 = vunpack.c.h.b16 %v1394
    %v2850 = vunpack.c.l.b16 %v1395
    %v2851 = vunpack.c.h.b16 %v1395
    %v2852 = vunpack.c.l.b16 %v1396
    %v2853 = vunpack.c.h.b16 %v1396
    %v2854 = vunpack.c.l.b16 %v1397
    %v2855 = vunpack.c.h.b16 %v1397
    %v2856 = vunpack.c.l.b16 %v1398
    %v2857 = vunpack.c.h.b16 %v1398
    %v2858 = vunpack.c.l.b16 %v1399
    %v2859 = vunpack.c.h.b16 %v1399
    %v2860 = vunpack.c.l.b16 %v1400
    %v2861 = vunpack.c.h.b16 %v1400
    %v2862 = vunpack.c.l.b16 %v1401
    %v2863 = vunpack.c.h.b16 %v1401
    %v2864 = vunpack.c.l.b16 %v1402
    %v2865 = vunpack.c.h.b16 %v1402
    %v2866 = vunpack.c.l.b16 %v1403
    %v2867 = vunpack.c.h.b16 %v1403
    %v2868 = vunpack.c.l.b16 %v1404
    %v2869 = vunpack.c.h.b16 %v1404
    %v2870 = vunpack.c.l.b16 %v1405
    %v2871 = vunpack.c.h.b16 %v1405
    %v2872 = vunpack.c.l.b16 %v1406
    %v2873 = vunpack.c.h.b16 %v1406
    %v2874 = vunpack.c.l.b16 %v1407
    %v2875 = vunpack.c.h.b16 %v1407
    %v2876 = vunpack.c.l.b16 %v1408
    %v2877 = vunpack.c.h.b16 %v1408
    %v2878 = vunpack.c.l.b16 %v1409
    %v2879 = vunpack.c.h.b16 %v1409
    %v2880 = vunpack.c.l.b16 %v1410
    %v2881 = vunpack.c.h.b16 %v1410
    %v2882 = vunpack.c.l.b16 %v1411
    %v2883 = vunpack.c.h.b16 %v1411
    %v2884 = vunpack.c.l.b16 %v1412
    %v2885 = vunpack.c.h.b16 %v1412
    %v2886 = vunpack.c.l.b16 %v1413
    %v2887 = vunpack.c.h.b16 %v1413
    %v2888 = vunpack.c.l.b16 %v1414
    %v2889 = vunpack.c.h.b16 %v1414
    %v2890 = vunpack.c.l.b16 %v1415
    %v2891 = vunpack.c.h.b16 %v1415
    %v2892 = vunpack.c.l.b16 %v1416
    %v2893 = vunpack.c.h.b16 %v1416
    %v2894 = vunpack.c.l.b16 %v1417
    %v2895 = vunpack.c.h.b16 %v1417
    %v2896 = vunpack.c.l.b16 %v1418
    %v2897 = vunpack.c.h.b16 %v1418
    %v2898 = vunpack.c.l.b16 %v1419
    %v2899 = vunpack.c.h.b16 %v1419
    %v2900 = vunpack.c.l.b16 %v1420
    %v2901 = vunpack.c.h.b16 %v1420
    %v2902 = vunpack.c.l.b16 %v1421
    %v2903 = vunpack.c.h.b16 %v1421
    %v2904 = vunpack.c.l.b16 %v1422
    %v2905 = vunpack.c.h.b16 %v1422
    %v2906 = vunpack.c.l.b16 %v1423
    %v2907 = vunpack.c.h.b16 %v1423
    %v2908 = vunpack.c.l.b16 %v1424
    %v2909 = vunpack.c.h.b16 %v1424
    %v2910 = vunpack.c.l.b16 %v1425
    %v2911 = vunpack.c.h.b16 %v1425
    %v2912 = vunpack.c.l.b16 %v1426
    %v2913 = vunpack.c.h.b16 %v1426
    %v2914 = vunpack.c.l.b16 %v1427
    %v2915 = vunpack.c.h.b16 %v1427
    %v2916 = vunpack.c.l.b16 %v1428
    %v2917 = vunpack.c.h.b16 %v1428
    %v2918 = vunpack.c.l.b16 %v1429
    %v2919 = vunpack.c.h.b16 %v1429
    %v2920 = vunpack.c.l.b16 %v1430
    %v2921 = vunpack.c.h.b16 %v1430
    %v2922 = vunpack.c.l.b16 %v1431
    %v2923 = vunpack.c.h.b16 %v1431
    %v2924 = vunpack.c.l.b16 %v1432
    %v2925 = vunpack.c.h.b16 %v1432
    %v2926 = vunpack.c.l.b16 %v1433
    %v2927 = vunpack.c.h.b16 %v1433
    %v2928 = vunpack.c.l.b16 %v1434
    %v2929 = vunpack.c.h.b16 %v1434
    %v2930 = vunpack.c.l.b16 %v1435
    %v2931 = vunpack.c.h.b16 %v1435
    %v2932 = vunpack.c.l.b16 %v1436
    %v2933 = vunpack.c.h.b16 %v1436
    %v2934 = vunpack.c.l.b16 %v1437
    %v2935 = vunpack.c.h.b16 %v1437
    %v2936 = vunpack.c.l.b16 %v1438
    %v2937 = vunpack.c.h.b16 %v1438
    %v2938 = vunpack.c.l.b16 %v1439
    %v2939 = vunpack.c.h.b16 %v1439
    %v2940 = vunpack.c.l.b16 %v1440
    %v2941 = vunpack.c.h.b16 %v1440
    %v2942 = vunpack.c.l.b16 %v1441
    %v2943 = vunpack.c.h.b16 %v1441
    %v2944 = vunpack.c.l.b16 %v1442
    %v2945 = vunpack.c.h.b16 %v1442
    %v2946 = vunpack.c.l.b16 %v1443
    %v2947 = vunpack.c.h.b16 %v1443
    %v2948 = vunpack.c.l.b16 %v1444
    %v2949 = vunpack.c.h.b16 %v1444
    %v2950 = vunpack.c.l.b16 %v1445
    %v2951 = vunpack.c.h.b16 %v1445
    %v2952 = vunpack.c.l.b16 %v1446
    %v2953 = vunpack.c.h.b16 %v1446
    %v2954 = vunpack.c.l.b16 %v1447
    %v2955 = vunpack.c.h.b16 %v1447
    %v2956 = vunpack.c.l.b16 %v1448
    %v2957 = vunpack.c.h.b16 %v1448
    %v2958 = vunpack.c.l.b16 %v1449
    %v2959 = vunpack.c.h.b16 %v1449
    %v2960 = vunpack.c.l.b16 %v1450
    %v2961 = vunpack.c.h.b16 %v1450
    %v2962 = vunpack.c.l.b16 %v1451
    %v2963 = vunpack.c.h.b16 %v1451
    %v2964 = vunpack.c.l.b16 %v1452
    %v2965 = vunpack.c.h.b16 %v1452
    %v2966 = vunpack.c.l.b16 %v1453
    %v2967 = vunpack.c.h.b16 %v1453
    %v2968 = vunpack.c.l.b16 %v1454
    %v2969 = vunpack.c.h.b16 %v1454
    %v2970 = vunpack.c.l.b16 %v1455
    %v2971 = vunpack.c.h.b16 %v1455
    %v2972 = vunpack.c.l.b16 %v1456
    %v2973 = vunpack.c.h.b16 %v1456
    %v2974 = vunpack.c.l.b16 %v1457
    %v2975 = vunpack.c.h.b16 %v1457
    %v2976 = vunpack.c.l.b16 %v1458
    %v2977 = vunpack.c.h.b16 %v1458
    %v2978 = vunpack.c.l.b16 %v1459
    %v2979 = vunpack.c.h.b16 %v1459
    %v2980 = vunpack.c.l.b16 %v1460
    %v2981 = vunpack.c.h.b16 %v1460
    %v2982 = vunpack.c.l.b16 %v1461
    %v2983 = vunpack.c.h.b16 %v1461
    %v2984 = vunpack.c.l.b16 %v1462
    %v2985 = vunpack.c.h.b16 %v1462
    %v2986 = vunpack.c.l.b16 %v1463
    %v2987 = vunpack.c.h.b16 %v1463
    %v2988 = vunpack.c.l.b16 %v1464
    %v2989 = vunpack.c.h.b16 %v1464
    %v2990 = vunpack.c.l.b16 %v1465
    %v2991 = vunpack.c.h.b16 %v1465
    %v2992 = vunpack.c.l.b16 %v1466
    %v2993 = vunpack.c.h.b16 %v1466
    %v2994 = vunpack.c.l.b16 %v1467
    %v2995 = vunpack.c.h.b16 %v1467
    %v2996 = vunpack.c.l.b16 %v1468
    %v2997 = vunpack.c.h.b16 %v1468
    %v2998 = vunpack.c.l.b16 %v1469
    %v2999 = vunpack.c.h.b16 %v1469
    %v3000 = vunpack.c.l.b16 %v1470
    %v3001 = vunpack.c.h.b16 %v1470
    %v3002 = vunpack.c.l.b16 %v1471
    %v3003 = vunpack.c.h.b16 %v1471
    %v3004 = vunpack.c.l.b16 %v1472
    %v3005 = vunpack.c.h.b16 %v1472
    %v3006 = vunpack.c.l.b16 %v1473
    %v3007 = vunpack.c.h.b16 %v1473
    %v3008 = vunpack.c.l.b16 %v1474
    %v3009 = vunpack.c.h.b16 %v1474
    %v3010 = vunpack.c.l.b16 %v1475
    %v3011 = vunpack.c.h.b16 %v1475
    %v3012 = vunpack.c.l.b16 %v1476
    %v3013 = vunpack.c.h.b16 %v1476
    %v3014 = vunpack.c.l.b16 %v1477
    %v3015 = vunpack.c.h.b16 %v1477
    %v3016 = vunpack.c.l.b16 %v1478
    %v3017 = vunpack.c.h.b16 %v1478
    %v3018 = vunpack.c.l.b16 %v1479
    %v3019 = vunpack.c.h.b16 %v1479
    %v3020 = vunpack.c.l.b16 %v1480
    %v3021 = vunpack.c.h.b16 %v1480
    %v3022 = vunpack.c.l.b16 %v1481
    %v3023 = vunpack.c.h.b16 %v1481
    %v3024 = vunpack.c.l.b16 %v1482
    %v3025 = vunpack.c.h.b16 %v1482
    %v3026 = vunpack.c.l.b16 %v1483
    %v3027 = vunpack.c.h.b16 %v1483
    %v3028 = vunpack.c.l.b16 %v1484
    %v3029 = vunpack.c.h.b16 %v1484
    %v3030 = vunpack.c.l.b16 %v1485
    %v3031 = vunpack.c.h.b16 %v1485
    %v3032 = vunpack.c.l.b16 %v1486
    %v3033 = vunpack.c.h.b16 %v1486
    %v3034 = vunpack.c.l.b16 %v1487
    %v3035 = vunpack.c.h.b16 %v1487
    %v3036 = vunpack.c.l.b16 %v1488
    %v3037 = vunpack.c.h.b16 %v1488
    %v3038 = vunpack.c.l.b16 %v1489
    %v3039 = vunpack.c.h.b16 %v1489
    %v3040 = vunpack.c.l.b16 %v1490
    %v3041 = vunpack.c.h.b16 %v1490
    %v3042 = vunpack.c.l.b16 %v1491
    %v3043 = vunpack.c.h.b16 %v1491
    %v3044 = vunpack.c.l.b16 %v1492
    %v3045 = vunpack.c.h.b16 %v1492
    %v3046 = vunpack.c.l.b16 %v1493
    %v3047 = vunpack.c.h.b16 %v1493
    %v3048 = vunpack.c.l.b16 %v1494
    %v3049 = vunpack.c.h.b16 %v1494
    %v3050 = vunpack.c.l.b16 %v1495
    %v3051 = vunpack.c.h.b16 %v1495
    %v3052 = vunpack.c.l.b16 %v1496
    %v3053 = vunpack.c.h.b16 %v1496
    %v3054 = vunpack.c.l.b16 %v1497
    %v3055 = vunpack.c.h.b16 %v1497
    %v3056 = vunpack.c.l.b16 %v1498
    %v3057 = vunpack.c.h.b16 %v1498
    %v3058 = vunpack.c.l.b16 %v1499
    %v3059 = vunpack.c.h.b16 %v1499
    %v3060 = vunpack.c.l.b16 %v1500
    %v3061 = vunpack.c.h.b16 %v1500
    %v3062 = vunpack.c.l.b16 %v1501
    %v3063 = vunpack.c.h.b16 %v1501
    %v3064 = vunpack.c.l.b16 %v1502
    %v3065 = vunpack.c.h.b16 %v1502
    %v3066 = vunpack.c.l.b16 %v1503
    %v3067 = vunpack.c.h.b16 %v1503
    %v3068 = vunpack.c.l.b16 %v1504
    %v3069 = vunpack.c.h.b16 %v1504
    %v3070 = vunpack.c.l.b16 %v1505
    %v3071 = vunpack.c.h.b16 %v1505
    %v3072 = vunpack.c.l.b16 %v1506
    %v3073 = vunpack.c.h.b16 %v1506
    %v3074 = vunpack.c.l.b16 %v1507
    %v3075 = vunpack.c.h.b16 %v1507
    %v3076 = vunpack.c.l.b16 %v1508
    %v3077 = vunpack.c.h.b16 %v1508
    %v3078 = vunpack.c.l.b16 %v1509
    %v3079 = vunpack.c.h.b16 %v1509
    %v3080 = vunpack.c.l.b16 %v1510
    %v3081 = vunpack.c.h.b16 %v1510
    %v3082 = vunpack.c.l.b16 %v1511
    %v3083 = vunpack.c.h.b16 %v1511
    %v3084 = vunpack.c.l.b16 %v1512
    %v3085 = vunpack.c.h.b16 %v1512
    %v3086 = vunpack.c.l.b16 %v1513
    %v3087 = vunpack.c.h.b16 %v1513
    %v3088 = vunpack.c.l.b16 %v1514
    %v3089 = vunpack.c.h.b16 %v1514
    %v3090 = vunpack.c.l.b16 %v1515
    %v3091 = vunpack.c.h.b16 %v1515
    %v3092 = vunpack.c.l.b16 %v1516
    %v3093 = vunpack.c.h.b16 %v1516
    %v3094 = vunpack.c.l.b16 %v1517
    %v3095 = vunpack.c.h.b16 %v1517
    %v3096 = vpack.c.b16 %v2080, %v2072
    %v3097 = vpack.c.b16 %v2081, %v2073
    %v3098 = vpack.c.b16 %v2082, %v2074
    %v3099 = vpack.c.b16 %v2083, %v2075
    %v3100 = vpack.c.b16 %v2084, %v2076
    %v3101 = vpack.c.b16 %v2085, %v2077
    %v3102 = vpack.c.b16 %v2086, %v2078
    %v3103 = vpack.c.b16 %v2087, %v2079
    %v3104 = vpack.c.b16 %v2096, %v2088
    %v3105 = vpack.c.b16 %v2097, %v2089
    %v3106 = vpack.c.b16 %v2098, %v2090
    %v3107 = vpack.c.b16 %v2099, %v2091
    %v3108 = vpack.c.b16 %v2100, %v2092
    %v3109 = vpack.c.b16 %v2101, %v2093
    %v3110 = vpack.c.b16 %v2102, %v2094
    %v3111 = vpack.c.b16 %v2103, %v2095
    %v3112 = vpack.c.b16 %v2112, %v2104
    %v3113 = vpack.c.b16 %v2113, %v2105
    %v3114 = vpack.c.b16 %v2114, %v2106
    %v3115 = vpack.c.b16 %v2115, %v2107
    %v3116 = vpack.c.b16 %v2116, %v2108
    %v3117 = vpack.c.b16 %v2117, %v2109
    %v3118 = vpack.c.b16 %v2118, %v2110
    %v3119 = vpack.c.b16 %v2119, %v2111
    %v3120 = vpack.c.b16 %v2128, %v2120
    %v3121 = vpack.c.b16 %v2129, %v2121
    %v3122 = vpack.c.b16 %v2130, %v2122
    %v3123 = vpack.c.b16 %v2131, %v2123
    %v3124 = vpack.c.b16 %v2132, %v2124
    %v3125 = vpack.c.b16 %v2133, %v2125
    %v3126 = vpack.c.b16 %v2134, %v2126
    %v3127 = vpack.c.b16 %v2135, %v2127
    %v3128 = vpack.c.b16 %v2144, %v2136
    %v3129 = vpack.c.b16 %v2145, %v2137
    %v3130 = vpack.c.b16 %v2146, %v2138
    %v3131 = vpack.c.b16 %v2147, %v2139
    %v3132 = vpack.c.b16 %v2148, %v2140
    %v3133 = vpack.c.b16 %v2149, %v2141
    %v3134 = vpack.c.b16 %v2150, %v2142
    %v3135 = vpack.c.b16 %v2151, %v2143
    %v3136 = vpack.c.b16 %v2160, %v2152
    %v3137 = vpack.c.b16 %v2161, %v2153
    %v3138 = vpack.c.b16 %v2162, %v2154
    %v3139 = vpack.c.b16 %v2163, %v2155
    %v3140 = vpack.c.b16 %v2164, %v2156
    %v3141 = vpack.c.b16 %v2165, %v2157
    %v3142 = vpack.c.b16 %v2166, %v2158
    %v3143 = vpack.c.b16 %v2167, %v2159
    %v3144 = vpack.c.b16 %v2176, %v2168
    %v3145 = vpack.c.b16 %v2177, %v2169
    %v3146 = vpack.c.b16 %v2178, %v2170
    %v3147 = vpack.c.b16 %v2179, %v2171
    %v3148 = vpack.c.b16 %v2180, %v2172
    %v3149 = vpack.c.b16 %v2181, %v2173
    %v3150 = vpack.c.b16 %v2182, %v2174
    %v3151 = vpack.c.b16 %v2183, %v2175
    %v3152 = vpack.c.b16 %v2192, %v2184
    %v3153 = vpack.c.b16 %v2193, %v2185
    %v3154 = vpack.c.b16 %v2194, %v2186
    %v3155 = vpack.c.b16 %v2195, %v2187
    %v3156 = vpack.c.b16 %v2196, %v2188
    %v3157 = vpack.c.b16 %v2197, %v2189
    %v3158 = vpack.c.b16 %v2198, %v2190
    %v3159 = vpack.c.b16 %v2199, %v2191
    %v3160 = vpack.c.b16 %v2208, %v2200
    %v3161 = vpack.c.b16 %v2209, %v2201
    %v3162 = vpack.c.b16 %v2210, %v2202
    %v3163 = vpack.c.b16 %v2211, %v2203
    %v3164 = vpack.c.b16 %v2212, %v2204
    %v3165 = vpack.c.b16 %v2213, %v2205
    %v3166 = vpack.c.b16 %v2214, %v2206
    %v3167 = vpack.c.b16 %v2215, %v2207
    %v3168 = vpack.c.b16 %v2224, %v2216
    %v3169 = vpack.c.b16 %v2225, %v2217
    %v3170 = vpack.c.b16 %v2226, %v2218
    %v3171 = vpack.c.b16 %v2227, %v2219
    %v3172 = vpack.c.b16 %v2228, %v2220
    %v3173 = vpack.c.b16 %v2229, %v2221
    %v3174 = vpack.c.b16 %v2230, %v2222
    %v3175 = vpack.c.b16 %v2231, %v2223
    %v3176 = vpack.c.b16 %v2240, %v2232
    %v3177 = vpack.c.b16 %v2241, %v2233
    %v3178 = vpack.c.b16 %v2242, %v2234
    %v3179 = vpack.c.b16 %v2243, %v2235
    %v3180 = vpack.c.b16 %v2244, %v2236
    %v3181 = vpack.c.b16 %v2245, %v2237
    %v3182 = vpack.c.b16 %v2246, %v2238
    %v3183 = vpack.c.b16 %v2247, %v2239
    %v3184 = vpack.c.b16 %v2256, %v2248
    %v3185 = vpack.c.b16 %v2257, %v2249
    %v3186 = vpack.c.b16 %v2258, %v2250
    %v3187 = vpack.c.b16 %v2259, %v2251
    %v3188 = vpack.c.b16 %v2260, %v2252
    %v3189 = vpack.c.b16 %v2261, %v2253
    %v3190 = vpack.c.b16 %v2262, %v2254
    %v3191 = vpack.c.b16 %v2263, %v2255
    %v3192 = vpack.c.b16 %v2272, %v2264
    %v3193 = vpack.c.b16 %v2273, %v2265
    %v3194 = vpack.c.b16 %v2274, %v2266
    %v3195 = vpack.c.b16 %v2275, %v2267
    %v3196 = vpack.c.b16 %v2276, %v2268
    %v3197 = vpack.c.b16 %v2277, %v2269
    %v3198 = vpack.c.b16 %v2278, %v2270
    %v3199 = vpack.c.b16 %v2279, %v2271
    %v3200 = vpack.c.b16 %v2288, %v2280
    %v3201 = vpack.c.b16 %v2289, %v2281
    %v3202 = vpack.c.b16 %v2290, %v2282
    %v3203 = vpack.c.b16 %v2291, %v2283
    %v3204 = vpack.c.b16 %v2292, %v2284
    %v3205 = vpack.c.b16 %v2293, %v2285
    %v3206 = vpack.c.b16 %v2294, %v2286
    %v3207 = vpack.c.b16 %v2295, %v2287
    %v3208 = vpack.c.b16 %v2304, %v2296
    %v3209 = vpack.c.b16 %v2305, %v2297
    %v3210 = vpack.c.b16 %v2306, %v2298
    %v3211 = vpack.c.b16 %v2307, %v2299
    %v3212 = vpack.c.b16 %v2308, %v2300
    %v3213 = vpack.c.b16 %v2309, %v2301
    %v3214 = vpack.c.b16 %v2310, %v2302
    %v3215 = vpack.c.b16 %v2311, %v2303
    %v3216 = vpack.c.b16 %v2320, %v2312
    %v3217 = vpack.c.b16 %v2321, %v2313
    %v3218 = vpack.c.b16 %v2322, %v2314
    %v3219 = vpack.c.b16 %v2323, %v2315
    %v3220 = vpack.c.b16 %v2324, %v2316
    %v3221 = vpack.c.b16 %v2325, %v2317
    %v3222 = vpack.c.b16 %v2326, %v2318
    %v3223 = vpack.c.b16 %v2327, %v2319
    %v3224 = vpack.c.b16 %v2336, %v2328
    %v3225 = vpack.c.b16 %v2337, %v2329
    %v3226 = vpack.c.b16 %v2338, %v2330
    %v3227 = vpack.c.b16 %v2339, %v2331
    %v3228 = vpack.c.b16 %v2340, %v2332
    %v3229 = vpack.c.b16 %v2341, %v2333
    %v3230 = vpack.c.b16 %v2342, %v2334
    %v3231 = vpack.c.b16 %v2343, %v2335
    %v3232 = vpack.c.b16 %v2352, %v2344
    %v3233 = vpack.c.b16 %v2353, %v2345
    %v3234 = vpack.c.b16 %v2354, %v2346
    %v3235 = vpack.c.b16 %v2355, %v2347
    %v3236 = vpack.c.b16 %v2356, %v2348
    %v3237 = vpack.c.b16 %v2357, %v2349
    %v3238 = vpack.c.b16 %v2358, %v2350
    %v3239 = vpack.c.b16 %v2359, %v2351
    %v3240 = vpack.c.b16 %v2368, %v2360
    %v3241 = vpack.c.b16 %v2369, %v2361
    %v3242 = vpack.c.b16 %v2370, %v2362
    %v3243 = vpack.c.b16 %v2371, %v2363
    %v3244 = vpack.c.b16 %v2372, %v2364
    %v3245 = vpack.c.b16 %v2373, %v2365
    %v3246 = vpack.c.b16 %v2374, %v2366
    %v3247 = vpack.c.b16 %v2375, %v2367
    %v3248 = vpack.c.b16 %v2384, %v2376
    %v3249 = vpack.c.b16 %v2385, %v2377
    %v3250 = vpack.c.b16 %v2386, %v2378
    %v3251 = vpack.c.b16 %v2387, %v2379
    %v3252 = vpack.c.b16 %v2388, %v2380
    %v3253 = vpack.c.b16 %v2389, %v2381
    %v3254 = vpack.c.b16 %v2390, %v2382
    %v3255 = vpack.c.b16 %v2391, %v2383
    %v3256 = vpack.c.b16 %v2400, %v2392
    %v3257 = vpack.c.b16 %v2401, %v2393
    %v3258 = vpack.c.b16 %v2402, %v2394
    %v3259 = vpack.c.b16 %v2403, %v2395
    %v3260 = vpack.c.b16 %v2404, %v2396
    %v3261 = vpack.c.b16 %v2405, %v2397
    %v3262 = vpack.c.b16 %v2406, %v2398
    %v3263 = vpack.c.b16 %v2407, %v2399
    %v3264 = vpack.c.b16 %v2416, %v2408
    %v3265 = vpack.c.b16 %v2417, %v2409
    %v3266 = vpack.c.b16 %v2418, %v2410
    %v3267 = vpack.c.b16 %v2419, %v2411
    %v3268 = vpack.c.b16 %v2420, %v2412
    %v3269 = vpack.c.b16 %v2421, %v2413
    %v3270 = vpack.c.b16 %v2422, %v2414
    %v3271 = vpack.c.b16 %v2423, %v2415
    %v3272 = vpack.c.b16 %v2432, %v2424
    %v3273 = vpack.c.b16 %v2433, %v2425
    %v3274 = vpack.c.b16 %v2434, %v2426
    %v3275 = vpack.c.b16 %v2435, %v2427
    %v3276 = vpack.c.b16 %v2436, %v2428
    %v3277 = vpack.c.b16 %v2437, %v2429
    %v3278 = vpack.c.b16 %v2438, %v2430
    %v3279 = vpack.c.b16 %v2439, %v2431
    %v3280 = vpack.c.b16 %v2448, %v2440
    %v3281 = vpack.c.b16 %v2449, %v2441
    %v3282 = vpack.c.b16 %v2450, %v2442
    %v3283 = vpack.c.b16 %v2451, %v2443
    %v3284 = vpack.c.b16 %v2452, %v2444
    %v3285 = vpack.c.b16 %v2453, %v2445
    %v3286 = vpack.c.b16 %v2454, %v2446
    %v3287 = vpack.c.b16 %v2455, %v2447
    %v3288 = vpack.c.b16 %v2464, %v2456
    %v3289 = vpack.c.b16 %v2465, %v2457
    %v3290 = vpack.c.b16 %v2466, %v2458
    %v3291 = vpack.c.b16 %v2467, %v2459
    %v3292 = vpack.c.b16 %v2468, %v2460
    %v3293 = vpack.c.b16 %v2469, %v2461
    %v3294 = vpack.c.b16 %v2470, %v2462
    %v3295 = vpack.c.b16 %v2471, %v2463
    %v3296 = vpack.c.b16 %v2480, %v2472
    %v3297 = vpack.c.b16 %v2481, %v2473
    %v3298 = vpack.c.b16 %v2482, %v2474
    %v3299 = vpack.c.b16 %v2483, %v2475
    %v3300 = vpack.c.b16 %v2484, %v2476
    %v3301 = vpack.c.b16 %v2485, %v2477
    %v3302 = vpack.c.b16 %v2486, %v2478
    %v3303 = vpack.c.b16 %v2487, %v2479
    %v3304 = vpack.c.b16 %v2496, %v2488
    %v3305 = vpack.c.b16 %v2497, %v2489
    %v3306 = vpack.c.b16 %v2498, %v2490
    %v3307 = vpack.c.b16 %v2499, %v2491
    %v3308 = vpack.c.b16 %v2500, %v2492
    %v3309 = vpack.c.b16 %v2501, %v2493
    %v3310 = vpack.c.b16 %v2502, %v2494
    %v3311 = vpack.c.b16 %v2503, %v2495
    %v3312 = vpack.c.b16 %v2512, %v2504
    %v3313 = vpack.c.b16 %v2513, %v2505
    %v3314 = vpack.c.b16 %v2514, %v2506
    %v3315 = vpack.c.b16 %v2515, %v2507
    %v3316 = vpack.c.b16 %v2516, %v2508
    %v3317 = vpack.c.b16 %v2517, %v2509
    %v3318 = vpack.c.b16 %v2518, %v2510
    %v3319 = vpack.c.b16 %v2519, %v2511
    %v3320 = vpack.c.b16 %v2528, %v2520
    %v3321 = vpack.c.b16 %v2529, %v2521
    %v3322 = vpack.c.b16 %v2530, %v2522
    %v3323 = vpack.c.b16 %v2531, %v2523
    %v3324 = vpack.c.b16 %v2532, %v2524
    %v3325 = vpack.c.b16 %v2533, %v2525
    %v3326 = vpack.c.b16 %v2534, %v2526
    %v3327 = vpack.c.b16 %v2535, %v2527
    %v3328 = vpack.c.b16 %v2544, %v2536
    %v3329 = vpack.c.b16 %v2545, %v2537
    %v3330 = vpack.c.b16 %v2546, %v2538
    %v3331 = vpack.c.b16 %v2547, %v2539
    %v3332 = vpack.c.b16 %v2548, %v2540
    %v3333 = vpack.c.b16 %v2549, %v2541
    %v3334 = vpack.c.b16 %v2550, %v2542
    %v3335 = vpack.c.b16 %v2551, %v2543
    %v3336 = vpack.c.b16 %v2560, %v2552
    %v3337 = vpack.c.b16 %v2561, %v2553
    %v3338 = vpack.c.b16 %v2562, %v2554
    %v3339 = vpack.c.b16 %v2563, %v2555
    %v3340 = vpack.c.b16 %v2564, %v2556
    %v3341 = vpack.c.b16 %v2565, %v2557
    %v3342 = vpack.c.b16 %v2566, %v2558
    %v3343 = vpack.c.b16 %v2567, %v2559
    %v3344 = vpack.c.b16 %v2576, %v2568
    %v3345 = vpack.c.b16 %v2577, %v2569
    %v3346 = vpack.c.b16 %v2578, %v2570
    %v3347 = vpack.c.b16 %v2579, %v2571
    %v3348 = vpack.c.b16 %v2580, %v2572
    %v3349 = vpack.c.b16 %v2581, %v2573
    %v3350 = vpack.c.b16 %v2582, %v2574
    %v3351 = vpack.c.b16 %v2583, %v2575
    %v3352 = vpack.c.b16 %v2592, %v2584
    %v3353 = vpack.c.b16 %v2593, %v2585
    %v3354 = vpack.c.b16 %v2594, %v2586
    %v3355 = vpack.c.b16 %v2595, %v2587
    %v3356 = vpack.c.b16 %v2596, %v2588
    %v3357 = vpack.c.b16 %v2597, %v2589
    %v3358 = vpack.c.b16 %v2598, %v2590
    %v3359 = vpack.c.b16 %v2599, %v2591
    %v3360 = vpack.c.b16 %v2608, %v2600
    %v3361 = vpack.c.b16 %v2609, %v2601
    %v3362 = vpack.c.b16 %v2610, %v2602
    %v3363 = vpack.c.b16 %v2611, %v2603
    %v3364 = vpack.c.b16 %v2612, %v2604
    %v3365 = vpack.c.b16 %v2613, %v2605
    %v3366 = vpack.c.b16 %v2614, %v2606
    %v3367 = vpack.c.b16 %v2615, %v2607
    %v3368 = vpack.c.b16 %v2624, %v2616
    %v3369 = vpack.c.b16 %v2625, %v2617
    %v3370 = vpack.c.b16 %v2626, %v2618
    %v3371 = vpack.c.b16 %v2627, %v2619
    %v3372 = vpack.c.b16 %v2628, %v2620
    %v3373 = vpack.c.b16 %v2629, %v2621
    %v3374 = vpack.c.b16 %v2630, %v2622
    %v3375 = vpack.c.b16 %v2631, %v2623
    %v3376 = vpack.c.b16 %v2640, %v2632
    %v3377 = vpack.c.b16 %v2641, %v2633
    %v3378 = vpack.c.b16 %v2642, %v2634
    %v3379 = vpack.c.b16 %v2643, %v2635
    %v3380 = vpack.c.b16 %v2644, %v2636
    %v3381 = vpack.c.b16 %v2645, %v2637
    %v3382 = vpack.c.b16 %v2646, %v2638
    %v3383 = vpack.c.b16 %v2647, %v2639
    %v3384 = vpack.c.b16 %v2656, %v2648
    %v3385 = vpack.c.b16 %v2657, %v2649
    %v3386 = vpack.c.b16 %v2658, %v2650
    %v3387 = vpack.c.b16 %v2659, %v2651
    %v3388 = vpack.c.b16 %v2660, %v2652
    %v3389 = vpack.c.b16 %v2661, %v2653
    %v3390 = vpack.c.b16 %v2662, %v2654
    %v3391 = vpack.c.b16 %v2663, %v2655
    %v3392 = vpack.c.b16 %v2672, %v2664
    %v3393 = vpack.c.b16 %v2673, %v2665
    %v3394 = vpack.c.b16 %v2674, %v2666
    %v3395 = vpack.c.b16 %v2675, %v2667
    %v3396 = vpack.c.b16 %v2676, %v2668
    %v3397 = vpack.c.b16 %v2677, %v2669
    %v3398 = vpack.c.b16 %v2678, %v2670
    %v3399 = vpack.c.b16 %v2679, %v2671
    %v3400 = vpack.c.b16 %v2688, %v2680
    %v3401 = vpack.c.b16 %v2689, %v2681
    %v3402 = vpack.c.b16 %v2690, %v2682
    %v3403 = vpack.c.b16 %v2691, %v2683
    %v3404 = vpack.c.b16 %v2692, %v2684
    %v3405 = vpack.c.b16 %v2693, %v2685
    %v3406 = vpack.c.b16 %v2694, %v2686
    %v3407 = vpack.c.b16 %v2695, %v2687
    %v3408 = vpack.c.b16 %v2704, %v2696
    %v3409 = vpack.c.b16 %v2705, %v2697
    %v3410 = vpack.c.b16 %v2706, %v2698
    %v3411 = vpack.c.b16 %v2707, %v2699
    %v3412 = vpack.c.b16 %v2708, %v2700
    %v3413 = vpack.c.b16 %v2709, %v2701
    %v3414 = vpack.c.b16 %v2710, %v2702
    %v3415 = vpack.c.b16 %v2711, %v2703
    %v3416 = vpack.c.b16 %v2720, %v2712
    %v3417 = vpack.c.b16 %v2721, %v2713
    %v3418 = vpack.c.b16 %v2722, %v2714
    %v3419 = vpack.c.b16 %v2723, %v2715
    %v3420 = vpack.c.b16 %v2724, %v2716
    %v3421 = vpack.c.b16 %v2725, %v2717
    %v3422 = vpack.c.b16 %v2726, %v2718
    %v3423 = vpack.c.b16 %v2727, %v2719
    %v3424 = vpack.c.b16 %v2736, %v2728
    %v3425 = vpack.c.b16 %v2737, %v2729
    %v3426 = vpack.c.b16 %v2738, %v2730
    %v3427 = vpack.c.b16 %v2739, %v2731
    %v3428 = vpack.c.b16 %v2740, %v2732
    %v3429 = vpack.c.b16 %v2741, %v2733
    %v3430 = vpack.c.b16 %v2742, %v2734
    %v3431 = vpack.c.b16 %v2743, %v2735
    %v3432 = vpack.c.b16 %v2752, %v2744
    %v3433 = vpack.c.b16 %v2753, %v2745
    %v3434 = vpack.c.b16 %v2754, %v2746
    %v3435 = vpack.c.b16 %v2755, %v2747
    %v3436 = vpack.c.b16 %v2756, %v2748
    %v3437 = vpack.c.b16 %v2757, %v2749
    %v3438 = vpack.c.b16 %v2758, %v2750
    %v3439 = vpack.c.b16 %v2759, %v2751
    %v3440 = vpack.c.b16 %v2768, %v2760
    %v3441 = vpack.c.b16 %v2769, %v2761
    %v3442 = vpack.c.b16 %v2770, %v2762
    %v3443 = vpack.c.b16 %v2771, %v2763
    %v3444 = vpack.c.b16 %v2772, %v2764
    %v3445 = vpack.c.b16 %v2773, %v2765
    %v3446 = vpack.c.b16 %v2774, %v2766
    %v3447 = vpack.c.b16 %v2775, %v2767
    %v3448 = vpack.c.b16 %v2784, %v2776
    %v3449 = vpack.c.b16 %v2785, %v2777
    %v3450 = vpack.c.b16 %v2786, %v2778
    %v3451 = vpack.c.b16 %v2787, %v2779
    %v3452 = vpack.c.b16 %v2788, %v2780
    %v3453 = vpack.c.b16 %v2789, %v2781
    %v3454 = vpack.c.b16 %v2790, %v2782
    %v3455 = vpack.c.b16 %v2791, %v2783
    %v3456 = vpack.c.b16 %v2800, %v2792
    %v3457 = vpack.c.b16 %v2801, %v2793
    %v3458 = vpack.c.b16 %v2802, %v2794
    %v3459 = vpack.c.b16 %v2803, %v2795
    %v3460 = vpack.c.b16 %v2804, %v2796
    %v3461 = vpack.c.b16 %v2805, %v2797
    %v3462 = vpack.c.b16 %v2806, %v2798
    %v3463 = vpack.c.b16 %v2807, %v2799
    %v3464 = vpack.c.b16 %v2816, %v2808
    %v3465 = vpack.c.b16 %v2817, %v2809
    %v3466 = vpack.c.b16 %v2818, %v2810
    %v3467 = vpack.c.b16 %v2819, %v2811
    %v3468 = vpack.c.b16 %v2820, %v2812
    %v3469 = vpack.c.b16 %v2821, %v2813
    %v3470 = vpack.c.b16 %v2822, %v2814
    %v3471 = vpack.c.b16 %v2823, %v2815
    %v3472 = vpack.c.b16 %v2832, %v2824
    %v3473 = vpack.c.b16 %v2833, %v2825
    %v3474 = vpack.c.b16 %v2834, %v2826
    %v3475 = vpack.c.b16 %v2835, %v2827
    %v3476 = vpack.c.b16 %v2836, %v2828
    %v3477 = vpack.c.b16 %v2837, %v2829
    %v3478 = vpack.c.b16 %v2838, %v2830
    %v3479 = vpack.c.b16 %v2839, %v2831
    %v3480 = vpack.c.b16 %v2848, %v2840
    %v3481 = vpack.c.b16 %v2849, %v2841
    %v3482 = vpack.c.b16 %v2850, %v2842
    %v3483 = vpack.c.b16 %v2851, %v2843
    %v3484 = vpack.c.b16 %v2852, %v2844
    %v3485 = vpack.c.b16 %v2853, %v2845
    %v3486 = vpack.c.b16 %v2854, %v2846
    %v3487 = vpack.c.b16 %v2855, %v2847
    %v3488 = vpack.c.b16 %v2864, %v2856
    %v3489 = vpack.c.b16 %v2865, %v2857
    %v3490 = vpack.c.b16 %v2866, %v2858
    %v3491 = vpack.c.b16 %v2867, %v2859
    %v3492 = vpack.c.b16 %v2868, %v2860
    %v3493 = vpack.c.b16 %v2869, %v2861
    %v3494 = vpack.c.b16 %v2870, %v2862
    %v3495 = vpack.c.b16 %v2871, %v2863
    %v3496 = vpack.c.b16 %v2880, %v2872
    %v3497 = vpack.c.b16 %v2881, %v2873
    %v3498 = vpack.c.b16 %v2882, %v2874
    %v3499 = vpack.c.b16 %v2883, %v2875
    %v3500 = vpack.c.b16 %v2884, %v2876
    %v3501 = vpack.c.b16 %v2885, %v2877
    %v3502 = vpack.c.b16 %v2886, %v2878
    %v3503 = vpack.c.b16 %v2887, %v2879
    %v3504 = vpack.c.b16 %v2896, %v2888
    %v3505 = vpack.c.b16 %v2897, %v2889
    %v3506 = vpack.c.b16 %v2898, %v2890
    %v3507 = vpack.c.b16 %v2899, %v2891
    %v3508 = vpack.c.b16 %v2900, %v2892
    %v3509 = vpack.c.b16 %v2901, %v2893
    %v3510 = vpack.c.b16 %v2902, %v2894
    %v3511 = vpack.c.b16 %v2903, %v2895
    %v3512 = vpack.c.b16 %v2912, %v2904
    %v3513 = vpack.c.b16 %v2913, %v2905
    %v3514 = vpack.c.b16 %v2914, %v2906
    %v3515 = vpack.c.b16 %v2915, %v2907
    %v3516 = vpack.c.b16 %v2916, %v2908
    %v3517 = vpack.c.b16 %v2917, %v2909
    %v3518 = vpack.c.b16 %v2918, %v2910
    %v3519 = vpack.c.b16 %v2919, %v2911
    %v3520 = vpack.c.b16 %v2928, %v2920
    %v3521 = vpack.c.b16 %v2929, %v2921
    %v3522 = vpack.c.b16 %v2930, %v2922
    %v3523 = vpack.c.b16 %v2931, %v2923
    %v3524 = vpack.c.b16 %v2932, %v2924
    %v3525 = vpack.c.b16 %v2933, %v2925
    %v3526 = vpack.c.b16 %v2934, %v2926
    %v3527 = vpack.c.b16 %v2935, %v2927
    %v3528 = vpack.c.b16 %v2944, %v2936
    %v3529 = vpack.c.b16 %v2945, %v2937
    %v3530 = vpack.c.b16 %v2946, %v2938
    %v3531 = vpack.c.b16 %v2947, %v2939
    %v3532 = vpack.c.b16 %v2948, %v2940
    %v3533 = vpack.c.b16 %v2949, %v2941
    %v3534 = vpack.c.b16 %v2950, %v2942
    %v3535 = vpack.c.b16 %v2951, %v2943
    %v3536 = vpack.c.b16 %v2960, %v2952
    %v3537 = vpack.c.b16 %v2961, %v2953
    %v3538 = vpack.c.b16 %v2962, %v2954
    %v3539 = vpack.c.b16 %v2963, %v2955
    %v3540 = vpack.c.b16 %v2964, %v2956
    %v3541 = vpack.c.b16 %v2965, %v2957
    %v3542 = vpack.c.b16 %v2966, %v2958
    %v3543 = vpack.c.b16 %v2967, %v2959
    %v3544 = vpack.c.b16 %v2976, %v2968
    %v3545 = vpack.c.b16 %v2977, %v2969
    %v3546 = vpack.c.b16 %v2978, %v2970
    %v3547 = vpack.c.b16 %v2979, %v2971
    %v3548 = vpack.c.b16 %v2980, %v2972
    %v3549 = vpack.c.b16 %v2981, %v2973
    %v3550 = vpack.c.b16 %v2982, %v2974
    %v3551 = vpack.c.b16 %v2983, %v2975
    %v3552 = vpack.c.b16 %v2992, %v2984
    %v3553 = vpack.c.b16 %v2993, %v2985
    %v3554 = vpack.c.b16 %v2994, %v2986
    %v3555 = vpack.c.b16 %v2995, %v2987
    %v3556 = vpack.c.b16 %v2996, %v2988
    %v3557 = vpack.c.b16 %v2997, %v2989
    %v3558 = vpack.c.b16 %v2998, %v2990
    %v3559 = vpack.c.b16 %v2999, %v2991
    %v3560 = vpack.c.b16 %v3008, %v3000
    %v3561 = vpack.c.b16 %v3009, %v3001
    %v3562 = vpack.c.b16 %v3010, %v3002
    %v3563 = vpack.c.b16 %v3011, %v3003
    %v3564 = vpack.c.b16 %v3012, %v3004
    %v3565 = vpack.c.b16 %v3013, %v3005
    %v3566 = vpack.c.b16 %v3014, %v3006
    %v3567 = vpack.c.b16 %v3015, %v3007
    %v3568 = vpack.c.b16 %v3024, %v3016
    %v3569 = vpack.c.b16 %v3025, %v3017
    %v3570 = vpack.c.b16 %v3026, %v3018
    %v3571 = vpack.c.b16 %v3027, %v3019
    %v3572 = vpack.c.b16 %v3028, %v3020
    %v3573 = vpack.c.b16 %v3029, %v3021
    %v3574 = vpack.c.b16 %v3030, %v3022
    %v3575 = vpack.c.b16 %v3031, %v3023
    %v3576 = vpack.c.b16 %v3040, %v3032
    %v3577 = vpack.c.b16 %v3041, %v3033
    %v3578 = vpack.c.b16 %v3042, %v3034
    %v3579 = vpack.c.b16 %v3043, %v3035
    %v3580 = vpack.c.b16 %v3044, %v3036
    %v3581 = vpack.c.b16 %v3045, %v3037
    %v3582 = vpack.c.b16 %v3046, %v3038
    %v3583 = vpack.c.b16 %v3047, %v3039
    %v3584 = vpack.c.b16 %v3056, %v3048
    %v3585 = vpack.c.b16 %v3057, %v3049
    %v3586 = vpack.c.b16 %v3058, %v3050
    %v3587 = vpack.c.b16 %v3059, %v3051
    %v3588 = vpack.c.b16 %v3060, %v3052
    %v3589 = vpack.c.b16 %v3061, %v3053
    %v3590 = vpack.c.b16 %v3062, %v3054
    %v3591 = vpack.c.b16 %v3063, %v3055
    %v3592 = vpack.c.b16 %v3072, %v3064
    %v3593 = vpack.c.b16 %v3073, %v3065
    %v3594 = vpack.c.b16 %v3074, %v3066
    %v3595 = vpack.c.b16 %v3075, %v3067
    %v3596 = vpack.c.b16 %v3076, %v3068
    %v3597 = vpack.c.b16 %v3077, %v3069
    %v3598 = vpack.c.b16 %v3078, %v3070
    %v3599 = vpack.c.b16 %v3079, %v3071
    %v3600 = vpack.c.b16 %v3088, %v3080
    %v3601 = vpack.c.b16 %v3089, %v3081
    %v3602 = vpack.c.b16 %v3090, %v3082
    %v3603 = vpack.c.b16 %v3091, %v3083
    %v3604 = vpack.c.b16 %v3092, %v3084
    %v3605 = vpack.c.b16 %v3093, %v3085
    %v3606 = vpack.c.b16 %v3094, %v3086
    %v3607 = vpack.c.b16 %v3095, %v3087
    %4120 = vmatprep.subr.bf16.mxu0 %v3153
    %4121 = vmatpush1.bf16.msra.mxu0 %v3152
    %4122 = vmatprep.subr.bf16.mxu0 %v3145
    %4123 = vmatpush1.bf16.msra.mxu0 %v3144
    %4124 = vmatprep.subr.bf16.mxu0 %v3137
    %4125 = vmatpush1.bf16.msra.mxu0 %v3136
    %4126 = vmatprep.subr.bf16.mxu0 %v3129
    %4127 = vmatpush1.bf16.msra.mxu0 %v3128
    %4128 = vmatprep.subr.bf16.mxu0 %v3121
    %4129 = vmatpush1.bf16.msra.mxu0 %v3120
    %4130 = vmatprep.subr.bf16.mxu0 %v3113
    %4131 = vmatpush1.bf16.msra.mxu0 %v3112
    %4132 = vmatprep.subr.bf16.mxu0 %v3105
    %4133 = vmatpush1.bf16.msra.mxu0 %v3104
    %4134 = vmatprep.subr.bf16.mxu0 %v3097
    %4135 = vmatpush1.bf16.msra.mxu0 %v3096
    %4136 = vmatprep.subr.bf16.mxu0 %v3217
    %4137 = vmatpush2.bf16.msra.mxu0 %v3216
    %4138 = vmatprep.subr.bf16.mxu0 %v3209
    %4139 = vmatpush2.bf16.msra.mxu0 %v3208
    %4140 = vmatprep.subr.bf16.mxu0 %v3201
    %4141 = vmatpush2.bf16.msra.mxu0 %v3200
    %4142 = vmatprep.subr.bf16.mxu0 %v3193
    %4143 = vmatpush2.bf16.msra.mxu0 %v3192
    %4144 = vmatprep.subr.bf16.mxu0 %v3185
    %4145 = vmatpush2.bf16.msra.mxu0 %v3184
    %4146 = vmatprep.subr.bf16.mxu0 %v3177
    %4147 = vmatpush2.bf16.msra.mxu0 %v3176
    %4148 = vmatprep.subr.bf16.mxu0 %v3169
    %4149 = vmatpush2.bf16.msra.mxu0 %v3168
    %4150 = vmatprep.subr.bf16.mxu0 %v3161
    %4151 = vmatpush2.bf16.msra.mxu0 %v3160
    %4152 = vmatprep.mubr.bf16.mxu0 %v999
    %4153 = vmatmul.mubr.bf16.gmra.mxu0 %v998
    %v4154 = vpop.f32.mrf.mxu0
    %v4155 = vadd.f32 %v1523, %v4154
    %v4156 = vpop.f32.mrf.mxu0
    %v4157 = vadd.f32 %v1527, %v4156
    %v4158 = vpop.f32.mrf.mxu0
    %v4159 = vpop.f32.mrf.mxu0
    %4160 = vdwg.mxu0
    %4161 = vmatprep.subr.bf16.mxu0 %v3281
    %4162 = vmatpush1.bf16.msra.mxu0 %v3280
    %4163 = vmatprep.subr.bf16.mxu0 %v3273
    %4164 = vmatpush1.bf16.msra.mxu0 %v3272
    %4165 = vmatprep.subr.bf16.mxu0 %v3265
    %4166 = vmatpush1.bf16.msra.mxu0 %v3264
    %4167 = vmatprep.subr.bf16.mxu0 %v3257
    %4168 = vmatpush1.bf16.msra.mxu0 %v3256
    %4169 = vmatprep.subr.bf16.mxu0 %v3249
    %4170 = vmatpush1.bf16.msra.mxu0 %v3248
    %4171 = vmatprep.subr.bf16.mxu0 %v3241
    %4172 = vmatpush1.bf16.msra.mxu0 %v3240
    %4173 = vmatprep.subr.bf16.mxu0 %v3233
    %4174 = vmatpush1.bf16.msra.mxu0 %v3232
    %4175 = vmatprep.subr.bf16.mxu0 %v3225
    %4176 = vmatpush1.bf16.msra.mxu0 %v3224
    %4177 = vmatprep.subr.bf16.mxu0 %v3345
    %4178 = vmatpush2.bf16.msra.mxu0 %v3344
    %4179 = vmatprep.subr.bf16.mxu0 %v3337
    %4180 = vmatpush2.bf16.msra.mxu0 %v3336
    %4181 = vmatprep.subr.bf16.mxu0 %v3329
    %4182 = vmatpush2.bf16.msra.mxu0 %v3328
    %4183 = vmatprep.subr.bf16.mxu0 %v3321
    %4184 = vmatpush2.bf16.msra.mxu0 %v3320
    %4185 = vmatprep.subr.bf16.mxu0 %v3313
    %4186 = vmatpush2.bf16.msra.mxu0 %v3312
    %4187 = vmatprep.subr.bf16.mxu0 %v3305
    %4188 = vmatpush2.bf16.msra.mxu0 %v3304
    %4189 = vmatprep.subr.bf16.mxu0 %v3297
    %4190 = vmatpush2.bf16.msra.mxu0 %v3296
    %4191 = vmatprep.subr.bf16.mxu0 %v3289
    %4192 = vmatpush2.bf16.msra.mxu0 %v3288
    %4193 = vmatprep.mubr.bf16.mxu0 %v1001
    %4194 = vmatmul.mubr.bf16.gmra.mxu0 %v1000
    %v4195 = vpop.f32.mrf.mxu0
    %v4196 = vadd.f32 %v4155, %v4195
    %v4197 = vpop.f32.mrf.mxu0
    %v4198 = vadd.f32 %v4157, %v4197
    %v4199 = vpop.f32.mrf.mxu0
    %v4200 = vpop.f32.mrf.mxu0
    %4201 = vdwg.mxu0
    %4202 = vmatprep.subr.bf16.mxu0 %v3409
    %4203 = vmatpush1.bf16.msra.mxu0 %v3408
    %4204 = vmatprep.subr.bf16.mxu0 %v3401
    %4205 = vmatpush1.bf16.msra.mxu0 %v3400
    %4206 = vmatprep.subr.bf16.mxu0 %v3393
    %4207 = vmatpush1.bf16.msra.mxu0 %v3392
    %4208 = vmatprep.subr.bf16.mxu0 %v3385
    %4209 = vmatpush1.bf16.msra.mxu0 %v3384
    %4210 = vmatprep.subr.bf16.mxu0 %v3377
    %4211 = vmatpush1.bf16.msra.mxu0 %v3376
    %4212 = vmatprep.subr.bf16.mxu0 %v3369
    %4213 = vmatpush1.bf16.msra.mxu0 %v3368
    %4214 = vmatprep.subr.bf16.mxu0 %v3361
    %4215 = vmatpush1.bf16.msra.mxu0 %v3360
    %4216 = vmatprep.subr.bf16.mxu0 %v3353
    %4217 = vmatpush1.bf16.msra.mxu0 %v3352
    %4218 = vmatprep.subr.bf16.mxu0 %v3473
    %4219 = vmatpush2.bf16.msra.mxu0 %v3472
    %4220 = vmatprep.subr.bf16.mxu0 %v3465
    %4221 = vmatpush2.bf16.msra.mxu0 %v3464
    %4222 = vmatprep.subr.bf16.mxu0 %v3457
    %4223 = vmatpush2.bf16.msra.mxu0 %v3456
    %4224 = vmatprep.subr.bf16.mxu0 %v3449
    %4225 = vmatpush2.bf16.msra.mxu0 %v3448
    %4226 = vmatprep.subr.bf16.mxu0 %v3441
    %4227 = vmatpush2.bf16.msra.mxu0 %v3440
    %4228 = vmatprep.subr.bf16.mxu0 %v3433
    %4229 = vmatpush2.bf16.msra.mxu0 %v3432
    %4230 = vmatprep.subr.bf16.mxu0 %v3425
    %4231 = vmatpush2.bf16.msra.mxu0 %v3424
    %4232 = vmatprep.subr.bf16.mxu0 %v3417
    %4233 = vmatpush2.bf16.msra.mxu0 %v3416
    %4234 = vmatprep.mubr.bf16.mxu0 %v1003
    %4235 = vmatmul.mubr.bf16.gmra.mxu0 %v1002
    %v4236 = vpop.f32.mrf.mxu0
    %v4237 = vadd.f32 %v4196, %v4236
    %v4238 = vpop.f32.mrf.mxu0
    %v4239 = vadd.f32 %v4198, %v4238
    %v4240 = vpop.f32.mrf.mxu0
    %v4241 = vpop.f32.mrf.mxu0
    %4242 = vdwg.mxu0
    %4243 = vmatprep.subr.bf16.mxu0 %v3537
    %4244 = vmatpush1.bf16.msra.mxu0 %v3536
    %4245 = vmatprep.subr.bf16.mxu0 %v3529
    %4246 = vmatpush1.bf16.msra.mxu0 %v3528
    %4247 = vmatprep.subr.bf16.mxu0 %v3521
    %4248 = vmatpush1.bf16.msra.mxu0 %v3520
    %4249 = vmatprep.subr.bf16.mxu0 %v3513
    %4250 = vmatpush1.bf16.msra.mxu0 %v3512
    %4251 = vmatprep.subr.bf16.mxu0 %v3505
    %4252 = vmatpush1.bf16.msra.mxu0 %v3504
    %4253 = vmatprep.subr.bf16.mxu0 %v3497
    %4254 = vmatpush1.bf16.msra.mxu0 %v3496
    %4255 = vmatprep.subr.bf16.mxu0 %v3489
    %4256 = vmatpush1.bf16.msra.mxu0 %v3488
    %4257 = vmatprep.subr.bf16.mxu0 %v3481
    %4258 = vmatpush1.bf16.msra.mxu0 %v3480
    %4259 = vmatprep.subr.bf16.mxu0 %v3601
    %4260 = vmatpush2.bf16.msra.mxu0 %v3600
    %4261 = vmatprep.subr.bf16.mxu0 %v3593
    %4262 = vmatpush2.bf16.msra.mxu0 %v3592
    %4263 = vmatprep.subr.bf16.mxu0 %v3585
    %4264 = vmatpush2.bf16.msra.mxu0 %v3584
    %4265 = vmatprep.subr.bf16.mxu0 %v3577
    %4266 = vmatpush2.bf16.msra.mxu0 %v3576
    %4267 = vmatprep.subr.bf16.mxu0 %v3569
    %4268 = vmatpush2.bf16.msra.mxu0 %v3568
    %4269 = vmatprep.subr.bf16.mxu0 %v3561
    %4270 = vmatpush2.bf16.msra.mxu0 %v3560
    %4271 = vmatprep.subr.bf16.mxu0 %v3553
    %4272 = vmatpush2.bf16.msra.mxu0 %v3552
    %4273 = vmatprep.subr.bf16.mxu0 %v3545
    %4274 = vmatpush2.bf16.msra.mxu0 %v3544
    %4275 = vmatprep.mubr.bf16.mxu0 %v1005
    %4276 = vmatmul.mubr.bf16.gmra.mxu0 %v1004
    %v4277 = vpop.f32.mrf.mxu0
    %v4278 = vadd.f32 %v4237, %v4277
    %v4279 = vpop.f32.mrf.mxu0
    %v4280 = vadd.f32 %v4239, %v4279
    %v4281 = vpop.f32.mrf.mxu0
    %v4282 = vpop.f32.mrf.mxu0
    %4283 = vdwg.mxu0
    %4284 = vmatprep.subr.bf16.mxu0 %v3155
    %4285 = vmatpush1.bf16.msra.mxu0 %v3154
    %4286 = vmatprep.subr.bf16.mxu0 %v3147
    %4287 = vmatpush1.bf16.msra.mxu0 %v3146
    %4288 = vmatprep.subr.bf16.mxu0 %v3139
    %4289 = vmatpush1.bf16.msra.mxu0 %v3138
    %4290 = vmatprep.subr.bf16.mxu0 %v3131
    %4291 = vmatpush1.bf16.msra.mxu0 %v3130
    %4292 = vmatprep.subr.bf16.mxu0 %v3123
    %4293 = vmatpush1.bf16.msra.mxu0 %v3122
    %4294 = vmatprep.subr.bf16.mxu0 %v3115
    %4295 = vmatpush1.bf16.msra.mxu0 %v3114
    %4296 = vmatprep.subr.bf16.mxu0 %v3107
    %4297 = vmatpush1.bf16.msra.mxu0 %v3106
    %4298 = vmatprep.subr.bf16.mxu0 %v3099
    %4299 = vmatpush1.bf16.msra.mxu0 %v3098
    %4300 = vmatprep.subr.bf16.mxu0 %v3219
    %4301 = vmatpush2.bf16.msra.mxu0 %v3218
    %4302 = vmatprep.subr.bf16.mxu0 %v3211
    %4303 = vmatpush2.bf16.msra.mxu0 %v3210
    %4304 = vmatprep.subr.bf16.mxu0 %v3203
    %4305 = vmatpush2.bf16.msra.mxu0 %v3202
    %4306 = vmatprep.subr.bf16.mxu0 %v3195
    %4307 = vmatpush2.bf16.msra.mxu0 %v3194
    %4308 = vmatprep.subr.bf16.mxu0 %v3187
    %4309 = vmatpush2.bf16.msra.mxu0 %v3186
    %4310 = vmatprep.subr.bf16.mxu0 %v3179
    %4311 = vmatpush2.bf16.msra.mxu0 %v3178
    %4312 = vmatprep.subr.bf16.mxu0 %v3171
    %4313 = vmatpush2.bf16.msra.mxu0 %v3170
    %4314 = vmatprep.subr.bf16.mxu0 %v3163
    %4315 = vmatpush2.bf16.msra.mxu0 %v3162
    %4316 = vmatprep.mubr.bf16.mxu0 %v999
    %4317 = vmatmul.mubr.bf16.gmra.mxu0 %v998
    %v4318 = vpop.f32.mrf.mxu0
    %v4319 = vadd.f32 %v1531, %v4318
    %v4320 = vpop.f32.mrf.mxu0
    %v4321 = vadd.f32 %v1535, %v4320
    %v4322 = vpop.f32.mrf.mxu0
    %v4323 = vpop.f32.mrf.mxu0
    %4324 = vdwg.mxu0
    %4325 = vmatprep.subr.bf16.mxu0 %v3283
    %4326 = vmatpush1.bf16.msra.mxu0 %v3282
    %4327 = vmatprep.subr.bf16.mxu0 %v3275
    %4328 = vmatpush1.bf16.msra.mxu0 %v3274
    %4329 = vmatprep.subr.bf16.mxu0 %v3267
    %4330 = vmatpush1.bf16.msra.mxu0 %v3266
    %4331 = vmatprep.subr.bf16.mxu0 %v3259
    %4332 = vmatpush1.bf16.msra.mxu0 %v3258
    %4333 = vmatprep.subr.bf16.mxu0 %v3251
    %4334 = vmatpush1.bf16.msra.mxu0 %v3250
    %4335 = vmatprep.subr.bf16.mxu0 %v3243
    %4336 = vmatpush1.bf16.msra.mxu0 %v3242
    %4337 = vmatprep.subr.bf16.mxu0 %v3235
    %4338 = vmatpush1.bf16.msra.mxu0 %v3234
    %4339 = vmatprep.subr.bf16.mxu0 %v3227
    %4340 = vmatpush1.bf16.msra.mxu0 %v3226
    %4341 = vmatprep.subr.bf16.mxu0 %v3347
    %4342 = vmatpush2.bf16.msra.mxu0 %v3346
    %4343 = vmatprep.subr.bf16.mxu0 %v3339
    %4344 = vmatpush2.bf16.msra.mxu0 %v3338
    %4345 = vmatprep.subr.bf16.mxu0 %v3331
    %4346 = vmatpush2.bf16.msra.mxu0 %v3330
    %4347 = vmatprep.subr.bf16.mxu0 %v3323
    %4348 = vmatpush2.bf16.msra.mxu0 %v3322
    %4349 = vmatprep.subr.bf16.mxu0 %v3315
    %4350 = vmatpush2.bf16.msra.mxu0 %v3314
    %4351 = vmatprep.subr.bf16.mxu0 %v3307
    %4352 = vmatpush2.bf16.msra.mxu0 %v3306
    %4353 = vmatprep.subr.bf16.mxu0 %v3299
    %4354 = vmatpush2.bf16.msra.mxu0 %v3298
    %4355 = vmatprep.subr.bf16.mxu0 %v3291
    %4356 = vmatpush2.bf16.msra.mxu0 %v3290
    %4357 = vmatprep.mubr.bf16.mxu0 %v1001
    %4358 = vmatmul.mubr.bf16.gmra.mxu0 %v1000
    %v4359 = vpop.f32.mrf.mxu0
    %v4360 = vadd.f32 %v4319, %v4359
    %v4361 = vpop.f32.mrf.mxu0
    %v4362 = vadd.f32 %v4321, %v4361
    %v4363 = vpop.f32.mrf.mxu0
    %v4364 = vpop.f32.mrf.mxu0
    %4365 = vdwg.mxu0
    %4366 = vmatprep.subr.bf16.mxu0 %v3411
    %4367 = vmatpush1.bf16.msra.mxu0 %v3410
    %4368 = vmatprep.subr.bf16.mxu0 %v3403
    %4369 = vmatpush1.bf16.msra.mxu0 %v3402
    %4370 = vmatprep.subr.bf16.mxu0 %v3395
    %4371 = vmatpush1.bf16.msra.mxu0 %v3394
    %4372 = vmatprep.subr.bf16.mxu0 %v3387
    %4373 = vmatpush1.bf16.msra.mxu0 %v3386
    %4374 = vmatprep.subr.bf16.mxu0 %v3379
    %4375 = vmatpush1.bf16.msra.mxu0 %v3378
    %4376 = vmatprep.subr.bf16.mxu0 %v3371
    %4377 = vmatpush1.bf16.msra.mxu0 %v3370
    %4378 = vmatprep.subr.bf16.mxu0 %v3363
    %4379 = vmatpush1.bf16.msra.mxu0 %v3362
    %4380 = vmatprep.subr.bf16.mxu0 %v3355
    %4381 = vmatpush1.bf16.msra.mxu0 %v3354
    %4382 = vmatprep.subr.bf16.mxu0 %v3475
    %4383 = vmatpush2.bf16.msra.mxu0 %v3474
    %4384 = vmatprep.subr.bf16.mxu0 %v3467
    %4385 = vmatpush2.bf16.msra.mxu0 %v3466
    %4386 = vmatprep.subr.bf16.mxu0 %v3459
    %4387 = vmatpush2.bf16.msra.mxu0 %v3458
    %4388 = vmatprep.subr.bf16.mxu0 %v3451
    %4389 = vmatpush2.bf16.msra.mxu0 %v3450
    %4390 = vmatprep.subr.bf16.mxu0 %v3443
    %4391 = vmatpush2.bf16.msra.mxu0 %v3442
    %4392 = vmatprep.subr.bf16.mxu0 %v3435
    %4393 = vmatpush2.bf16.msra.mxu0 %v3434
    %4394 = vmatprep.subr.bf16.mxu0 %v3427
    %4395 = vmatpush2.bf16.msra.mxu0 %v3426
    %4396 = vmatprep.subr.bf16.mxu0 %v3419
    %4397 = vmatpush2.bf16.msra.mxu0 %v3418
    %4398 = vmatprep.mubr.bf16.mxu0 %v1003
    %4399 = vmatmul.mubr.bf16.gmra.mxu0 %v1002
    %v4400 = vpop.f32.mrf.mxu0
    %v4401 = vadd.f32 %v4360, %v4400
    %v4402 = vpop.f32.mrf.mxu0
    %v4403 = vadd.f32 %v4362, %v4402
    %v4404 = vpop.f32.mrf.mxu0
    %v4405 = vpop.f32.mrf.mxu0
    %4406 = vdwg.mxu0
    %4407 = vmatprep.subr.bf16.mxu0 %v3539
    %4408 = vmatpush1.bf16.msra.mxu0 %v3538
    %4409 = vmatprep.subr.bf16.mxu0 %v3531
    %4410 = vmatpush1.bf16.msra.mxu0 %v3530
    %4411 = vmatprep.subr.bf16.mxu0 %v3523
    %4412 = vmatpush1.bf16.msra.mxu0 %v3522
    %4413 = vmatprep.subr.bf16.mxu0 %v3515
    %4414 = vmatpush1.bf16.msra.mxu0 %v3514
    %4415 = vmatprep.subr.bf16.mxu0 %v3507
    %4416 = vmatpush1.bf16.msra.mxu0 %v3506
    %4417 = vmatprep.subr.bf16.mxu0 %v3499
    %4418 = vmatpush1.bf16.msra.mxu0 %v3498
    %4419 = vmatprep.subr.bf16.mxu0 %v3491
    %4420 = vmatpush1.bf16.msra.mxu0 %v3490
    %4421 = vmatprep.subr.bf16.mxu0 %v3483
    %4422 = vmatpush1.bf16.msra.mxu0 %v3482
    %4423 = vmatprep.subr.bf16.mxu0 %v3603
    %4424 = vmatpush2.bf16.msra.mxu0 %v3602
    %4425 = vmatprep.subr.bf16.mxu0 %v3595
    %4426 = vmatpush2.bf16.msra.mxu0 %v3594
    %4427 = vmatprep.subr.bf16.mxu0 %v3587
    %4428 = vmatpush2.bf16.msra.mxu0 %v3586
    %4429 = vmatprep.subr.bf16.mxu0 %v3579
    %4430 = vmatpush2.bf16.msra.mxu0 %v3578
    %4431 = vmatprep.subr.bf16.mxu0 %v3571
    %4432 = vmatpush2.bf16.msra.mxu0 %v3570
    %4433 = vmatprep.subr.bf16.mxu0 %v3563
    %4434 = vmatpush2.bf16.msra.mxu0 %v3562
    %4435 = vmatprep.subr.bf16.mxu0 %v3555
    %4436 = vmatpush2.bf16.msra.mxu0 %v3554
    %4437 = vmatprep.subr.bf16.mxu0 %v3547
    %4438 = vmatpush2.bf16.msra.mxu0 %v3546
    %4439 = vmatprep.mubr.bf16.mxu0 %v1005
    %4440 = vmatmul.mubr.bf16.gmra.mxu0 %v1004
    %v4441 = vpop.f32.mrf.mxu0
    %v4442 = vadd.f32 %v4401, %v4441
    %v4443 = vpop.f32.mrf.mxu0
    %v4444 = vadd.f32 %v4403, %v4443
    %v4445 = vpop.f32.mrf.mxu0
    %v4446 = vpop.f32.mrf.mxu0
    %4447 = vdwg.mxu0
    %4448 = vmatprep.subr.bf16.mxu0 %v3157
    %4449 = vmatpush1.bf16.msra.mxu0 %v3156
    %4450 = vmatprep.subr.bf16.mxu0 %v3149
    %4451 = vmatpush1.bf16.msra.mxu0 %v3148
    %4452 = vmatprep.subr.bf16.mxu0 %v3141
    %4453 = vmatpush1.bf16.msra.mxu0 %v3140
    %4454 = vmatprep.subr.bf16.mxu0 %v3133
    %4455 = vmatpush1.bf16.msra.mxu0 %v3132
    %4456 = vmatprep.subr.bf16.mxu0 %v3125
    %4457 = vmatpush1.bf16.msra.mxu0 %v3124
    %4458 = vmatprep.subr.bf16.mxu0 %v3117
    %4459 = vmatpush1.bf16.msra.mxu0 %v3116
    %4460 = vmatprep.subr.bf16.mxu0 %v3109
    %4461 = vmatpush1.bf16.msra.mxu0 %v3108
    %4462 = vmatprep.subr.bf16.mxu0 %v3101
    %4463 = vmatpush1.bf16.msra.mxu0 %v3100
    %4464 = vmatprep.subr.bf16.mxu0 %v3221
    %4465 = vmatpush2.bf16.msra.mxu0 %v3220
    %4466 = vmatprep.subr.bf16.mxu0 %v3213
    %4467 = vmatpush2.bf16.msra.mxu0 %v3212
    %4468 = vmatprep.subr.bf16.mxu0 %v3205
    %4469 = vmatpush2.bf16.msra.mxu0 %v3204
    %4470 = vmatprep.subr.bf16.mxu0 %v3197
    %4471 = vmatpush2.bf16.msra.mxu0 %v3196
    %4472 = vmatprep.subr.bf16.mxu0 %v3189
    %4473 = vmatpush2.bf16.msra.mxu0 %v3188
    %4474 = vmatprep.subr.bf16.mxu0 %v3181
    %4475 = vmatpush2.bf16.msra.mxu0 %v3180
    %4476 = vmatprep.subr.bf16.mxu0 %v3173
    %4477 = vmatpush2.bf16.msra.mxu0 %v3172
    %4478 = vmatprep.subr.bf16.mxu0 %v3165
    %4479 = vmatpush2.bf16.msra.mxu0 %v3164
    %4480 = vmatprep.mubr.bf16.mxu0 %v999
    %4481 = vmatmul.mubr.bf16.gmra.mxu0 %v998
    %v4482 = vpop.f32.mrf.mxu0
    %v4483 = vadd.f32 %v1539, %v4482
    %v4484 = vpop.f32.mrf.mxu0
    %v4485 = vadd.f32 %v1543, %v4484
    %v4486 = vpop.f32.mrf.mxu0
    %v4487 = vpop.f32.mrf.mxu0
    %4488 = vdwg.mxu0
    %4489 = vmatprep.subr.bf16.mxu0 %v3285
    %4490 = vmatpush1.bf16.msra.mxu0 %v3284
    %4491 = vmatprep.subr.bf16.mxu0 %v3277
    %4492 = vmatpush1.bf16.msra.mxu0 %v3276
    %4493 = vmatprep.subr.bf16.mxu0 %v3269
    %4494 = vmatpush1.bf16.msra.mxu0 %v3268
    %4495 = vmatprep.subr.bf16.mxu0 %v3261
    %4496 = vmatpush1.bf16.msra.mxu0 %v3260
    %4497 = vmatprep.subr.bf16.mxu0 %v3253
    %4498 = vmatpush1.bf16.msra.mxu0 %v3252
    %4499 = vmatprep.subr.bf16.mxu0 %v3245
    %4500 = vmatpush1.bf16.msra.mxu0 %v3244
    %4501 = vmatprep.subr.bf16.mxu0 %v3237
    %4502 = vmatpush1.bf16.msra.mxu0 %v3236
    %4503 = vmatprep.subr.bf16.mxu0 %v3229
    %4504 = vmatpush1.bf16.msra.mxu0 %v3228
    %4505 = vmatprep.subr.bf16.mxu0 %v3349
    %4506 = vmatpush2.bf16.msra.mxu0 %v3348
    %4507 = vmatprep.subr.bf16.mxu0 %v3341
    %4508 = vmatpush2.bf16.msra.mxu0 %v3340
    %4509 = vmatprep.subr.bf16.mxu0 %v3333
    %4510 = vmatpush2.bf16.msra.mxu0 %v3332
    %4511 = vmatprep.subr.bf16.mxu0 %v3325
    %4512 = vmatpush2.bf16.msra.mxu0 %v3324
    %4513 = vmatprep.subr.bf16.mxu0 %v3317
    %4514 = vmatpush2.bf16.msra.mxu0 %v3316
    %4515 = vmatprep.subr.bf16.mxu0 %v3309
    %4516 = vmatpush2.bf16.msra.mxu0 %v3308
    %4517 = vmatprep.subr.bf16.mxu0 %v3301
    %4518 = vmatpush2.bf16.msra.mxu0 %v3300
    %4519 = vmatprep.subr.bf16.mxu0 %v3293
    %4520 = vmatpush2.bf16.msra.mxu0 %v3292
    %4521 = vmatprep.mubr.bf16.mxu0 %v1001
    %4522 = vmatmul.mubr.bf16.gmra.mxu0 %v1000
    %v4523 = vpop.f32.mrf.mxu0
    %v4524 = vadd.f32 %v4483, %v4523
    %v4525 = vpop.f32.mrf.mxu0
    %v4526 = vadd.f32 %v4485, %v4525
    %v4527 = vpop.f32.mrf.mxu0
    %v4528 = vpop.f32.mrf.mxu0
    %4529 = vdwg.mxu0
    %4530 = vmatprep.subr.bf16.mxu0 %v3413
    %4531 = vmatpush1.bf16.msra.mxu0 %v3412
    %4532 = vmatprep.subr.bf16.mxu0 %v3405
    %4533 = vmatpush1.bf16.msra.mxu0 %v3404
    %4534 = vmatprep.subr.bf16.mxu0 %v3397
    %4535 = vmatpush1.bf16.msra.mxu0 %v3396
    %4536 = vmatprep.subr.bf16.mxu0 %v3389
    %4537 = vmatpush1.bf16.msra.mxu0 %v3388
    %4538 = vmatprep.subr.bf16.mxu0 %v3381
    %4539 = vmatpush1.bf16.msra.mxu0 %v3380
    %4540 = vmatprep.subr.bf16.mxu0 %v3373
    %4541 = vmatpush1.bf16.msra.mxu0 %v3372
    %4542 = vmatprep.subr.bf16.mxu0 %v3365
    %4543 = vmatpush1.bf16.msra.mxu0 %v3364
    %4544 = vmatprep.subr.bf16.mxu0 %v3357
    %4545 = vmatpush1.bf16.msra.mxu0 %v3356
    %4546 = vmatprep.subr.bf16.mxu0 %v3477
    %4547 = vmatpush2.bf16.msra.mxu0 %v3476
    %4548 = vmatprep.subr.bf16.mxu0 %v3469
    %4549 = vmatpush2.bf16.msra.mxu0 %v3468
    %4550 = vmatprep.subr.bf16.mxu0 %v3461
    %4551 = vmatpush2.bf16.msra.mxu0 %v3460
    %4552 = vmatprep.subr.bf16.mxu0 %v3453
    %4553 = vmatpush2.bf16.msra.mxu0 %v3452
    %4554 = vmatprep.subr.bf16.mxu0 %v3445
    %4555 = vmatpush2.bf16.msra.mxu0 %v3444
    %4556 = vmatprep.subr.bf16.mxu0 %v3437
    %4557 = vmatpush2.bf16.msra.mxu0 %v3436
    %4558 = vmatprep.subr.bf16.mxu0 %v3429
    %4559 = vmatpush2.bf16.msra.mxu0 %v3428
    %4560 = vmatprep.subr.bf16.mxu0 %v3421
    %4561 = vmatpush2.bf16.msra.mxu0 %v3420
    %4562 = vmatprep.mubr.bf16.mxu0 %v1003
    %4563 = vmatmul.mubr.bf16.gmra.mxu0 %v1002
    %v4564 = vpop.f32.mrf.mxu0
    %v4565 = vadd.f32 %v4524, %v4564
    %v4566 = vpop.f32.mrf.mxu0
    %v4567 = vadd.f32 %v4526, %v4566
    %v4568 = vpop.f32.mrf.mxu0
    %v4569 = vpop.f32.mrf.mxu0
    %4570 = vdwg.mxu0
    %4571 = vmatprep.subr.bf16.mxu0 %v3541
    %4572 = vmatpush1.bf16.msra.mxu0 %v3540
    %4573 = vmatprep.subr.bf16.mxu0 %v3533
    %4574 = vmatpush1.bf16.msra.mxu0 %v3532
    %4575 = vmatprep.subr.bf16.mxu0 %v3525
    %4576 = vmatpush1.bf16.msra.mxu0 %v3524
    %4577 = vmatprep.subr.bf16.mxu0 %v3517
    %4578 = vmatpush1.bf16.msra.mxu0 %v3516
    %4579 = vmatprep.subr.bf16.mxu0 %v3509
    %4580 = vmatpush1.bf16.msra.mxu0 %v3508
    %4581 = vmatprep.subr.bf16.mxu0 %v3501
    %4582 = vmatpush1.bf16.msra.mxu0 %v3500
    %4583 = vmatprep.subr.bf16.mxu0 %v3493
    %4584 = vmatpush1.bf16.msra.mxu0 %v3492
    %4585 = vmatprep.subr.bf16.mxu0 %v3485
    %4586 = vmatpush1.bf16.msra.mxu0 %v3484
    %4587 = vmatprep.subr.bf16.mxu0 %v3605
    %4588 = vmatpush2.bf16.msra.mxu0 %v3604
    %4589 = vmatprep.subr.bf16.mxu0 %v3597
    %4590 = vmatpush2.bf16.msra.mxu0 %v3596
    %4591 = vmatprep.subr.bf16.mxu0 %v3589
    %4592 = vmatpush2.bf16.msra.mxu0 %v3588
    %4593 = vmatprep.subr.bf16.mxu0 %v3581
    %4594 = vmatpush2.bf16.msra.mxu0 %v3580
    %4595 = vmatprep.subr.bf16.mxu0 %v3573
    %4596 = vmatpush2.bf16.msra.mxu0 %v3572
    %4597 = vmatprep.subr.bf16.mxu0 %v3565
    %4598 = vmatpush2.bf16.msra.mxu0 %v3564
    %4599 = vmatprep.subr.bf16.mxu0 %v3557
    %4600 = vmatpush2.bf16.msra.mxu0 %v3556
    %4601 = vmatprep.subr.bf16.mxu0 %v3549
    %4602 = vmatpush2.bf16.msra.mxu0 %v3548
    %4603 = vmatprep.mubr.bf16.mxu0 %v1005
    %4604 = vmatmul.mubr.bf16.gmra.mxu0 %v1004
    %v4605 = vpop.f32.mrf.mxu0
    %v4606 = vadd.f32 %v4565, %v4605
    %v4607 = vpop.f32.mrf.mxu0
    %v4608 = vadd.f32 %v4567, %v4607
    %v4609 = vpop.f32.mrf.mxu0
    %v4610 = vpop.f32.mrf.mxu0
    %4611 = vdwg.mxu0
    %4612 = vmatprep.subr.bf16.mxu0 %v3159
    %4613 = vmatpush1.bf16.msra.mxu0 %v3158
    %4614 = vmatprep.subr.bf16.mxu0 %v3151
    %4615 = vmatpush1.bf16.msra.mxu0 %v3150
    %4616 = vmatprep.subr.bf16.mxu0 %v3143
    %4617 = vmatpush1.bf16.msra.mxu0 %v3142
    %4618 = vmatprep.subr.bf16.mxu0 %v3135
    %4619 = vmatpush1.bf16.msra.mxu0 %v3134
    %4620 = vmatprep.subr.bf16.mxu0 %v3127
    %4621 = vmatpush1.bf16.msra.mxu0 %v3126
    %4622 = vmatprep.subr.bf16.mxu0 %v3119
    %4623 = vmatpush1.bf16.msra.mxu0 %v3118
    %4624 = vmatprep.subr.bf16.mxu0 %v3111
    %4625 = vmatpush1.bf16.msra.mxu0 %v3110
    %4626 = vmatprep.subr.bf16.mxu0 %v3103
    %4627 = vmatpush1.bf16.msra.mxu0 %v3102
    %4628 = vmatprep.subr.bf16.mxu0 %v3223
    %4629 = vmatpush2.bf16.msra.mxu0 %v3222
    %4630 = vmatprep.subr.bf16.mxu0 %v3215
    %4631 = vmatpush2.bf16.msra.mxu0 %v3214
    %4632 = vmatprep.subr.bf16.mxu0 %v3207
    %4633 = vmatpush2.bf16.msra.mxu0 %v3206
    %4634 = vmatprep.subr.bf16.mxu0 %v3199
    %4635 = vmatpush2.bf16.msra.mxu0 %v3198
    %4636 = vmatprep.subr.bf16.mxu0 %v3191
    %4637 = vmatpush2.bf16.msra.mxu0 %v3190
    %4638 = vmatprep.subr.bf16.mxu0 %v3183
    %4639 = vmatpush2.bf16.msra.mxu0 %v3182
    %4640 = vmatprep.subr.bf16.mxu0 %v3175
    %4641 = vmatpush2.bf16.msra.mxu0 %v3174
    %4642 = vmatprep.subr.bf16.mxu0 %v3167
    %4643 = vmatpush2.bf16.msra.mxu0 %v3166
    %4644 = vmatprep.mubr.bf16.mxu0 %v999
    %4645 = vmatmul.mubr.bf16.gmra.mxu0 %v998
    %v4646 = vpop.f32.mrf.mxu0
    %v4647 = vadd.f32 %v1547, %v4646
    %v4648 = vpop.f32.mrf.mxu0
    %v4649 = vadd.f32 %v1551, %v4648
    %v4650 = vpop.f32.mrf.mxu0
    %v4651 = vpop.f32.mrf.mxu0
    %4652 = vdwg.mxu0
    %4653 = vmatprep.subr.bf16.mxu0 %v3287
    %4654 = vmatpush1.bf16.msra.mxu0 %v3286
    %4655 = vmatprep.subr.bf16.mxu0 %v3279
    %4656 = vmatpush1.bf16.msra.mxu0 %v3278
    %4657 = vmatprep.subr.bf16.mxu0 %v3271
    %4658 = vmatpush1.bf16.msra.mxu0 %v3270
    %4659 = vmatprep.subr.bf16.mxu0 %v3263
    %4660 = vmatpush1.bf16.msra.mxu0 %v3262
    %4661 = vmatprep.subr.bf16.mxu0 %v3255
    %4662 = vmatpush1.bf16.msra.mxu0 %v3254
    %4663 = vmatprep.subr.bf16.mxu0 %v3247
    %4664 = vmatpush1.bf16.msra.mxu0 %v3246
    %4665 = vmatprep.subr.bf16.mxu0 %v3239
    %4666 = vmatpush1.bf16.msra.mxu0 %v3238
    %4667 = vmatprep.subr.bf16.mxu0 %v3231
    %4668 = vmatpush1.bf16.msra.mxu0 %v3230
    %4669 = vmatprep.subr.bf16.mxu0 %v3351
    %4670 = vmatpush2.bf16.msra.mxu0 %v3350
    %4671 = vmatprep.subr.bf16.mxu0 %v3343
    %4672 = vmatpush2.bf16.msra.mxu0 %v3342
    %4673 = vmatprep.subr.bf16.mxu0 %v3335
    %4674 = vmatpush2.bf16.msra.mxu0 %v3334
    %4675 = vmatprep.subr.bf16.mxu0 %v3327
    %4676 = vmatpush2.bf16.msra.mxu0 %v3326
    %4677 = vmatprep.subr.bf16.mxu0 %v3319
    %4678 = vmatpush2.bf16.msra.mxu0 %v3318
    %4679 = vmatprep.subr.bf16.mxu0 %v3311
    %4680 = vmatpush2.bf16.msra.mxu0 %v3310
    %4681 = vmatprep.subr.bf16.mxu0 %v3303
    %4682 = vmatpush2.bf16.msra.mxu0 %v3302
    %4683 = vmatprep.subr.bf16.mxu0 %v3295
    %4684 = vmatpush2.bf16.msra.mxu0 %v3294
    %4685 = vmatprep.mubr.bf16.mxu0 %v1001
    %4686 = vmatmul.mubr.bf16.gmra.mxu0 %v1000
    %v4687 = vpop.f32.mrf.mxu0
    %v4688 = vadd.f32 %v4647, %v4687
    %v4689 = vpop.f32.mrf.mxu0
    %v4690 = vadd.f32 %v4649, %v4689
    %v4691 = vpop.f32.mrf.mxu0
    %v4692 = vpop.f32.mrf.mxu0
    %4693 = vdwg.mxu0
    %4694 = vmatprep.subr.bf16.mxu0 %v3415
    %4695 = vmatpush1.bf16.msra.mxu0 %v3414
    %4696 = vmatprep.subr.bf16.mxu0 %v3407
    %4697 = vmatpush1.bf16.msra.mxu0 %v3406
    %4698 = vmatprep.subr.bf16.mxu0 %v3399
    %4699 = vmatpush1.bf16.msra.mxu0 %v3398
    %4700 = vmatprep.subr.bf16.mxu0 %v3391
    %4701 = vmatpush1.bf16.msra.mxu0 %v3390
    %4702 = vmatprep.subr.bf16.mxu0 %v3383
    %4703 = vmatpush1.bf16.msra.mxu0 %v3382
    %4704 = vmatprep.subr.bf16.mxu0 %v3375
    %4705 = vmatpush1.bf16.msra.mxu0 %v3374
    %4706 = vmatprep.subr.bf16.mxu0 %v3367
    %4707 = vmatpush1.bf16.msra.mxu0 %v3366
    %4708 = vmatprep.subr.bf16.mxu0 %v3359
    %4709 = vmatpush1.bf16.msra.mxu0 %v3358
    %4710 = vmatprep.subr.bf16.mxu0 %v3479
    %4711 = vmatpush2.bf16.msra.mxu0 %v3478
    %4712 = vmatprep.subr.bf16.mxu0 %v3471
    %4713 = vmatpush2.bf16.msra.mxu0 %v3470
    %4714 = vmatprep.subr.bf16.mxu0 %v3463
    %4715 = vmatpush2.bf16.msra.mxu0 %v3462
    %4716 = vmatprep.subr.bf16.mxu0 %v3455
    %4717 = vmatpush2.bf16.msra.mxu0 %v3454
    %4718 = vmatprep.subr.bf16.mxu0 %v3447
    %4719 = vmatpush2.bf16.msra.mxu0 %v3446
    %4720 = vmatprep.subr.bf16.mxu0 %v3439
    %4721 = vmatpush2.bf16.msra.mxu0 %v3438
    %4722 = vmatprep.subr.bf16.mxu0 %v3431
    %4723 = vmatpush2.bf16.msra.mxu0 %v3430
    %4724 = vmatprep.subr.bf16.mxu0 %v3423
    %4725 = vmatpush2.bf16.msra.mxu0 %v3422
    %4726 = vmatprep.mubr.bf16.mxu0 %v1003
    %4727 = vmatmul.mubr.bf16.gmra.mxu0 %v1002
    %v4728 = vpop.f32.mrf.mxu0
    %v4729 = vadd.f32 %v4688, %v4728
    %v4730 = vpop.f32.mrf.mxu0
    %v4731 = vadd.f32 %v4690, %v4730
    %v4732 = vpop.f32.mrf.mxu0
    %v4733 = vpop.f32.mrf.mxu0
    %4734 = vdwg.mxu0
    %4735 = vmatprep.subr.bf16.mxu0 %v3543
    %4736 = vmatpush1.bf16.msra.mxu0 %v3542
    %4737 = vmatprep.subr.bf16.mxu0 %v3535
    %4738 = vmatpush1.bf16.msra.mxu0 %v3534
    %4739 = vmatprep.subr.bf16.mxu0 %v3527
    %4740 = vmatpush1.bf16.msra.mxu0 %v3526
    %4741 = vmatprep.subr.bf16.mxu0 %v3519
    %4742 = vmatpush1.bf16.msra.mxu0 %v3518
    %4743 = vmatprep.subr.bf16.mxu0 %v3511
    %4744 = vmatpush1.bf16.msra.mxu0 %v3510
    %4745 = vmatprep.subr.bf16.mxu0 %v3503
    %4746 = vmatpush1.bf16.msra.mxu0 %v3502
    %4747 = vmatprep.subr.bf16.mxu0 %v3495
    %4748 = vmatpush1.bf16.msra.mxu0 %v3494
    %4749 = vmatprep.subr.bf16.mxu0 %v3487
    %4750 = vmatpush1.bf16.msra.mxu0 %v3486
    %4751 = vmatprep.subr.bf16.mxu0 %v3607
    %4752 = vmatpush2.bf16.msra.mxu0 %v3606
    %4753 = vmatprep.subr.bf16.mxu0 %v3599
    %4754 = vmatpush2.bf16.msra.mxu0 %v3598
    %4755 = vmatprep.subr.bf16.mxu0 %v3591
    %4756 = vmatpush2.bf16.msra.mxu0 %v3590
    %4757 = vmatprep.subr.bf16.mxu0 %v3583
    %4758 = vmatpush2.bf16.msra.mxu0 %v3582
    %4759 = vmatprep.subr.bf16.mxu0 %v3575
    %4760 = vmatpush2.bf16.msra.mxu0 %v3574
    %4761 = vmatprep.subr.bf16.mxu0 %v3567
    %4762 = vmatpush2.bf16.msra.mxu0 %v3566
    %4763 = vmatprep.subr.bf16.mxu0 %v3559
    %4764 = vmatpush2.bf16.msra.mxu0 %v3558
    %4765 = vmatprep.subr.bf16.mxu0 %v3551
    %4766 = vmatpush2.bf16.msra.mxu0 %v3550
    %4767 = vmatprep.mubr.bf16.mxu0 %v1005
    %4768 = vmatmul.mubr.bf16.gmra.mxu0 %v1004
    %v4769 = vpop.f32.mrf.mxu0
    %v4770 = vadd.f32 %v4729, %v4769
    %v4771 = vpop.f32.mrf.mxu0
    %v4772 = vadd.f32 %v4731, %v4771
    %v4773 = vpop.f32.mrf.mxu0
    %v4774 = vpop.f32.mrf.mxu0
    %4775 = vdwg.mxu0
    %v4776 = vpack.c.bf16 %v823, %v823
    %v4777 = vpack.c.bf16 %v825, %v825
    %v4778 = vpack.c.bf16 %v864, %v864
    %v4779 = vpack.c.bf16 %v866, %v866
    %v4780 = vpack.c.bf16 %v905, %v905
    %v4781 = vpack.c.bf16 %v907, %v907
    %v4782 = vpack.c.bf16 %v946, %v946
    %v4783 = vpack.c.bf16 %v948, %v948
    %v4784 = vld [vmem:[%s10] sm:$0xff]
    %v4785 = vld [vmem:[%s10 + $0x8] sm:$0xff]
    %v4786 = vld [vmem:[%s10 + $0x10] sm:$0xff]
    %v4787 = vld [vmem:[%s10 + $0x18] sm:$0xff]
    %v4788 = vld [vmem:[%s10 + $0x20] sm:$0xff]
    %v4789 = vld [vmem:[%s10 + $0x28] sm:$0xff]
    %v4790 = vld [vmem:[%s10 + $0x30] sm:$0xff]
    %v4791 = vld [vmem:[%s10 + $0x38] sm:$0xff]
    %v4792 = vld [vmem:[%s10 + $0x40] sm:$0xff]
    %v4793 = vld [vmem:[%s10 + $0x48] sm:$0xff]
    %v4794 = vld [vmem:[%s10 + $0x50] sm:$0xff]
    %v4795 = vld [vmem:[%s10 + $0x58] sm:$0xff]
    %v4796 = vld [vmem:[%s10 + $0x60] sm:$0xff]
    %v4797 = vld [vmem:[%s10 + $0x68] sm:$0xff]
    %v4798 = vld [vmem:[%s10 + $0x70] sm:$0xff]
    %v4799 = vld [vmem:[%s10 + $0x78] sm:$0xff]
    %v4800 = vld [vmem:[%s10 + $0x80] sm:$0xff]
    %v4801 = vld [vmem:[%s10 + $0x88] sm:$0xff]
    %v4802 = vld [vmem:[%s10 + $0x90] sm:$0xff]
    %v4803 = vld [vmem:[%s10 + $0x98] sm:$0xff]
    %v4804 = vld [vmem:[%s10 + $0xa0] sm:$0xff]
    %v4805 = vld [vmem:[%s10 + $0xa8] sm:$0xff]
    %v4806 = vld [vmem:[%s10 + $0xb0] sm:$0xff]
    %v4807 = vld [vmem:[%s10 + $0xb8] sm:$0xff]
    %v4808 = vld [vmem:[%s10 + $0xc0] sm:$0xff]
    %v4809 = vld [vmem:[%s10 + $0xc8] sm:$0xff]
    %v4810 = vld [vmem:[%s10 + $0xd0] sm:$0xff]
    %v4811 = vld [vmem:[%s10 + $0xd8] sm:$0xff]
    %v4812 = vld [vmem:[%s10 + $0xe0] sm:$0xff]
    %v4813 = vld [vmem:[%s10 + $0xe8] sm:$0xff]
    %v4814 = vld [vmem:[%s10 + $0xf0] sm:$0xff]
    %v4815 = vld [vmem:[%s10 + $0xf8] sm:$0xff]
    %v4816 = vld [vmem:[%s10 + $0x100] sm:$0xff]
    %v4817 = vld [vmem:[%s10 + $0x108] sm:$0xff]
    %v4818 = vld [vmem:[%s10 + $0x110] sm:$0xff]
    %v4819 = vld [vmem:[%s10 + $0x118] sm:$0xff]
    %v4820 = vld [vmem:[%s10 + $0x120] sm:$0xff]
    %v4821 = vld [vmem:[%s10 + $0x128] sm:$0xff]
    %v4822 = vld [vmem:[%s10 + $0x130] sm:$0xff]
    %v4823 = vld [vmem:[%s10 + $0x138] sm:$0xff]
    %v4824 = vld [vmem:[%s10 + $0x140] sm:$0xff]
    %v4825 = vld [vmem:[%s10 + $0x148] sm:$0xff]
    %v4826 = vld [vmem:[%s10 + $0x150] sm:$0xff]
    %v4827 = vld [vmem:[%s10 + $0x158] sm:$0xff]
    %v4828 = vld [vmem:[%s10 + $0x160] sm:$0xff]
    %v4829 = vld [vmem:[%s10 + $0x168] sm:$0xff]
    %v4830 = vld [vmem:[%s10 + $0x170] sm:$0xff]
    %v4831 = vld [vmem:[%s10 + $0x178] sm:$0xff]
    %v4832 = vld [vmem:[%s10 + $0x180] sm:$0xff]
    %v4833 = vld [vmem:[%s10 + $0x188] sm:$0xff]
    %v4834 = vld [vmem:[%s10 + $0x190] sm:$0xff]
    %v4835 = vld [vmem:[%s10 + $0x198] sm:$0xff]
    %v4836 = vld [vmem:[%s10 + $0x1a0] sm:$0xff]
    %v4837 = vld [vmem:[%s10 + $0x1a8] sm:$0xff]
    %v4838 = vld [vmem:[%s10 + $0x1b0] sm:$0xff]
    %v4839 = vld [vmem:[%s10 + $0x1b8] sm:$0xff]
    %v4840 = vld [vmem:[%s10 + $0x1c0] sm:$0xff]
    %v4841 = vld [vmem:[%s10 + $0x1c8] sm:$0xff]
    %v4842 = vld [vmem:[%s10 + $0x1d0] sm:$0xff]
    %v4843 = vld [vmem:[%s10 + $0x1d8] sm:$0xff]
    %v4844 = vld [vmem:[%s10 + $0x1e0] sm:$0xff]
    %v4845 = vld [vmem:[%s10 + $0x1e8] sm:$0xff]
    %v4846 = vld [vmem:[%s10 + $0x1f0] sm:$0xff]
    %v4847 = vld [vmem:[%s10 + $0x1f8] sm:$0xff]
    %v4848 = vld [vmem:[%s10 + $0x200] sm:$0xff]
    %v4849 = vld [vmem:[%s10 + $0x208] sm:$0xff]
    %v4850 = vld [vmem:[%s10 + $0x210] sm:$0xff]
    %v4851 = vld [vmem:[%s10 + $0x218] sm:$0xff]
    %v4852 = vld [vmem:[%s10 + $0x220] sm:$0xff]
    %v4853 = vld [vmem:[%s10 + $0x228] sm:$0xff]
    %v4854 = vld [vmem:[%s10 + $0x230] sm:$0xff]
    %v4855 = vld [vmem:[%s10 + $0x238] sm:$0xff]
    %v4856 = vld [vmem:[%s10 + $0x240] sm:$0xff]
    %v4857 = vld [vmem:[%s10 + $0x248] sm:$0xff]
    %v4858 = vld [vmem:[%s10 + $0x250] sm:$0xff]
    %v4859 = vld [vmem:[%s10 + $0x258] sm:$0xff]
    %v4860 = vld [vmem:[%s10 + $0x260] sm:$0xff]
    %v4861 = vld [vmem:[%s10 + $0x268] sm:$0xff]
    %v4862 = vld [vmem:[%s10 + $0x270] sm:$0xff]
    %v4863 = vld [vmem:[%s10 + $0x278] sm:$0xff]
    %v4864 = vld [vmem:[%s10 + $0x280] sm:$0xff]
    %v4865 = vld [vmem:[%s10 + $0x288] sm:$0xff]
    %v4866 = vld [vmem:[%s10 + $0x290] sm:$0xff]
    %v4867 = vld [vmem:[%s10 + $0x298] sm:$0xff]
    %v4868 = vld [vmem:[%s10 + $0x2a0] sm:$0xff]
    %v4869 = vld [vmem:[%s10 + $0x2a8] sm:$0xff]
    %v4870 = vld [vmem:[%s10 + $0x2b0] sm:$0xff]
    %v4871 = vld [vmem:[%s10 + $0x2b8] sm:$0xff]
    %v4872 = vld [vmem:[%s10 + $0x2c0] sm:$0xff]
    %v4873 = vld [vmem:[%s10 + $0x2c8] sm:$0xff]
    %v4874 = vld [vmem:[%s10 + $0x2d0] sm:$0xff]
    %v4875 = vld [vmem:[%s10 + $0x2d8] sm:$0xff]
    %v4876 = vld [vmem:[%s10 + $0x2e0] sm:$0xff]
    %v4877 = vld [vmem:[%s10 + $0x2e8] sm:$0xff]
    %v4878 = vld [vmem:[%s10 + $0x2f0] sm:$0xff]
    %v4879 = vld [vmem:[%s10 + $0x2f8] sm:$0xff]
    %v4880 = vld [vmem:[%s10 + $0x300] sm:$0xff]
    %v4881 = vld [vmem:[%s10 + $0x308] sm:$0xff]
    %v4882 = vld [vmem:[%s10 + $0x310] sm:$0xff]
    %v4883 = vld [vmem:[%s10 + $0x318] sm:$0xff]
    %v4884 = vld [vmem:[%s10 + $0x320] sm:$0xff]
    %v4885 = vld [vmem:[%s10 + $0x328] sm:$0xff]
    %v4886 = vld [vmem:[%s10 + $0x330] sm:$0xff]
    %v4887 = vld [vmem:[%s10 + $0x338] sm:$0xff]
    %v4888 = vld [vmem:[%s10 + $0x340] sm:$0xff]
    %v4889 = vld [vmem:[%s10 + $0x348] sm:$0xff]
    %v4890 = vld [vmem:[%s10 + $0x350] sm:$0xff]
    %v4891 = vld [vmem:[%s10 + $0x358] sm:$0xff]
    %v4892 = vld [vmem:[%s10 + $0x360] sm:$0xff]
    %v4893 = vld [vmem:[%s10 + $0x368] sm:$0xff]
    %v4894 = vld [vmem:[%s10 + $0x370] sm:$0xff]
    %v4895 = vld [vmem:[%s10 + $0x378] sm:$0xff]
    %v4896 = vld [vmem:[%s10 + $0x380] sm:$0xff]
    %v4897 = vld [vmem:[%s10 + $0x388] sm:$0xff]
    %v4898 = vld [vmem:[%s10 + $0x390] sm:$0xff]
    %v4899 = vld [vmem:[%s10 + $0x398] sm:$0xff]
    %v4900 = vld [vmem:[%s10 + $0x3a0] sm:$0xff]
    %v4901 = vld [vmem:[%s10 + $0x3a8] sm:$0xff]
    %v4902 = vld [vmem:[%s10 + $0x3b0] sm:$0xff]
    %v4903 = vld [vmem:[%s10 + $0x3b8] sm:$0xff]
    %v4904 = vld [vmem:[%s10 + $0x3c0] sm:$0xff]
    %v4905 = vld [vmem:[%s10 + $0x3c8] sm:$0xff]
    %v4906 = vld [vmem:[%s10 + $0x3d0] sm:$0xff]
    %v4907 = vld [vmem:[%s10 + $0x3d8] sm:$0xff]
    %v4908 = vld [vmem:[%s10 + $0x3e0] sm:$0xff]
    %v4909 = vld [vmem:[%s10 + $0x3e8] sm:$0xff]
    %v4910 = vld [vmem:[%s10 + $0x3f0] sm:$0xff]
    %v4911 = vld [vmem:[%s10 + $0x3f8] sm:$0xff]
    %v4912 = vld [vmem:[%s10 + $0x400] sm:$0xff]
    %v4913 = vld [vmem:[%s10 + $0x408] sm:$0xff]
    %v4914 = vld [vmem:[%s10 + $0x410] sm:$0xff]
    %v4915 = vld [vmem:[%s10 + $0x418] sm:$0xff]
    %v4916 = vld [vmem:[%s10 + $0x420] sm:$0xff]
    %v4917 = vld [vmem:[%s10 + $0x428] sm:$0xff]
    %v4918 = vld [vmem:[%s10 + $0x430] sm:$0xff]
    %v4919 = vld [vmem:[%s10 + $0x438] sm:$0xff]
    %v4920 = vld [vmem:[%s10 + $0x440] sm:$0xff]
    %v4921 = vld [vmem:[%s10 + $0x448] sm:$0xff]
    %v4922 = vld [vmem:[%s10 + $0x450] sm:$0xff]
    %v4923 = vld [vmem:[%s10 + $0x458] sm:$0xff]
    %v4924 = vld [vmem:[%s10 + $0x460] sm:$0xff]
    %v4925 = vld [vmem:[%s10 + $0x468] sm:$0xff]
    %v4926 = vld [vmem:[%s10 + $0x470] sm:$0xff]
    %v4927 = vld [vmem:[%s10 + $0x478] sm:$0xff]
    %v4928 = vld [vmem:[%s10 + $0x480] sm:$0xff]
    %v4929 = vld [vmem:[%s10 + $0x488] sm:$0xff]
    %v4930 = vld [vmem:[%s10 + $0x490] sm:$0xff]
    %v4931 = vld [vmem:[%s10 + $0x498] sm:$0xff]
    %v4932 = vld [vmem:[%s10 + $0x4a0] sm:$0xff]
    %v4933 = vld [vmem:[%s10 + $0x4a8] sm:$0xff]
    %v4934 = vld [vmem:[%s10 + $0x4b0] sm:$0xff]
    %v4935 = vld [vmem:[%s10 + $0x4b8] sm:$0xff]
    %v4936 = vld [vmem:[%s10 + $0x4c0] sm:$0xff]
    %v4937 = vld [vmem:[%s10 + $0x4c8] sm:$0xff]
    %v4938 = vld [vmem:[%s10 + $0x4d0] sm:$0xff]
    %v4939 = vld [vmem:[%s10 + $0x4d8] sm:$0xff]
    %v4940 = vld [vmem:[%s10 + $0x4e0] sm:$0xff]
    %v4941 = vld [vmem:[%s10 + $0x4e8] sm:$0xff]
    %v4942 = vld [vmem:[%s10 + $0x4f0] sm:$0xff]
    %v4943 = vld [vmem:[%s10 + $0x4f8] sm:$0xff]
    %v4944 = vld [vmem:[%s10 + $0x500] sm:$0xff]
    %v4945 = vld [vmem:[%s10 + $0x508] sm:$0xff]
    %v4946 = vld [vmem:[%s10 + $0x510] sm:$0xff]
    %v4947 = vld [vmem:[%s10 + $0x518] sm:$0xff]
    %v4948 = vld [vmem:[%s10 + $0x520] sm:$0xff]
    %v4949 = vld [vmem:[%s10 + $0x528] sm:$0xff]
    %v4950 = vld [vmem:[%s10 + $0x530] sm:$0xff]
    %v4951 = vld [vmem:[%s10 + $0x538] sm:$0xff]
    %v4952 = vld [vmem:[%s10 + $0x540] sm:$0xff]
    %v4953 = vld [vmem:[%s10 + $0x548] sm:$0xff]
    %v4954 = vld [vmem:[%s10 + $0x550] sm:$0xff]
    %v4955 = vld [vmem:[%s10 + $0x558] sm:$0xff]
    %v4956 = vld [vmem:[%s10 + $0x560] sm:$0xff]
    %v4957 = vld [vmem:[%s10 + $0x568] sm:$0xff]
    %v4958 = vld [vmem:[%s10 + $0x570] sm:$0xff]
    %v4959 = vld [vmem:[%s10 + $0x578] sm:$0xff]
    %v4960 = vld [vmem:[%s10 + $0x580] sm:$0xff]
    %v4961 = vld [vmem:[%s10 + $0x588] sm:$0xff]
    %v4962 = vld [vmem:[%s10 + $0x590] sm:$0xff]
    %v4963 = vld [vmem:[%s10 + $0x598] sm:$0xff]
    %v4964 = vld [vmem:[%s10 + $0x5a0] sm:$0xff]
    %v4965 = vld [vmem:[%s10 + $0x5a8] sm:$0xff]
    %v4966 = vld [vmem:[%s10 + $0x5b0] sm:$0xff]
    %v4967 = vld [vmem:[%s10 + $0x5b8] sm:$0xff]
    %v4968 = vld [vmem:[%s10 + $0x5c0] sm:$0xff]
    %v4969 = vld [vmem:[%s10 + $0x5c8] sm:$0xff]
    %v4970 = vld [vmem:[%s10 + $0x5d0] sm:$0xff]
    %v4971 = vld [vmem:[%s10 + $0x5d8] sm:$0xff]
    %v4972 = vld [vmem:[%s10 + $0x5e0] sm:$0xff]
    %v4973 = vld [vmem:[%s10 + $0x5e8] sm:$0xff]
    %v4974 = vld [vmem:[%s10 + $0x5f0] sm:$0xff]
    %v4975 = vld [vmem:[%s10 + $0x5f8] sm:$0xff]
    %v4976 = vld [vmem:[%s10 + $0x600] sm:$0xff]
    %v4977 = vld [vmem:[%s10 + $0x608] sm:$0xff]
    %v4978 = vld [vmem:[%s10 + $0x610] sm:$0xff]
    %v4979 = vld [vmem:[%s10 + $0x618] sm:$0xff]
    %v4980 = vld [vmem:[%s10 + $0x620] sm:$0xff]
    %v4981 = vld [vmem:[%s10 + $0x628] sm:$0xff]
    %v4982 = vld [vmem:[%s10 + $0x630] sm:$0xff]
    %v4983 = vld [vmem:[%s10 + $0x638] sm:$0xff]
    %v4984 = vld [vmem:[%s10 + $0x640] sm:$0xff]
    %v4985 = vld [vmem:[%s10 + $0x648] sm:$0xff]
    %v4986 = vld [vmem:[%s10 + $0x650] sm:$0xff]
    %v4987 = vld [vmem:[%s10 + $0x658] sm:$0xff]
    %v4988 = vld [vmem:[%s10 + $0x660] sm:$0xff]
    %v4989 = vld [vmem:[%s10 + $0x668] sm:$0xff]
    %v4990 = vld [vmem:[%s10 + $0x670] sm:$0xff]
    %v4991 = vld [vmem:[%s10 + $0x678] sm:$0xff]
    %v4992 = vld [vmem:[%s10 + $0x680] sm:$0xff]
    %v4993 = vld [vmem:[%s10 + $0x688] sm:$0xff]
    %v4994 = vld [vmem:[%s10 + $0x690] sm:$0xff]
    %v4995 = vld [vmem:[%s10 + $0x698] sm:$0xff]
    %v4996 = vld [vmem:[%s10 + $0x6a0] sm:$0xff]
    %v4997 = vld [vmem:[%s10 + $0x6a8] sm:$0xff]
    %v4998 = vld [vmem:[%s10 + $0x6b0] sm:$0xff]
    %v4999 = vld [vmem:[%s10 + $0x6b8] sm:$0xff]
    %v5000 = vld [vmem:[%s10 + $0x6c0] sm:$0xff]
    %v5001 = vld [vmem:[%s10 + $0x6c8] sm:$0xff]
    %v5002 = vld [vmem:[%s10 + $0x6d0] sm:$0xff]
    %v5003 = vld [vmem:[%s10 + $0x6d8] sm:$0xff]
    %v5004 = vld [vmem:[%s10 + $0x6e0] sm:$0xff]
    %v5005 = vld [vmem:[%s10 + $0x6e8] sm:$0xff]
    %v5006 = vld [vmem:[%s10 + $0x6f0] sm:$0xff]
    %v5007 = vld [vmem:[%s10 + $0x6f8] sm:$0xff]
    %v5008 = vld [vmem:[%s10 + $0x700] sm:$0xff]
    %v5009 = vld [vmem:[%s10 + $0x708] sm:$0xff]
    %v5010 = vld [vmem:[%s10 + $0x710] sm:$0xff]
    %v5011 = vld [vmem:[%s10 + $0x718] sm:$0xff]
    %v5012 = vld [vmem:[%s10 + $0x720] sm:$0xff]
    %v5013 = vld [vmem:[%s10 + $0x728] sm:$0xff]
    %v5014 = vld [vmem:[%s10 + $0x730] sm:$0xff]
    %v5015 = vld [vmem:[%s10 + $0x738] sm:$0xff]
    %v5016 = vld [vmem:[%s10 + $0x740] sm:$0xff]
    %v5017 = vld [vmem:[%s10 + $0x748] sm:$0xff]
    %v5018 = vld [vmem:[%s10 + $0x750] sm:$0xff]
    %v5019 = vld [vmem:[%s10 + $0x758] sm:$0xff]
    %v5020 = vld [vmem:[%s10 + $0x760] sm:$0xff]
    %v5021 = vld [vmem:[%s10 + $0x768] sm:$0xff]
    %v5022 = vld [vmem:[%s10 + $0x770] sm:$0xff]
    %v5023 = vld [vmem:[%s10 + $0x778] sm:$0xff]
    %v5024 = vld [vmem:[%s10 + $0x780] sm:$0xff]
    %v5025 = vld [vmem:[%s10 + $0x788] sm:$0xff]
    %v5026 = vld [vmem:[%s10 + $0x790] sm:$0xff]
    %v5027 = vld [vmem:[%s10 + $0x798] sm:$0xff]
    %v5028 = vld [vmem:[%s10 + $0x7a0] sm:$0xff]
    %v5029 = vld [vmem:[%s10 + $0x7a8] sm:$0xff]
    %v5030 = vld [vmem:[%s10 + $0x7b0] sm:$0xff]
    %v5031 = vld [vmem:[%s10 + $0x7b8] sm:$0xff]
    %v5032 = vld [vmem:[%s10 + $0x7c0] sm:$0xff]
    %v5033 = vld [vmem:[%s10 + $0x7c8] sm:$0xff]
    %v5034 = vld [vmem:[%s10 + $0x7d0] sm:$0xff]
    %v5035 = vld [vmem:[%s10 + $0x7d8] sm:$0xff]
    %v5036 = vld [vmem:[%s10 + $0x7e0] sm:$0xff]
    %v5037 = vld [vmem:[%s10 + $0x7e8] sm:$0xff]
    %v5038 = vld [vmem:[%s10 + $0x7f0] sm:$0xff]
    %v5039 = vld [vmem:[%s10 + $0x7f8] sm:$0xff]
    %v5040 = vld [vmem:[%s10 + $0x800] sm:$0xff]
    %v5041 = vld [vmem:[%s10 + $0x808] sm:$0xff]
    %v5042 = vld [vmem:[%s10 + $0x810] sm:$0xff]
    %v5043 = vld [vmem:[%s10 + $0x818] sm:$0xff]
    %v5044 = vld [vmem:[%s10 + $0x820] sm:$0xff]
    %v5045 = vld [vmem:[%s10 + $0x828] sm:$0xff]
    %v5046 = vld [vmem:[%s10 + $0x830] sm:$0xff]
    %v5047 = vld [vmem:[%s10 + $0x838] sm:$0xff]
    %v5048 = vld [vmem:[%s10 + $0x840] sm:$0xff]
    %v5049 = vld [vmem:[%s10 + $0x848] sm:$0xff]
    %v5050 = vld [vmem:[%s10 + $0x850] sm:$0xff]
    %v5051 = vld [vmem:[%s10 + $0x858] sm:$0xff]
    %v5052 = vld [vmem:[%s10 + $0x860] sm:$0xff]
    %v5053 = vld [vmem:[%s10 + $0x868] sm:$0xff]
    %v5054 = vld [vmem:[%s10 + $0x870] sm:$0xff]
    %v5055 = vld [vmem:[%s10 + $0x878] sm:$0xff]
    %v5056 = vld [vmem:[%s10 + $0x880] sm:$0xff]
    %v5057 = vld [vmem:[%s10 + $0x888] sm:$0xff]
    %v5058 = vld [vmem:[%s10 + $0x890] sm:$0xff]
    %v5059 = vld [vmem:[%s10 + $0x898] sm:$0xff]
    %v5060 = vld [vmem:[%s10 + $0x8a0] sm:$0xff]
    %v5061 = vld [vmem:[%s10 + $0x8a8] sm:$0xff]
    %v5062 = vld [vmem:[%s10 + $0x8b0] sm:$0xff]
    %v5063 = vld [vmem:[%s10 + $0x8b8] sm:$0xff]
    %v5064 = vld [vmem:[%s10 + $0x8c0] sm:$0xff]
    %v5065 = vld [vmem:[%s10 + $0x8c8] sm:$0xff]
    %v5066 = vld [vmem:[%s10 + $0x8d0] sm:$0xff]
    %v5067 = vld [vmem:[%s10 + $0x8d8] sm:$0xff]
    %v5068 = vld [vmem:[%s10 + $0x8e0] sm:$0xff]
    %v5069 = vld [vmem:[%s10 + $0x8e8] sm:$0xff]
    %v5070 = vld [vmem:[%s10 + $0x8f0] sm:$0xff]
    %v5071 = vld [vmem:[%s10 + $0x8f8] sm:$0xff]
    %v5072 = vld [vmem:[%s10 + $0x900] sm:$0xff]
    %v5073 = vld [vmem:[%s10 + $0x908] sm:$0xff]
    %v5074 = vld [vmem:[%s10 + $0x910] sm:$0xff]
    %v5075 = vld [vmem:[%s10 + $0x918] sm:$0xff]
    %v5076 = vld [vmem:[%s10 + $0x920] sm:$0xff]
    %v5077 = vld [vmem:[%s10 + $0x928] sm:$0xff]
    %v5078 = vld [vmem:[%s10 + $0x930] sm:$0xff]
    %v5079 = vld [vmem:[%s10 + $0x938] sm:$0xff]
    %v5080 = vld [vmem:[%s10 + $0x940] sm:$0xff]
    %v5081 = vld [vmem:[%s10 + $0x948] sm:$0xff]
    %v5082 = vld [vmem:[%s10 + $0x950] sm:$0xff]
    %v5083 = vld [vmem:[%s10 + $0x958] sm:$0xff]
    %v5084 = vld [vmem:[%s10 + $0x960] sm:$0xff]
    %v5085 = vld [vmem:[%s10 + $0x968] sm:$0xff]
    %v5086 = vld [vmem:[%s10 + $0x970] sm:$0xff]
    %v5087 = vld [vmem:[%s10 + $0x978] sm:$0xff]
    %v5088 = vld [vmem:[%s10 + $0x980] sm:$0xff]
    %v5089 = vld [vmem:[%s10 + $0x988] sm:$0xff]
    %v5090 = vld [vmem:[%s10 + $0x990] sm:$0xff]
    %v5091 = vld [vmem:[%s10 + $0x998] sm:$0xff]
    %v5092 = vld [vmem:[%s10 + $0x9a0] sm:$0xff]
    %v5093 = vld [vmem:[%s10 + $0x9a8] sm:$0xff]
    %v5094 = vld [vmem:[%s10 + $0x9b0] sm:$0xff]
    %v5095 = vld [vmem:[%s10 + $0x9b8] sm:$0xff]
    %v5096 = vld [vmem:[%s10 + $0x9c0] sm:$0xff]
    %v5097 = vld [vmem:[%s10 + $0x9c8] sm:$0xff]
    %v5098 = vld [vmem:[%s10 + $0x9d0] sm:$0xff]
    %v5099 = vld [vmem:[%s10 + $0x9d8] sm:$0xff]
    %v5100 = vld [vmem:[%s10 + $0x9e0] sm:$0xff]
    %v5101 = vld [vmem:[%s10 + $0x9e8] sm:$0xff]
    %v5102 = vld [vmem:[%s10 + $0x9f0] sm:$0xff]
    %v5103 = vld [vmem:[%s10 + $0x9f8] sm:$0xff]
    %v5104 = vld [vmem:[%s10 + $0xa00] sm:$0xff]
    %v5105 = vld [vmem:[%s10 + $0xa08] sm:$0xff]
    %v5106 = vld [vmem:[%s10 + $0xa10] sm:$0xff]
    %v5107 = vld [vmem:[%s10 + $0xa18] sm:$0xff]
    %v5108 = vld [vmem:[%s10 + $0xa20] sm:$0xff]
    %v5109 = vld [vmem:[%s10 + $0xa28] sm:$0xff]
    %v5110 = vld [vmem:[%s10 + $0xa30] sm:$0xff]
    %v5111 = vld [vmem:[%s10 + $0xa38] sm:$0xff]
    %v5112 = vld [vmem:[%s10 + $0xa40] sm:$0xff]
    %v5113 = vld [vmem:[%s10 + $0xa48] sm:$0xff]
    %v5114 = vld [vmem:[%s10 + $0xa50] sm:$0xff]
    %v5115 = vld [vmem:[%s10 + $0xa58] sm:$0xff]
    %v5116 = vld [vmem:[%s10 + $0xa60] sm:$0xff]
    %v5117 = vld [vmem:[%s10 + $0xa68] sm:$0xff]
    %v5118 = vld [vmem:[%s10 + $0xa70] sm:$0xff]
    %v5119 = vld [vmem:[%s10 + $0xa78] sm:$0xff]
    %v5120 = vld [vmem:[%s10 + $0xa80] sm:$0xff]
    %v5121 = vld [vmem:[%s10 + $0xa88] sm:$0xff]
    %v5122 = vld [vmem:[%s10 + $0xa90] sm:$0xff]
    %v5123 = vld [vmem:[%s10 + $0xa98] sm:$0xff]
    %v5124 = vld [vmem:[%s10 + $0xaa0] sm:$0xff]
    %v5125 = vld [vmem:[%s10 + $0xaa8] sm:$0xff]
    %v5126 = vld [vmem:[%s10 + $0xab0] sm:$0xff]
    %v5127 = vld [vmem:[%s10 + $0xab8] sm:$0xff]
    %v5128 = vld [vmem:[%s10 + $0xac0] sm:$0xff]
    %v5129 = vld [vmem:[%s10 + $0xac8] sm:$0xff]
    %v5130 = vld [vmem:[%s10 + $0xad0] sm:$0xff]
    %v5131 = vld [vmem:[%s10 + $0xad8] sm:$0xff]
    %v5132 = vld [vmem:[%s10 + $0xae0] sm:$0xff]
    %v5133 = vld [vmem:[%s10 + $0xae8] sm:$0xff]
    %v5134 = vld [vmem:[%s10 + $0xaf0] sm:$0xff]
    %v5135 = vld [vmem:[%s10 + $0xaf8] sm:$0xff]
    %v5136 = vld [vmem:[%s10 + $0xb00] sm:$0xff]
    %v5137 = vld [vmem:[%s10 + $0xb08] sm:$0xff]
    %v5138 = vld [vmem:[%s10 + $0xb10] sm:$0xff]
    %v5139 = vld [vmem:[%s10 + $0xb18] sm:$0xff]
    %v5140 = vld [vmem:[%s10 + $0xb20] sm:$0xff]
    %v5141 = vld [vmem:[%s10 + $0xb28] sm:$0xff]
    %v5142 = vld [vmem:[%s10 + $0xb30] sm:$0xff]
    %v5143 = vld [vmem:[%s10 + $0xb38] sm:$0xff]
    %v5144 = vld [vmem:[%s10 + $0xb40] sm:$0xff]
    %v5145 = vld [vmem:[%s10 + $0xb48] sm:$0xff]
    %v5146 = vld [vmem:[%s10 + $0xb50] sm:$0xff]
    %v5147 = vld [vmem:[%s10 + $0xb58] sm:$0xff]
    %v5148 = vld [vmem:[%s10 + $0xb60] sm:$0xff]
    %v5149 = vld [vmem:[%s10 + $0xb68] sm:$0xff]
    %v5150 = vld [vmem:[%s10 + $0xb70] sm:$0xff]
    %v5151 = vld [vmem:[%s10 + $0xb78] sm:$0xff]
    %v5152 = vld [vmem:[%s10 + $0xb80] sm:$0xff]
    %v5153 = vld [vmem:[%s10 + $0xb88] sm:$0xff]
    %v5154 = vld [vmem:[%s10 + $0xb90] sm:$0xff]
    %v5155 = vld [vmem:[%s10 + $0xb98] sm:$0xff]
    %v5156 = vld [vmem:[%s10 + $0xba0] sm:$0xff]
    %v5157 = vld [vmem:[%s10 + $0xba8] sm:$0xff]
    %v5158 = vld [vmem:[%s10 + $0xbb0] sm:$0xff]
    %v5159 = vld [vmem:[%s10 + $0xbb8] sm:$0xff]
    %v5160 = vld [vmem:[%s10 + $0xbc0] sm:$0xff]
    %v5161 = vld [vmem:[%s10 + $0xbc8] sm:$0xff]
    %v5162 = vld [vmem:[%s10 + $0xbd0] sm:$0xff]
    %v5163 = vld [vmem:[%s10 + $0xbd8] sm:$0xff]
    %v5164 = vld [vmem:[%s10 + $0xbe0] sm:$0xff]
    %v5165 = vld [vmem:[%s10 + $0xbe8] sm:$0xff]
    %v5166 = vld [vmem:[%s10 + $0xbf0] sm:$0xff]
    %v5167 = vld [vmem:[%s10 + $0xbf8] sm:$0xff]
    %v5168 = vld [vmem:[%s10 + $0xc00] sm:$0xff]
    %v5169 = vld [vmem:[%s10 + $0xc08] sm:$0xff]
    %v5170 = vld [vmem:[%s10 + $0xc10] sm:$0xff]
    %v5171 = vld [vmem:[%s10 + $0xc18] sm:$0xff]
    %v5172 = vld [vmem:[%s10 + $0xc20] sm:$0xff]
    %v5173 = vld [vmem:[%s10 + $0xc28] sm:$0xff]
    %v5174 = vld [vmem:[%s10 + $0xc30] sm:$0xff]
    %v5175 = vld [vmem:[%s10 + $0xc38] sm:$0xff]
    %v5176 = vld [vmem:[%s10 + $0xc40] sm:$0xff]
    %v5177 = vld [vmem:[%s10 + $0xc48] sm:$0xff]
    %v5178 = vld [vmem:[%s10 + $0xc50] sm:$0xff]
    %v5179 = vld [vmem:[%s10 + $0xc58] sm:$0xff]
    %v5180 = vld [vmem:[%s10 + $0xc60] sm:$0xff]
    %v5181 = vld [vmem:[%s10 + $0xc68] sm:$0xff]
    %v5182 = vld [vmem:[%s10 + $0xc70] sm:$0xff]
    %v5183 = vld [vmem:[%s10 + $0xc78] sm:$0xff]
    %v5184 = vld [vmem:[%s10 + $0xc80] sm:$0xff]
    %v5185 = vld [vmem:[%s10 + $0xc88] sm:$0xff]
    %v5186 = vld [vmem:[%s10 + $0xc90] sm:$0xff]
    %v5187 = vld [vmem:[%s10 + $0xc98] sm:$0xff]
    %v5188 = vld [vmem:[%s10 + $0xca0] sm:$0xff]
    %v5189 = vld [vmem:[%s10 + $0xca8] sm:$0xff]
    %v5190 = vld [vmem:[%s10 + $0xcb0] sm:$0xff]
    %v5191 = vld [vmem:[%s10 + $0xcb8] sm:$0xff]
    %v5192 = vld [vmem:[%s10 + $0xcc0] sm:$0xff]
    %v5193 = vld [vmem:[%s10 + $0xcc8] sm:$0xff]
    %v5194 = vld [vmem:[%s10 + $0xcd0] sm:$0xff]
    %v5195 = vld [vmem:[%s10 + $0xcd8] sm:$0xff]
    %v5196 = vld [vmem:[%s10 + $0xce0] sm:$0xff]
    %v5197 = vld [vmem:[%s10 + $0xce8] sm:$0xff]
    %v5198 = vld [vmem:[%s10 + $0xcf0] sm:$0xff]
    %v5199 = vld [vmem:[%s10 + $0xcf8] sm:$0xff]
    %v5200 = vld [vmem:[%s10 + $0xd00] sm:$0xff]
    %v5201 = vld [vmem:[%s10 + $0xd08] sm:$0xff]
    %v5202 = vld [vmem:[%s10 + $0xd10] sm:$0xff]
    %v5203 = vld [vmem:[%s10 + $0xd18] sm:$0xff]
    %v5204 = vld [vmem:[%s10 + $0xd20] sm:$0xff]
    %v5205 = vld [vmem:[%s10 + $0xd28] sm:$0xff]
    %v5206 = vld [vmem:[%s10 + $0xd30] sm:$0xff]
    %v5207 = vld [vmem:[%s10 + $0xd38] sm:$0xff]
    %v5208 = vld [vmem:[%s10 + $0xd40] sm:$0xff]
    %v5209 = vld [vmem:[%s10 + $0xd48] sm:$0xff]
    %v5210 = vld [vmem:[%s10 + $0xd50] sm:$0xff]
    %v5211 = vld [vmem:[%s10 + $0xd58] sm:$0xff]
    %v5212 = vld [vmem:[%s10 + $0xd60] sm:$0xff]
    %v5213 = vld [vmem:[%s10 + $0xd68] sm:$0xff]
    %v5214 = vld [vmem:[%s10 + $0xd70] sm:$0xff]
    %v5215 = vld [vmem:[%s10 + $0xd78] sm:$0xff]
    %v5216 = vld [vmem:[%s10 + $0xd80] sm:$0xff]
    %v5217 = vld [vmem:[%s10 + $0xd88] sm:$0xff]
    %v5218 = vld [vmem:[%s10 + $0xd90] sm:$0xff]
    %v5219 = vld [vmem:[%s10 + $0xd98] sm:$0xff]
    %v5220 = vld [vmem:[%s10 + $0xda0] sm:$0xff]
    %v5221 = vld [vmem:[%s10 + $0xda8] sm:$0xff]
    %v5222 = vld [vmem:[%s10 + $0xdb0] sm:$0xff]
    %v5223 = vld [vmem:[%s10 + $0xdb8] sm:$0xff]
    %v5224 = vld [vmem:[%s10 + $0xdc0] sm:$0xff]
    %v5225 = vld [vmem:[%s10 + $0xdc8] sm:$0xff]
    %v5226 = vld [vmem:[%s10 + $0xdd0] sm:$0xff]
    %v5227 = vld [vmem:[%s10 + $0xdd8] sm:$0xff]
    %v5228 = vld [vmem:[%s10 + $0xde0] sm:$0xff]
    %v5229 = vld [vmem:[%s10 + $0xde8] sm:$0xff]
    %v5230 = vld [vmem:[%s10 + $0xdf0] sm:$0xff]
    %v5231 = vld [vmem:[%s10 + $0xdf8] sm:$0xff]
    %v5232 = vld [vmem:[%s10 + $0xe00] sm:$0xff]
    %v5233 = vld [vmem:[%s10 + $0xe08] sm:$0xff]
    %v5234 = vld [vmem:[%s10 + $0xe10] sm:$0xff]
    %v5235 = vld [vmem:[%s10 + $0xe18] sm:$0xff]
    %v5236 = vld [vmem:[%s10 + $0xe20] sm:$0xff]
    %v5237 = vld [vmem:[%s10 + $0xe28] sm:$0xff]
    %v5238 = vld [vmem:[%s10 + $0xe30] sm:$0xff]
    %v5239 = vld [vmem:[%s10 + $0xe38] sm:$0xff]
    %v5240 = vld [vmem:[%s10 + $0xe40] sm:$0xff]
    %v5241 = vld [vmem:[%s10 + $0xe48] sm:$0xff]
    %v5242 = vld [vmem:[%s10 + $0xe50] sm:$0xff]
    %v5243 = vld [vmem:[%s10 + $0xe58] sm:$0xff]
    %v5244 = vld [vmem:[%s10 + $0xe60] sm:$0xff]
    %v5245 = vld [vmem:[%s10 + $0xe68] sm:$0xff]
    %v5246 = vld [vmem:[%s10 + $0xe70] sm:$0xff]
    %v5247 = vld [vmem:[%s10 + $0xe78] sm:$0xff]
    %v5248 = vld [vmem:[%s10 + $0xe80] sm:$0xff]
    %v5249 = vld [vmem:[%s10 + $0xe88] sm:$0xff]
    %v5250 = vld [vmem:[%s10 + $0xe90] sm:$0xff]
    %v5251 = vld [vmem:[%s10 + $0xe98] sm:$0xff]
    %v5252 = vld [vmem:[%s10 + $0xea0] sm:$0xff]
    %v5253 = vld [vmem:[%s10 + $0xea8] sm:$0xff]
    %v5254 = vld [vmem:[%s10 + $0xeb0] sm:$0xff]
    %v5255 = vld [vmem:[%s10 + $0xeb8] sm:$0xff]
    %v5256 = vld [vmem:[%s10 + $0xec0] sm:$0xff]
    %v5257 = vld [vmem:[%s10 + $0xec8] sm:$0xff]
    %v5258 = vld [vmem:[%s10 + $0xed0] sm:$0xff]
    %v5259 = vld [vmem:[%s10 + $0xed8] sm:$0xff]
    %v5260 = vld [vmem:[%s10 + $0xee0] sm:$0xff]
    %v5261 = vld [vmem:[%s10 + $0xee8] sm:$0xff]
    %v5262 = vld [vmem:[%s10 + $0xef0] sm:$0xff]
    %v5263 = vld [vmem:[%s10 + $0xef8] sm:$0xff]
    %v5264 = vld [vmem:[%s10 + $0xf00] sm:$0xff]
    %v5265 = vld [vmem:[%s10 + $0xf08] sm:$0xff]
    %v5266 = vld [vmem:[%s10 + $0xf10] sm:$0xff]
    %v5267 = vld [vmem:[%s10 + $0xf18] sm:$0xff]
    %v5268 = vld [vmem:[%s10 + $0xf20] sm:$0xff]
    %v5269 = vld [vmem:[%s10 + $0xf28] sm:$0xff]
    %v5270 = vld [vmem:[%s10 + $0xf30] sm:$0xff]
    %v5271 = vld [vmem:[%s10 + $0xf38] sm:$0xff]
    %v5272 = vld [vmem:[%s10 + $0xf40] sm:$0xff]
    %v5273 = vld [vmem:[%s10 + $0xf48] sm:$0xff]
    %v5274 = vld [vmem:[%s10 + $0xf50] sm:$0xff]
    %v5275 = vld [vmem:[%s10 + $0xf58] sm:$0xff]
    %v5276 = vld [vmem:[%s10 + $0xf60] sm:$0xff]
    %v5277 = vld [vmem:[%s10 + $0xf68] sm:$0xff]
    %v5278 = vld [vmem:[%s10 + $0xf70] sm:$0xff]
    %v5279 = vld [vmem:[%s10 + $0xf78] sm:$0xff]
    %v5280 = vld [vmem:[%s10 + $0xf80] sm:$0xff]
    %v5281 = vld [vmem:[%s10 + $0xf88] sm:$0xff]
    %v5282 = vld [vmem:[%s10 + $0xf90] sm:$0xff]
    %v5283 = vld [vmem:[%s10 + $0xf98] sm:$0xff]
    %v5284 = vld [vmem:[%s10 + $0xfa0] sm:$0xff]
    %v5285 = vld [vmem:[%s10 + $0xfa8] sm:$0xff]
    %v5286 = vld [vmem:[%s10 + $0xfb0] sm:$0xff]
    %v5287 = vld [vmem:[%s10 + $0xfb8] sm:$0xff]
    %v5288 = vld [vmem:[%s10 + $0xfc0] sm:$0xff]
    %v5289 = vld [vmem:[%s10 + $0xfc8] sm:$0xff]
    %v5290 = vld [vmem:[%s10 + $0xfd0] sm:$0xff]
    %v5291 = vld [vmem:[%s10 + $0xfd8] sm:$0xff]
    %v5292 = vld [vmem:[%s10 + $0xfe0] sm:$0xff]
    %v5293 = vld [vmem:[%s10 + $0xfe8] sm:$0xff]
    %v5294 = vld [vmem:[%s10 + $0xff0] sm:$0xff]
    %v5295 = vld [vmem:[%s10 + $0xff8] sm:$0xff]
    %v5296 = vpack.c.bf16 %v4278, %v4278
    %v5297 = vpack.c.bf16 %v4280, %v4280
    %v5298 = vpack.c.bf16 %v4442, %v4442
    %v5299 = vpack.c.bf16 %v4444, %v4444
    %v5300 = vpack.c.bf16 %v4606, %v4606
    %v5301 = vpack.c.bf16 %v4608, %v4608
    %v5302 = vpack.c.bf16 %v4770, %v4770
    %v5303 = vpack.c.bf16 %v4772, %v4772
    %v5304 = vld [vmem:[%s10 + $0x1000] sm:$0xff]
    %v5305 = vld [vmem:[%s10 + $0x1008] sm:$0xff]
    %v5306 = vld [vmem:[%s10 + $0x1010] sm:$0xff]
    %v5307 = vld [vmem:[%s10 + $0x1018] sm:$0xff]
    %v5308 = vld [vmem:[%s10 + $0x1020] sm:$0xff]
    %v5309 = vld [vmem:[%s10 + $0x1028] sm:$0xff]
    %v5310 = vld [vmem:[%s10 + $0x1030] sm:$0xff]
    %v5311 = vld [vmem:[%s10 + $0x1038] sm:$0xff]
    %v5312 = vld [vmem:[%s10 + $0x1040] sm:$0xff]
    %v5313 = vld [vmem:[%s10 + $0x1048] sm:$0xff]
    %v5314 = vld [vmem:[%s10 + $0x1050] sm:$0xff]
    %v5315 = vld [vmem:[%s10 + $0x1058] sm:$0xff]
    %v5316 = vld [vmem:[%s10 + $0x1060] sm:$0xff]
    %v5317 = vld [vmem:[%s10 + $0x1068] sm:$0xff]
    %v5318 = vld [vmem:[%s10 + $0x1070] sm:$0xff]
    %v5319 = vld [vmem:[%s10 + $0x1078] sm:$0xff]
    %v5320 = vld [vmem:[%s10 + $0x1080] sm:$0xff]
    %v5321 = vld [vmem:[%s10 + $0x1088] sm:$0xff]
    %v5322 = vld [vmem:[%s10 + $0x1090] sm:$0xff]
    %v5323 = vld [vmem:[%s10 + $0x1098] sm:$0xff]
    %v5324 = vld [vmem:[%s10 + $0x10a0] sm:$0xff]
    %v5325 = vld [vmem:[%s10 + $0x10a8] sm:$0xff]
    %v5326 = vld [vmem:[%s10 + $0x10b0] sm:$0xff]
    %v5327 = vld [vmem:[%s10 + $0x10b8] sm:$0xff]
    %v5328 = vld [vmem:[%s10 + $0x10c0] sm:$0xff]
    %v5329 = vld [vmem:[%s10 + $0x10c8] sm:$0xff]
    %v5330 = vld [vmem:[%s10 + $0x10d0] sm:$0xff]
    %v5331 = vld [vmem:[%s10 + $0x10d8] sm:$0xff]
    %v5332 = vld [vmem:[%s10 + $0x10e0] sm:$0xff]
    %v5333 = vld [vmem:[%s10 + $0x10e8] sm:$0xff]
    %v5334 = vld [vmem:[%s10 + $0x10f0] sm:$0xff]
    %v5335 = vld [vmem:[%s10 + $0x10f8] sm:$0xff]
    %v5336 = vld [vmem:[%s10 + $0x1100] sm:$0xff]
    %v5337 = vld [vmem:[%s10 + $0x1108] sm:$0xff]
    %v5338 = vld [vmem:[%s10 + $0x1110] sm:$0xff]
    %v5339 = vld [vmem:[%s10 + $0x1118] sm:$0xff]
    %v5340 = vld [vmem:[%s10 + $0x1120] sm:$0xff]
    %v5341 = vld [vmem:[%s10 + $0x1128] sm:$0xff]
    %v5342 = vld [vmem:[%s10 + $0x1130] sm:$0xff]
    %v5343 = vld [vmem:[%s10 + $0x1138] sm:$0xff]
    %v5344 = vld [vmem:[%s10 + $0x1140] sm:$0xff]
    %v5345 = vld [vmem:[%s10 + $0x1148] sm:$0xff]
    %v5346 = vld [vmem:[%s10 + $0x1150] sm:$0xff]
    %v5347 = vld [vmem:[%s10 + $0x1158] sm:$0xff]
    %v5348 = vld [vmem:[%s10 + $0x1160] sm:$0xff]
    %v5349 = vld [vmem:[%s10 + $0x1168] sm:$0xff]
    %v5350 = vld [vmem:[%s10 + $0x1170] sm:$0xff]
    %v5351 = vld [vmem:[%s10 + $0x1178] sm:$0xff]
    %v5352 = vld [vmem:[%s10 + $0x1180] sm:$0xff]
    %v5353 = vld [vmem:[%s10 + $0x1188] sm:$0xff]
    %v5354 = vld [vmem:[%s10 + $0x1190] sm:$0xff]
    %v5355 = vld [vmem:[%s10 + $0x1198] sm:$0xff]
    %v5356 = vld [vmem:[%s10 + $0x11a0] sm:$0xff]
    %v5357 = vld [vmem:[%s10 + $0x11a8] sm:$0xff]
    %v5358 = vld [vmem:[%s10 + $0x11b0] sm:$0xff]
    %v5359 = vld [vmem:[%s10 + $0x11b8] sm:$0xff]
    %v5360 = vld [vmem:[%s10 + $0x11c0] sm:$0xff]
    %v5361 = vld [vmem:[%s10 + $0x11c8] sm:$0xff]
    %v5362 = vld [vmem:[%s10 + $0x11d0] sm:$0xff]
    %v5363 = vld [vmem:[%s10 + $0x11d8] sm:$0xff]
    %v5364 = vld [vmem:[%s10 + $0x11e0] sm:$0xff]
    %v5365 = vld [vmem:[%s10 + $0x11e8] sm:$0xff]
    %v5366 = vld [vmem:[%s10 + $0x11f0] sm:$0xff]
    %v5367 = vld [vmem:[%s10 + $0x11f8] sm:$0xff]
    %v5368 = vld [vmem:[%s10 + $0x1200] sm:$0xff]
    %v5369 = vld [vmem:[%s10 + $0x1208] sm:$0xff]
    %v5370 = vld [vmem:[%s10 + $0x1210] sm:$0xff]
    %v5371 = vld [vmem:[%s10 + $0x1218] sm:$0xff]
    %v5372 = vld [vmem:[%s10 + $0x1220] sm:$0xff]
    %v5373 = vld [vmem:[%s10 + $0x1228] sm:$0xff]
    %v5374 = vld [vmem:[%s10 + $0x1230] sm:$0xff]
    %v5375 = vld [vmem:[%s10 + $0x1238] sm:$0xff]
    %v5376 = vld [vmem:[%s10 + $0x1240] sm:$0xff]
    %v5377 = vld [vmem:[%s10 + $0x1248] sm:$0xff]
    %v5378 = vld [vmem:[%s10 + $0x1250] sm:$0xff]
    %v5379 = vld [vmem:[%s10 + $0x1258] sm:$0xff]
    %v5380 = vld [vmem:[%s10 + $0x1260] sm:$0xff]
    %v5381 = vld [vmem:[%s10 + $0x1268] sm:$0xff]
    %v5382 = vld [vmem:[%s10 + $0x1270] sm:$0xff]
    %v5383 = vld [vmem:[%s10 + $0x1278] sm:$0xff]
    %v5384 = vld [vmem:[%s10 + $0x1280] sm:$0xff]
    %v5385 = vld [vmem:[%s10 + $0x1288] sm:$0xff]
    %v5386 = vld [vmem:[%s10 + $0x1290] sm:$0xff]
    %v5387 = vld [vmem:[%s10 + $0x1298] sm:$0xff]
    %v5388 = vld [vmem:[%s10 + $0x12a0] sm:$0xff]
    %v5389 = vld [vmem:[%s10 + $0x12a8] sm:$0xff]
    %v5390 = vld [vmem:[%s10 + $0x12b0] sm:$0xff]
    %v5391 = vld [vmem:[%s10 + $0x12b8] sm:$0xff]
    %v5392 = vld [vmem:[%s10 + $0x12c0] sm:$0xff]
    %v5393 = vld [vmem:[%s10 + $0x12c8] sm:$0xff]
    %v5394 = vld [vmem:[%s10 + $0x12d0] sm:$0xff]
    %v5395 = vld [vmem:[%s10 + $0x12d8] sm:$0xff]
    %v5396 = vld [vmem:[%s10 + $0x12e0] sm:$0xff]
    %v5397 = vld [vmem:[%s10 + $0x12e8] sm:$0xff]
    %v5398 = vld [vmem:[%s10 + $0x12f0] sm:$0xff]
    %v5399 = vld [vmem:[%s10 + $0x12f8] sm:$0xff]
    %v5400 = vld [vmem:[%s10 + $0x1300] sm:$0xff]
    %v5401 = vld [vmem:[%s10 + $0x1308] sm:$0xff]
    %v5402 = vld [vmem:[%s10 + $0x1310] sm:$0xff]
    %v5403 = vld [vmem:[%s10 + $0x1318] sm:$0xff]
    %v5404 = vld [vmem:[%s10 + $0x1320] sm:$0xff]
    %v5405 = vld [vmem:[%s10 + $0x1328] sm:$0xff]
    %v5406 = vld [vmem:[%s10 + $0x1330] sm:$0xff]
    %v5407 = vld [vmem:[%s10 + $0x1338] sm:$0xff]
    %v5408 = vld [vmem:[%s10 + $0x1340] sm:$0xff]
    %v5409 = vld [vmem:[%s10 + $0x1348] sm:$0xff]
    %v5410 = vld [vmem:[%s10 + $0x1350] sm:$0xff]
    %v5411 = vld [vmem:[%s10 + $0x1358] sm:$0xff]
    %v5412 = vld [vmem:[%s10 + $0x1360] sm:$0xff]
    %v5413 = vld [vmem:[%s10 + $0x1368] sm:$0xff]
    %v5414 = vld [vmem:[%s10 + $0x1370] sm:$0xff]
    %v5415 = vld [vmem:[%s10 + $0x1378] sm:$0xff]
    %v5416 = vld [vmem:[%s10 + $0x1380] sm:$0xff]
    %v5417 = vld [vmem:[%s10 + $0x1388] sm:$0xff]
    %v5418 = vld [vmem:[%s10 + $0x1390] sm:$0xff]
    %v5419 = vld [vmem:[%s10 + $0x1398] sm:$0xff]
    %v5420 = vld [vmem:[%s10 + $0x13a0] sm:$0xff]
    %v5421 = vld [vmem:[%s10 + $0x13a8] sm:$0xff]
    %v5422 = vld [vmem:[%s10 + $0x13b0] sm:$0xff]
    %v5423 = vld [vmem:[%s10 + $0x13b8] sm:$0xff]
    %v5424 = vld [vmem:[%s10 + $0x13c0] sm:$0xff]
    %v5425 = vld [vmem:[%s10 + $0x13c8] sm:$0xff]
    %v5426 = vld [vmem:[%s10 + $0x13d0] sm:$0xff]
    %v5427 = vld [vmem:[%s10 + $0x13d8] sm:$0xff]
    %v5428 = vld [vmem:[%s10 + $0x13e0] sm:$0xff]
    %v5429 = vld [vmem:[%s10 + $0x13e8] sm:$0xff]
    %v5430 = vld [vmem:[%s10 + $0x13f0] sm:$0xff]
    %v5431 = vld [vmem:[%s10 + $0x13f8] sm:$0xff]
    %v5432 = vld [vmem:[%s10 + $0x1400] sm:$0xff]
    %v5433 = vld [vmem:[%s10 + $0x1408] sm:$0xff]
    %v5434 = vld [vmem:[%s10 + $0x1410] sm:$0xff]
    %v5435 = vld [vmem:[%s10 + $0x1418] sm:$0xff]
    %v5436 = vld [vmem:[%s10 + $0x1420] sm:$0xff]
    %v5437 = vld [vmem:[%s10 + $0x1428] sm:$0xff]
    %v5438 = vld [vmem:[%s10 + $0x1430] sm:$0xff]
    %v5439 = vld [vmem:[%s10 + $0x1438] sm:$0xff]
    %v5440 = vld [vmem:[%s10 + $0x1440] sm:$0xff]
    %v5441 = vld [vmem:[%s10 + $0x1448] sm:$0xff]
    %v5442 = vld [vmem:[%s10 + $0x1450] sm:$0xff]
    %v5443 = vld [vmem:[%s10 + $0x1458] sm:$0xff]
    %v5444 = vld [vmem:[%s10 + $0x1460] sm:$0xff]
    %v5445 = vld [vmem:[%s10 + $0x1468] sm:$0xff]
    %v5446 = vld [vmem:[%s10 + $0x1470] sm:$0xff]
    %v5447 = vld [vmem:[%s10 + $0x1478] sm:$0xff]
    %v5448 = vld [vmem:[%s10 + $0x1480] sm:$0xff]
    %v5449 = vld [vmem:[%s10 + $0x1488] sm:$0xff]
    %v5450 = vld [vmem:[%s10 + $0x1490] sm:$0xff]
    %v5451 = vld [vmem:[%s10 + $0x1498] sm:$0xff]
    %v5452 = vld [vmem:[%s10 + $0x14a0] sm:$0xff]
    %v5453 = vld [vmem:[%s10 + $0x14a8] sm:$0xff]
    %v5454 = vld [vmem:[%s10 + $0x14b0] sm:$0xff]
    %v5455 = vld [vmem:[%s10 + $0x14b8] sm:$0xff]
    %v5456 = vld [vmem:[%s10 + $0x14c0] sm:$0xff]
    %v5457 = vld [vmem:[%s10 + $0x14c8] sm:$0xff]
    %v5458 = vld [vmem:[%s10 + $0x14d0] sm:$0xff]
    %v5459 = vld [vmem:[%s10 + $0x14d8] sm:$0xff]
    %v5460 = vld [vmem:[%s10 + $0x14e0] sm:$0xff]
    %v5461 = vld [vmem:[%s10 + $0x14e8] sm:$0xff]
    %v5462 = vld [vmem:[%s10 + $0x14f0] sm:$0xff]
    %v5463 = vld [vmem:[%s10 + $0x14f8] sm:$0xff]
    %v5464 = vld [vmem:[%s10 + $0x1500] sm:$0xff]
    %v5465 = vld [vmem:[%s10 + $0x1508] sm:$0xff]
    %v5466 = vld [vmem:[%s10 + $0x1510] sm:$0xff]
    %v5467 = vld [vmem:[%s10 + $0x1518] sm:$0xff]
    %v5468 = vld [vmem:[%s10 + $0x1520] sm:$0xff]
    %v5469 = vld [vmem:[%s10 + $0x1528] sm:$0xff]
    %v5470 = vld [vmem:[%s10 + $0x1530] sm:$0xff]
    %v5471 = vld [vmem:[%s10 + $0x1538] sm:$0xff]
    %v5472 = vld [vmem:[%s10 + $0x1540] sm:$0xff]
    %v5473 = vld [vmem:[%s10 + $0x1548] sm:$0xff]
    %v5474 = vld [vmem:[%s10 + $0x1550] sm:$0xff]
    %v5475 = vld [vmem:[%s10 + $0x1558] sm:$0xff]
    %v5476 = vld [vmem:[%s10 + $0x1560] sm:$0xff]
    %v5477 = vld [vmem:[%s10 + $0x1568] sm:$0xff]
    %v5478 = vld [vmem:[%s10 + $0x1570] sm:$0xff]
    %v5479 = vld [vmem:[%s10 + $0x1578] sm:$0xff]
    %v5480 = vld [vmem:[%s10 + $0x1580] sm:$0xff]
    %v5481 = vld [vmem:[%s10 + $0x1588] sm:$0xff]
    %v5482 = vld [vmem:[%s10 + $0x1590] sm:$0xff]
    %v5483 = vld [vmem:[%s10 + $0x1598] sm:$0xff]
    %v5484 = vld [vmem:[%s10 + $0x15a0] sm:$0xff]
    %v5485 = vld [vmem:[%s10 + $0x15a8] sm:$0xff]
    %v5486 = vld [vmem:[%s10 + $0x15b0] sm:$0xff]
    %v5487 = vld [vmem:[%s10 + $0x15b8] sm:$0xff]
    %v5488 = vld [vmem:[%s10 + $0x15c0] sm:$0xff]
    %v5489 = vld [vmem:[%s10 + $0x15c8] sm:$0xff]
    %v5490 = vld [vmem:[%s10 + $0x15d0] sm:$0xff]
    %v5491 = vld [vmem:[%s10 + $0x15d8] sm:$0xff]
    %v5492 = vld [vmem:[%s10 + $0x15e0] sm:$0xff]
    %v5493 = vld [vmem:[%s10 + $0x15e8] sm:$0xff]
    %v5494 = vld [vmem:[%s10 + $0x15f0] sm:$0xff]
    %v5495 = vld [vmem:[%s10 + $0x15f8] sm:$0xff]
    %v5496 = vld [vmem:[%s10 + $0x1600] sm:$0xff]
    %v5497 = vld [vmem:[%s10 + $0x1608] sm:$0xff]
    %v5498 = vld [vmem:[%s10 + $0x1610] sm:$0xff]
    %v5499 = vld [vmem:[%s10 + $0x1618] sm:$0xff]
    %v5500 = vld [vmem:[%s10 + $0x1620] sm:$0xff]
    %v5501 = vld [vmem:[%s10 + $0x1628] sm:$0xff]
    %v5502 = vld [vmem:[%s10 + $0x1630] sm:$0xff]
    %v5503 = vld [vmem:[%s10 + $0x1638] sm:$0xff]
    %v5504 = vld [vmem:[%s10 + $0x1640] sm:$0xff]
    %v5505 = vld [vmem:[%s10 + $0x1648] sm:$0xff]
    %v5506 = vld [vmem:[%s10 + $0x1650] sm:$0xff]
    %v5507 = vld [vmem:[%s10 + $0x1658] sm:$0xff]
    %v5508 = vld [vmem:[%s10 + $0x1660] sm:$0xff]
    %v5509 = vld [vmem:[%s10 + $0x1668] sm:$0xff]
    %v5510 = vld [vmem:[%s10 + $0x1670] sm:$0xff]
    %v5511 = vld [vmem:[%s10 + $0x1678] sm:$0xff]
    %v5512 = vld [vmem:[%s10 + $0x1680] sm:$0xff]
    %v5513 = vld [vmem:[%s10 + $0x1688] sm:$0xff]
    %v5514 = vld [vmem:[%s10 + $0x1690] sm:$0xff]
    %v5515 = vld [vmem:[%s10 + $0x1698] sm:$0xff]
    %v5516 = vld [vmem:[%s10 + $0x16a0] sm:$0xff]
    %v5517 = vld [vmem:[%s10 + $0x16a8] sm:$0xff]
    %v5518 = vld [vmem:[%s10 + $0x16b0] sm:$0xff]
    %v5519 = vld [vmem:[%s10 + $0x16b8] sm:$0xff]
    %v5520 = vld [vmem:[%s10 + $0x16c0] sm:$0xff]
    %v5521 = vld [vmem:[%s10 + $0x16c8] sm:$0xff]
    %v5522 = vld [vmem:[%s10 + $0x16d0] sm:$0xff]
    %v5523 = vld [vmem:[%s10 + $0x16d8] sm:$0xff]
    %v5524 = vld [vmem:[%s10 + $0x16e0] sm:$0xff]
    %v5525 = vld [vmem:[%s10 + $0x16e8] sm:$0xff]
    %v5526 = vld [vmem:[%s10 + $0x16f0] sm:$0xff]
    %v5527 = vld [vmem:[%s10 + $0x16f8] sm:$0xff]
    %v5528 = vld [vmem:[%s10 + $0x1700] sm:$0xff]
    %v5529 = vld [vmem:[%s10 + $0x1708] sm:$0xff]
    %v5530 = vld [vmem:[%s10 + $0x1710] sm:$0xff]
    %v5531 = vld [vmem:[%s10 + $0x1718] sm:$0xff]
    %v5532 = vld [vmem:[%s10 + $0x1720] sm:$0xff]
    %v5533 = vld [vmem:[%s10 + $0x1728] sm:$0xff]
    %v5534 = vld [vmem:[%s10 + $0x1730] sm:$0xff]
    %v5535 = vld [vmem:[%s10 + $0x1738] sm:$0xff]
    %v5536 = vld [vmem:[%s10 + $0x1740] sm:$0xff]
    %v5537 = vld [vmem:[%s10 + $0x1748] sm:$0xff]
    %v5538 = vld [vmem:[%s10 + $0x1750] sm:$0xff]
    %v5539 = vld [vmem:[%s10 + $0x1758] sm:$0xff]
    %v5540 = vld [vmem:[%s10 + $0x1760] sm:$0xff]
    %v5541 = vld [vmem:[%s10 + $0x1768] sm:$0xff]
    %v5542 = vld [vmem:[%s10 + $0x1770] sm:$0xff]
    %v5543 = vld [vmem:[%s10 + $0x1778] sm:$0xff]
    %v5544 = vld [vmem:[%s10 + $0x1780] sm:$0xff]
    %v5545 = vld [vmem:[%s10 + $0x1788] sm:$0xff]
    %v5546 = vld [vmem:[%s10 + $0x1790] sm:$0xff]
    %v5547 = vld [vmem:[%s10 + $0x1798] sm:$0xff]
    %v5548 = vld [vmem:[%s10 + $0x17a0] sm:$0xff]
    %v5549 = vld [vmem:[%s10 + $0x17a8] sm:$0xff]
    %v5550 = vld [vmem:[%s10 + $0x17b0] sm:$0xff]
    %v5551 = vld [vmem:[%s10 + $0x17b8] sm:$0xff]
    %v5552 = vld [vmem:[%s10 + $0x17c0] sm:$0xff]
    %v5553 = vld [vmem:[%s10 + $0x17c8] sm:$0xff]
    %v5554 = vld [vmem:[%s10 + $0x17d0] sm:$0xff]
    %v5555 = vld [vmem:[%s10 + $0x17d8] sm:$0xff]
    %v5556 = vld [vmem:[%s10 + $0x17e0] sm:$0xff]
    %v5557 = vld [vmem:[%s10 + $0x17e8] sm:$0xff]
    %v5558 = vld [vmem:[%s10 + $0x17f0] sm:$0xff]
    %v5559 = vld [vmem:[%s10 + $0x17f8] sm:$0xff]
    %v5560 = vld [vmem:[%s10 + $0x1800] sm:$0xff]
    %v5561 = vld [vmem:[%s10 + $0x1808] sm:$0xff]
    %v5562 = vld [vmem:[%s10 + $0x1810] sm:$0xff]
    %v5563 = vld [vmem:[%s10 + $0x1818] sm:$0xff]
    %v5564 = vld [vmem:[%s10 + $0x1820] sm:$0xff]
    %v5565 = vld [vmem:[%s10 + $0x1828] sm:$0xff]
    %v5566 = vld [vmem:[%s10 + $0x1830] sm:$0xff]
    %v5567 = vld [vmem:[%s10 + $0x1838] sm:$0xff]
    %v5568 = vld [vmem:[%s10 + $0x1840] sm:$0xff]
    %v5569 = vld [vmem:[%s10 + $0x1848] sm:$0xff]
    %v5570 = vld [vmem:[%s10 + $0x1850] sm:$0xff]
    %v5571 = vld [vmem:[%s10 + $0x1858] sm:$0xff]
    %v5572 = vld [vmem:[%s10 + $0x1860] sm:$0xff]
    %v5573 = vld [vmem:[%s10 + $0x1868] sm:$0xff]
    %v5574 = vld [vmem:[%s10 + $0x1870] sm:$0xff]
    %v5575 = vld [vmem:[%s10 + $0x1878] sm:$0xff]
    %v5576 = vld [vmem:[%s10 + $0x1880] sm:$0xff]
    %v5577 = vld [vmem:[%s10 + $0x1888] sm:$0xff]
    %v5578 = vld [vmem:[%s10 + $0x1890] sm:$0xff]
    %v5579 = vld [vmem:[%s10 + $0x1898] sm:$0xff]
    %v5580 = vld [vmem:[%s10 + $0x18a0] sm:$0xff]
    %v5581 = vld [vmem:[%s10 + $0x18a8] sm:$0xff]
    %v5582 = vld [vmem:[%s10 + $0x18b0] sm:$0xff]
    %v5583 = vld [vmem:[%s10 + $0x18b8] sm:$0xff]
    %v5584 = vld [vmem:[%s10 + $0x18c0] sm:$0xff]
    %v5585 = vld [vmem:[%s10 + $0x18c8] sm:$0xff]
    %v5586 = vld [vmem:[%s10 + $0x18d0] sm:$0xff]
    %v5587 = vld [vmem:[%s10 + $0x18d8] sm:$0xff]
    %v5588 = vld [vmem:[%s10 + $0x18e0] sm:$0xff]
    %v5589 = vld [vmem:[%s10 + $0x18e8] sm:$0xff]
    %v5590 = vld [vmem:[%s10 + $0x18f0] sm:$0xff]
    %v5591 = vld [vmem:[%s10 + $0x18f8] sm:$0xff]
    %v5592 = vld [vmem:[%s10 + $0x1900] sm:$0xff]
    %v5593 = vld [vmem:[%s10 + $0x1908] sm:$0xff]
    %v5594 = vld [vmem:[%s10 + $0x1910] sm:$0xff]
    %v5595 = vld [vmem:[%s10 + $0x1918] sm:$0xff]
    %v5596 = vld [vmem:[%s10 + $0x1920] sm:$0xff]
    %v5597 = vld [vmem:[%s10 + $0x1928] sm:$0xff]
    %v5598 = vld [vmem:[%s10 + $0x1930] sm:$0xff]
    %v5599 = vld [vmem:[%s10 + $0x1938] sm:$0xff]
    %v5600 = vld [vmem:[%s10 + $0x1940] sm:$0xff]
    %v5601 = vld [vmem:[%s10 + $0x1948] sm:$0xff]
    %v5602 = vld [vmem:[%s10 + $0x1950] sm:$0xff]
    %v5603 = vld [vmem:[%s10 + $0x1958] sm:$0xff]
    %v5604 = vld [vmem:[%s10 + $0x1960] sm:$0xff]
    %v5605 = vld [vmem:[%s10 + $0x1968] sm:$0xff]
    %v5606 = vld [vmem:[%s10 + $0x1970] sm:$0xff]
    %v5607 = vld [vmem:[%s10 + $0x1978] sm:$0xff]
    %v5608 = vld [vmem:[%s10 + $0x1980] sm:$0xff]
    %v5609 = vld [vmem:[%s10 + $0x1988] sm:$0xff]
    %v5610 = vld [vmem:[%s10 + $0x1990] sm:$0xff]
    %v5611 = vld [vmem:[%s10 + $0x1998] sm:$0xff]
    %v5612 = vld [vmem:[%s10 + $0x19a0] sm:$0xff]
    %v5613 = vld [vmem:[%s10 + $0x19a8] sm:$0xff]
    %v5614 = vld [vmem:[%s10 + $0x19b0] sm:$0xff]
    %v5615 = vld [vmem:[%s10 + $0x19b8] sm:$0xff]
    %v5616 = vld [vmem:[%s10 + $0x19c0] sm:$0xff]
    %v5617 = vld [vmem:[%s10 + $0x19c8] sm:$0xff]
    %v5618 = vld [vmem:[%s10 + $0x19d0] sm:$0xff]
    %v5619 = vld [vmem:[%s10 + $0x19d8] sm:$0xff]
    %v5620 = vld [vmem:[%s10 + $0x19e0] sm:$0xff]
    %v5621 = vld [vmem:[%s10 + $0x19e8] sm:$0xff]
    %v5622 = vld [vmem:[%s10 + $0x19f0] sm:$0xff]
    %v5623 = vld [vmem:[%s10 + $0x19f8] sm:$0xff]
    %v5624 = vld [vmem:[%s10 + $0x1a00] sm:$0xff]
    %v5625 = vld [vmem:[%s10 + $0x1a08] sm:$0xff]
    %v5626 = vld [vmem:[%s10 + $0x1a10] sm:$0xff]
    %v5627 = vld [vmem:[%s10 + $0x1a18] sm:$0xff]
    %v5628 = vld [vmem:[%s10 + $0x1a20] sm:$0xff]
    %v5629 = vld [vmem:[%s10 + $0x1a28] sm:$0xff]
    %v5630 = vld [vmem:[%s10 + $0x1a30] sm:$0xff]
    %v5631 = vld [vmem:[%s10 + $0x1a38] sm:$0xff]
    %v5632 = vld [vmem:[%s10 + $0x1a40] sm:$0xff]
    %v5633 = vld [vmem:[%s10 + $0x1a48] sm:$0xff]
    %v5634 = vld [vmem:[%s10 + $0x1a50] sm:$0xff]
    %v5635 = vld [vmem:[%s10 + $0x1a58] sm:$0xff]
    %v5636 = vld [vmem:[%s10 + $0x1a60] sm:$0xff]
    %v5637 = vld [vmem:[%s10 + $0x1a68] sm:$0xff]
    %v5638 = vld [vmem:[%s10 + $0x1a70] sm:$0xff]
    %v5639 = vld [vmem:[%s10 + $0x1a78] sm:$0xff]
    %v5640 = vld [vmem:[%s10 + $0x1a80] sm:$0xff]
    %v5641 = vld [vmem:[%s10 + $0x1a88] sm:$0xff]
    %v5642 = vld [vmem:[%s10 + $0x1a90] sm:$0xff]
    %v5643 = vld [vmem:[%s10 + $0x1a98] sm:$0xff]
    %v5644 = vld [vmem:[%s10 + $0x1aa0] sm:$0xff]
    %v5645 = vld [vmem:[%s10 + $0x1aa8] sm:$0xff]
    %v5646 = vld [vmem:[%s10 + $0x1ab0] sm:$0xff]
    %v5647 = vld [vmem:[%s10 + $0x1ab8] sm:$0xff]
    %v5648 = vld [vmem:[%s10 + $0x1ac0] sm:$0xff]
    %v5649 = vld [vmem:[%s10 + $0x1ac8] sm:$0xff]
    %v5650 = vld [vmem:[%s10 + $0x1ad0] sm:$0xff]
    %v5651 = vld [vmem:[%s10 + $0x1ad8] sm:$0xff]
    %v5652 = vld [vmem:[%s10 + $0x1ae0] sm:$0xff]
    %v5653 = vld [vmem:[%s10 + $0x1ae8] sm:$0xff]
    %v5654 = vld [vmem:[%s10 + $0x1af0] sm:$0xff]
    %v5655 = vld [vmem:[%s10 + $0x1af8] sm:$0xff]
    %v5656 = vld [vmem:[%s10 + $0x1b00] sm:$0xff]
    %v5657 = vld [vmem:[%s10 + $0x1b08] sm:$0xff]
    %v5658 = vld [vmem:[%s10 + $0x1b10] sm:$0xff]
    %v5659 = vld [vmem:[%s10 + $0x1b18] sm:$0xff]
    %v5660 = vld [vmem:[%s10 + $0x1b20] sm:$0xff]
    %v5661 = vld [vmem:[%s10 + $0x1b28] sm:$0xff]
    %v5662 = vld [vmem:[%s10 + $0x1b30] sm:$0xff]
    %v5663 = vld [vmem:[%s10 + $0x1b38] sm:$0xff]
    %v5664 = vld [vmem:[%s10 + $0x1b40] sm:$0xff]
    %v5665 = vld [vmem:[%s10 + $0x1b48] sm:$0xff]
    %v5666 = vld [vmem:[%s10 + $0x1b50] sm:$0xff]
    %v5667 = vld [vmem:[%s10 + $0x1b58] sm:$0xff]
    %v5668 = vld [vmem:[%s10 + $0x1b60] sm:$0xff]
    %v5669 = vld [vmem:[%s10 + $0x1b68] sm:$0xff]
    %v5670 = vld [vmem:[%s10 + $0x1b70] sm:$0xff]
    %v5671 = vld [vmem:[%s10 + $0x1b78] sm:$0xff]
    %v5672 = vld [vmem:[%s10 + $0x1b80] sm:$0xff]
    %v5673 = vld [vmem:[%s10 + $0x1b88] sm:$0xff]
    %v5674 = vld [vmem:[%s10 + $0x1b90] sm:$0xff]
    %v5675 = vld [vmem:[%s10 + $0x1b98] sm:$0xff]
    %v5676 = vld [vmem:[%s10 + $0x1ba0] sm:$0xff]
    %v5677 = vld [vmem:[%s10 + $0x1ba8] sm:$0xff]
    %v5678 = vld [vmem:[%s10 + $0x1bb0] sm:$0xff]
    %v5679 = vld [vmem:[%s10 + $0x1bb8] sm:$0xff]
    %v5680 = vld [vmem:[%s10 + $0x1bc0] sm:$0xff]
    %v5681 = vld [vmem:[%s10 + $0x1bc8] sm:$0xff]
    %v5682 = vld [vmem:[%s10 + $0x1bd0] sm:$0xff]
    %v5683 = vld [vmem:[%s10 + $0x1bd8] sm:$0xff]
    %v5684 = vld [vmem:[%s10 + $0x1be0] sm:$0xff]
    %v5685 = vld [vmem:[%s10 + $0x1be8] sm:$0xff]
    %v5686 = vld [vmem:[%s10 + $0x1bf0] sm:$0xff]
    %v5687 = vld [vmem:[%s10 + $0x1bf8] sm:$0xff]
    %v5688 = vld [vmem:[%s10 + $0x1c00] sm:$0xff]
    %v5689 = vld [vmem:[%s10 + $0x1c08] sm:$0xff]
    %v5690 = vld [vmem:[%s10 + $0x1c10] sm:$0xff]
    %v5691 = vld [vmem:[%s10 + $0x1c18] sm:$0xff]
    %v5692 = vld [vmem:[%s10 + $0x1c20] sm:$0xff]
    %v5693 = vld [vmem:[%s10 + $0x1c28] sm:$0xff]
    %v5694 = vld [vmem:[%s10 + $0x1c30] sm:$0xff]
    %v5695 = vld [vmem:[%s10 + $0x1c38] sm:$0xff]
    %v5696 = vld [vmem:[%s10 + $0x1c40] sm:$0xff]
    %v5697 = vld [vmem:[%s10 + $0x1c48] sm:$0xff]
    %v5698 = vld [vmem:[%s10 + $0x1c50] sm:$0xff]
    %v5699 = vld [vmem:[%s10 + $0x1c58] sm:$0xff]
    %v5700 = vld [vmem:[%s10 + $0x1c60] sm:$0xff]
    %v5701 = vld [vmem:[%s10 + $0x1c68] sm:$0xff]
    %v5702 = vld [vmem:[%s10 + $0x1c70] sm:$0xff]
    %v5703 = vld [vmem:[%s10 + $0x1c78] sm:$0xff]
    %v5704 = vld [vmem:[%s10 + $0x1c80] sm:$0xff]
    %v5705 = vld [vmem:[%s10 + $0x1c88] sm:$0xff]
    %v5706 = vld [vmem:[%s10 + $0x1c90] sm:$0xff]
    %v5707 = vld [vmem:[%s10 + $0x1c98] sm:$0xff]
    %v5708 = vld [vmem:[%s10 + $0x1ca0] sm:$0xff]
    %v5709 = vld [vmem:[%s10 + $0x1ca8] sm:$0xff]
    %v5710 = vld [vmem:[%s10 + $0x1cb0] sm:$0xff]
    %v5711 = vld [vmem:[%s10 + $0x1cb8] sm:$0xff]
    %v5712 = vld [vmem:[%s10 + $0x1cc0] sm:$0xff]
    %v5713 = vld [vmem:[%s10 + $0x1cc8] sm:$0xff]
    %v5714 = vld [vmem:[%s10 + $0x1cd0] sm:$0xff]
    %v5715 = vld [vmem:[%s10 + $0x1cd8] sm:$0xff]
    %v5716 = vld [vmem:[%s10 + $0x1ce0] sm:$0xff]
    %v5717 = vld [vmem:[%s10 + $0x1ce8] sm:$0xff]
    %v5718 = vld [vmem:[%s10 + $0x1cf0] sm:$0xff]
    %v5719 = vld [vmem:[%s10 + $0x1cf8] sm:$0xff]
    %v5720 = vld [vmem:[%s10 + $0x1d00] sm:$0xff]
    %v5721 = vld [vmem:[%s10 + $0x1d08] sm:$0xff]
    %v5722 = vld [vmem:[%s10 + $0x1d10] sm:$0xff]
    %v5723 = vld [vmem:[%s10 + $0x1d18] sm:$0xff]
    %v5724 = vld [vmem:[%s10 + $0x1d20] sm:$0xff]
    %v5725 = vld [vmem:[%s10 + $0x1d28] sm:$0xff]
    %v5726 = vld [vmem:[%s10 + $0x1d30] sm:$0xff]
    %v5727 = vld [vmem:[%s10 + $0x1d38] sm:$0xff]
    %v5728 = vld [vmem:[%s10 + $0x1d40] sm:$0xff]
    %v5729 = vld [vmem:[%s10 + $0x1d48] sm:$0xff]
    %v5730 = vld [vmem:[%s10 + $0x1d50] sm:$0xff]
    %v5731 = vld [vmem:[%s10 + $0x1d58] sm:$0xff]
    %v5732 = vld [vmem:[%s10 + $0x1d60] sm:$0xff]
    %v5733 = vld [vmem:[%s10 + $0x1d68] sm:$0xff]
    %v5734 = vld [vmem:[%s10 + $0x1d70] sm:$0xff]
    %v5735 = vld [vmem:[%s10 + $0x1d78] sm:$0xff]
    %v5736 = vld [vmem:[%s10 + $0x1d80] sm:$0xff]
    %v5737 = vld [vmem:[%s10 + $0x1d88] sm:$0xff]
    %v5738 = vld [vmem:[%s10 + $0x1d90] sm:$0xff]
    %v5739 = vld [vmem:[%s10 + $0x1d98] sm:$0xff]
    %v5740 = vld [vmem:[%s10 + $0x1da0] sm:$0xff]
    %v5741 = vld [vmem:[%s10 + $0x1da8] sm:$0xff]
    %v5742 = vld [vmem:[%s10 + $0x1db0] sm:$0xff]
    %v5743 = vld [vmem:[%s10 + $0x1db8] sm:$0xff]
    %v5744 = vld [vmem:[%s10 + $0x1dc0] sm:$0xff]
    %v5745 = vld [vmem:[%s10 + $0x1dc8] sm:$0xff]
    %v5746 = vld [vmem:[%s10 + $0x1dd0] sm:$0xff]
    %v5747 = vld [vmem:[%s10 + $0x1dd8] sm:$0xff]
    %v5748 = vld [vmem:[%s10 + $0x1de0] sm:$0xff]
    %v5749 = vld [vmem:[%s10 + $0x1de8] sm:$0xff]
    %v5750 = vld [vmem:[%s10 + $0x1df0] sm:$0xff]
    %v5751 = vld [vmem:[%s10 + $0x1df8] sm:$0xff]
    %v5752 = vld [vmem:[%s10 + $0x1e00] sm:$0xff]
    %v5753 = vld [vmem:[%s10 + $0x1e08] sm:$0xff]
    %v5754 = vld [vmem:[%s10 + $0x1e10] sm:$0xff]
    %v5755 = vld [vmem:[%s10 + $0x1e18] sm:$0xff]
    %v5756 = vld [vmem:[%s10 + $0x1e20] sm:$0xff]
    %v5757 = vld [vmem:[%s10 + $0x1e28] sm:$0xff]
    %v5758 = vld [vmem:[%s10 + $0x1e30] sm:$0xff]
    %v5759 = vld [vmem:[%s10 + $0x1e38] sm:$0xff]
    %v5760 = vld [vmem:[%s10 + $0x1e40] sm:$0xff]
    %v5761 = vld [vmem:[%s10 + $0x1e48] sm:$0xff]
    %v5762 = vld [vmem:[%s10 + $0x1e50] sm:$0xff]
    %v5763 = vld [vmem:[%s10 + $0x1e58] sm:$0xff]
    %v5764 = vld [vmem:[%s10 + $0x1e60] sm:$0xff]
    %v5765 = vld [vmem:[%s10 + $0x1e68] sm:$0xff]
    %v5766 = vld [vmem:[%s10 + $0x1e70] sm:$0xff]
    %v5767 = vld [vmem:[%s10 + $0x1e78] sm:$0xff]
    %v5768 = vld [vmem:[%s10 + $0x1e80] sm:$0xff]
    %v5769 = vld [vmem:[%s10 + $0x1e88] sm:$0xff]
    %v5770 = vld [vmem:[%s10 + $0x1e90] sm:$0xff]
    %v5771 = vld [vmem:[%s10 + $0x1e98] sm:$0xff]
    %v5772 = vld [vmem:[%s10 + $0x1ea0] sm:$0xff]
    %v5773 = vld [vmem:[%s10 + $0x1ea8] sm:$0xff]
    %v5774 = vld [vmem:[%s10 + $0x1eb0] sm:$0xff]
    %v5775 = vld [vmem:[%s10 + $0x1eb8] sm:$0xff]
    %v5776 = vld [vmem:[%s10 + $0x1ec0] sm:$0xff]
    %v5777 = vld [vmem:[%s10 + $0x1ec8] sm:$0xff]
    %v5778 = vld [vmem:[%s10 + $0x1ed0] sm:$0xff]
    %v5779 = vld [vmem:[%s10 + $0x1ed8] sm:$0xff]
    %v5780 = vld [vmem:[%s10 + $0x1ee0] sm:$0xff]
    %v5781 = vld [vmem:[%s10 + $0x1ee8] sm:$0xff]
    %v5782 = vld [vmem:[%s10 + $0x1ef0] sm:$0xff]
    %v5783 = vld [vmem:[%s10 + $0x1ef8] sm:$0xff]
    %v5784 = vld [vmem:[%s10 + $0x1f00] sm:$0xff]
    %v5785 = vld [vmem:[%s10 + $0x1f08] sm:$0xff]
    %v5786 = vld [vmem:[%s10 + $0x1f10] sm:$0xff]
    %v5787 = vld [vmem:[%s10 + $0x1f18] sm:$0xff]
    %v5788 = vld [vmem:[%s10 + $0x1f20] sm:$0xff]
    %v5789 = vld [vmem:[%s10 + $0x1f28] sm:$0xff]
    %v5790 = vld [vmem:[%s10 + $0x1f30] sm:$0xff]
    %v5791 = vld [vmem:[%s10 + $0x1f38] sm:$0xff]
    %v5792 = vld [vmem:[%s10 + $0x1f40] sm:$0xff]
    %v5793 = vld [vmem:[%s10 + $0x1f48] sm:$0xff]
    %v5794 = vld [vmem:[%s10 + $0x1f50] sm:$0xff]
    %v5795 = vld [vmem:[%s10 + $0x1f58] sm:$0xff]
    %v5796 = vld [vmem:[%s10 + $0x1f60] sm:$0xff]
    %v5797 = vld [vmem:[%s10 + $0x1f68] sm:$0xff]
    %v5798 = vld [vmem:[%s10 + $0x1f70] sm:$0xff]
    %v5799 = vld [vmem:[%s10 + $0x1f78] sm:$0xff]
    %v5800 = vld [vmem:[%s10 + $0x1f80] sm:$0xff]
    %v5801 = vld [vmem:[%s10 + $0x1f88] sm:$0xff]
    %v5802 = vld [vmem:[%s10 + $0x1f90] sm:$0xff]
    %v5803 = vld [vmem:[%s10 + $0x1f98] sm:$0xff]
    %v5804 = vld [vmem:[%s10 + $0x1fa0] sm:$0xff]
    %v5805 = vld [vmem:[%s10 + $0x1fa8] sm:$0xff]
    %v5806 = vld [vmem:[%s10 + $0x1fb0] sm:$0xff]
    %v5807 = vld [vmem:[%s10 + $0x1fb8] sm:$0xff]
    %v5808 = vld [vmem:[%s10 + $0x1fc0] sm:$0xff]
    %v5809 = vld [vmem:[%s10 + $0x1fc8] sm:$0xff]
    %v5810 = vld [vmem:[%s10 + $0x1fd0] sm:$0xff]
    %v5811 = vld [vmem:[%s10 + $0x1fd8] sm:$0xff]
    %v5812 = vld [vmem:[%s10 + $0x1fe0] sm:$0xff]
    %v5813 = vld [vmem:[%s10 + $0x1fe8] sm:$0xff]
    %v5814 = vld [vmem:[%s10 + $0x1ff0] sm:$0xff]
    %v5815 = vld [vmem:[%s10 + $0x1ff8] sm:$0xff]
    %v6328 = vunpack.c.l.b16 %v5304
    %v6329 = vunpack.c.h.b16 %v5304
    %v6330 = vunpack.c.l.b16 %v5305
    %v6331 = vunpack.c.h.b16 %v5305
    %v6332 = vunpack.c.l.b16 %v5306
    %v6333 = vunpack.c.h.b16 %v5306
    %v6334 = vunpack.c.l.b16 %v5307
    %v6335 = vunpack.c.h.b16 %v5307
    %v6336 = vunpack.c.l.b16 %v5308
    %v6337 = vunpack.c.h.b16 %v5308
    %v6338 = vunpack.c.l.b16 %v5309
    %v6339 = vunpack.c.h.b16 %v5309
    %v6340 = vunpack.c.l.b16 %v5310
    %v6341 = vunpack.c.h.b16 %v5310
    %v6342 = vunpack.c.l.b16 %v5311
    %v6343 = vunpack.c.h.b16 %v5311
    %v6344 = vunpack.c.l.b16 %v5312
    %v6345 = vunpack.c.h.b16 %v5312
    %v6346 = vunpack.c.l.b16 %v5313
    %v6347 = vunpack.c.h.b16 %v5313
    %v6348 = vunpack.c.l.b16 %v5314
    %v6349 = vunpack.c.h.b16 %v5314
    %v6350 = vunpack.c.l.b16 %v5315
    %v6351 = vunpack.c.h.b16 %v5315
    %v6352 = vunpack.c.l.b16 %v5316
    %v6353 = vunpack.c.h.b16 %v5316
    %v6354 = vunpack.c.l.b16 %v5317
    %v6355 = vunpack.c.h.b16 %v5317
    %v6356 = vunpack.c.l.b16 %v5318
    %v6357 = vunpack.c.h.b16 %v5318
    %v6358 = vunpack.c.l.b16 %v5319
    %v6359 = vunpack.c.h.b16 %v5319
    %v6360 = vunpack.c.l.b16 %v5320
    %v6361 = vunpack.c.h.b16 %v5320
    %v6362 = vunpack.c.l.b16 %v5321
    %v6363 = vunpack.c.h.b16 %v5321
    %v6364 = vunpack.c.l.b16 %v5322
    %v6365 = vunpack.c.h.b16 %v5322
    %v6366 = vunpack.c.l.b16 %v5323
    %v6367 = vunpack.c.h.b16 %v5323
    %v6368 = vunpack.c.l.b16 %v5324
    %v6369 = vunpack.c.h.b16 %v5324
    %v6370 = vunpack.c.l.b16 %v5325
    %v6371 = vunpack.c.h.b16 %v5325
    %v6372 = vunpack.c.l.b16 %v5326
    %v6373 = vunpack.c.h.b16 %v5326
    %v6374 = vunpack.c.l.b16 %v5327
    %v6375 = vunpack.c.h.b16 %v5327
    %v6376 = vunpack.c.l.b16 %v5328
    %v6377 = vunpack.c.h.b16 %v5328
    %v6378 = vunpack.c.l.b16 %v5329
    %v6379 = vunpack.c.h.b16 %v5329
    %v6380 = vunpack.c.l.b16 %v5330
    %v6381 = vunpack.c.h.b16 %v5330
    %v6382 = vunpack.c.l.b16 %v5331
    %v6383 = vunpack.c.h.b16 %v5331
    %v6384 = vunpack.c.l.b16 %v5332
    %v6385 = vunpack.c.h.b16 %v5332
    %v6386 = vunpack.c.l.b16 %v5333
    %v6387 = vunpack.c.h.b16 %v5333
    %v6388 = vunpack.c.l.b16 %v5334
    %v6389 = vunpack.c.h.b16 %v5334
    %v6390 = vunpack.c.l.b16 %v5335
    %v6391 = vunpack.c.h.b16 %v5335
    %v6392 = vunpack.c.l.b16 %v5336
    %v6393 = vunpack.c.h.b16 %v5336
    %v6394 = vunpack.c.l.b16 %v5337
    %v6395 = vunpack.c.h.b16 %v5337
    %v6396 = vunpack.c.l.b16 %v5338
    %v6397 = vunpack.c.h.b16 %v5338
    %v6398 = vunpack.c.l.b16 %v5339
    %v6399 = vunpack.c.h.b16 %v5339
    %v6400 = vunpack.c.l.b16 %v5340
    %v6401 = vunpack.c.h.b16 %v5340
    %v6402 = vunpack.c.l.b16 %v5341
    %v6403 = vunpack.c.h.b16 %v5341
    %v6404 = vunpack.c.l.b16 %v5342
    %v6405 = vunpack.c.h.b16 %v5342
    %v6406 = vunpack.c.l.b16 %v5343
    %v6407 = vunpack.c.h.b16 %v5343
    %v6408 = vunpack.c.l.b16 %v5344
    %v6409 = vunpack.c.h.b16 %v5344
    %v6410 = vunpack.c.l.b16 %v5345
    %v6411 = vunpack.c.h.b16 %v5345
    %v6412 = vunpack.c.l.b16 %v5346
    %v6413 = vunpack.c.h.b16 %v5346
    %v6414 = vunpack.c.l.b16 %v5347
    %v6415 = vunpack.c.h.b16 %v5347
    %v6416 = vunpack.c.l.b16 %v5348
    %v6417 = vunpack.c.h.b16 %v5348
    %v6418 = vunpack.c.l.b16 %v5349
    %v6419 = vunpack.c.h.b16 %v5349
    %v6420 = vunpack.c.l.b16 %v5350
    %v6421 = vunpack.c.h.b16 %v5350
    %v6422 = vunpack.c.l.b16 %v5351
    %v6423 = vunpack.c.h.b16 %v5351
    %v6424 = vunpack.c.l.b16 %v5352
    %v6425 = vunpack.c.h.b16 %v5352
    %v6426 = vunpack.c.l.b16 %v5353
    %v6427 = vunpack.c.h.b16 %v5353
    %v6428 = vunpack.c.l.b16 %v5354
    %v6429 = vunpack.c.h.b16 %v5354
    %v6430 = vunpack.c.l.b16 %v5355
    %v6431 = vunpack.c.h.b16 %v5355
    %v6432 = vunpack.c.l.b16 %v5356
    %v6433 = vunpack.c.h.b16 %v5356
    %v6434 = vunpack.c.l.b16 %v5357
    %v6435 = vunpack.c.h.b16 %v5357
    %v6436 = vunpack.c.l.b16 %v5358
    %v6437 = vunpack.c.h.b16 %v5358
    %v6438 = vunpack.c.l.b16 %v5359
    %v6439 = vunpack.c.h.b16 %v5359
    %v6440 = vunpack.c.l.b16 %v5360
    %v6441 = vunpack.c.h.b16 %v5360
    %v6442 = vunpack.c.l.b16 %v5361
    %v6443 = vunpack.c.h.b16 %v5361
    %v6444 = vunpack.c.l.b16 %v5362
    %v6445 = vunpack.c.h.b16 %v5362
    %v6446 = vunpack.c.l.b16 %v5363
    %v6447 = vunpack.c.h.b16 %v5363
    %v6448 = vunpack.c.l.b16 %v5364
    %v6449 = vunpack.c.h.b16 %v5364
    %v6450 = vunpack.c.l.b16 %v5365
    %v6451 = vunpack.c.h.b16 %v5365
    %v6452 = vunpack.c.l.b16 %v5366
    %v6453 = vunpack.c.h.b16 %v5366
    %v6454 = vunpack.c.l.b16 %v5367
    %v6455 = vunpack.c.h.b16 %v5367
    %v6456 = vunpack.c.l.b16 %v5368
    %v6457 = vunpack.c.h.b16 %v5368
    %v6458 = vunpack.c.l.b16 %v5369
    %v6459 = vunpack.c.h.b16 %v5369
    %v6460 = vunpack.c.l.b16 %v5370
    %v6461 = vunpack.c.h.b16 %v5370
    %v6462 = vunpack.c.l.b16 %v5371
    %v6463 = vunpack.c.h.b16 %v5371
    %v6464 = vunpack.c.l.b16 %v5372
    %v6465 = vunpack.c.h.b16 %v5372
    %v6466 = vunpack.c.l.b16 %v5373
    %v6467 = vunpack.c.h.b16 %v5373
    %v6468 = vunpack.c.l.b16 %v5374
    %v6469 = vunpack.c.h.b16 %v5374
    %v6470 = vunpack.c.l.b16 %v5375
    %v6471 = vunpack.c.h.b16 %v5375
    %v6472 = vunpack.c.l.b16 %v5376
    %v6473 = vunpack.c.h.b16 %v5376
    %v6474 = vunpack.c.l.b16 %v5377
    %v6475 = vunpack.c.h.b16 %v5377
    %v6476 = vunpack.c.l.b16 %v5378
    %v6477 = vunpack.c.h.b16 %v5378
    %v6478 = vunpack.c.l.b16 %v5379
    %v6479 = vunpack.c.h.b16 %v5379
    %v6480 = vunpack.c.l.b16 %v5380
    %v6481 = vunpack.c.h.b16 %v5380
    %v6482 = vunpack.c.l.b16 %v5381
    %v6483 = vunpack.c.h.b16 %v5381
    %v6484 = vunpack.c.l.b16 %v5382
    %v6485 = vunpack.c.h.b16 %v5382
    %v6486 = vunpack.c.l.b16 %v5383
    %v6487 = vunpack.c.h.b16 %v5383
    %v6488 = vunpack.c.l.b16 %v5384
    %v6489 = vunpack.c.h.b16 %v5384
    %v6490 = vunpack.c.l.b16 %v5385
    %v6491 = vunpack.c.h.b16 %v5385
    %v6492 = vunpack.c.l.b16 %v5386
    %v6493 = vunpack.c.h.b16 %v5386
    %v6494 = vunpack.c.l.b16 %v5387
    %v6495 = vunpack.c.h.b16 %v5387
    %v6496 = vunpack.c.l.b16 %v5388
    %v6497 = vunpack.c.h.b16 %v5388
    %v6498 = vunpack.c.l.b16 %v5389
    %v6499 = vunpack.c.h.b16 %v5389
    %v6500 = vunpack.c.l.b16 %v5390
    %v6501 = vunpack.c.h.b16 %v5390
    %v6502 = vunpack.c.l.b16 %v5391
    %v6503 = vunpack.c.h.b16 %v5391
    %v6504 = vunpack.c.l.b16 %v5392
    %v6505 = vunpack.c.h.b16 %v5392
    %v6506 = vunpack.c.l.b16 %v5393
    %v6507 = vunpack.c.h.b16 %v5393
    %v6508 = vunpack.c.l.b16 %v5394
    %v6509 = vunpack.c.h.b16 %v5394
    %v6510 = vunpack.c.l.b16 %v5395
    %v6511 = vunpack.c.h.b16 %v5395
    %v6512 = vunpack.c.l.b16 %v5396
    %v6513 = vunpack.c.h.b16 %v5396
    %v6514 = vunpack.c.l.b16 %v5397
    %v6515 = vunpack.c.h.b16 %v5397
    %v6516 = vunpack.c.l.b16 %v5398
    %v6517 = vunpack.c.h.b16 %v5398
    %v6518 = vunpack.c.l.b16 %v5399
    %v6519 = vunpack.c.h.b16 %v5399
    %v6520 = vunpack.c.l.b16 %v5400
    %v6521 = vunpack.c.h.b16 %v5400
    %v6522 = vunpack.c.l.b16 %v5401
    %v6523 = vunpack.c.h.b16 %v5401
    %v6524 = vunpack.c.l.b16 %v5402
    %v6525 = vunpack.c.h.b16 %v5402
    %v6526 = vunpack.c.l.b16 %v5403
    %v6527 = vunpack.c.h.b16 %v5403
    %v6528 = vunpack.c.l.b16 %v5404
    %v6529 = vunpack.c.h.b16 %v5404
    %v6530 = vunpack.c.l.b16 %v5405
    %v6531 = vunpack.c.h.b16 %v5405
    %v6532 = vunpack.c.l.b16 %v5406
    %v6533 = vunpack.c.h.b16 %v5406
    %v6534 = vunpack.c.l.b16 %v5407
    %v6535 = vunpack.c.h.b16 %v5407
    %v6536 = vunpack.c.l.b16 %v5408
    %v6537 = vunpack.c.h.b16 %v5408
    %v6538 = vunpack.c.l.b16 %v5409
    %v6539 = vunpack.c.h.b16 %v5409
    %v6540 = vunpack.c.l.b16 %v5410
    %v6541 = vunpack.c.h.b16 %v5410
    %v6542 = vunpack.c.l.b16 %v5411
    %v6543 = vunpack.c.h.b16 %v5411
    %v6544 = vunpack.c.l.b16 %v5412
    %v6545 = vunpack.c.h.b16 %v5412
    %v6546 = vunpack.c.l.b16 %v5413
    %v6547 = vunpack.c.h.b16 %v5413
    %v6548 = vunpack.c.l.b16 %v5414
    %v6549 = vunpack.c.h.b16 %v5414
    %v6550 = vunpack.c.l.b16 %v5415
    %v6551 = vunpack.c.h.b16 %v5415
    %v6552 = vunpack.c.l.b16 %v5416
    %v6553 = vunpack.c.h.b16 %v5416
    %v6554 = vunpack.c.l.b16 %v5417
    %v6555 = vunpack.c.h.b16 %v5417
    %v6556 = vunpack.c.l.b16 %v5418
    %v6557 = vunpack.c.h.b16 %v5418
    %v6558 = vunpack.c.l.b16 %v5419
    %v6559 = vunpack.c.h.b16 %v5419
    %v6560 = vunpack.c.l.b16 %v5420
    %v6561 = vunpack.c.h.b16 %v5420
    %v6562 = vunpack.c.l.b16 %v5421
    %v6563 = vunpack.c.h.b16 %v5421
    %v6564 = vunpack.c.l.b16 %v5422
    %v6565 = vunpack.c.h.b16 %v5422
    %v6566 = vunpack.c.l.b16 %v5423
    %v6567 = vunpack.c.h.b16 %v5423
    %v6568 = vunpack.c.l.b16 %v5424
    %v6569 = vunpack.c.h.b16 %v5424
    %v6570 = vunpack.c.l.b16 %v5425
    %v6571 = vunpack.c.h.b16 %v5425
    %v6572 = vunpack.c.l.b16 %v5426
    %v6573 = vunpack.c.h.b16 %v5426
    %v6574 = vunpack.c.l.b16 %v5427
    %v6575 = vunpack.c.h.b16 %v5427
    %v6576 = vunpack.c.l.b16 %v5428
    %v6577 = vunpack.c.h.b16 %v5428
    %v6578 = vunpack.c.l.b16 %v5429
    %v6579 = vunpack.c.h.b16 %v5429
    %v6580 = vunpack.c.l.b16 %v5430
    %v6581 = vunpack.c.h.b16 %v5430
    %v6582 = vunpack.c.l.b16 %v5431
    %v6583 = vunpack.c.h.b16 %v5431
    %v6584 = vunpack.c.l.b16 %v5432
    %v6585 = vunpack.c.h.b16 %v5432
    %v6586 = vunpack.c.l.b16 %v5433
    %v6587 = vunpack.c.h.b16 %v5433
    %v6588 = vunpack.c.l.b16 %v5434
    %v6589 = vunpack.c.h.b16 %v5434
    %v6590 = vunpack.c.l.b16 %v5435
    %v6591 = vunpack.c.h.b16 %v5435
    %v6592 = vunpack.c.l.b16 %v5436
    %v6593 = vunpack.c.h.b16 %v5436
    %v6594 = vunpack.c.l.b16 %v5437
    %v6595 = vunpack.c.h.b16 %v5437
    %v6596 = vunpack.c.l.b16 %v5438
    %v6597 = vunpack.c.h.b16 %v5438
    %v6598 = vunpack.c.l.b16 %v5439
    %v6599 = vunpack.c.h.b16 %v5439
    %v6600 = vunpack.c.l.b16 %v5440
    %v6601 = vunpack.c.h.b16 %v5440
    %v6602 = vunpack.c.l.b16 %v5441
    %v6603 = vunpack.c.h.b16 %v5441
    %v6604 = vunpack.c.l.b16 %v5442
    %v6605 = vunpack.c.h.b16 %v5442
    %v6606 = vunpack.c.l.b16 %v5443
    %v6607 = vunpack.c.h.b16 %v5443
    %v6608 = vunpack.c.l.b16 %v5444
    %v6609 = vunpack.c.h.b16 %v5444
    %v6610 = vunpack.c.l.b16 %v5445
    %v6611 = vunpack.c.h.b16 %v5445
    %v6612 = vunpack.c.l.b16 %v5446
    %v6613 = vunpack.c.h.b16 %v5446
    %v6614 = vunpack.c.l.b16 %v5447
    %v6615 = vunpack.c.h.b16 %v5447
    %v6616 = vunpack.c.l.b16 %v5448
    %v6617 = vunpack.c.h.b16 %v5448
    %v6618 = vunpack.c.l.b16 %v5449
    %v6619 = vunpack.c.h.b16 %v5449
    %v6620 = vunpack.c.l.b16 %v5450
    %v6621 = vunpack.c.h.b16 %v5450
    %v6622 = vunpack.c.l.b16 %v5451
    %v6623 = vunpack.c.h.b16 %v5451
    %v6624 = vunpack.c.l.b16 %v5452
    %v6625 = vunpack.c.h.b16 %v5452
    %v6626 = vunpack.c.l.b16 %v5453
    %v6627 = vunpack.c.h.b16 %v5453
    %v6628 = vunpack.c.l.b16 %v5454
    %v6629 = vunpack.c.h.b16 %v5454
    %v6630 = vunpack.c.l.b16 %v5455
    %v6631 = vunpack.c.h.b16 %v5455
    %v6632 = vunpack.c.l.b16 %v5456
    %v6633 = vunpack.c.h.b16 %v5456
    %v6634 = vunpack.c.l.b16 %v5457
    %v6635 = vunpack.c.h.b16 %v5457
    %v6636 = vunpack.c.l.b16 %v5458
    %v6637 = vunpack.c.h.b16 %v5458
    %v6638 = vunpack.c.l.b16 %v5459
    %v6639 = vunpack.c.h.b16 %v5459
    %v6640 = vunpack.c.l.b16 %v5460
    %v6641 = vunpack.c.h.b16 %v5460
    %v6642 = vunpack.c.l.b16 %v5461
    %v6643 = vunpack.c.h.b16 %v5461
    %v6644 = vunpack.c.l.b16 %v5462
    %v6645 = vunpack.c.h.b16 %v5462
    %v6646 = vunpack.c.l.b16 %v5463
    %v6647 = vunpack.c.h.b16 %v5463
    %v6648 = vunpack.c.l.b16 %v5464
    %v6649 = vunpack.c.h.b16 %v5464
    %v6650 = vunpack.c.l.b16 %v5465
    %v6651 = vunpack.c.h.b16 %v5465
    %v6652 = vunpack.c.l.b16 %v5466
    %v6653 = vunpack.c.h.b16 %v5466
    %v6654 = vunpack.c.l.b16 %v5467
    %v6655 = vunpack.c.h.b16 %v5467
    %v6656 = vunpack.c.l.b16 %v5468
    %v6657 = vunpack.c.h.b16 %v5468
    %v6658 = vunpack.c.l.b16 %v5469
    %v6659 = vunpack.c.h.b16 %v5469
    %v6660 = vunpack.c.l.b16 %v5470
    %v6661 = vunpack.c.h.b16 %v5470
    %v6662 = vunpack.c.l.b16 %v5471
    %v6663 = vunpack.c.h.b16 %v5471
    %v6664 = vunpack.c.l.b16 %v5472
    %v6665 = vunpack.c.h.b16 %v5472
    %v6666 = vunpack.c.l.b16 %v5473
    %v6667 = vunpack.c.h.b16 %v5473
    %v6668 = vunpack.c.l.b16 %v5474
    %v6669 = vunpack.c.h.b16 %v5474
    %v6670 = vunpack.c.l.b16 %v5475
    %v6671 = vunpack.c.h.b16 %v5475
    %v6672 = vunpack.c.l.b16 %v5476
    %v6673 = vunpack.c.h.b16 %v5476
    %v6674 = vunpack.c.l.b16 %v5477
    %v6675 = vunpack.c.h.b16 %v5477
    %v6676 = vunpack.c.l.b16 %v5478
    %v6677 = vunpack.c.h.b16 %v5478
    %v6678 = vunpack.c.l.b16 %v5479
    %v6679 = vunpack.c.h.b16 %v5479
    %v6680 = vunpack.c.l.b16 %v5480
    %v6681 = vunpack.c.h.b16 %v5480
    %v6682 = vunpack.c.l.b16 %v5481
    %v6683 = vunpack.c.h.b16 %v5481
    %v6684 = vunpack.c.l.b16 %v5482
    %v6685 = vunpack.c.h.b16 %v5482
    %v6686 = vunpack.c.l.b16 %v5483
    %v6687 = vunpack.c.h.b16 %v5483
    %v6688 = vunpack.c.l.b16 %v5484
    %v6689 = vunpack.c.h.b16 %v5484
    %v6690 = vunpack.c.l.b16 %v5485
    %v6691 = vunpack.c.h.b16 %v5485
    %v6692 = vunpack.c.l.b16 %v5486
    %v6693 = vunpack.c.h.b16 %v5486
    %v6694 = vunpack.c.l.b16 %v5487
    %v6695 = vunpack.c.h.b16 %v5487
    %v6696 = vunpack.c.l.b16 %v5488
    %v6697 = vunpack.c.h.b16 %v5488
    %v6698 = vunpack.c.l.b16 %v5489
    %v6699 = vunpack.c.h.b16 %v5489
    %v6700 = vunpack.c.l.b16 %v5490
    %v6701 = vunpack.c.h.b16 %v5490
    %v6702 = vunpack.c.l.b16 %v5491
    %v6703 = vunpack.c.h.b16 %v5491
    %v6704 = vunpack.c.l.b16 %v5492
    %v6705 = vunpack.c.h.b16 %v5492
    %v6706 = vunpack.c.l.b16 %v5493
    %v6707 = vunpack.c.h.b16 %v5493
    %v6708 = vunpack.c.l.b16 %v5494
    %v6709 = vunpack.c.h.b16 %v5494
    %v6710 = vunpack.c.l.b16 %v5495
    %v6711 = vunpack.c.h.b16 %v5495
    %v6712 = vunpack.c.l.b16 %v5496
    %v6713 = vunpack.c.h.b16 %v5496
    %v6714 = vunpack.c.l.b16 %v5497
    %v6715 = vunpack.c.h.b16 %v5497
    %v6716 = vunpack.c.l.b16 %v5498
    %v6717 = vunpack.c.h.b16 %v5498
    %v6718 = vunpack.c.l.b16 %v5499
    %v6719 = vunpack.c.h.b16 %v5499
    %v6720 = vunpack.c.l.b16 %v5500
    %v6721 = vunpack.c.h.b16 %v5500
    %v6722 = vunpack.c.l.b16 %v5501
    %v6723 = vunpack.c.h.b16 %v5501
    %v6724 = vunpack.c.l.b16 %v5502
    %v6725 = vunpack.c.h.b16 %v5502
    %v6726 = vunpack.c.l.b16 %v5503
    %v6727 = vunpack.c.h.b16 %v5503
    %v6728 = vunpack.c.l.b16 %v5504
    %v6729 = vunpack.c.h.b16 %v5504
    %v6730 = vunpack.c.l.b16 %v5505
    %v6731 = vunpack.c.h.b16 %v5505
    %v6732 = vunpack.c.l.b16 %v5506
    %v6733 = vunpack.c.h.b16 %v5506
    %v6734 = vunpack.c.l.b16 %v5507
    %v6735 = vunpack.c.h.b16 %v5507
    %v6736 = vunpack.c.l.b16 %v5508
    %v6737 = vunpack.c.h.b16 %v5508
    %v6738 = vunpack.c.l.b16 %v5509
    %v6739 = vunpack.c.h.b16 %v5509
    %v6740 = vunpack.c.l.b16 %v5510
    %v6741 = vunpack.c.h.b16 %v5510
    %v6742 = vunpack.c.l.b16 %v5511
    %v6743 = vunpack.c.h.b16 %v5511
    %v6744 = vunpack.c.l.b16 %v5512
    %v6745 = vunpack.c.h.b16 %v5512
    %v6746 = vunpack.c.l.b16 %v5513
    %v6747 = vunpack.c.h.b16 %v5513
    %v6748 = vunpack.c.l.b16 %v5514
    %v6749 = vunpack.c.h.b16 %v5514
    %v6750 = vunpack.c.l.b16 %v5515
    %v6751 = vunpack.c.h.b16 %v5515
    %v6752 = vunpack.c.l.b16 %v5516
    %v6753 = vunpack.c.h.b16 %v5516
    %v6754 = vunpack.c.l.b16 %v5517
    %v6755 = vunpack.c.h.b16 %v5517
    %v6756 = vunpack.c.l.b16 %v5518
    %v6757 = vunpack.c.h.b16 %v5518
    %v6758 = vunpack.c.l.b16 %v5519
    %v6759 = vunpack.c.h.b16 %v5519
    %v6760 = vunpack.c.l.b16 %v5520
    %v6761 = vunpack.c.h.b16 %v5520
    %v6762 = vunpack.c.l.b16 %v5521
    %v6763 = vunpack.c.h.b16 %v5521
    %v6764 = vunpack.c.l.b16 %v5522
    %v6765 = vunpack.c.h.b16 %v5522
    %v6766 = vunpack.c.l.b16 %v5523
    %v6767 = vunpack.c.h.b16 %v5523
    %v6768 = vunpack.c.l.b16 %v5524
    %v6769 = vunpack.c.h.b16 %v5524
    %v6770 = vunpack.c.l.b16 %v5525
    %v6771 = vunpack.c.h.b16 %v5525
    %v6772 = vunpack.c.l.b16 %v5526
    %v6773 = vunpack.c.h.b16 %v5526
    %v6774 = vunpack.c.l.b16 %v5527
    %v6775 = vunpack.c.h.b16 %v5527
    %v6776 = vunpack.c.l.b16 %v5528
    %v6777 = vunpack.c.h.b16 %v5528
    %v6778 = vunpack.c.l.b16 %v5529
    %v6779 = vunpack.c.h.b16 %v5529
    %v6780 = vunpack.c.l.b16 %v5530
    %v6781 = vunpack.c.h.b16 %v5530
    %v6782 = vunpack.c.l.b16 %v5531
    %v6783 = vunpack.c.h.b16 %v5531
    %v6784 = vunpack.c.l.b16 %v5532
    %v6785 = vunpack.c.h.b16 %v5532
    %v6786 = vunpack.c.l.b16 %v5533
    %v6787 = vunpack.c.h.b16 %v5533
    %v6788 = vunpack.c.l.b16 %v5534
    %v6789 = vunpack.c.h.b16 %v5534
    %v6790 = vunpack.c.l.b16 %v5535
    %v6791 = vunpack.c.h.b16 %v5535
    %v6792 = vunpack.c.l.b16 %v5536
    %v6793 = vunpack.c.h.b16 %v5536
    %v6794 = vunpack.c.l.b16 %v5537
    %v6795 = vunpack.c.h.b16 %v5537
    %v6796 = vunpack.c.l.b16 %v5538
    %v6797 = vunpack.c.h.b16 %v5538
    %v6798 = vunpack.c.l.b16 %v5539
    %v6799 = vunpack.c.h.b16 %v5539
    %v6800 = vunpack.c.l.b16 %v5540
    %v6801 = vunpack.c.h.b16 %v5540
    %v6802 = vunpack.c.l.b16 %v5541
    %v6803 = vunpack.c.h.b16 %v5541
    %v6804 = vunpack.c.l.b16 %v5542
    %v6805 = vunpack.c.h.b16 %v5542
    %v6806 = vunpack.c.l.b16 %v5543
    %v6807 = vunpack.c.h.b16 %v5543
    %v6808 = vunpack.c.l.b16 %v5544
    %v6809 = vunpack.c.h.b16 %v5544
    %v6810 = vunpack.c.l.b16 %v5545
    %v6811 = vunpack.c.h.b16 %v5545
    %v6812 = vunpack.c.l.b16 %v5546
    %v6813 = vunpack.c.h.b16 %v5546
    %v6814 = vunpack.c.l.b16 %v5547
    %v6815 = vunpack.c.h.b16 %v5547
    %v6816 = vunpack.c.l.b16 %v5548
    %v6817 = vunpack.c.h.b16 %v5548
    %v6818 = vunpack.c.l.b16 %v5549
    %v6819 = vunpack.c.h.b16 %v5549
    %v6820 = vunpack.c.l.b16 %v5550
    %v6821 = vunpack.c.h.b16 %v5550
    %v6822 = vunpack.c.l.b16 %v5551
    %v6823 = vunpack.c.h.b16 %v5551
    %v6824 = vunpack.c.l.b16 %v5552
    %v6825 = vunpack.c.h.b16 %v5552
    %v6826 = vunpack.c.l.b16 %v5553
    %v6827 = vunpack.c.h.b16 %v5553
    %v6828 = vunpack.c.l.b16 %v5554
    %v6829 = vunpack.c.h.b16 %v5554
    %v6830 = vunpack.c.l.b16 %v5555
    %v6831 = vunpack.c.h.b16 %v5555
    %v6832 = vunpack.c.l.b16 %v5556
    %v6833 = vunpack.c.h.b16 %v5556
    %v6834 = vunpack.c.l.b16 %v5557
    %v6835 = vunpack.c.h.b16 %v5557
    %v6836 = vunpack.c.l.b16 %v5558
    %v6837 = vunpack.c.h.b16 %v5558
    %v6838 = vunpack.c.l.b16 %v5559
    %v6839 = vunpack.c.h.b16 %v5559
    %v6840 = vunpack.c.l.b16 %v5560
    %v6841 = vunpack.c.h.b16 %v5560
    %v6842 = vunpack.c.l.b16 %v5561
    %v6843 = vunpack.c.h.b16 %v5561
    %v6844 = vunpack.c.l.b16 %v5562
    %v6845 = vunpack.c.h.b16 %v5562
    %v6846 = vunpack.c.l.b16 %v5563
    %v6847 = vunpack.c.h.b16 %v5563
    %v6848 = vunpack.c.l.b16 %v5564
    %v6849 = vunpack.c.h.b16 %v5564
    %v6850 = vunpack.c.l.b16 %v5565
    %v6851 = vunpack.c.h.b16 %v5565
    %v6852 = vunpack.c.l.b16 %v5566
    %v6853 = vunpack.c.h.b16 %v5566
    %v6854 = vunpack.c.l.b16 %v5567
    %v6855 = vunpack.c.h.b16 %v5567
    %v6856 = vunpack.c.l.b16 %v5568
    %v6857 = vunpack.c.h.b16 %v5568
    %v6858 = vunpack.c.l.b16 %v5569
    %v6859 = vunpack.c.h.b16 %v5569
    %v6860 = vunpack.c.l.b16 %v5570
    %v6861 = vunpack.c.h.b16 %v5570
    %v6862 = vunpack.c.l.b16 %v5571
    %v6863 = vunpack.c.h.b16 %v5571
    %v6864 = vunpack.c.l.b16 %v5572
    %v6865 = vunpack.c.h.b16 %v5572
    %v6866 = vunpack.c.l.b16 %v5573
    %v6867 = vunpack.c.h.b16 %v5573
    %v6868 = vunpack.c.l.b16 %v5574
    %v6869 = vunpack.c.h.b16 %v5574
    %v6870 = vunpack.c.l.b16 %v5575
    %v6871 = vunpack.c.h.b16 %v5575
    %v6872 = vunpack.c.l.b16 %v5576
    %v6873 = vunpack.c.h.b16 %v5576
    %v6874 = vunpack.c.l.b16 %v5577
    %v6875 = vunpack.c.h.b16 %v5577
    %v6876 = vunpack.c.l.b16 %v5578
    %v6877 = vunpack.c.h.b16 %v5578
    %v6878 = vunpack.c.l.b16 %v5579
    %v6879 = vunpack.c.h.b16 %v5579
    %v6880 = vunpack.c.l.b16 %v5580
    %v6881 = vunpack.c.h.b16 %v5580
    %v6882 = vunpack.c.l.b16 %v5581
    %v6883 = vunpack.c.h.b16 %v5581
    %v6884 = vunpack.c.l.b16 %v5582
    %v6885 = vunpack.c.h.b16 %v5582
    %v6886 = vunpack.c.l.b16 %v5583
    %v6887 = vunpack.c.h.b16 %v5583
    %v6888 = vunpack.c.l.b16 %v5584
    %v6889 = vunpack.c.h.b16 %v5584
    %v6890 = vunpack.c.l.b16 %v5585
    %v6891 = vunpack.c.h.b16 %v5585
    %v6892 = vunpack.c.l.b16 %v5586
    %v6893 = vunpack.c.h.b16 %v5586
    %v6894 = vunpack.c.l.b16 %v5587
    %v6895 = vunpack.c.h.b16 %v5587
    %v6896 = vunpack.c.l.b16 %v5588
    %v6897 = vunpack.c.h.b16 %v5588
    %v6898 = vunpack.c.l.b16 %v5589
    %v6899 = vunpack.c.h.b16 %v5589
    %v6900 = vunpack.c.l.b16 %v5590
    %v6901 = vunpack.c.h.b16 %v5590
    %v6902 = vunpack.c.l.b16 %v5591
    %v6903 = vunpack.c.h.b16 %v5591
    %v6904 = vunpack.c.l.b16 %v5592
    %v6905 = vunpack.c.h.b16 %v5592
    %v6906 = vunpack.c.l.b16 %v5593
    %v6907 = vunpack.c.h.b16 %v5593
    %v6908 = vunpack.c.l.b16 %v5594
    %v6909 = vunpack.c.h.b16 %v5594
    %v6910 = vunpack.c.l.b16 %v5595
    %v6911 = vunpack.c.h.b16 %v5595
    %v6912 = vunpack.c.l.b16 %v5596
    %v6913 = vunpack.c.h.b16 %v5596
    %v6914 = vunpack.c.l.b16 %v5597
    %v6915 = vunpack.c.h.b16 %v5597
    %v6916 = vunpack.c.l.b16 %v5598
    %v6917 = vunpack.c.h.b16 %v5598
    %v6918 = vunpack.c.l.b16 %v5599
    %v6919 = vunpack.c.h.b16 %v5599
    %v6920 = vunpack.c.l.b16 %v5600
    %v6921 = vunpack.c.h.b16 %v5600
    %v6922 = vunpack.c.l.b16 %v5601
    %v6923 = vunpack.c.h.b16 %v5601
    %v6924 = vunpack.c.l.b16 %v5602
    %v6925 = vunpack.c.h.b16 %v5602
    %v6926 = vunpack.c.l.b16 %v5603
    %v6927 = vunpack.c.h.b16 %v5603
    %v6928 = vunpack.c.l.b16 %v5604
    %v6929 = vunpack.c.h.b16 %v5604
    %v6930 = vunpack.c.l.b16 %v5605
    %v6931 = vunpack.c.h.b16 %v5605
    %v6932 = vunpack.c.l.b16 %v5606
    %v6933 = vunpack.c.h.b16 %v5606
    %v6934 = vunpack.c.l.b16 %v5607
    %v6935 = vunpack.c.h.b16 %v5607
    %v6936 = vunpack.c.l.b16 %v5608
    %v6937 = vunpack.c.h.b16 %v5608
    %v6938 = vunpack.c.l.b16 %v5609
    %v6939 = vunpack.c.h.b16 %v5609
    %v6940 = vunpack.c.l.b16 %v5610
    %v6941 = vunpack.c.h.b16 %v5610
    %v6942 = vunpack.c.l.b16 %v5611
    %v6943 = vunpack.c.h.b16 %v5611
    %v6944 = vunpack.c.l.b16 %v5612
    %v6945 = vunpack.c.h.b16 %v5612
    %v6946 = vunpack.c.l.b16 %v5613
    %v6947 = vunpack.c.h.b16 %v5613
    %v6948 = vunpack.c.l.b16 %v5614
    %v6949 = vunpack.c.h.b16 %v5614
    %v6950 = vunpack.c.l.b16 %v5615
    %v6951 = vunpack.c.h.b16 %v5615
    %v6952 = vunpack.c.l.b16 %v5616
    %v6953 = vunpack.c.h.b16 %v5616
    %v6954 = vunpack.c.l.b16 %v5617
    %v6955 = vunpack.c.h.b16 %v5617
    %v6956 = vunpack.c.l.b16 %v5618
    %v6957 = vunpack.c.h.b16 %v5618
    %v6958 = vunpack.c.l.b16 %v5619
    %v6959 = vunpack.c.h.b16 %v5619
    %v6960 = vunpack.c.l.b16 %v5620
    %v6961 = vunpack.c.h.b16 %v5620
    %v6962 = vunpack.c.l.b16 %v5621
    %v6963 = vunpack.c.h.b16 %v5621
    %v6964 = vunpack.c.l.b16 %v5622
    %v6965 = vunpack.c.h.b16 %v5622
    %v6966 = vunpack.c.l.b16 %v5623
    %v6967 = vunpack.c.h.b16 %v5623
    %v6968 = vunpack.c.l.b16 %v5624
    %v6969 = vunpack.c.h.b16 %v5624
    %v6970 = vunpack.c.l.b16 %v5625
    %v6971 = vunpack.c.h.b16 %v5625
    %v6972 = vunpack.c.l.b16 %v5626
    %v6973 = vunpack.c.h.b16 %v5626
    %v6974 = vunpack.c.l.b16 %v5627
    %v6975 = vunpack.c.h.b16 %v5627
    %v6976 = vunpack.c.l.b16 %v5628
    %v6977 = vunpack.c.h.b16 %v5628
    %v6978 = vunpack.c.l.b16 %v5629
    %v6979 = vunpack.c.h.b16 %v5629
    %v6980 = vunpack.c.l.b16 %v5630
    %v6981 = vunpack.c.h.b16 %v5630
    %v6982 = vunpack.c.l.b16 %v5631
    %v6983 = vunpack.c.h.b16 %v5631
    %v6984 = vunpack.c.l.b16 %v5632
    %v6985 = vunpack.c.h.b16 %v5632
    %v6986 = vunpack.c.l.b16 %v5633
    %v6987 = vunpack.c.h.b16 %v5633
    %v6988 = vunpack.c.l.b16 %v5634
    %v6989 = vunpack.c.h.b16 %v5634
    %v6990 = vunpack.c.l.b16 %v5635
    %v6991 = vunpack.c.h.b16 %v5635
    %v6992 = vunpack.c.l.b16 %v5636
    %v6993 = vunpack.c.h.b16 %v5636
    %v6994 = vunpack.c.l.b16 %v5637
    %v6995 = vunpack.c.h.b16 %v5637
    %v6996 = vunpack.c.l.b16 %v5638
    %v6997 = vunpack.c.h.b16 %v5638
    %v6998 = vunpack.c.l.b16 %v5639
    %v6999 = vunpack.c.h.b16 %v5639
    %v7000 = vunpack.c.l.b16 %v5640
    %v7001 = vunpack.c.h.b16 %v5640
    %v7002 = vunpack.c.l.b16 %v5641
    %v7003 = vunpack.c.h.b16 %v5641
    %v7004 = vunpack.c.l.b16 %v5642
    %v7005 = vunpack.c.h.b16 %v5642
    %v7006 = vunpack.c.l.b16 %v5643
    %v7007 = vunpack.c.h.b16 %v5643
    %v7008 = vunpack.c.l.b16 %v5644
    %v7009 = vunpack.c.h.b16 %v5644
    %v7010 = vunpack.c.l.b16 %v5645
    %v7011 = vunpack.c.h.b16 %v5645
    %v7012 = vunpack.c.l.b16 %v5646
    %v7013 = vunpack.c.h.b16 %v5646
    %v7014 = vunpack.c.l.b16 %v5647
    %v7015 = vunpack.c.h.b16 %v5647
    %v7016 = vunpack.c.l.b16 %v5648
    %v7017 = vunpack.c.h.b16 %v5648
    %v7018 = vunpack.c.l.b16 %v5649
    %v7019 = vunpack.c.h.b16 %v5649
    %v7020 = vunpack.c.l.b16 %v5650
    %v7021 = vunpack.c.h.b16 %v5650
    %v7022 = vunpack.c.l.b16 %v5651
    %v7023 = vunpack.c.h.b16 %v5651
    %v7024 = vunpack.c.l.b16 %v5652
    %v7025 = vunpack.c.h.b16 %v5652
    %v7026 = vunpack.c.l.b16 %v5653
    %v7027 = vunpack.c.h.b16 %v5653
    %v7028 = vunpack.c.l.b16 %v5654
    %v7029 = vunpack.c.h.b16 %v5654
    %v7030 = vunpack.c.l.b16 %v5655
    %v7031 = vunpack.c.h.b16 %v5655
    %v7032 = vunpack.c.l.b16 %v5656
    %v7033 = vunpack.c.h.b16 %v5656
    %v7034 = vunpack.c.l.b16 %v5657
    %v7035 = vunpack.c.h.b16 %v5657
    %v7036 = vunpack.c.l.b16 %v5658
    %v7037 = vunpack.c.h.b16 %v5658
    %v7038 = vunpack.c.l.b16 %v5659
    %v7039 = vunpack.c.h.b16 %v5659
    %v7040 = vunpack.c.l.b16 %v5660
    %v7041 = vunpack.c.h.b16 %v5660
    %v7042 = vunpack.c.l.b16 %v5661
    %v7043 = vunpack.c.h.b16 %v5661
    %v7044 = vunpack.c.l.b16 %v5662
    %v7045 = vunpack.c.h.b16 %v5662
    %v7046 = vunpack.c.l.b16 %v5663
    %v7047 = vunpack.c.h.b16 %v5663
    %v7048 = vunpack.c.l.b16 %v5664
    %v7049 = vunpack.c.h.b16 %v5664
    %v7050 = vunpack.c.l.b16 %v5665
    %v7051 = vunpack.c.h.b16 %v5665
    %v7052 = vunpack.c.l.b16 %v5666
    %v7053 = vunpack.c.h.b16 %v5666
    %v7054 = vunpack.c.l.b16 %v5667
    %v7055 = vunpack.c.h.b16 %v5667
    %v7056 = vunpack.c.l.b16 %v5668
    %v7057 = vunpack.c.h.b16 %v5668
    %v7058 = vunpack.c.l.b16 %v5669
    %v7059 = vunpack.c.h.b16 %v5669
    %v7060 = vunpack.c.l.b16 %v5670
    %v7061 = vunpack.c.h.b16 %v5670
    %v7062 = vunpack.c.l.b16 %v5671
    %v7063 = vunpack.c.h.b16 %v5671
    %v7064 = vunpack.c.l.b16 %v5672
    %v7065 = vunpack.c.h.b16 %v5672
    %v7066 = vunpack.c.l.b16 %v5673
    %v7067 = vunpack.c.h.b16 %v5673
    %v7068 = vunpack.c.l.b16 %v5674
    %v7069 = vunpack.c.h.b16 %v5674
    %v7070 = vunpack.c.l.b16 %v5675
    %v7071 = vunpack.c.h.b16 %v5675
    %v7072 = vunpack.c.l.b16 %v5676
    %v7073 = vunpack.c.h.b16 %v5676
    %v7074 = vunpack.c.l.b16 %v5677
    %v7075 = vunpack.c.h.b16 %v5677
    %v7076 = vunpack.c.l.b16 %v5678
    %v7077 = vunpack.c.h.b16 %v5678
    %v7078 = vunpack.c.l.b16 %v5679
    %v7079 = vunpack.c.h.b16 %v5679
    %v7080 = vunpack.c.l.b16 %v5680
    %v7081 = vunpack.c.h.b16 %v5680
    %v7082 = vunpack.c.l.b16 %v5681
    %v7083 = vunpack.c.h.b16 %v5681
    %v7084 = vunpack.c.l.b16 %v5682
    %v7085 = vunpack.c.h.b16 %v5682
    %v7086 = vunpack.c.l.b16 %v5683
    %v7087 = vunpack.c.h.b16 %v5683
    %v7088 = vunpack.c.l.b16 %v5684
    %v7089 = vunpack.c.h.b16 %v5684
    %v7090 = vunpack.c.l.b16 %v5685
    %v7091 = vunpack.c.h.b16 %v5685
    %v7092 = vunpack.c.l.b16 %v5686
    %v7093 = vunpack.c.h.b16 %v5686
    %v7094 = vunpack.c.l.b16 %v5687
    %v7095 = vunpack.c.h.b16 %v5687
    %v7096 = vunpack.c.l.b16 %v5688
    %v7097 = vunpack.c.h.b16 %v5688
    %v7098 = vunpack.c.l.b16 %v5689
    %v7099 = vunpack.c.h.b16 %v5689
    %v7100 = vunpack.c.l.b16 %v5690
    %v7101 = vunpack.c.h.b16 %v5690
    %v7102 = vunpack.c.l.b16 %v5691
    %v7103 = vunpack.c.h.b16 %v5691
    %v7104 = vunpack.c.l.b16 %v5692
    %v7105 = vunpack.c.h.b16 %v5692
    %v7106 = vunpack.c.l.b16 %v5693
    %v7107 = vunpack.c.h.b16 %v5693
    %v7108 = vunpack.c.l.b16 %v5694
    %v7109 = vunpack.c.h.b16 %v5694
    %v7110 = vunpack.c.l.b16 %v5695
    %v7111 = vunpack.c.h.b16 %v5695
    %v7112 = vunpack.c.l.b16 %v5696
    %v7113 = vunpack.c.h.b16 %v5696
    %v7114 = vunpack.c.l.b16 %v5697
    %v7115 = vunpack.c.h.b16 %v5697
    %v7116 = vunpack.c.l.b16 %v5698
    %v7117 = vunpack.c.h.b16 %v5698
    %v7118 = vunpack.c.l.b16 %v5699
    %v7119 = vunpack.c.h.b16 %v5699
    %v7120 = vunpack.c.l.b16 %v5700
    %v7121 = vunpack.c.h.b16 %v5700
    %v7122 = vunpack.c.l.b16 %v5701
    %v7123 = vunpack.c.h.b16 %v5701
    %v7124 = vunpack.c.l.b16 %v5702
    %v7125 = vunpack.c.h.b16 %v5702
    %v7126 = vunpack.c.l.b16 %v5703
    %v7127 = vunpack.c.h.b16 %v5703
    %v7128 = vunpack.c.l.b16 %v5704
    %v7129 = vunpack.c.h.b16 %v5704
    %v7130 = vunpack.c.l.b16 %v5705
    %v7131 = vunpack.c.h.b16 %v5705
    %v7132 = vunpack.c.l.b16 %v5706
    %v7133 = vunpack.c.h.b16 %v5706
    %v7134 = vunpack.c.l.b16 %v5707
    %v7135 = vunpack.c.h.b16 %v5707
    %v7136 = vunpack.c.l.b16 %v5708
    %v7137 = vunpack.c.h.b16 %v5708
    %v7138 = vunpack.c.l.b16 %v5709
    %v7139 = vunpack.c.h.b16 %v5709
    %v7140 = vunpack.c.l.b16 %v5710
    %v7141 = vunpack.c.h.b16 %v5710
    %v7142 = vunpack.c.l.b16 %v5711
    %v7143 = vunpack.c.h.b16 %v5711
    %v7144 = vunpack.c.l.b16 %v5712
    %v7145 = vunpack.c.h.b16 %v5712
    %v7146 = vunpack.c.l.b16 %v5713
    %v7147 = vunpack.c.h.b16 %v5713
    %v7148 = vunpack.c.l.b16 %v5714
    %v7149 = vunpack.c.h.b16 %v5714
    %v7150 = vunpack.c.l.b16 %v5715
    %v7151 = vunpack.c.h.b16 %v5715
    %v7152 = vunpack.c.l.b16 %v5716
    %v7153 = vunpack.c.h.b16 %v5716
    %v7154 = vunpack.c.l.b16 %v5717
    %v7155 = vunpack.c.h.b16 %v5717
    %v7156 = vunpack.c.l.b16 %v5718
    %v7157 = vunpack.c.h.b16 %v5718
    %v7158 = vunpack.c.l.b16 %v5719
    %v7159 = vunpack.c.h.b16 %v5719
    %v7160 = vunpack.c.l.b16 %v5720
    %v7161 = vunpack.c.h.b16 %v5720
    %v7162 = vunpack.c.l.b16 %v5721
    %v7163 = vunpack.c.h.b16 %v5721
    %v7164 = vunpack.c.l.b16 %v5722
    %v7165 = vunpack.c.h.b16 %v5722
    %v7166 = vunpack.c.l.b16 %v5723
    %v7167 = vunpack.c.h.b16 %v5723
    %v7168 = vunpack.c.l.b16 %v5724
    %v7169 = vunpack.c.h.b16 %v5724
    %v7170 = vunpack.c.l.b16 %v5725
    %v7171 = vunpack.c.h.b16 %v5725
    %v7172 = vunpack.c.l.b16 %v5726
    %v7173 = vunpack.c.h.b16 %v5726
    %v7174 = vunpack.c.l.b16 %v5727
    %v7175 = vunpack.c.h.b16 %v5727
    %v7176 = vunpack.c.l.b16 %v5728
    %v7177 = vunpack.c.h.b16 %v5728
    %v7178 = vunpack.c.l.b16 %v5729
    %v7179 = vunpack.c.h.b16 %v5729
    %v7180 = vunpack.c.l.b16 %v5730
    %v7181 = vunpack.c.h.b16 %v5730
    %v7182 = vunpack.c.l.b16 %v5731
    %v7183 = vunpack.c.h.b16 %v5731
    %v7184 = vunpack.c.l.b16 %v5732
    %v7185 = vunpack.c.h.b16 %v5732
    %v7186 = vunpack.c.l.b16 %v5733
    %v7187 = vunpack.c.h.b16 %v5733
    %v7188 = vunpack.c.l.b16 %v5734
    %v7189 = vunpack.c.h.b16 %v5734
    %v7190 = vunpack.c.l.b16 %v5735
    %v7191 = vunpack.c.h.b16 %v5735
    %v7192 = vunpack.c.l.b16 %v5736
    %v7193 = vunpack.c.h.b16 %v5736
    %v7194 = vunpack.c.l.b16 %v5737
    %v7195 = vunpack.c.h.b16 %v5737
    %v7196 = vunpack.c.l.b16 %v5738
    %v7197 = vunpack.c.h.b16 %v5738
    %v7198 = vunpack.c.l.b16 %v5739
    %v7199 = vunpack.c.h.b16 %v5739
    %v7200 = vunpack.c.l.b16 %v5740
    %v7201 = vunpack.c.h.b16 %v5740
    %v7202 = vunpack.c.l.b16 %v5741
    %v7203 = vunpack.c.h.b16 %v5741
    %v7204 = vunpack.c.l.b16 %v5742
    %v7205 = vunpack.c.h.b16 %v5742
    %v7206 = vunpack.c.l.b16 %v5743
    %v7207 = vunpack.c.h.b16 %v5743
    %v7208 = vunpack.c.l.b16 %v5744
    %v7209 = vunpack.c.h.b16 %v5744
    %v7210 = vunpack.c.l.b16 %v5745
    %v7211 = vunpack.c.h.b16 %v5745
    %v7212 = vunpack.c.l.b16 %v5746
    %v7213 = vunpack.c.h.b16 %v5746
    %v7214 = vunpack.c.l.b16 %v5747
    %v7215 = vunpack.c.h.b16 %v5747
    %v7216 = vunpack.c.l.b16 %v5748
    %v7217 = vunpack.c.h.b16 %v5748
    %v7218 = vunpack.c.l.b16 %v5749
    %v7219 = vunpack.c.h.b16 %v5749
    %v7220 = vunpack.c.l.b16 %v5750
    %v7221 = vunpack.c.h.b16 %v5750
    %v7222 = vunpack.c.l.b16 %v5751
    %v7223 = vunpack.c.h.b16 %v5751
    %v7224 = vunpack.c.l.b16 %v5752
    %v7225 = vunpack.c.h.b16 %v5752
    %v7226 = vunpack.c.l.b16 %v5753
    %v7227 = vunpack.c.h.b16 %v5753
    %v7228 = vunpack.c.l.b16 %v5754
    %v7229 = vunpack.c.h.b16 %v5754
    %v7230 = vunpack.c.l.b16 %v5755
    %v7231 = vunpack.c.h.b16 %v5755
    %v7232 = vunpack.c.l.b16 %v5756
    %v7233 = vunpack.c.h.b16 %v5756
    %v7234 = vunpack.c.l.b16 %v5757
    %v7235 = vunpack.c.h.b16 %v5757
    %v7236 = vunpack.c.l.b16 %v5758
    %v7237 = vunpack.c.h.b16 %v5758
    %v7238 = vunpack.c.l.b16 %v5759
    %v7239 = vunpack.c.h.b16 %v5759
    %v7240 = vunpack.c.l.b16 %v5760
    %v7241 = vunpack.c.h.b16 %v5760
    %v7242 = vunpack.c.l.b16 %v5761
    %v7243 = vunpack.c.h.b16 %v5761
    %v7244 = vunpack.c.l.b16 %v5762
    %v7245 = vunpack.c.h.b16 %v5762
    %v7246 = vunpack.c.l.b16 %v5763
    %v7247 = vunpack.c.h.b16 %v5763
    %v7248 = vunpack.c.l.b16 %v5764
    %v7249 = vunpack.c.h.b16 %v5764
    %v7250 = vunpack.c.l.b16 %v5765
    %v7251 = vunpack.c.h.b16 %v5765
    %v7252 = vunpack.c.l.b16 %v5766
    %v7253 = vunpack.c.h.b16 %v5766
    %v7254 = vunpack.c.l.b16 %v5767
    %v7255 = vunpack.c.h.b16 %v5767
    %v7256 = vunpack.c.l.b16 %v5768
    %v7257 = vunpack.c.h.b16 %v5768
    %v7258 = vunpack.c.l.b16 %v5769
    %v7259 = vunpack.c.h.b16 %v5769
    %v7260 = vunpack.c.l.b16 %v5770
    %v7261 = vunpack.c.h.b16 %v5770
    %v7262 = vunpack.c.l.b16 %v5771
    %v7263 = vunpack.c.h.b16 %v5771
    %v7264 = vunpack.c.l.b16 %v5772
    %v7265 = vunpack.c.h.b16 %v5772
    %v7266 = vunpack.c.l.b16 %v5773
    %v7267 = vunpack.c.h.b16 %v5773
    %v7268 = vunpack.c.l.b16 %v5774
    %v7269 = vunpack.c.h.b16 %v5774
    %v7270 = vunpack.c.l.b16 %v5775
    %v7271 = vunpack.c.h.b16 %v5775
    %v7272 = vunpack.c.l.b16 %v5776
    %v7273 = vunpack.c.h.b16 %v5776
    %v7274 = vunpack.c.l.b16 %v5777
    %v7275 = vunpack.c.h.b16 %v5777
    %v7276 = vunpack.c.l.b16 %v5778
    %v7277 = vunpack.c.h.b16 %v5778
    %v7278 = vunpack.c.l.b16 %v5779
    %v7279 = vunpack.c.h.b16 %v5779
    %v7280 = vunpack.c.l.b16 %v5780
    %v7281 = vunpack.c.h.b16 %v5780
    %v7282 = vunpack.c.l.b16 %v5781
    %v7283 = vunpack.c.h.b16 %v5781
    %v7284 = vunpack.c.l.b16 %v5782
    %v7285 = vunpack.c.h.b16 %v5782
    %v7286 = vunpack.c.l.b16 %v5783
    %v7287 = vunpack.c.h.b16 %v5783
    %v7288 = vunpack.c.l.b16 %v5784
    %v7289 = vunpack.c.h.b16 %v5784
    %v7290 = vunpack.c.l.b16 %v5785
    %v7291 = vunpack.c.h.b16 %v5785
    %v7292 = vunpack.c.l.b16 %v5786
    %v7293 = vunpack.c.h.b16 %v5786
    %v7294 = vunpack.c.l.b16 %v5787
    %v7295 = vunpack.c.h.b16 %v5787
    %v7296 = vunpack.c.l.b16 %v5788
    %v7297 = vunpack.c.h.b16 %v5788
    %v7298 = vunpack.c.l.b16 %v5789
    %v7299 = vunpack.c.h.b16 %v5789
    %v7300 = vunpack.c.l.b16 %v5790
    %v7301 = vunpack.c.h.b16 %v5790
    %v7302 = vunpack.c.l.b16 %v5791
    %v7303 = vunpack.c.h.b16 %v5791
    %v7304 = vunpack.c.l.b16 %v5792
    %v7305 = vunpack.c.h.b16 %v5792
    %v7306 = vunpack.c.l.b16 %v5793
    %v7307 = vunpack.c.h.b16 %v5793
    %v7308 = vunpack.c.l.b16 %v5794
    %v7309 = vunpack.c.h.b16 %v5794
    %v7310 = vunpack.c.l.b16 %v5795
    %v7311 = vunpack.c.h.b16 %v5795
    %v7312 = vunpack.c.l.b16 %v5796
    %v7313 = vunpack.c.h.b16 %v5796
    %v7314 = vunpack.c.l.b16 %v5797
    %v7315 = vunpack.c.h.b16 %v5797
    %v7316 = vunpack.c.l.b16 %v5798
    %v7317 = vunpack.c.h.b16 %v5798
    %v7318 = vunpack.c.l.b16 %v5799
    %v7319 = vunpack.c.h.b16 %v5799
    %v7320 = vunpack.c.l.b16 %v5800
    %v7321 = vunpack.c.h.b16 %v5800
    %v7322 = vunpack.c.l.b16 %v5801
    %v7323 = vunpack.c.h.b16 %v5801
    %v7324 = vunpack.c.l.b16 %v5802
    %v7325 = vunpack.c.h.b16 %v5802
    %v7326 = vunpack.c.l.b16 %v5803
    %v7327 = vunpack.c.h.b16 %v5803
    %v7328 = vunpack.c.l.b16 %v5804
    %v7329 = vunpack.c.h.b16 %v5804
    %v7330 = vunpack.c.l.b16 %v5805
    %v7331 = vunpack.c.h.b16 %v5805
    %v7332 = vunpack.c.l.b16 %v5806
    %v7333 = vunpack.c.h.b16 %v5806
    %v7334 = vunpack.c.l.b16 %v5807
    %v7335 = vunpack.c.h.b16 %v5807
    %v7336 = vunpack.c.l.b16 %v5808
    %v7337 = vunpack.c.h.b16 %v5808
    %v7338 = vunpack.c.l.b16 %v5809
    %v7339 = vunpack.c.h.b16 %v5809
    %v7340 = vunpack.c.l.b16 %v5810
    %v7341 = vunpack.c.h.b16 %v5810
    %v7342 = vunpack.c.l.b16 %v5811
    %v7343 = vunpack.c.h.b16 %v5811
    %v7344 = vunpack.c.l.b16 %v5812
    %v7345 = vunpack.c.h.b16 %v5812
    %v7346 = vunpack.c.l.b16 %v5813
    %v7347 = vunpack.c.h.b16 %v5813
    %v7348 = vunpack.c.l.b16 %v5814
    %v7349 = vunpack.c.h.b16 %v5814
    %v7350 = vunpack.c.l.b16 %v5815
    %v7351 = vunpack.c.h.b16 %v5815
    %v7352 = vpack.c.b16 %v6336, %v6328
    %v7353 = vpack.c.b16 %v6337, %v6329
    %v7354 = vpack.c.b16 %v6338, %v6330
    %v7355 = vpack.c.b16 %v6339, %v6331
    %v7356 = vpack.c.b16 %v6340, %v6332
    %v7357 = vpack.c.b16 %v6341, %v6333
    %v7358 = vpack.c.b16 %v6342, %v6334
    %v7359 = vpack.c.b16 %v6343, %v6335
    %v7360 = vpack.c.b16 %v6352, %v6344
    %v7361 = vpack.c.b16 %v6353, %v6345
    %v7362 = vpack.c.b16 %v6354, %v6346
    %v7363 = vpack.c.b16 %v6355, %v6347
    %v7364 = vpack.c.b16 %v6356, %v6348
    %v7365 = vpack.c.b16 %v6357, %v6349
    %v7366 = vpack.c.b16 %v6358, %v6350
    %v7367 = vpack.c.b16 %v6359, %v6351
    %v7368 = vpack.c.b16 %v6368, %v6360
    %v7369 = vpack.c.b16 %v6369, %v6361
    %v7370 = vpack.c.b16 %v6370, %v6362
    %v7371 = vpack.c.b16 %v6371, %v6363
    %v7372 = vpack.c.b16 %v6372, %v6364
    %v7373 = vpack.c.b16 %v6373, %v6365
    %v7374 = vpack.c.b16 %v6374, %v6366
    %v7375 = vpack.c.b16 %v6375, %v6367
    %v7376 = vpack.c.b16 %v6384, %v6376
    %v7377 = vpack.c.b16 %v6385, %v6377
    %v7378 = vpack.c.b16 %v6386, %v6378
    %v7379 = vpack.c.b16 %v6387, %v6379
    %v7380 = vpack.c.b16 %v6388, %v6380
    %v7381 = vpack.c.b16 %v6389, %v6381
    %v7382 = vpack.c.b16 %v6390, %v6382
    %v7383 = vpack.c.b16 %v6391, %v6383
    %v7384 = vpack.c.b16 %v6400, %v6392
    %v7385 = vpack.c.b16 %v6401, %v6393
    %v7386 = vpack.c.b16 %v6402, %v6394
    %v7387 = vpack.c.b16 %v6403, %v6395
    %v7388 = vpack.c.b16 %v6404, %v6396
    %v7389 = vpack.c.b16 %v6405, %v6397
    %v7390 = vpack.c.b16 %v6406, %v6398
    %v7391 = vpack.c.b16 %v6407, %v6399
    %v7392 = vpack.c.b16 %v6416, %v6408
    %v7393 = vpack.c.b16 %v6417, %v6409
    %v7394 = vpack.c.b16 %v6418, %v6410
    %v7395 = vpack.c.b16 %v6419, %v6411
    %v7396 = vpack.c.b16 %v6420, %v6412
    %v7397 = vpack.c.b16 %v6421, %v6413
    %v7398 = vpack.c.b16 %v6422, %v6414
    %v7399 = vpack.c.b16 %v6423, %v6415
    %v7400 = vpack.c.b16 %v6432, %v6424
    %v7401 = vpack.c.b16 %v6433, %v6425
    %v7402 = vpack.c.b16 %v6434, %v6426
    %v7403 = vpack.c.b16 %v6435, %v6427
    %v7404 = vpack.c.b16 %v6436, %v6428
    %v7405 = vpack.c.b16 %v6437, %v6429
    %v7406 = vpack.c.b16 %v6438, %v6430
    %v7407 = vpack.c.b16 %v6439, %v6431
    %v7408 = vpack.c.b16 %v6448, %v6440
    %v7409 = vpack.c.b16 %v6449, %v6441
    %v7410 = vpack.c.b16 %v6450, %v6442
    %v7411 = vpack.c.b16 %v6451, %v6443
    %v7412 = vpack.c.b16 %v6452, %v6444
    %v7413 = vpack.c.b16 %v6453, %v6445
    %v7414 = vpack.c.b16 %v6454, %v6446
    %v7415 = vpack.c.b16 %v6455, %v6447
    %v7416 = vpack.c.b16 %v6464, %v6456
    %v7417 = vpack.c.b16 %v6465, %v6457
    %v7418 = vpack.c.b16 %v6466, %v6458
    %v7419 = vpack.c.b16 %v6467, %v6459
    %v7420 = vpack.c.b16 %v6468, %v6460
    %v7421 = vpack.c.b16 %v6469, %v6461
    %v7422 = vpack.c.b16 %v6470, %v6462
    %v7423 = vpack.c.b16 %v6471, %v6463
    %v7424 = vpack.c.b16 %v6480, %v6472
    %v7425 = vpack.c.b16 %v6481, %v6473
    %v7426 = vpack.c.b16 %v6482, %v6474
    %v7427 = vpack.c.b16 %v6483, %v6475
    %v7428 = vpack.c.b16 %v6484, %v6476
    %v7429 = vpack.c.b16 %v6485, %v6477
    %v7430 = vpack.c.b16 %v6486, %v6478
    %v7431 = vpack.c.b16 %v6487, %v6479
    %v7432 = vpack.c.b16 %v6496, %v6488
    %v7433 = vpack.c.b16 %v6497, %v6489
    %v7434 = vpack.c.b16 %v6498, %v6490
    %v7435 = vpack.c.b16 %v6499, %v6491
    %v7436 = vpack.c.b16 %v6500, %v6492
    %v7437 = vpack.c.b16 %v6501, %v6493
    %v7438 = vpack.c.b16 %v6502, %v6494
    %v7439 = vpack.c.b16 %v6503, %v6495
    %v7440 = vpack.c.b16 %v6512, %v6504
    %v7441 = vpack.c.b16 %v6513, %v6505
    %v7442 = vpack.c.b16 %v6514, %v6506
    %v7443 = vpack.c.b16 %v6515, %v6507
    %v7444 = vpack.c.b16 %v6516, %v6508
    %v7445 = vpack.c.b16 %v6517, %v6509
    %v7446 = vpack.c.b16 %v6518, %v6510
    %v7447 = vpack.c.b16 %v6519, %v6511
    %v7448 = vpack.c.b16 %v6528, %v6520
    %v7449 = vpack.c.b16 %v6529, %v6521
    %v7450 = vpack.c.b16 %v6530, %v6522
    %v7451 = vpack.c.b16 %v6531, %v6523
    %v7452 = vpack.c.b16 %v6532, %v6524
    %v7453 = vpack.c.b16 %v6533, %v6525
    %v7454 = vpack.c.b16 %v6534, %v6526
    %v7455 = vpack.c.b16 %v6535, %v6527
    %v7456 = vpack.c.b16 %v6544, %v6536
    %v7457 = vpack.c.b16 %v6545, %v6537
    %v7458 = vpack.c.b16 %v6546, %v6538
    %v7459 = vpack.c.b16 %v6547, %v6539
    %v7460 = vpack.c.b16 %v6548, %v6540
    %v7461 = vpack.c.b16 %v6549, %v6541
    %v7462 = vpack.c.b16 %v6550, %v6542
    %v7463 = vpack.c.b16 %v6551, %v6543
    %v7464 = vpack.c.b16 %v6560, %v6552
    %v7465 = vpack.c.b16 %v6561, %v6553
    %v7466 = vpack.c.b16 %v6562, %v6554
    %v7467 = vpack.c.b16 %v6563, %v6555
    %v7468 = vpack.c.b16 %v6564, %v6556
    %v7469 = vpack.c.b16 %v6565, %v6557
    %v7470 = vpack.c.b16 %v6566, %v6558
    %v7471 = vpack.c.b16 %v6567, %v6559
    %v7472 = vpack.c.b16 %v6576, %v6568
    %v7473 = vpack.c.b16 %v6577, %v6569
    %v7474 = vpack.c.b16 %v6578, %v6570
    %v7475 = vpack.c.b16 %v6579, %v6571
    %v7476 = vpack.c.b16 %v6580, %v6572
    %v7477 = vpack.c.b16 %v6581, %v6573
    %v7478 = vpack.c.b16 %v6582, %v6574
    %v7479 = vpack.c.b16 %v6583, %v6575
    %v7480 = vpack.c.b16 %v6592, %v6584
    %v7481 = vpack.c.b16 %v6593, %v6585
    %v7482 = vpack.c.b16 %v6594, %v6586
    %v7483 = vpack.c.b16 %v6595, %v6587
    %v7484 = vpack.c.b16 %v6596, %v6588
    %v7485 = vpack.c.b16 %v6597, %v6589
    %v7486 = vpack.c.b16 %v6598, %v6590
    %v7487 = vpack.c.b16 %v6599, %v6591
    %v7488 = vpack.c.b16 %v6608, %v6600
    %v7489 = vpack.c.b16 %v6609, %v6601
    %v7490 = vpack.c.b16 %v6610, %v6602
    %v7491 = vpack.c.b16 %v6611, %v6603
    %v7492 = vpack.c.b16 %v6612, %v6604
    %v7493 = vpack.c.b16 %v6613, %v6605
    %v7494 = vpack.c.b16 %v6614, %v6606
    %v7495 = vpack.c.b16 %v6615, %v6607
    %v7496 = vpack.c.b16 %v6624, %v6616
    %v7497 = vpack.c.b16 %v6625, %v6617
    %v7498 = vpack.c.b16 %v6626, %v6618
    %v7499 = vpack.c.b16 %v6627, %v6619
    %v7500 = vpack.c.b16 %v6628, %v6620
    %v7501 = vpack.c.b16 %v6629, %v6621
    %v7502 = vpack.c.b16 %v6630, %v6622
    %v7503 = vpack.c.b16 %v6631, %v6623
    %v7504 = vpack.c.b16 %v6640, %v6632
    %v7505 = vpack.c.b16 %v6641, %v6633
    %v7506 = vpack.c.b16 %v6642, %v6634
    %v7507 = vpack.c.b16 %v6643, %v6635
    %v7508 = vpack.c.b16 %v6644, %v6636
    %v7509 = vpack.c.b16 %v6645, %v6637
    %v7510 = vpack.c.b16 %v6646, %v6638
    %v7511 = vpack.c.b16 %v6647, %v6639
    %v7512 = vpack.c.b16 %v6656, %v6648
    %v7513 = vpack.c.b16 %v6657, %v6649
    %v7514 = vpack.c.b16 %v6658, %v6650
    %v7515 = vpack.c.b16 %v6659, %v6651
    %v7516 = vpack.c.b16 %v6660, %v6652
    %v7517 = vpack.c.b16 %v6661, %v6653
    %v7518 = vpack.c.b16 %v6662, %v6654
    %v7519 = vpack.c.b16 %v6663, %v6655
    %v7520 = vpack.c.b16 %v6672, %v6664
    %v7521 = vpack.c.b16 %v6673, %v6665
    %v7522 = vpack.c.b16 %v6674, %v6666
    %v7523 = vpack.c.b16 %v6675, %v6667
    %v7524 = vpack.c.b16 %v6676, %v6668
    %v7525 = vpack.c.b16 %v6677, %v6669
    %v7526 = vpack.c.b16 %v6678, %v6670
    %v7527 = vpack.c.b16 %v6679, %v6671
    %v7528 = vpack.c.b16 %v6688, %v6680
    %v7529 = vpack.c.b16 %v6689, %v6681
    %v7530 = vpack.c.b16 %v6690, %v6682
    %v7531 = vpack.c.b16 %v6691, %v6683
    %v7532 = vpack.c.b16 %v6692, %v6684
    %v7533 = vpack.c.b16 %v6693, %v6685
    %v7534 = vpack.c.b16 %v6694, %v6686
    %v7535 = vpack.c.b16 %v6695, %v6687
    %v7536 = vpack.c.b16 %v6704, %v6696
    %v7537 = vpack.c.b16 %v6705, %v6697
    %v7538 = vpack.c.b16 %v6706, %v6698
    %v7539 = vpack.c.b16 %v6707, %v6699
    %v7540 = vpack.c.b16 %v6708, %v6700
    %v7541 = vpack.c.b16 %v6709, %v6701
    %v7542 = vpack.c.b16 %v6710, %v6702
    %v7543 = vpack.c.b16 %v6711, %v6703
    %v7544 = vpack.c.b16 %v6720, %v6712
    %v7545 = vpack.c.b16 %v6721, %v6713
    %v7546 = vpack.c.b16 %v6722, %v6714
    %v7547 = vpack.c.b16 %v6723, %v6715
    %v7548 = vpack.c.b16 %v6724, %v6716
    %v7549 = vpack.c.b16 %v6725, %v6717
    %v7550 = vpack.c.b16 %v6726, %v6718
    %v7551 = vpack.c.b16 %v6727, %v6719
    %v7552 = vpack.c.b16 %v6736, %v6728
    %v7553 = vpack.c.b16 %v6737, %v6729
    %v7554 = vpack.c.b16 %v6738, %v6730
    %v7555 = vpack.c.b16 %v6739, %v6731
    %v7556 = vpack.c.b16 %v6740, %v6732
    %v7557 = vpack.c.b16 %v6741, %v6733
    %v7558 = vpack.c.b16 %v6742, %v6734
    %v7559 = vpack.c.b16 %v6743, %v6735
    %v7560 = vpack.c.b16 %v6752, %v6744
    %v7561 = vpack.c.b16 %v6753, %v6745
    %v7562 = vpack.c.b16 %v6754, %v6746
    %v7563 = vpack.c.b16 %v6755, %v6747
    %v7564 = vpack.c.b16 %v6756, %v6748
    %v7565 = vpack.c.b16 %v6757, %v6749
    %v7566 = vpack.c.b16 %v6758, %v6750
    %v7567 = vpack.c.b16 %v6759, %v6751
    %v7568 = vpack.c.b16 %v6768, %v6760
    %v7569 = vpack.c.b16 %v6769, %v6761
    %v7570 = vpack.c.b16 %v6770, %v6762
    %v7571 = vpack.c.b16 %v6771, %v6763
    %v7572 = vpack.c.b16 %v6772, %v6764
    %v7573 = vpack.c.b16 %v6773, %v6765
    %v7574 = vpack.c.b16 %v6774, %v6766
    %v7575 = vpack.c.b16 %v6775, %v6767
    %v7576 = vpack.c.b16 %v6784, %v6776
    %v7577 = vpack.c.b16 %v6785, %v6777
    %v7578 = vpack.c.b16 %v6786, %v6778
    %v7579 = vpack.c.b16 %v6787, %v6779
    %v7580 = vpack.c.b16 %v6788, %v6780
    %v7581 = vpack.c.b16 %v6789, %v6781
    %v7582 = vpack.c.b16 %v6790, %v6782
    %v7583 = vpack.c.b16 %v6791, %v6783
    %v7584 = vpack.c.b16 %v6800, %v6792
    %v7585 = vpack.c.b16 %v6801, %v6793
    %v7586 = vpack.c.b16 %v6802, %v6794
    %v7587 = vpack.c.b16 %v6803, %v6795
    %v7588 = vpack.c.b16 %v6804, %v6796
    %v7589 = vpack.c.b16 %v6805, %v6797
    %v7590 = vpack.c.b16 %v6806, %v6798
    %v7591 = vpack.c.b16 %v6807, %v6799
    %v7592 = vpack.c.b16 %v6816, %v6808
    %v7593 = vpack.c.b16 %v6817, %v6809
    %v7594 = vpack.c.b16 %v6818, %v6810
    %v7595 = vpack.c.b16 %v6819, %v6811
    %v7596 = vpack.c.b16 %v6820, %v6812
    %v7597 = vpack.c.b16 %v6821, %v6813
    %v7598 = vpack.c.b16 %v6822, %v6814
    %v7599 = vpack.c.b16 %v6823, %v6815
    %v7600 = vpack.c.b16 %v6832, %v6824
    %v7601 = vpack.c.b16 %v6833, %v6825
    %v7602 = vpack.c.b16 %v6834, %v6826
    %v7603 = vpack.c.b16 %v6835, %v6827
    %v7604 = vpack.c.b16 %v6836, %v6828
    %v7605 = vpack.c.b16 %v6837, %v6829
    %v7606 = vpack.c.b16 %v6838, %v6830
    %v7607 = vpack.c.b16 %v6839, %v6831
    %v7608 = vpack.c.b16 %v6848, %v6840
    %v7609 = vpack.c.b16 %v6849, %v6841
    %v7610 = vpack.c.b16 %v6850, %v6842
    %v7611 = vpack.c.b16 %v6851, %v6843
    %v7612 = vpack.c.b16 %v6852, %v6844
    %v7613 = vpack.c.b16 %v6853, %v6845
    %v7614 = vpack.c.b16 %v6854, %v6846
    %v7615 = vpack.c.b16 %v6855, %v6847
    %v7616 = vpack.c.b16 %v6864, %v6856
    %v7617 = vpack.c.b16 %v6865, %v6857
    %v7618 = vpack.c.b16 %v6866, %v6858
    %v7619 = vpack.c.b16 %v6867, %v6859
    %v7620 = vpack.c.b16 %v6868, %v6860
    %v7621 = vpack.c.b16 %v6869, %v6861
    %v7622 = vpack.c.b16 %v6870, %v6862
    %v7623 = vpack.c.b16 %v6871, %v6863
    %v7624 = vpack.c.b16 %v6880, %v6872
    %v7625 = vpack.c.b16 %v6881, %v6873
    %v7626 = vpack.c.b16 %v6882, %v6874
    %v7627 = vpack.c.b16 %v6883, %v6875
    %v7628 = vpack.c.b16 %v6884, %v6876
    %v7629 = vpack.c.b16 %v6885, %v6877
    %v7630 = vpack.c.b16 %v6886, %v6878
    %v7631 = vpack.c.b16 %v6887, %v6879
    %v7632 = vpack.c.b16 %v6896, %v6888
    %v7633 = vpack.c.b16 %v6897, %v6889
    %v7634 = vpack.c.b16 %v6898, %v6890
    %v7635 = vpack.c.b16 %v6899, %v6891
    %v7636 = vpack.c.b16 %v6900, %v6892
    %v7637 = vpack.c.b16 %v6901, %v6893
    %v7638 = vpack.c.b16 %v6902, %v6894
    %v7639 = vpack.c.b16 %v6903, %v6895
    %v7640 = vpack.c.b16 %v6912, %v6904
    %v7641 = vpack.c.b16 %v6913, %v6905
    %v7642 = vpack.c.b16 %v6914, %v6906
    %v7643 = vpack.c.b16 %v6915, %v6907
    %v7644 = vpack.c.b16 %v6916, %v6908
    %v7645 = vpack.c.b16 %v6917, %v6909
    %v7646 = vpack.c.b16 %v6918, %v6910
    %v7647 = vpack.c.b16 %v6919, %v6911
    %v7648 = vpack.c.b16 %v6928, %v6920
    %v7649 = vpack.c.b16 %v6929, %v6921
    %v7650 = vpack.c.b16 %v6930, %v6922
    %v7651 = vpack.c.b16 %v6931, %v6923
    %v7652 = vpack.c.b16 %v6932, %v6924
    %v7653 = vpack.c.b16 %v6933, %v6925
    %v7654 = vpack.c.b16 %v6934, %v6926
    %v7655 = vpack.c.b16 %v6935, %v6927
    %v7656 = vpack.c.b16 %v6944, %v6936
    %v7657 = vpack.c.b16 %v6945, %v6937
    %v7658 = vpack.c.b16 %v6946, %v6938
    %v7659 = vpack.c.b16 %v6947, %v6939
    %v7660 = vpack.c.b16 %v6948, %v6940
    %v7661 = vpack.c.b16 %v6949, %v6941
    %v7662 = vpack.c.b16 %v6950, %v6942
    %v7663 = vpack.c.b16 %v6951, %v6943
    %v7664 = vpack.c.b16 %v6960, %v6952
    %v7665 = vpack.c.b16 %v6961, %v6953
    %v7666 = vpack.c.b16 %v6962, %v6954
    %v7667 = vpack.c.b16 %v6963, %v6955
    %v7668 = vpack.c.b16 %v6964, %v6956
    %v7669 = vpack.c.b16 %v6965, %v6957
    %v7670 = vpack.c.b16 %v6966, %v6958
    %v7671 = vpack.c.b16 %v6967, %v6959
    %v7672 = vpack.c.b16 %v6976, %v6968
    %v7673 = vpack.c.b16 %v6977, %v6969
    %v7674 = vpack.c.b16 %v6978, %v6970
    %v7675 = vpack.c.b16 %v6979, %v6971
    %v7676 = vpack.c.b16 %v6980, %v6972
    %v7677 = vpack.c.b16 %v6981, %v6973
    %v7678 = vpack.c.b16 %v6982, %v6974
    %v7679 = vpack.c.b16 %v6983, %v6975
    %v7680 = vpack.c.b16 %v6992, %v6984
    %v7681 = vpack.c.b16 %v6993, %v6985
    %v7682 = vpack.c.b16 %v6994, %v6986
    %v7683 = vpack.c.b16 %v6995, %v6987
    %v7684 = vpack.c.b16 %v6996, %v6988
    %v7685 = vpack.c.b16 %v6997, %v6989
    %v7686 = vpack.c.b16 %v6998, %v6990
    %v7687 = vpack.c.b16 %v6999, %v6991
    %v7688 = vpack.c.b16 %v7008, %v7000
    %v7689 = vpack.c.b16 %v7009, %v7001
    %v7690 = vpack.c.b16 %v7010, %v7002
    %v7691 = vpack.c.b16 %v7011, %v7003
    %v7692 = vpack.c.b16 %v7012, %v7004
    %v7693 = vpack.c.b16 %v7013, %v7005
    %v7694 = vpack.c.b16 %v7014, %v7006
    %v7695 = vpack.c.b16 %v7015, %v7007
    %v7696 = vpack.c.b16 %v7024, %v7016
    %v7697 = vpack.c.b16 %v7025, %v7017
    %v7698 = vpack.c.b16 %v7026, %v7018
    %v7699 = vpack.c.b16 %v7027, %v7019
    %v7700 = vpack.c.b16 %v7028, %v7020
    %v7701 = vpack.c.b16 %v7029, %v7021
    %v7702 = vpack.c.b16 %v7030, %v7022
    %v7703 = vpack.c.b16 %v7031, %v7023
    %v7704 = vpack.c.b16 %v7040, %v7032
    %v7705 = vpack.c.b16 %v7041, %v7033
    %v7706 = vpack.c.b16 %v7042, %v7034
    %v7707 = vpack.c.b16 %v7043, %v7035
    %v7708 = vpack.c.b16 %v7044, %v7036
    %v7709 = vpack.c.b16 %v7045, %v7037
    %v7710 = vpack.c.b16 %v7046, %v7038
    %v7711 = vpack.c.b16 %v7047, %v7039
    %v7712 = vpack.c.b16 %v7056, %v7048
    %v7713 = vpack.c.b16 %v7057, %v7049
    %v7714 = vpack.c.b16 %v7058, %v7050
    %v7715 = vpack.c.b16 %v7059, %v7051
    %v7716 = vpack.c.b16 %v7060, %v7052
    %v7717 = vpack.c.b16 %v7061, %v7053
    %v7718 = vpack.c.b16 %v7062, %v7054
    %v7719 = vpack.c.b16 %v7063, %v7055
    %v7720 = vpack.c.b16 %v7072, %v7064
    %v7721 = vpack.c.b16 %v7073, %v7065
    %v7722 = vpack.c.b16 %v7074, %v7066
    %v7723 = vpack.c.b16 %v7075, %v7067
    %v7724 = vpack.c.b16 %v7076, %v7068
    %v7725 = vpack.c.b16 %v7077, %v7069
    %v7726 = vpack.c.b16 %v7078, %v7070
    %v7727 = vpack.c.b16 %v7079, %v7071
    %v7728 = vpack.c.b16 %v7088, %v7080
    %v7729 = vpack.c.b16 %v7089, %v7081
    %v7730 = vpack.c.b16 %v7090, %v7082
    %v7731 = vpack.c.b16 %v7091, %v7083
    %v7732 = vpack.c.b16 %v7092, %v7084
    %v7733 = vpack.c.b16 %v7093, %v7085
    %v7734 = vpack.c.b16 %v7094, %v7086
    %v7735 = vpack.c.b16 %v7095, %v7087
    %v7736 = vpack.c.b16 %v7104, %v7096
    %v7737 = vpack.c.b16 %v7105, %v7097
    %v7738 = vpack.c.b16 %v7106, %v7098
    %v7739 = vpack.c.b16 %v7107, %v7099
    %v7740 = vpack.c.b16 %v7108, %v7100
    %v7741 = vpack.c.b16 %v7109, %v7101
    %v7742 = vpack.c.b16 %v7110, %v7102
    %v7743 = vpack.c.b16 %v7111, %v7103
    %v7744 = vpack.c.b16 %v7120, %v7112
    %v7745 = vpack.c.b16 %v7121, %v7113
    %v7746 = vpack.c.b16 %v7122, %v7114
    %v7747 = vpack.c.b16 %v7123, %v7115
    %v7748 = vpack.c.b16 %v7124, %v7116
    %v7749 = vpack.c.b16 %v7125, %v7117
    %v7750 = vpack.c.b16 %v7126, %v7118
    %v7751 = vpack.c.b16 %v7127, %v7119
    %v7752 = vpack.c.b16 %v7136, %v7128
    %v7753 = vpack.c.b16 %v7137, %v7129
    %v7754 = vpack.c.b16 %v7138, %v7130
    %v7755 = vpack.c.b16 %v7139, %v7131
    %v7756 = vpack.c.b16 %v7140, %v7132
    %v7757 = vpack.c.b16 %v7141, %v7133
    %v7758 = vpack.c.b16 %v7142, %v7134
    %v7759 = vpack.c.b16 %v7143, %v7135
    %v7760 = vpack.c.b16 %v7152, %v7144
    %v7761 = vpack.c.b16 %v7153, %v7145
    %v7762 = vpack.c.b16 %v7154, %v7146
    %v7763 = vpack.c.b16 %v7155, %v7147
    %v7764 = vpack.c.b16 %v7156, %v7148
    %v7765 = vpack.c.b16 %v7157, %v7149
    %v7766 = vpack.c.b16 %v7158, %v7150
    %v7767 = vpack.c.b16 %v7159, %v7151
    %v7768 = vpack.c.b16 %v7168, %v7160
    %v7769 = vpack.c.b16 %v7169, %v7161
    %v7770 = vpack.c.b16 %v7170, %v7162
    %v7771 = vpack.c.b16 %v7171, %v7163
    %v7772 = vpack.c.b16 %v7172, %v7164
    %v7773 = vpack.c.b16 %v7173, %v7165
    %v7774 = vpack.c.b16 %v7174, %v7166
    %v7775 = vpack.c.b16 %v7175, %v7167
    %v7776 = vpack.c.b16 %v7184, %v7176
    %v7777 = vpack.c.b16 %v7185, %v7177
    %v7778 = vpack.c.b16 %v7186, %v7178
    %v7779 = vpack.c.b16 %v7187, %v7179
    %v7780 = vpack.c.b16 %v7188, %v7180
    %v7781 = vpack.c.b16 %v7189, %v7181
    %v7782 = vpack.c.b16 %v7190, %v7182
    %v7783 = vpack.c.b16 %v7191, %v7183
    %v7784 = vpack.c.b16 %v7200, %v7192
    %v7785 = vpack.c.b16 %v7201, %v7193
    %v7786 = vpack.c.b16 %v7202, %v7194
    %v7787 = vpack.c.b16 %v7203, %v7195
    %v7788 = vpack.c.b16 %v7204, %v7196
    %v7789 = vpack.c.b16 %v7205, %v7197
    %v7790 = vpack.c.b16 %v7206, %v7198
    %v7791 = vpack.c.b16 %v7207, %v7199
    %v7792 = vpack.c.b16 %v7216, %v7208
    %v7793 = vpack.c.b16 %v7217, %v7209
    %v7794 = vpack.c.b16 %v7218, %v7210
    %v7795 = vpack.c.b16 %v7219, %v7211
    %v7796 = vpack.c.b16 %v7220, %v7212
    %v7797 = vpack.c.b16 %v7221, %v7213
    %v7798 = vpack.c.b16 %v7222, %v7214
    %v7799 = vpack.c.b16 %v7223, %v7215
    %v7800 = vpack.c.b16 %v7232, %v7224
    %v7801 = vpack.c.b16 %v7233, %v7225
    %v7802 = vpack.c.b16 %v7234, %v7226
    %v7803 = vpack.c.b16 %v7235, %v7227
    %v7804 = vpack.c.b16 %v7236, %v7228
    %v7805 = vpack.c.b16 %v7237, %v7229
    %v7806 = vpack.c.b16 %v7238, %v7230
    %v7807 = vpack.c.b16 %v7239, %v7231
    %v7808 = vpack.c.b16 %v7248, %v7240
    %v7809 = vpack.c.b16 %v7249, %v7241
    %v7810 = vpack.c.b16 %v7250, %v7242
    %v7811 = vpack.c.b16 %v7251, %v7243
    %v7812 = vpack.c.b16 %v7252, %v7244
    %v7813 = vpack.c.b16 %v7253, %v7245
    %v7814 = vpack.c.b16 %v7254, %v7246
    %v7815 = vpack.c.b16 %v7255, %v7247
    %v7816 = vpack.c.b16 %v7264, %v7256
    %v7817 = vpack.c.b16 %v7265, %v7257
    %v7818 = vpack.c.b16 %v7266, %v7258
    %v7819 = vpack.c.b16 %v7267, %v7259
    %v7820 = vpack.c.b16 %v7268, %v7260
    %v7821 = vpack.c.b16 %v7269, %v7261
    %v7822 = vpack.c.b16 %v7270, %v7262
    %v7823 = vpack.c.b16 %v7271, %v7263
    %v7824 = vpack.c.b16 %v7280, %v7272
    %v7825 = vpack.c.b16 %v7281, %v7273
    %v7826 = vpack.c.b16 %v7282, %v7274
    %v7827 = vpack.c.b16 %v7283, %v7275
    %v7828 = vpack.c.b16 %v7284, %v7276
    %v7829 = vpack.c.b16 %v7285, %v7277
    %v7830 = vpack.c.b16 %v7286, %v7278
    %v7831 = vpack.c.b16 %v7287, %v7279
    %v7832 = vpack.c.b16 %v7296, %v7288
    %v7833 = vpack.c.b16 %v7297, %v7289
    %v7834 = vpack.c.b16 %v7298, %v7290
    %v7835 = vpack.c.b16 %v7299, %v7291
    %v7836 = vpack.c.b16 %v7300, %v7292
    %v7837 = vpack.c.b16 %v7301, %v7293
    %v7838 = vpack.c.b16 %v7302, %v7294
    %v7839 = vpack.c.b16 %v7303, %v7295
    %v7840 = vpack.c.b16 %v7312, %v7304
    %v7841 = vpack.c.b16 %v7313, %v7305
    %v7842 = vpack.c.b16 %v7314, %v7306
    %v7843 = vpack.c.b16 %v7315, %v7307
    %v7844 = vpack.c.b16 %v7316, %v7308
    %v7845 = vpack.c.b16 %v7317, %v7309
    %v7846 = vpack.c.b16 %v7318, %v7310
    %v7847 = vpack.c.b16 %v7319, %v7311
    %v7848 = vpack.c.b16 %v7328, %v7320
    %v7849 = vpack.c.b16 %v7329, %v7321
    %v7850 = vpack.c.b16 %v7330, %v7322
    %v7851 = vpack.c.b16 %v7331, %v7323
    %v7852 = vpack.c.b16 %v7332, %v7324
    %v7853 = vpack.c.b16 %v7333, %v7325
    %v7854 = vpack.c.b16 %v7334, %v7326
    %v7855 = vpack.c.b16 %v7335, %v7327
    %v7856 = vpack.c.b16 %v7344, %v7336
    %v7857 = vpack.c.b16 %v7345, %v7337
    %v7858 = vpack.c.b16 %v7346, %v7338
    %v7859 = vpack.c.b16 %v7347, %v7339
    %v7860 = vpack.c.b16 %v7348, %v7340
    %v7861 = vpack.c.b16 %v7349, %v7341
    %v7862 = vpack.c.b16 %v7350, %v7342
    %v7863 = vpack.c.b16 %v7351, %v7343
    %8376 = vmatprep.subr.bf16.mxu0 %v7409
    %8377 = vmatpush1.bf16.msra.mxu0 %v7408
    %8378 = vmatprep.subr.bf16.mxu0 %v7401
    %8379 = vmatpush1.bf16.msra.mxu0 %v7400
    %8380 = vmatprep.subr.bf16.mxu0 %v7393
    %8381 = vmatpush1.bf16.msra.mxu0 %v7392
    %8382 = vmatprep.subr.bf16.mxu0 %v7385
    %8383 = vmatpush1.bf16.msra.mxu0 %v7384
    %8384 = vmatprep.subr.bf16.mxu0 %v7377
    %8385 = vmatpush1.bf16.msra.mxu0 %v7376
    %8386 = vmatprep.subr.bf16.mxu0 %v7369
    %8387 = vmatpush1.bf16.msra.mxu0 %v7368
    %8388 = vmatprep.subr.bf16.mxu0 %v7361
    %8389 = vmatpush1.bf16.msra.mxu0 %v7360
    %8390 = vmatprep.subr.bf16.mxu0 %v7353
    %8391 = vmatpush1.bf16.msra.mxu0 %v7352
    %8392 = vmatprep.subr.bf16.mxu0 %v7473
    %8393 = vmatpush2.bf16.msra.mxu0 %v7472
    %8394 = vmatprep.subr.bf16.mxu0 %v7465
    %8395 = vmatpush2.bf16.msra.mxu0 %v7464
    %8396 = vmatprep.subr.bf16.mxu0 %v7457
    %8397 = vmatpush2.bf16.msra.mxu0 %v7456
    %8398 = vmatprep.subr.bf16.mxu0 %v7449
    %8399 = vmatpush2.bf16.msra.mxu0 %v7448
    %8400 = vmatprep.subr.bf16.mxu0 %v7441
    %8401 = vmatpush2.bf16.msra.mxu0 %v7440
    %8402 = vmatprep.subr.bf16.mxu0 %v7433
    %8403 = vmatpush2.bf16.msra.mxu0 %v7432
    %8404 = vmatprep.subr.bf16.mxu0 %v7425
    %8405 = vmatpush2.bf16.msra.mxu0 %v7424
    %8406 = vmatprep.subr.bf16.mxu0 %v7417
    %8407 = vmatpush2.bf16.msra.mxu0 %v7416
    %8408 = vmatprep.mubr.bf16.mxu0 %v5297
    %8409 = vmatmul.mubr.bf16.gmra.mxu0 %v5296
    %v8410 = vpop.f32.mrf.mxu0
    %v8411 = vadd.f32 0.0, %v8410
    %v8412 = vpop.f32.mrf.mxu0
    %v8413 = vadd.f32 0.0, %v8412
    %v8414 = vpop.f32.mrf.mxu0
    %v8415 = vpop.f32.mrf.mxu0
    %8416 = vdwg.mxu0
    %8417 = vmatprep.subr.bf16.mxu0 %v7537
    %8418 = vmatpush1.bf16.msra.mxu0 %v7536
    %8419 = vmatprep.subr.bf16.mxu0 %v7529
    %8420 = vmatpush1.bf16.msra.mxu0 %v7528
    %8421 = vmatprep.subr.bf16.mxu0 %v7521
    %8422 = vmatpush1.bf16.msra.mxu0 %v7520
    %8423 = vmatprep.subr.bf16.mxu0 %v7513
    %8424 = vmatpush1.bf16.msra.mxu0 %v7512
    %8425 = vmatprep.subr.bf16.mxu0 %v7505
    %8426 = vmatpush1.bf16.msra.mxu0 %v7504
    %8427 = vmatprep.subr.bf16.mxu0 %v7497
    %8428 = vmatpush1.bf16.msra.mxu0 %v7496
    %8429 = vmatprep.subr.bf16.mxu0 %v7489
    %8430 = vmatpush1.bf16.msra.mxu0 %v7488
    %8431 = vmatprep.subr.bf16.mxu0 %v7481
    %8432 = vmatpush1.bf16.msra.mxu0 %v7480
    %8433 = vmatprep.subr.bf16.mxu0 %v7601
    %8434 = vmatpush2.bf16.msra.mxu0 %v7600
    %8435 = vmatprep.subr.bf16.mxu0 %v7593
    %8436 = vmatpush2.bf16.msra.mxu0 %v7592
    %8437 = vmatprep.subr.bf16.mxu0 %v7585
    %8438 = vmatpush2.bf16.msra.mxu0 %v7584
    %8439 = vmatprep.subr.bf16.mxu0 %v7577
    %8440 = vmatpush2.bf16.msra.mxu0 %v7576
    %8441 = vmatprep.subr.bf16.mxu0 %v7569
    %8442 = vmatpush2.bf16.msra.mxu0 %v7568
    %8443 = vmatprep.subr.bf16.mxu0 %v7561
    %8444 = vmatpush2.bf16.msra.mxu0 %v7560
    %8445 = vmatprep.subr.bf16.mxu0 %v7553
    %8446 = vmatpush2.bf16.msra.mxu0 %v7552
    %8447 = vmatprep.subr.bf16.mxu0 %v7545
    %8448 = vmatpush2.bf16.msra.mxu0 %v7544
    %8449 = vmatprep.mubr.bf16.mxu0 %v5299
    %8450 = vmatmul.mubr.bf16.gmra.mxu0 %v5298
    %v8451 = vpop.f32.mrf.mxu0
    %v8452 = vadd.f32 %v8411, %v8451
    %v8453 = vpop.f32.mrf.mxu0
    %v8454 = vadd.f32 %v8413, %v8453
    %v8455 = vpop.f32.mrf.mxu0
    %v8456 = vpop.f32.mrf.mxu0
    %8457 = vdwg.mxu0
    %8458 = vmatprep.subr.bf16.mxu0 %v7665
    %8459 = vmatpush1.bf16.msra.mxu0 %v7664
    %8460 = vmatprep.subr.bf16.mxu0 %v7657
    %8461 = vmatpush1.bf16.msra.mxu0 %v7656
    %8462 = vmatprep.subr.bf16.mxu0 %v7649
    %8463 = vmatpush1.bf16.msra.mxu0 %v7648
    %8464 = vmatprep.subr.bf16.mxu0 %v7641
    %8465 = vmatpush1.bf16.msra.mxu0 %v7640
    %8466 = vmatprep.subr.bf16.mxu0 %v7633
    %8467 = vmatpush1.bf16.msra.mxu0 %v7632
    %8468 = vmatprep.subr.bf16.mxu0 %v7625
    %8469 = vmatpush1.bf16.msra.mxu0 %v7624
    %8470 = vmatprep.subr.bf16.mxu0 %v7617
    %8471 = vmatpush1.bf16.msra.mxu0 %v7616
    %8472 = vmatprep.subr.bf16.mxu0 %v7609
    %8473 = vmatpush1.bf16.msra.mxu0 %v7608
    %8474 = vmatprep.subr.bf16.mxu0 %v7729
    %8475 = vmatpush2.bf16.msra.mxu0 %v7728
    %8476 = vmatprep.subr.bf16.mxu0 %v7721
    %8477 = vmatpush2.bf16.msra.mxu0 %v7720
    %8478 = vmatprep.subr.bf16.mxu0 %v7713
    %8479 = vmatpush2.bf16.msra.mxu0 %v7712
    %8480 = vmatprep.subr.bf16.mxu0 %v7705
    %8481 = vmatpush2.bf16.msra.mxu0 %v7704
    %8482 = vmatprep.subr.bf16.mxu0 %v7697
    %8483 = vmatpush2.bf16.msra.mxu0 %v7696
    %8484 = vmatprep.subr.bf16.mxu0 %v7689
    %8485 = vmatpush2.bf16.msra.mxu0 %v7688
    %8486 = vmatprep.subr.bf16.mxu0 %v7681
    %8487 = vmatpush2.bf16.msra.mxu0 %v7680
    %8488 = vmatprep.subr.bf16.mxu0 %v7673
    %8489 = vmatpush2.bf16.msra.mxu0 %v7672
    %8490 = vmatprep.mubr.bf16.mxu0 %v5301
    %8491 = vmatmul.mubr.bf16.gmra.mxu0 %v5300
    %v8492 = vpop.f32.mrf.mxu0
    %v8493 = vadd.f32 %v8452, %v8492
    %v8494 = vpop.f32.mrf.mxu0
    %v8495 = vadd.f32 %v8454, %v8494
    %v8496 = vpop.f32.mrf.mxu0
    %v8497 = vpop.f32.mrf.mxu0
    %8498 = vdwg.mxu0
    %8499 = vmatprep.subr.bf16.mxu0 %v7793
    %8500 = vmatpush1.bf16.msra.mxu0 %v7792
    %8501 = vmatprep.subr.bf16.mxu0 %v7785
    %8502 = vmatpush1.bf16.msra.mxu0 %v7784
    %8503 = vmatprep.subr.bf16.mxu0 %v7777
    %8504 = vmatpush1.bf16.msra.mxu0 %v7776
    %8505 = vmatprep.subr.bf16.mxu0 %v7769
    %8506 = vmatpush1.bf16.msra.mxu0 %v7768
    %8507 = vmatprep.subr.bf16.mxu0 %v7761
    %8508 = vmatpush1.bf16.msra.mxu0 %v7760
    %8509 = vmatprep.subr.bf16.mxu0 %v7753
    %8510 = vmatpush1.bf16.msra.mxu0 %v7752
    %8511 = vmatprep.subr.bf16.mxu0 %v7745
    %8512 = vmatpush1.bf16.msra.mxu0 %v7744
    %8513 = vmatprep.subr.bf16.mxu0 %v7737
    %8514 = vmatpush1.bf16.msra.mxu0 %v7736
    %8515 = vmatprep.subr.bf16.mxu0 %v7857
    %8516 = vmatpush2.bf16.msra.mxu0 %v7856
    %8517 = vmatprep.subr.bf16.mxu0 %v7849
    %8518 = vmatpush2.bf16.msra.mxu0 %v7848
    %8519 = vmatprep.subr.bf16.mxu0 %v7841
    %8520 = vmatpush2.bf16.msra.mxu0 %v7840
    %8521 = vmatprep.subr.bf16.mxu0 %v7833
    %8522 = vmatpush2.bf16.msra.mxu0 %v7832
    %8523 = vmatprep.subr.bf16.mxu0 %v7825
    %8524 = vmatpush2.bf16.msra.mxu0 %v7824
    %8525 = vmatprep.subr.bf16.mxu0 %v7817
    %8526 = vmatpush2.bf16.msra.mxu0 %v7816
    %8527 = vmatprep.subr.bf16.mxu0 %v7809
    %8528 = vmatpush2.bf16.msra.mxu0 %v7808
    %8529 = vmatprep.subr.bf16.mxu0 %v7801
    %8530 = vmatpush2.bf16.msra.mxu0 %v7800
    %8531 = vmatprep.mubr.bf16.mxu0 %v5303
    %8532 = vmatmul.mubr.bf16.gmra.mxu0 %v5302
    %v8533 = vpop.f32.mrf.mxu0
    %v8534 = vadd.f32 %v8493, %v8533
    %v8535 = vpop.f32.mrf.mxu0
    %v8536 = vadd.f32 %v8495, %v8535
    %v8537 = vpop.f32.mrf.mxu0
    %v8538 = vpop.f32.mrf.mxu0
    %8539 = vdwg.mxu0
    %8540 = vmatprep.subr.bf16.mxu0 %v7411
    %8541 = vmatpush1.bf16.msra.mxu0 %v7410
    %8542 = vmatprep.subr.bf16.mxu0 %v7403
    %8543 = vmatpush1.bf16.msra.mxu0 %v7402
    %8544 = vmatprep.subr.bf16.mxu0 %v7395
    %8545 = vmatpush1.bf16.msra.mxu0 %v7394
    %8546 = vmatprep.subr.bf16.mxu0 %v7387
    %8547 = vmatpush1.bf16.msra.mxu0 %v7386
    %8548 = vmatprep.subr.bf16.mxu0 %v7379
    %8549 = vmatpush1.bf16.msra.mxu0 %v7378
    %8550 = vmatprep.subr.bf16.mxu0 %v7371
    %8551 = vmatpush1.bf16.msra.mxu0 %v7370
    %8552 = vmatprep.subr.bf16.mxu0 %v7363
    %8553 = vmatpush1.bf16.msra.mxu0 %v7362
    %8554 = vmatprep.subr.bf16.mxu0 %v7355
    %8555 = vmatpush1.bf16.msra.mxu0 %v7354
    %8556 = vmatprep.subr.bf16.mxu0 %v7475
    %8557 = vmatpush2.bf16.msra.mxu0 %v7474
    %8558 = vmatprep.subr.bf16.mxu0 %v7467
    %8559 = vmatpush2.bf16.msra.mxu0 %v7466
    %8560 = vmatprep.subr.bf16.mxu0 %v7459
    %8561 = vmatpush2.bf16.msra.mxu0 %v7458
    %8562 = vmatprep.subr.bf16.mxu0 %v7451
    %8563 = vmatpush2.bf16.msra.mxu0 %v7450
    %8564 = vmatprep.subr.bf16.mxu0 %v7443
    %8565 = vmatpush2.bf16.msra.mxu0 %v7442
    %8566 = vmatprep.subr.bf16.mxu0 %v7435
    %8567 = vmatpush2.bf16.msra.mxu0 %v7434
    %8568 = vmatprep.subr.bf16.mxu0 %v7427
    %8569 = vmatpush2.bf16.msra.mxu0 %v7426
    %8570 = vmatprep.subr.bf16.mxu0 %v7419
    %8571 = vmatpush2.bf16.msra.mxu0 %v7418
    %8572 = vmatprep.mubr.bf16.mxu0 %v5297
    %8573 = vmatmul.mubr.bf16.gmra.mxu0 %v5296
    %v8574 = vpop.f32.mrf.mxu0
    %v8575 = vadd.f32 0.0, %v8574
    %v8576 = vpop.f32.mrf.mxu0
    %v8577 = vadd.f32 0.0, %v8576
    %v8578 = vpop.f32.mrf.mxu0
    %v8579 = vpop.f32.mrf.mxu0
    %8580 = vdwg.mxu0
    %8581 = vmatprep.subr.bf16.mxu0 %v7539
    %8582 = vmatpush1.bf16.msra.mxu0 %v7538
    %8583 = vmatprep.subr.bf16.mxu0 %v7531
    %8584 = vmatpush1.bf16.msra.mxu0 %v7530
    %8585 = vmatprep.subr.bf16.mxu0 %v7523
    %8586 = vmatpush1.bf16.msra.mxu0 %v7522
    %8587 = vmatprep.subr.bf16.mxu0 %v7515
    %8588 = vmatpush1.bf16.msra.mxu0 %v7514
    %8589 = vmatprep.subr.bf16.mxu0 %v7507
    %8590 = vmatpush1.bf16.msra.mxu0 %v7506
    %8591 = vmatprep.subr.bf16.mxu0 %v7499
    %8592 = vmatpush1.bf16.msra.mxu0 %v7498
    %8593 = vmatprep.subr.bf16.mxu0 %v7491
    %8594 = vmatpush1.bf16.msra.mxu0 %v7490
    %8595 = vmatprep.subr.bf16.mxu0 %v7483
    %8596 = vmatpush1.bf16.msra.mxu0 %v7482
    %8597 = vmatprep.subr.bf16.mxu0 %v7603
    %8598 = vmatpush2.bf16.msra.mxu0 %v7602
    %8599 = vmatprep.subr.bf16.mxu0 %v7595
    %8600 = vmatpush2.bf16.msra.mxu0 %v7594
    %8601 = vmatprep.subr.bf16.mxu0 %v7587
    %8602 = vmatpush2.bf16.msra.mxu0 %v7586
    %8603 = vmatprep.subr.bf16.mxu0 %v7579
    %8604 = vmatpush2.bf16.msra.mxu0 %v7578
    %8605 = vmatprep.subr.bf16.mxu0 %v7571
    %8606 = vmatpush2.bf16.msra.mxu0 %v7570
    %8607 = vmatprep.subr.bf16.mxu0 %v7563
    %8608 = vmatpush2.bf16.msra.mxu0 %v7562
    %8609 = vmatprep.subr.bf16.mxu0 %v7555
    %8610 = vmatpush2.bf16.msra.mxu0 %v7554
    %8611 = vmatprep.subr.bf16.mxu0 %v7547
    %8612 = vmatpush2.bf16.msra.mxu0 %v7546
    %8613 = vmatprep.mubr.bf16.mxu0 %v5299
    %8614 = vmatmul.mubr.bf16.gmra.mxu0 %v5298
    %v8615 = vpop.f32.mrf.mxu0
    %v8616 = vadd.f32 %v8575, %v8615
    %v8617 = vpop.f32.mrf.mxu0
    %v8618 = vadd.f32 %v8577, %v8617
    %v8619 = vpop.f32.mrf.mxu0
    %v8620 = vpop.f32.mrf.mxu0
    %8621 = vdwg.mxu0
    %8622 = vmatprep.subr.bf16.mxu0 %v7667
    %8623 = vmatpush1.bf16.msra.mxu0 %v7666
    %8624 = vmatprep.subr.bf16.mxu0 %v7659
    %8625 = vmatpush1.bf16.msra.mxu0 %v7658
    %8626 = vmatprep.subr.bf16.mxu0 %v7651
    %8627 = vmatpush1.bf16.msra.mxu0 %v7650
    %8628 = vmatprep.subr.bf16.mxu0 %v7643
    %8629 = vmatpush1.bf16.msra.mxu0 %v7642
    %8630 = vmatprep.subr.bf16.mxu0 %v7635
    %8631 = vmatpush1.bf16.msra.mxu0 %v7634
    %8632 = vmatprep.subr.bf16.mxu0 %v7627
    %8633 = vmatpush1.bf16.msra.mxu0 %v7626
    %8634 = vmatprep.subr.bf16.mxu0 %v7619
    %8635 = vmatpush1.bf16.msra.mxu0 %v7618
    %8636 = vmatprep.subr.bf16.mxu0 %v7611
    %8637 = vmatpush1.bf16.msra.mxu0 %v7610
    %8638 = vmatprep.subr.bf16.mxu0 %v7731
    %8639 = vmatpush2.bf16.msra.mxu0 %v7730
    %8640 = vmatprep.subr.bf16.mxu0 %v7723
    %8641 = vmatpush2.bf16.msra.mxu0 %v7722
    %8642 = vmatprep.subr.bf16.mxu0 %v7715
    %8643 = vmatpush2.bf16.msra.mxu0 %v7714
    %8644 = vmatprep.subr.bf16.mxu0 %v7707
    %8645 = vmatpush2.bf16.msra.mxu0 %v7706
    %8646 = vmatprep.subr.bf16.mxu0 %v7699
    %8647 = vmatpush2.bf16.msra.mxu0 %v7698
    %8648 = vmatprep.subr.bf16.mxu0 %v7691
    %8649 = vmatpush2.bf16.msra.mxu0 %v7690
    %8650 = vmatprep.subr.bf16.mxu0 %v7683
    %8651 = vmatpush2.bf16.msra.mxu0 %v7682
    %8652 = vmatprep.subr.bf16.mxu0 %v7675
    %8653 = vmatpush2.bf16.msra.mxu0 %v7674
    %8654 = vmatprep.mubr.bf16.mxu0 %v5301
    %8655 = vmatmul.mubr.bf16.gmra.mxu0 %v5300
    %v8656 = vpop.f32.mrf.mxu0
    %v8657 = vadd.f32 %v8616, %v8656
    %v8658 = vpop.f32.mrf.mxu0
    %v8659 = vadd.f32 %v8618, %v8658
    %v8660 = vpop.f32.mrf.mxu0
    %v8661 = vpop.f32.mrf.mxu0
    %8662 = vdwg.mxu0
    %8663 = vmatprep.subr.bf16.mxu0 %v7795
    %8664 = vmatpush1.bf16.msra.mxu0 %v7794
    %8665 = vmatprep.subr.bf16.mxu0 %v7787
    %8666 = vmatpush1.bf16.msra.mxu0 %v7786
    %8667 = vmatprep.subr.bf16.mxu0 %v7779
    %8668 = vmatpush1.bf16.msra.mxu0 %v7778
    %8669 = vmatprep.subr.bf16.mxu0 %v7771
    %8670 = vmatpush1.bf16.msra.mxu0 %v7770
    %8671 = vmatprep.subr.bf16.mxu0 %v7763
    %8672 = vmatpush1.bf16.msra.mxu0 %v7762
    %8673 = vmatprep.subr.bf16.mxu0 %v7755
    %8674 = vmatpush1.bf16.msra.mxu0 %v7754
    %8675 = vmatprep.subr.bf16.mxu0 %v7747
    %8676 = vmatpush1.bf16.msra.mxu0 %v7746
    %8677 = vmatprep.subr.bf16.mxu0 %v7739
    %8678 = vmatpush1.bf16.msra.mxu0 %v7738
    %8679 = vmatprep.subr.bf16.mxu0 %v7859
    %8680 = vmatpush2.bf16.msra.mxu0 %v7858
    %8681 = vmatprep.subr.bf16.mxu0 %v7851
    %8682 = vmatpush2.bf16.msra.mxu0 %v7850
    %8683 = vmatprep.subr.bf16.mxu0 %v7843
    %8684 = vmatpush2.bf16.msra.mxu0 %v7842
    %8685 = vmatprep.subr.bf16.mxu0 %v7835
    %8686 = vmatpush2.bf16.msra.mxu0 %v7834
    %8687 = vmatprep.subr.bf16.mxu0 %v7827
    %8688 = vmatpush2.bf16.msra.mxu0 %v7826
    %8689 = vmatprep.subr.bf16.mxu0 %v7819
    %8690 = vmatpush2.bf16.msra.mxu0 %v7818
    %8691 = vmatprep.subr.bf16.mxu0 %v7811
    %8692 = vmatpush2.bf16.msra.mxu0 %v7810
    %8693 = vmatprep.subr.bf16.mxu0 %v7803
    %8694 = vmatpush2.bf16.msra.mxu0 %v7802
    %8695 = vmatprep.mubr.bf16.mxu0 %v5303
    %8696 = vmatmul.mubr.bf16.gmra.mxu0 %v5302
    %v8697 = vpop.f32.mrf.mxu0
    %v8698 = vadd.f32 %v8657, %v8697
    %v8699 = vpop.f32.mrf.mxu0
    %v8700 = vadd.f32 %v8659, %v8699
    %v8701 = vpop.f32.mrf.mxu0
    %v8702 = vpop.f32.mrf.mxu0
    %8703 = vdwg.mxu0
    %8704 = vmatprep.subr.bf16.mxu0 %v7413
    %8705 = vmatpush1.bf16.msra.mxu0 %v7412
    %8706 = vmatprep.subr.bf16.mxu0 %v7405
    %8707 = vmatpush1.bf16.msra.mxu0 %v7404
    %8708 = vmatprep.subr.bf16.mxu0 %v7397
    %8709 = vmatpush1.bf16.msra.mxu0 %v7396
    %8710 = vmatprep.subr.bf16.mxu0 %v7389
    %8711 = vmatpush1.bf16.msra.mxu0 %v7388
    %8712 = vmatprep.subr.bf16.mxu0 %v7381
    %8713 = vmatpush1.bf16.msra.mxu0 %v7380
    %8714 = vmatprep.subr.bf16.mxu0 %v7373
    %8715 = vmatpush1.bf16.msra.mxu0 %v7372
    %8716 = vmatprep.subr.bf16.mxu0 %v7365
    %8717 = vmatpush1.bf16.msra.mxu0 %v7364
    %8718 = vmatprep.subr.bf16.mxu0 %v7357
    %8719 = vmatpush1.bf16.msra.mxu0 %v7356
    %8720 = vmatprep.subr.bf16.mxu0 %v7477
    %8721 = vmatpush2.bf16.msra.mxu0 %v7476
    %8722 = vmatprep.subr.bf16.mxu0 %v7469
    %8723 = vmatpush2.bf16.msra.mxu0 %v7468
    %8724 = vmatprep.subr.bf16.mxu0 %v7461
    %8725 = vmatpush2.bf16.msra.mxu0 %v7460
    %8726 = vmatprep.subr.bf16.mxu0 %v7453
    %8727 = vmatpush2.bf16.msra.mxu0 %v7452
    %8728 = vmatprep.subr.bf16.mxu0 %v7445
    %8729 = vmatpush2.bf16.msra.mxu0 %v7444
    %8730 = vmatprep.subr.bf16.mxu0 %v7437
    %8731 = vmatpush2.bf16.msra.mxu0 %v7436
    %8732 = vmatprep.subr.bf16.mxu0 %v7429
    %8733 = vmatpush2.bf16.msra.mxu0 %v7428
    %8734 = vmatprep.subr.bf16.mxu0 %v7421
    %8735 = vmatpush2.bf16.msra.mxu0 %v7420
    %8736 = vmatprep.mubr.bf16.mxu0 %v5297
    %8737 = vmatmul.mubr.bf16.gmra.mxu0 %v5296
    %v8738 = vpop.f32.mrf.mxu0
    %v8739 = vadd.f32 0.0, %v8738
    %v8740 = vpop.f32.mrf.mxu0
    %v8741 = vadd.f32 0.0, %v8740
    %v8742 = vpop.f32.mrf.mxu0
    %v8743 = vpop.f32.mrf.mxu0
    %8744 = vdwg.mxu0
    %8745 = vmatprep.subr.bf16.mxu0 %v7541
    %8746 = vmatpush1.bf16.msra.mxu0 %v7540
    %8747 = vmatprep.subr.bf16.mxu0 %v7533
    %8748 = vmatpush1.bf16.msra.mxu0 %v7532
    %8749 = vmatprep.subr.bf16.mxu0 %v7525
    %8750 = vmatpush1.bf16.msra.mxu0 %v7524
    %8751 = vmatprep.subr.bf16.mxu0 %v7517
    %8752 = vmatpush1.bf16.msra.mxu0 %v7516
    %8753 = vmatprep.subr.bf16.mxu0 %v7509
    %8754 = vmatpush1.bf16.msra.mxu0 %v7508
    %8755 = vmatprep.subr.bf16.mxu0 %v7501
    %8756 = vmatpush1.bf16.msra.mxu0 %v7500
    %8757 = vmatprep.subr.bf16.mxu0 %v7493
    %8758 = vmatpush1.bf16.msra.mxu0 %v7492
    %8759 = vmatprep.subr.bf16.mxu0 %v7485
    %8760 = vmatpush1.bf16.msra.mxu0 %v7484
    %8761 = vmatprep.subr.bf16.mxu0 %v7605
    %8762 = vmatpush2.bf16.msra.mxu0 %v7604
    %8763 = vmatprep.subr.bf16.mxu0 %v7597
    %8764 = vmatpush2.bf16.msra.mxu0 %v7596
    %8765 = vmatprep.subr.bf16.mxu0 %v7589
    %8766 = vmatpush2.bf16.msra.mxu0 %v7588
    %8767 = vmatprep.subr.bf16.mxu0 %v7581
    %8768 = vmatpush2.bf16.msra.mxu0 %v7580
    %8769 = vmatprep.subr.bf16.mxu0 %v7573
    %8770 = vmatpush2.bf16.msra.mxu0 %v7572
    %8771 = vmatprep.subr.bf16.mxu0 %v7565
    %8772 = vmatpush2.bf16.msra.mxu0 %v7564
    %8773 = vmatprep.subr.bf16.mxu0 %v7557
    %8774 = vmatpush2.bf16.msra.mxu0 %v7556
    %8775 = vmatprep.subr.bf16.mxu0 %v7549
    %8776 = vmatpush2.bf16.msra.mxu0 %v7548
    %8777 = vmatprep.mubr.bf16.mxu0 %v5299
    %8778 = vmatmul.mubr.bf16.gmra.mxu0 %v5298
    %v8779 = vpop.f32.mrf.mxu0
    %v8780 = vadd.f32 %v8739, %v8779
    %v8781 = vpop.f32.mrf.mxu0
    %v8782 = vadd.f32 %v8741, %v8781
    %v8783 = vpop.f32.mrf.mxu0
    %v8784 = vpop.f32.mrf.mxu0
    %8785 = vdwg.mxu0
    %8786 = vmatprep.subr.bf16.mxu0 %v7669
    %8787 = vmatpush1.bf16.msra.mxu0 %v7668
    %8788 = vmatprep.subr.bf16.mxu0 %v7661
    %8789 = vmatpush1.bf16.msra.mxu0 %v7660
    %8790 = vmatprep.subr.bf16.mxu0 %v7653
    %8791 = vmatpush1.bf16.msra.mxu0 %v7652
    %8792 = vmatprep.subr.bf16.mxu0 %v7645
    %8793 = vmatpush1.bf16.msra.mxu0 %v7644
    %8794 = vmatprep.subr.bf16.mxu0 %v7637
    %8795 = vmatpush1.bf16.msra.mxu0 %v7636
    %8796 = vmatprep.subr.bf16.mxu0 %v7629
    %8797 = vmatpush1.bf16.msra.mxu0 %v7628
    %8798 = vmatprep.subr.bf16.mxu0 %v7621
    %8799 = vmatpush1.bf16.msra.mxu0 %v7620
    %8800 = vmatprep.subr.bf16.mxu0 %v7613
    %8801 = vmatpush1.bf16.msra.mxu0 %v7612
    %8802 = vmatprep.subr.bf16.mxu0 %v7733
    %8803 = vmatpush2.bf16.msra.mxu0 %v7732
    %8804 = vmatprep.subr.bf16.mxu0 %v7725
    %8805 = vmatpush2.bf16.msra.mxu0 %v7724
    %8806 = vmatprep.subr.bf16.mxu0 %v7717
    %8807 = vmatpush2.bf16.msra.mxu0 %v7716
    %8808 = vmatprep.subr.bf16.mxu0 %v7709
    %8809 = vmatpush2.bf16.msra.mxu0 %v7708
    %8810 = vmatprep.subr.bf16.mxu0 %v7701
    %8811 = vmatpush2.bf16.msra.mxu0 %v7700
    %8812 = vmatprep.subr.bf16.mxu0 %v7693
    %8813 = vmatpush2.bf16.msra.mxu0 %v7692
    %8814 = vmatprep.subr.bf16.mxu0 %v7685
    %8815 = vmatpush2.bf16.msra.mxu0 %v7684
    %8816 = vmatprep.subr.bf16.mxu0 %v7677
    %8817 = vmatpush2.bf16.msra.mxu0 %v7676
    %8818 = vmatprep.mubr.bf16.mxu0 %v5301
    %8819 = vmatmul.mubr.bf16.gmra.mxu0 %v5300
    %v8820 = vpop.f32.mrf.mxu0
    %v8821 = vadd.f32 %v8780, %v8820
    %v8822 = vpop.f32.mrf.mxu0
    %v8823 = vadd.f32 %v8782, %v8822
    %v8824 = vpop.f32.mrf.mxu0
    %v8825 = vpop.f32.mrf.mxu0
    %8826 = vdwg.mxu0
    %8827 = vmatprep.subr.bf16.mxu0 %v7797
    %8828 = vmatpush1.bf16.msra.mxu0 %v7796
    %8829 = vmatprep.subr.bf16.mxu0 %v7789
    %8830 = vmatpush1.bf16.msra.mxu0 %v7788
    %8831 = vmatprep.subr.bf16.mxu0 %v7781
    %8832 = vmatpush1.bf16.msra.mxu0 %v7780
    %8833 = vmatprep.subr.bf16.mxu0 %v7773
    %8834 = vmatpush1.bf16.msra.mxu0 %v7772
    %8835 = vmatprep.subr.bf16.mxu0 %v7765
    %8836 = vmatpush1.bf16.msra.mxu0 %v7764
    %8837 = vmatprep.subr.bf16.mxu0 %v7757
    %8838 = vmatpush1.bf16.msra.mxu0 %v7756
    %8839 = vmatprep.subr.bf16.mxu0 %v7749
    %8840 = vmatpush1.bf16.msra.mxu0 %v7748
    %8841 = vmatprep.subr.bf16.mxu0 %v7741
    %8842 = vmatpush1.bf16.msra.mxu0 %v7740
    %8843 = vmatprep.subr.bf16.mxu0 %v7861
    %8844 = vmatpush2.bf16.msra.mxu0 %v7860
    %8845 = vmatprep.subr.bf16.mxu0 %v7853
    %8846 = vmatpush2.bf16.msra.mxu0 %v7852
    %8847 = vmatprep.subr.bf16.mxu0 %v7845
    %8848 = vmatpush2.bf16.msra.mxu0 %v7844
    %8849 = vmatprep.subr.bf16.mxu0 %v7837
    %8850 = vmatpush2.bf16.msra.mxu0 %v7836
    %8851 = vmatprep.subr.bf16.mxu0 %v7829
    %8852 = vmatpush2.bf16.msra.mxu0 %v7828
    %8853 = vmatprep.subr.bf16.mxu0 %v7821
    %8854 = vmatpush2.bf16.msra.mxu0 %v7820
    %8855 = vmatprep.subr.bf16.mxu0 %v7813
    %8856 = vmatpush2.bf16.msra.mxu0 %v7812
    %8857 = vmatprep.subr.bf16.mxu0 %v7805
    %8858 = vmatpush2.bf16.msra.mxu0 %v7804
    %8859 = vmatprep.mubr.bf16.mxu0 %v5303
    %8860 = vmatmul.mubr.bf16.gmra.mxu0 %v5302
    %v8861 = vpop.f32.mrf.mxu0
    %v8862 = vadd.f32 %v8821, %v8861
    %v8863 = vpop.f32.mrf.mxu0
    %v8864 = vadd.f32 %v8823, %v8863
    %v8865 = vpop.f32.mrf.mxu0
    %v8866 = vpop.f32.mrf.mxu0
    %8867 = vdwg.mxu0
    %8868 = vmatprep.subr.bf16.mxu0 %v7415
    %8869 = vmatpush1.bf16.msra.mxu0 %v7414
    %8870 = vmatprep.subr.bf16.mxu0 %v7407
    %8871 = vmatpush1.bf16.msra.mxu0 %v7406
    %8872 = vmatprep.subr.bf16.mxu0 %v7399
    %8873 = vmatpush1.bf16.msra.mxu0 %v7398
    %8874 = vmatprep.subr.bf16.mxu0 %v7391
    %8875 = vmatpush1.bf16.msra.mxu0 %v7390
    %8876 = vmatprep.subr.bf16.mxu0 %v7383
    %8877 = vmatpush1.bf16.msra.mxu0 %v7382
    %8878 = vmatprep.subr.bf16.mxu0 %v7375
    %8879 = vmatpush1.bf16.msra.mxu0 %v7374
    %8880 = vmatprep.subr.bf16.mxu0 %v7367
    %8881 = vmatpush1.bf16.msra.mxu0 %v7366
    %8882 = vmatprep.subr.bf16.mxu0 %v7359
    %8883 = vmatpush1.bf16.msra.mxu0 %v7358
    %8884 = vmatprep.subr.bf16.mxu0 %v7479
    %8885 = vmatpush2.bf16.msra.mxu0 %v7478
    %8886 = vmatprep.subr.bf16.mxu0 %v7471
    %8887 = vmatpush2.bf16.msra.mxu0 %v7470
    %8888 = vmatprep.subr.bf16.mxu0 %v7463
    %8889 = vmatpush2.bf16.msra.mxu0 %v7462
    %8890 = vmatprep.subr.bf16.mxu0 %v7455
    %8891 = vmatpush2.bf16.msra.mxu0 %v7454
    %8892 = vmatprep.subr.bf16.mxu0 %v7447
    %8893 = vmatpush2.bf16.msra.mxu0 %v7446
    %8894 = vmatprep.subr.bf16.mxu0 %v7439
    %8895 = vmatpush2.bf16.msra.mxu0 %v7438
    %8896 = vmatprep.subr.bf16.mxu0 %v7431
    %8897 = vmatpush2.bf16.msra.mxu0 %v7430
    %8898 = vmatprep.subr.bf16.mxu0 %v7423
    %8899 = vmatpush2.bf16.msra.mxu0 %v7422
    %8900 = vmatprep.mubr.bf16.mxu0 %v5297
    %8901 = vmatmul.mubr.bf16.gmra.mxu0 %v5296
    %v8902 = vpop.f32.mrf.mxu0
    %v8903 = vadd.f32 0.0, %v8902
    %v8904 = vpop.f32.mrf.mxu0
    %v8905 = vadd.f32 0.0, %v8904
    %v8906 = vpop.f32.mrf.mxu0
    %v8907 = vpop.f32.mrf.mxu0
    %8908 = vdwg.mxu0
    %8909 = vmatprep.subr.bf16.mxu0 %v7543
    %8910 = vmatpush1.bf16.msra.mxu0 %v7542
    %8911 = vmatprep.subr.bf16.mxu0 %v7535
    %8912 = vmatpush1.bf16.msra.mxu0 %v7534
    %8913 = vmatprep.subr.bf16.mxu0 %v7527
    %8914 = vmatpush1.bf16.msra.mxu0 %v7526
    %8915 = vmatprep.subr.bf16.mxu0 %v7519
    %8916 = vmatpush1.bf16.msra.mxu0 %v7518
    %8917 = vmatprep.subr.bf16.mxu0 %v7511
    %8918 = vmatpush1.bf16.msra.mxu0 %v7510
    %8919 = vmatprep.subr.bf16.mxu0 %v7503
    %8920 = vmatpush1.bf16.msra.mxu0 %v7502
    %8921 = vmatprep.subr.bf16.mxu0 %v7495
    %8922 = vmatpush1.bf16.msra.mxu0 %v7494
    %8923 = vmatprep.subr.bf16.mxu0 %v7487
    %8924 = vmatpush1.bf16.msra.mxu0 %v7486
    %8925 = vmatprep.subr.bf16.mxu0 %v7607
    %8926 = vmatpush2.bf16.msra.mxu0 %v7606
    %8927 = vmatprep.subr.bf16.mxu0 %v7599
    %8928 = vmatpush2.bf16.msra.mxu0 %v7598
    %8929 = vmatprep.subr.bf16.mxu0 %v7591
    %8930 = vmatpush2.bf16.msra.mxu0 %v7590
    %8931 = vmatprep.subr.bf16.mxu0 %v7583
    %8932 = vmatpush2.bf16.msra.mxu0 %v7582
    %8933 = vmatprep.subr.bf16.mxu0 %v7575
    %8934 = vmatpush2.bf16.msra.mxu0 %v7574
    %8935 = vmatprep.subr.bf16.mxu0 %v7567
    %8936 = vmatpush2.bf16.msra.mxu0 %v7566
    %8937 = vmatprep.subr.bf16.mxu0 %v7559
    %8938 = vmatpush2.bf16.msra.mxu0 %v7558
    %8939 = vmatprep.subr.bf16.mxu0 %v7551
    %8940 = vmatpush2.bf16.msra.mxu0 %v7550
    %8941 = vmatprep.mubr.bf16.mxu0 %v5299
    %8942 = vmatmul.mubr.bf16.gmra.mxu0 %v5298
    %v8943 = vpop.f32.mrf.mxu0
    %v8944 = vadd.f32 %v8903, %v8943
    %v8945 = vpop.f32.mrf.mxu0
    %v8946 = vadd.f32 %v8905, %v8945
    %v8947 = vpop.f32.mrf.mxu0
    %v8948 = vpop.f32.mrf.mxu0
    %8949 = vdwg.mxu0
    %8950 = vmatprep.subr.bf16.mxu0 %v7671
    %8951 = vmatpush1.bf16.msra.mxu0 %v7670
    %8952 = vmatprep.subr.bf16.mxu0 %v7663
    %8953 = vmatpush1.bf16.msra.mxu0 %v7662
    %8954 = vmatprep.subr.bf16.mxu0 %v7655
    %8955 = vmatpush1.bf16.msra.mxu0 %v7654
    %8956 = vmatprep.subr.bf16.mxu0 %v7647
    %8957 = vmatpush1.bf16.msra.mxu0 %v7646
    %8958 = vmatprep.subr.bf16.mxu0 %v7639
    %8959 = vmatpush1.bf16.msra.mxu0 %v7638
    %8960 = vmatprep.subr.bf16.mxu0 %v7631
    %8961 = vmatpush1.bf16.msra.mxu0 %v7630
    %8962 = vmatprep.subr.bf16.mxu0 %v7623
    %8963 = vmatpush1.bf16.msra.mxu0 %v7622
    %8964 = vmatprep.subr.bf16.mxu0 %v7615
    %8965 = vmatpush1.bf16.msra.mxu0 %v7614
    %8966 = vmatprep.subr.bf16.mxu0 %v7735
    %8967 = vmatpush2.bf16.msra.mxu0 %v7734
    %8968 = vmatprep.subr.bf16.mxu0 %v7727
    %8969 = vmatpush2.bf16.msra.mxu0 %v7726
    %8970 = vmatprep.subr.bf16.mxu0 %v7719
    %8971 = vmatpush2.bf16.msra.mxu0 %v7718
    %8972 = vmatprep.subr.bf16.mxu0 %v7711
    %8973 = vmatpush2.bf16.msra.mxu0 %v7710
    %8974 = vmatprep.subr.bf16.mxu0 %v7703
    %8975 = vmatpush2.bf16.msra.mxu0 %v7702
    %8976 = vmatprep.subr.bf16.mxu0 %v7695
    %8977 = vmatpush2.bf16.msra.mxu0 %v7694
    %8978 = vmatprep.subr.bf16.mxu0 %v7687
    %8979 = vmatpush2.bf16.msra.mxu0 %v7686
    %8980 = vmatprep.subr.bf16.mxu0 %v7679
    %8981 = vmatpush2.bf16.msra.mxu0 %v7678
    %8982 = vmatprep.mubr.bf16.mxu0 %v5301
    %8983 = vmatmul.mubr.bf16.gmra.mxu0 %v5300
    %v8984 = vpop.f32.mrf.mxu0
    %v8985 = vadd.f32 %v8944, %v8984
    %v8986 = vpop.f32.mrf.mxu0
    %v8987 = vadd.f32 %v8946, %v8986
    %v8988 = vpop.f32.mrf.mxu0
    %v8989 = vpop.f32.mrf.mxu0
    %8990 = vdwg.mxu0
    %8991 = vmatprep.subr.bf16.mxu0 %v7799
    %8992 = vmatpush1.bf16.msra.mxu0 %v7798
    %8993 = vmatprep.subr.bf16.mxu0 %v7791
    %8994 = vmatpush1.bf16.msra.mxu0 %v7790
    %8995 = vmatprep.subr.bf16.mxu0 %v7783
    %8996 = vmatpush1.bf16.msra.mxu0 %v7782
    %8997 = vmatprep.subr.bf16.mxu0 %v7775
    %8998 = vmatpush1.bf16.msra.mxu0 %v7774
    %8999 = vmatprep.subr.bf16.mxu0 %v7767
    %9000 = vmatpush1.bf16.msra.mxu0 %v7766
    %9001 = vmatprep.subr.bf16.mxu0 %v7759
    %9002 = vmatpush1.bf16.msra.mxu0 %v7758
    %9003 = vmatprep.subr.bf16.mxu0 %v7751
    %9004 = vmatpush1.bf16.msra.mxu0 %v7750
    %9005 = vmatprep.subr.bf16.mxu0 %v7743
    %9006 = vmatpush1.bf16.msra.mxu0 %v7742
    %9007 = vmatprep.subr.bf16.mxu0 %v7863
    %9008 = vmatpush2.bf16.msra.mxu0 %v7862
    %9009 = vmatprep.subr.bf16.mxu0 %v7855
    %9010 = vmatpush2.bf16.msra.mxu0 %v7854
    %9011 = vmatprep.subr.bf16.mxu0 %v7847
    %9012 = vmatpush2.bf16.msra.mxu0 %v7846
    %9013 = vmatprep.subr.bf16.mxu0 %v7839
    %9014 = vmatpush2.bf16.msra.mxu0 %v7838
    %9015 = vmatprep.subr.bf16.mxu0 %v7831
    %9016 = vmatpush2.bf16.msra.mxu0 %v7830
    %9017 = vmatprep.subr.bf16.mxu0 %v7823
    %9018 = vmatpush2.bf16.msra.mxu0 %v7822
    %9019 = vmatprep.subr.bf16.mxu0 %v7815
    %9020 = vmatpush2.bf16.msra.mxu0 %v7814
    %9021 = vmatprep.subr.bf16.mxu0 %v7807
    %9022 = vmatpush2.bf16.msra.mxu0 %v7806
    %9023 = vmatprep.mubr.bf16.mxu0 %v5303
    %9024 = vmatmul.mubr.bf16.gmra.mxu0 %v5302
    %v9025 = vpop.f32.mrf.mxu0
    %v9026 = vadd.f32 %v8985, %v9025
    %v9027 = vpop.f32.mrf.mxu0
    %v9028 = vadd.f32 %v8987, %v9027
    %v9029 = vpop.f32.mrf.mxu0
    %v9030 = vpop.f32.mrf.mxu0
    %9031 = vdwg.mxu0
    %v9544 = vunpack.c.l.b16 %v4784
    %v9545 = vunpack.c.h.b16 %v4784
    %v9546 = vunpack.c.l.b16 %v4785
    %v9547 = vunpack.c.h.b16 %v4785
    %v9548 = vunpack.c.l.b16 %v4786
    %v9549 = vunpack.c.h.b16 %v4786
    %v9550 = vunpack.c.l.b16 %v4787
    %v9551 = vunpack.c.h.b16 %v4787
    %v9552 = vunpack.c.l.b16 %v4788
    %v9553 = vunpack.c.h.b16 %v4788
    %v9554 = vunpack.c.l.b16 %v4789
    %v9555 = vunpack.c.h.b16 %v4789
    %v9556 = vunpack.c.l.b16 %v4790
    %v9557 = vunpack.c.h.b16 %v4790
    %v9558 = vunpack.c.l.b16 %v4791
    %v9559 = vunpack.c.h.b16 %v4791
    %v9560 = vunpack.c.l.b16 %v4792
    %v9561 = vunpack.c.h.b16 %v4792
    %v9562 = vunpack.c.l.b16 %v4793
    %v9563 = vunpack.c.h.b16 %v4793
    %v9564 = vunpack.c.l.b16 %v4794
    %v9565 = vunpack.c.h.b16 %v4794
    %v9566 = vunpack.c.l.b16 %v4795
    %v9567 = vunpack.c.h.b16 %v4795
    %v9568 = vunpack.c.l.b16 %v4796
    %v9569 = vunpack.c.h.b16 %v4796
    %v9570 = vunpack.c.l.b16 %v4797
    %v9571 = vunpack.c.h.b16 %v4797
    %v9572 = vunpack.c.l.b16 %v4798
    %v9573 = vunpack.c.h.b16 %v4798
    %v9574 = vunpack.c.l.b16 %v4799
    %v9575 = vunpack.c.h.b16 %v4799
    %v9576 = vunpack.c.l.b16 %v4800
    %v9577 = vunpack.c.h.b16 %v4800
    %v9578 = vunpack.c.l.b16 %v4801
    %v9579 = vunpack.c.h.b16 %v4801
    %v9580 = vunpack.c.l.b16 %v4802
    %v9581 = vunpack.c.h.b16 %v4802
    %v9582 = vunpack.c.l.b16 %v4803
    %v9583 = vunpack.c.h.b16 %v4803
    %v9584 = vunpack.c.l.b16 %v4804
    %v9585 = vunpack.c.h.b16 %v4804
    %v9586 = vunpack.c.l.b16 %v4805
    %v9587 = vunpack.c.h.b16 %v4805
    %v9588 = vunpack.c.l.b16 %v4806
    %v9589 = vunpack.c.h.b16 %v4806
    %v9590 = vunpack.c.l.b16 %v4807
    %v9591 = vunpack.c.h.b16 %v4807
    %v9592 = vunpack.c.l.b16 %v4808
    %v9593 = vunpack.c.h.b16 %v4808
    %v9594 = vunpack.c.l.b16 %v4809
    %v9595 = vunpack.c.h.b16 %v4809
    %v9596 = vunpack.c.l.b16 %v4810
    %v9597 = vunpack.c.h.b16 %v4810
    %v9598 = vunpack.c.l.b16 %v4811
    %v9599 = vunpack.c.h.b16 %v4811
    %v9600 = vunpack.c.l.b16 %v4812
    %v9601 = vunpack.c.h.b16 %v4812
    %v9602 = vunpack.c.l.b16 %v4813
    %v9603 = vunpack.c.h.b16 %v4813
    %v9604 = vunpack.c.l.b16 %v4814
    %v9605 = vunpack.c.h.b16 %v4814
    %v9606 = vunpack.c.l.b16 %v4815
    %v9607 = vunpack.c.h.b16 %v4815
    %v9608 = vunpack.c.l.b16 %v4816
    %v9609 = vunpack.c.h.b16 %v4816
    %v9610 = vunpack.c.l.b16 %v4817
    %v9611 = vunpack.c.h.b16 %v4817
    %v9612 = vunpack.c.l.b16 %v4818
    %v9613 = vunpack.c.h.b16 %v4818
    %v9614 = vunpack.c.l.b16 %v4819
    %v9615 = vunpack.c.h.b16 %v4819
    %v9616 = vunpack.c.l.b16 %v4820
    %v9617 = vunpack.c.h.b16 %v4820
    %v9618 = vunpack.c.l.b16 %v4821
    %v9619 = vunpack.c.h.b16 %v4821
    %v9620 = vunpack.c.l.b16 %v4822
    %v9621 = vunpack.c.h.b16 %v4822
    %v9622 = vunpack.c.l.b16 %v4823
    %v9623 = vunpack.c.h.b16 %v4823
    %v9624 = vunpack.c.l.b16 %v4824
    %v9625 = vunpack.c.h.b16 %v4824
    %v9626 = vunpack.c.l.b16 %v4825
    %v9627 = vunpack.c.h.b16 %v4825
    %v9628 = vunpack.c.l.b16 %v4826
    %v9629 = vunpack.c.h.b16 %v4826
    %v9630 = vunpack.c.l.b16 %v4827
    %v9631 = vunpack.c.h.b16 %v4827
    %v9632 = vunpack.c.l.b16 %v4828
    %v9633 = vunpack.c.h.b16 %v4828
    %v9634 = vunpack.c.l.b16 %v4829
    %v9635 = vunpack.c.h.b16 %v4829
    %v9636 = vunpack.c.l.b16 %v4830
    %v9637 = vunpack.c.h.b16 %v4830
    %v9638 = vunpack.c.l.b16 %v4831
    %v9639 = vunpack.c.h.b16 %v4831
    %v9640 = vunpack.c.l.b16 %v4832
    %v9641 = vunpack.c.h.b16 %v4832
    %v9642 = vunpack.c.l.b16 %v4833
    %v9643 = vunpack.c.h.b16 %v4833
    %v9644 = vunpack.c.l.b16 %v4834
    %v9645 = vunpack.c.h.b16 %v4834
    %v9646 = vunpack.c.l.b16 %v4835
    %v9647 = vunpack.c.h.b16 %v4835
    %v9648 = vunpack.c.l.b16 %v4836
    %v9649 = vunpack.c.h.b16 %v4836
    %v9650 = vunpack.c.l.b16 %v4837
    %v9651 = vunpack.c.h.b16 %v4837
    %v9652 = vunpack.c.l.b16 %v4838
    %v9653 = vunpack.c.h.b16 %v4838
    %v9654 = vunpack.c.l.b16 %v4839
    %v9655 = vunpack.c.h.b16 %v4839
    %v9656 = vunpack.c.l.b16 %v4840
    %v9657 = vunpack.c.h.b16 %v4840
    %v9658 = vunpack.c.l.b16 %v4841
    %v9659 = vunpack.c.h.b16 %v4841
    %v9660 = vunpack.c.l.b16 %v4842
    %v9661 = vunpack.c.h.b16 %v4842
    %v9662 = vunpack.c.l.b16 %v4843
    %v9663 = vunpack.c.h.b16 %v4843
    %v9664 = vunpack.c.l.b16 %v4844
    %v9665 = vunpack.c.h.b16 %v4844
    %v9666 = vunpack.c.l.b16 %v4845
    %v9667 = vunpack.c.h.b16 %v4845
    %v9668 = vunpack.c.l.b16 %v4846
    %v9669 = vunpack.c.h.b16 %v4846
    %v9670 = vunpack.c.l.b16 %v4847
    %v9671 = vunpack.c.h.b16 %v4847
    %v9672 = vunpack.c.l.b16 %v4848
    %v9673 = vunpack.c.h.b16 %v4848
    %v9674 = vunpack.c.l.b16 %v4849
    %v9675 = vunpack.c.h.b16 %v4849
    %v9676 = vunpack.c.l.b16 %v4850
    %v9677 = vunpack.c.h.b16 %v4850
    %v9678 = vunpack.c.l.b16 %v4851
    %v9679 = vunpack.c.h.b16 %v4851
    %v9680 = vunpack.c.l.b16 %v4852
    %v9681 = vunpack.c.h.b16 %v4852
    %v9682 = vunpack.c.l.b16 %v4853
    %v9683 = vunpack.c.h.b16 %v4853
    %v9684 = vunpack.c.l.b16 %v4854
    %v9685 = vunpack.c.h.b16 %v4854
    %v9686 = vunpack.c.l.b16 %v4855
    %v9687 = vunpack.c.h.b16 %v4855
    %v9688 = vunpack.c.l.b16 %v4856
    %v9689 = vunpack.c.h.b16 %v4856
    %v9690 = vunpack.c.l.b16 %v4857
    %v9691 = vunpack.c.h.b16 %v4857
    %v9692 = vunpack.c.l.b16 %v4858
    %v9693 = vunpack.c.h.b16 %v4858
    %v9694 = vunpack.c.l.b16 %v4859
    %v9695 = vunpack.c.h.b16 %v4859
    %v9696 = vunpack.c.l.b16 %v4860
    %v9697 = vunpack.c.h.b16 %v4860
    %v9698 = vunpack.c.l.b16 %v4861
    %v9699 = vunpack.c.h.b16 %v4861
    %v9700 = vunpack.c.l.b16 %v4862
    %v9701 = vunpack.c.h.b16 %v4862
    %v9702 = vunpack.c.l.b16 %v4863
    %v9703 = vunpack.c.h.b16 %v4863
    %v9704 = vunpack.c.l.b16 %v4864
    %v9705 = vunpack.c.h.b16 %v4864
    %v9706 = vunpack.c.l.b16 %v4865
    %v9707 = vunpack.c.h.b16 %v4865
    %v9708 = vunpack.c.l.b16 %v4866
    %v9709 = vunpack.c.h.b16 %v4866
    %v9710 = vunpack.c.l.b16 %v4867
    %v9711 = vunpack.c.h.b16 %v4867
    %v9712 = vunpack.c.l.b16 %v4868
    %v9713 = vunpack.c.h.b16 %v4868
    %v9714 = vunpack.c.l.b16 %v4869
    %v9715 = vunpack.c.h.b16 %v4869
    %v9716 = vunpack.c.l.b16 %v4870
    %v9717 = vunpack.c.h.b16 %v4870
    %v9718 = vunpack.c.l.b16 %v4871
    %v9719 = vunpack.c.h.b16 %v4871
    %v9720 = vunpack.c.l.b16 %v4872
    %v9721 = vunpack.c.h.b16 %v4872
    %v9722 = vunpack.c.l.b16 %v4873
    %v9723 = vunpack.c.h.b16 %v4873
    %v9724 = vunpack.c.l.b16 %v4874
    %v9725 = vunpack.c.h.b16 %v4874
    %v9726 = vunpack.c.l.b16 %v4875
    %v9727 = vunpack.c.h.b16 %v4875
    %v9728 = vunpack.c.l.b16 %v4876
    %v9729 = vunpack.c.h.b16 %v4876
    %v9730 = vunpack.c.l.b16 %v4877
    %v9731 = vunpack.c.h.b16 %v4877
    %v9732 = vunpack.c.l.b16 %v4878
    %v9733 = vunpack.c.h.b16 %v4878
    %v9734 = vunpack.c.l.b16 %v4879
    %v9735 = vunpack.c.h.b16 %v4879
    %v9736 = vunpack.c.l.b16 %v4880
    %v9737 = vunpack.c.h.b16 %v4880
    %v9738 = vunpack.c.l.b16 %v4881
    %v9739 = vunpack.c.h.b16 %v4881
    %v9740 = vunpack.c.l.b16 %v4882
    %v9741 = vunpack.c.h.b16 %v4882
    %v9742 = vunpack.c.l.b16 %v4883
    %v9743 = vunpack.c.h.b16 %v4883
    %v9744 = vunpack.c.l.b16 %v4884
    %v9745 = vunpack.c.h.b16 %v4884
    %v9746 = vunpack.c.l.b16 %v4885
    %v9747 = vunpack.c.h.b16 %v4885
    %v9748 = vunpack.c.l.b16 %v4886
    %v9749 = vunpack.c.h.b16 %v4886
    %v9750 = vunpack.c.l.b16 %v4887
    %v9751 = vunpack.c.h.b16 %v4887
    %v9752 = vunpack.c.l.b16 %v4888
    %v9753 = vunpack.c.h.b16 %v4888
    %v9754 = vunpack.c.l.b16 %v4889
    %v9755 = vunpack.c.h.b16 %v4889
    %v9756 = vunpack.c.l.b16 %v4890
    %v9757 = vunpack.c.h.b16 %v4890
    %v9758 = vunpack.c.l.b16 %v4891
    %v9759 = vunpack.c.h.b16 %v4891
    %v9760 = vunpack.c.l.b16 %v4892
    %v9761 = vunpack.c.h.b16 %v4892
    %v9762 = vunpack.c.l.b16 %v4893
    %v9763 = vunpack.c.h.b16 %v4893
    %v9764 = vunpack.c.l.b16 %v4894
    %v9765 = vunpack.c.h.b16 %v4894
    %v9766 = vunpack.c.l.b16 %v4895
    %v9767 = vunpack.c.h.b16 %v4895
    %v9768 = vunpack.c.l.b16 %v4896
    %v9769 = vunpack.c.h.b16 %v4896
    %v9770 = vunpack.c.l.b16 %v4897
    %v9771 = vunpack.c.h.b16 %v4897
    %v9772 = vunpack.c.l.b16 %v4898
    %v9773 = vunpack.c.h.b16 %v4898
    %v9774 = vunpack.c.l.b16 %v4899
    %v9775 = vunpack.c.h.b16 %v4899
    %v9776 = vunpack.c.l.b16 %v4900
    %v9777 = vunpack.c.h.b16 %v4900
    %v9778 = vunpack.c.l.b16 %v4901
    %v9779 = vunpack.c.h.b16 %v4901
    %v9780 = vunpack.c.l.b16 %v4902
    %v9781 = vunpack.c.h.b16 %v4902
    %v9782 = vunpack.c.l.b16 %v4903
    %v9783 = vunpack.c.h.b16 %v4903
    %v9784 = vunpack.c.l.b16 %v4904
    %v9785 = vunpack.c.h.b16 %v4904
    %v9786 = vunpack.c.l.b16 %v4905
    %v9787 = vunpack.c.h.b16 %v4905
    %v9788 = vunpack.c.l.b16 %v4906
    %v9789 = vunpack.c.h.b16 %v4906
    %v9790 = vunpack.c.l.b16 %v4907
    %v9791 = vunpack.c.h.b16 %v4907
    %v9792 = vunpack.c.l.b16 %v4908
    %v9793 = vunpack.c.h.b16 %v4908
    %v9794 = vunpack.c.l.b16 %v4909
    %v9795 = vunpack.c.h.b16 %v4909
    %v9796 = vunpack.c.l.b16 %v4910
    %v9797 = vunpack.c.h.b16 %v4910
    %v9798 = vunpack.c.l.b16 %v4911
    %v9799 = vunpack.c.h.b16 %v4911
    %v9800 = vunpack.c.l.b16 %v4912
    %v9801 = vunpack.c.h.b16 %v4912
    %v9802 = vunpack.c.l.b16 %v4913
    %v9803 = vunpack.c.h.b16 %v4913
    %v9804 = vunpack.c.l.b16 %v4914
    %v9805 = vunpack.c.h.b16 %v4914
    %v9806 = vunpack.c.l.b16 %v4915
    %v9807 = vunpack.c.h.b16 %v4915
    %v9808 = vunpack.c.l.b16 %v4916
    %v9809 = vunpack.c.h.b16 %v4916
    %v9810 = vunpack.c.l.b16 %v4917
    %v9811 = vunpack.c.h.b16 %v4917
    %v9812 = vunpack.c.l.b16 %v4918
    %v9813 = vunpack.c.h.b16 %v4918
    %v9814 = vunpack.c.l.b16 %v4919
    %v9815 = vunpack.c.h.b16 %v4919
    %v9816 = vunpack.c.l.b16 %v4920
    %v9817 = vunpack.c.h.b16 %v4920
    %v9818 = vunpack.c.l.b16 %v4921
    %v9819 = vunpack.c.h.b16 %v4921
    %v9820 = vunpack.c.l.b16 %v4922
    %v9821 = vunpack.c.h.b16 %v4922
    %v9822 = vunpack.c.l.b16 %v4923
    %v9823 = vunpack.c.h.b16 %v4923
    %v9824 = vunpack.c.l.b16 %v4924
    %v9825 = vunpack.c.h.b16 %v4924
    %v9826 = vunpack.c.l.b16 %v4925
    %v9827 = vunpack.c.h.b16 %v4925
    %v9828 = vunpack.c.l.b16 %v4926
    %v9829 = vunpack.c.h.b16 %v4926
    %v9830 = vunpack.c.l.b16 %v4927
    %v9831 = vunpack.c.h.b16 %v4927
    %v9832 = vunpack.c.l.b16 %v4928
    %v9833 = vunpack.c.h.b16 %v4928
    %v9834 = vunpack.c.l.b16 %v4929
    %v9835 = vunpack.c.h.b16 %v4929
    %v9836 = vunpack.c.l.b16 %v4930
    %v9837 = vunpack.c.h.b16 %v4930
    %v9838 = vunpack.c.l.b16 %v4931
    %v9839 = vunpack.c.h.b16 %v4931
    %v9840 = vunpack.c.l.b16 %v4932
    %v9841 = vunpack.c.h.b16 %v4932
    %v9842 = vunpack.c.l.b16 %v4933
    %v9843 = vunpack.c.h.b16 %v4933
    %v9844 = vunpack.c.l.b16 %v4934
    %v9845 = vunpack.c.h.b16 %v4934
    %v9846 = vunpack.c.l.b16 %v4935
    %v9847 = vunpack.c.h.b16 %v4935
    %v9848 = vunpack.c.l.b16 %v4936
    %v9849 = vunpack.c.h.b16 %v4936
    %v9850 = vunpack.c.l.b16 %v4937
    %v9851 = vunpack.c.h.b16 %v4937
    %v9852 = vunpack.c.l.b16 %v4938
    %v9853 = vunpack.c.h.b16 %v4938
    %v9854 = vunpack.c.l.b16 %v4939
    %v9855 = vunpack.c.h.b16 %v4939
    %v9856 = vunpack.c.l.b16 %v4940
    %v9857 = vunpack.c.h.b16 %v4940
    %v9858 = vunpack.c.l.b16 %v4941
    %v9859 = vunpack.c.h.b16 %v4941
    %v9860 = vunpack.c.l.b16 %v4942
    %v9861 = vunpack.c.h.b16 %v4942
    %v9862 = vunpack.c.l.b16 %v4943
    %v9863 = vunpack.c.h.b16 %v4943
    %v9864 = vunpack.c.l.b16 %v4944
    %v9865 = vunpack.c.h.b16 %v4944
    %v9866 = vunpack.c.l.b16 %v4945
    %v9867 = vunpack.c.h.b16 %v4945
    %v9868 = vunpack.c.l.b16 %v4946
    %v9869 = vunpack.c.h.b16 %v4946
    %v9870 = vunpack.c.l.b16 %v4947
    %v9871 = vunpack.c.h.b16 %v4947
    %v9872 = vunpack.c.l.b16 %v4948
    %v9873 = vunpack.c.h.b16 %v4948
    %v9874 = vunpack.c.l.b16 %v4949
    %v9875 = vunpack.c.h.b16 %v4949
    %v9876 = vunpack.c.l.b16 %v4950
    %v9877 = vunpack.c.h.b16 %v4950
    %v9878 = vunpack.c.l.b16 %v4951
    %v9879 = vunpack.c.h.b16 %v4951
    %v9880 = vunpack.c.l.b16 %v4952
    %v9881 = vunpack.c.h.b16 %v4952
    %v9882 = vunpack.c.l.b16 %v4953
    %v9883 = vunpack.c.h.b16 %v4953
    %v9884 = vunpack.c.l.b16 %v4954
    %v9885 = vunpack.c.h.b16 %v4954
    %v9886 = vunpack.c.l.b16 %v4955
    %v9887 = vunpack.c.h.b16 %v4955
    %v9888 = vunpack.c.l.b16 %v4956
    %v9889 = vunpack.c.h.b16 %v4956
    %v9890 = vunpack.c.l.b16 %v4957
    %v9891 = vunpack.c.h.b16 %v4957
    %v9892 = vunpack.c.l.b16 %v4958
    %v9893 = vunpack.c.h.b16 %v4958
    %v9894 = vunpack.c.l.b16 %v4959
    %v9895 = vunpack.c.h.b16 %v4959
    %v9896 = vunpack.c.l.b16 %v4960
    %v9897 = vunpack.c.h.b16 %v4960
    %v9898 = vunpack.c.l.b16 %v4961
    %v9899 = vunpack.c.h.b16 %v4961
    %v9900 = vunpack.c.l.b16 %v4962
    %v9901 = vunpack.c.h.b16 %v4962
    %v9902 = vunpack.c.l.b16 %v4963
    %v9903 = vunpack.c.h.b16 %v4963
    %v9904 = vunpack.c.l.b16 %v4964
    %v9905 = vunpack.c.h.b16 %v4964
    %v9906 = vunpack.c.l.b16 %v4965
    %v9907 = vunpack.c.h.b16 %v4965
    %v9908 = vunpack.c.l.b16 %v4966
    %v9909 = vunpack.c.h.b16 %v4966
    %v9910 = vunpack.c.l.b16 %v4967
    %v9911 = vunpack.c.h.b16 %v4967
    %v9912 = vunpack.c.l.b16 %v4968
    %v9913 = vunpack.c.h.b16 %v4968
    %v9914 = vunpack.c.l.b16 %v4969
    %v9915 = vunpack.c.h.b16 %v4969
    %v9916 = vunpack.c.l.b16 %v4970
    %v9917 = vunpack.c.h.b16 %v4970
    %v9918 = vunpack.c.l.b16 %v4971
    %v9919 = vunpack.c.h.b16 %v4971
    %v9920 = vunpack.c.l.b16 %v4972
    %v9921 = vunpack.c.h.b16 %v4972
    %v9922 = vunpack.c.l.b16 %v4973
    %v9923 = vunpack.c.h.b16 %v4973
    %v9924 = vunpack.c.l.b16 %v4974
    %v9925 = vunpack.c.h.b16 %v4974
    %v9926 = vunpack.c.l.b16 %v4975
    %v9927 = vunpack.c.h.b16 %v4975
    %v9928 = vunpack.c.l.b16 %v4976
    %v9929 = vunpack.c.h.b16 %v4976
    %v9930 = vunpack.c.l.b16 %v4977
    %v9931 = vunpack.c.h.b16 %v4977
    %v9932 = vunpack.c.l.b16 %v4978
    %v9933 = vunpack.c.h.b16 %v4978
    %v9934 = vunpack.c.l.b16 %v4979
    %v9935 = vunpack.c.h.b16 %v4979
    %v9936 = vunpack.c.l.b16 %v4980
    %v9937 = vunpack.c.h.b16 %v4980
    %v9938 = vunpack.c.l.b16 %v4981
    %v9939 = vunpack.c.h.b16 %v4981
    %v9940 = vunpack.c.l.b16 %v4982
    %v9941 = vunpack.c.h.b16 %v4982
    %v9942 = vunpack.c.l.b16 %v4983
    %v9943 = vunpack.c.h.b16 %v4983
    %v9944 = vunpack.c.l.b16 %v4984
    %v9945 = vunpack.c.h.b16 %v4984
    %v9946 = vunpack.c.l.b16 %v4985
    %v9947 = vunpack.c.h.b16 %v4985
    %v9948 = vunpack.c.l.b16 %v4986
    %v9949 = vunpack.c.h.b16 %v4986
    %v9950 = vunpack.c.l.b16 %v4987
    %v9951 = vunpack.c.h.b16 %v4987
    %v9952 = vunpack.c.l.b16 %v4988
    %v9953 = vunpack.c.h.b16 %v4988
    %v9954 = vunpack.c.l.b16 %v4989
    %v9955 = vunpack.c.h.b16 %v4989
    %v9956 = vunpack.c.l.b16 %v4990
    %v9957 = vunpack.c.h.b16 %v4990
    %v9958 = vunpack.c.l.b16 %v4991
    %v9959 = vunpack.c.h.b16 %v4991
    %v9960 = vunpack.c.l.b16 %v4992
    %v9961 = vunpack.c.h.b16 %v4992
    %v9962 = vunpack.c.l.b16 %v4993
    %v9963 = vunpack.c.h.b16 %v4993
    %v9964 = vunpack.c.l.b16 %v4994
    %v9965 = vunpack.c.h.b16 %v4994
    %v9966 = vunpack.c.l.b16 %v4995
    %v9967 = vunpack.c.h.b16 %v4995
    %v9968 = vunpack.c.l.b16 %v4996
    %v9969 = vunpack.c.h.b16 %v4996
    %v9970 = vunpack.c.l.b16 %v4997
    %v9971 = vunpack.c.h.b16 %v4997
    %v9972 = vunpack.c.l.b16 %v4998
    %v9973 = vunpack.c.h.b16 %v4998
    %v9974 = vunpack.c.l.b16 %v4999
    %v9975 = vunpack.c.h.b16 %v4999
    %v9976 = vunpack.c.l.b16 %v5000
    %v9977 = vunpack.c.h.b16 %v5000
    %v9978 = vunpack.c.l.b16 %v5001
    %v9979 = vunpack.c.h.b16 %v5001
    %v9980 = vunpack.c.l.b16 %v5002
    %v9981 = vunpack.c.h.b16 %v5002
    %v9982 = vunpack.c.l.b16 %v5003
    %v9983 = vunpack.c.h.b16 %v5003
    %v9984 = vunpack.c.l.b16 %v5004
    %v9985 = vunpack.c.h.b16 %v5004
    %v9986 = vunpack.c.l.b16 %v5005
    %v9987 = vunpack.c.h.b16 %v5005
    %v9988 = vunpack.c.l.b16 %v5006
    %v9989 = vunpack.c.h.b16 %v5006
    %v9990 = vunpack.c.l.b16 %v5007
    %v9991 = vunpack.c.h.b16 %v5007
    %v9992 = vunpack.c.l.b16 %v5008
    %v9993 = vunpack.c.h.b16 %v5008
    %v9994 = vunpack.c.l.b16 %v5009
    %v9995 = vunpack.c.h.b16 %v5009
    %v9996 = vunpack.c.l.b16 %v5010
    %v9997 = vunpack.c.h.b16 %v5010
    %v9998 = vunpack.c.l.b16 %v5011
    %v9999 = vunpack.c.h.b16 %v5011
    %v10000 = vunpack.c.l.b16 %v5012
    %v10001 = vunpack.c.h.b16 %v5012
    %v10002 = vunpack.c.l.b16 %v5013
    %v10003 = vunpack.c.h.b16 %v5013
    %v10004 = vunpack.c.l.b16 %v5014
    %v10005 = vunpack.c.h.b16 %v5014
    %v10006 = vunpack.c.l.b16 %v5015
    %v10007 = vunpack.c.h.b16 %v5015
    %v10008 = vunpack.c.l.b16 %v5016
    %v10009 = vunpack.c.h.b16 %v5016
    %v10010 = vunpack.c.l.b16 %v5017
    %v10011 = vunpack.c.h.b16 %v5017
    %v10012 = vunpack.c.l.b16 %v5018
    %v10013 = vunpack.c.h.b16 %v5018
    %v10014 = vunpack.c.l.b16 %v5019
    %v10015 = vunpack.c.h.b16 %v5019
    %v10016 = vunpack.c.l.b16 %v5020
    %v10017 = vunpack.c.h.b16 %v5020
    %v10018 = vunpack.c.l.b16 %v5021
    %v10019 = vunpack.c.h.b16 %v5021
    %v10020 = vunpack.c.l.b16 %v5022
    %v10021 = vunpack.c.h.b16 %v5022
    %v10022 = vunpack.c.l.b16 %v5023
    %v10023 = vunpack.c.h.b16 %v5023
    %v10024 = vunpack.c.l.b16 %v5024
    %v10025 = vunpack.c.h.b16 %v5024
    %v10026 = vunpack.c.l.b16 %v5025
    %v10027 = vunpack.c.h.b16 %v5025
    %v10028 = vunpack.c.l.b16 %v5026
    %v10029 = vunpack.c.h.b16 %v5026
    %v10030 = vunpack.c.l.b16 %v5027
    %v10031 = vunpack.c.h.b16 %v5027
    %v10032 = vunpack.c.l.b16 %v5028
    %v10033 = vunpack.c.h.b16 %v5028
    %v10034 = vunpack.c.l.b16 %v5029
    %v10035 = vunpack.c.h.b16 %v5029
    %v10036 = vunpack.c.l.b16 %v5030
    %v10037 = vunpack.c.h.b16 %v5030
    %v10038 = vunpack.c.l.b16 %v5031
    %v10039 = vunpack.c.h.b16 %v5031
    %v10040 = vunpack.c.l.b16 %v5032
    %v10041 = vunpack.c.h.b16 %v5032
    %v10042 = vunpack.c.l.b16 %v5033
    %v10043 = vunpack.c.h.b16 %v5033
    %v10044 = vunpack.c.l.b16 %v5034
    %v10045 = vunpack.c.h.b16 %v5034
    %v10046 = vunpack.c.l.b16 %v5035
    %v10047 = vunpack.c.h.b16 %v5035
    %v10048 = vunpack.c.l.b16 %v5036
    %v10049 = vunpack.c.h.b16 %v5036
    %v10050 = vunpack.c.l.b16 %v5037
    %v10051 = vunpack.c.h.b16 %v5037
    %v10052 = vunpack.c.l.b16 %v5038
    %v10053 = vunpack.c.h.b16 %v5038
    %v10054 = vunpack.c.l.b16 %v5039
    %v10055 = vunpack.c.h.b16 %v5039
    %v10056 = vunpack.c.l.b16 %v5040
    %v10057 = vunpack.c.h.b16 %v5040
    %v10058 = vunpack.c.l.b16 %v5041
    %v10059 = vunpack.c.h.b16 %v5041
    %v10060 = vunpack.c.l.b16 %v5042
    %v10061 = vunpack.c.h.b16 %v5042
    %v10062 = vunpack.c.l.b16 %v5043
    %v10063 = vunpack.c.h.b16 %v5043
    %v10064 = vunpack.c.l.b16 %v5044
    %v10065 = vunpack.c.h.b16 %v5044
    %v10066 = vunpack.c.l.b16 %v5045
    %v10067 = vunpack.c.h.b16 %v5045
    %v10068 = vunpack.c.l.b16 %v5046
    %v10069 = vunpack.c.h.b16 %v5046
    %v10070 = vunpack.c.l.b16 %v5047
    %v10071 = vunpack.c.h.b16 %v5047
    %v10072 = vunpack.c.l.b16 %v5048
    %v10073 = vunpack.c.h.b16 %v5048
    %v10074 = vunpack.c.l.b16 %v5049
    %v10075 = vunpack.c.h.b16 %v5049
    %v10076 = vunpack.c.l.b16 %v5050
    %v10077 = vunpack.c.h.b16 %v5050
    %v10078 = vunpack.c.l.b16 %v5051
    %v10079 = vunpack.c.h.b16 %v5051
    %v10080 = vunpack.c.l.b16 %v5052
    %v10081 = vunpack.c.h.b16 %v5052
    %v10082 = vunpack.c.l.b16 %v5053
    %v10083 = vunpack.c.h.b16 %v5053
    %v10084 = vunpack.c.l.b16 %v5054
    %v10085 = vunpack.c.h.b16 %v5054
    %v10086 = vunpack.c.l.b16 %v5055
    %v10087 = vunpack.c.h.b16 %v5055
    %v10088 = vunpack.c.l.b16 %v5056
    %v10089 = vunpack.c.h.b16 %v5056
    %v10090 = vunpack.c.l.b16 %v5057
    %v10091 = vunpack.c.h.b16 %v5057
    %v10092 = vunpack.c.l.b16 %v5058
    %v10093 = vunpack.c.h.b16 %v5058
    %v10094 = vunpack.c.l.b16 %v5059
    %v10095 = vunpack.c.h.b16 %v5059
    %v10096 = vunpack.c.l.b16 %v5060
    %v10097 = vunpack.c.h.b16 %v5060
    %v10098 = vunpack.c.l.b16 %v5061
    %v10099 = vunpack.c.h.b16 %v5061
    %v10100 = vunpack.c.l.b16 %v5062
    %v10101 = vunpack.c.h.b16 %v5062
    %v10102 = vunpack.c.l.b16 %v5063
    %v10103 = vunpack.c.h.b16 %v5063
    %v10104 = vunpack.c.l.b16 %v5064
    %v10105 = vunpack.c.h.b16 %v5064
    %v10106 = vunpack.c.l.b16 %v5065
    %v10107 = vunpack.c.h.b16 %v5065
    %v10108 = vunpack.c.l.b16 %v5066
    %v10109 = vunpack.c.h.b16 %v5066
    %v10110 = vunpack.c.l.b16 %v5067
    %v10111 = vunpack.c.h.b16 %v5067
    %v10112 = vunpack.c.l.b16 %v5068
    %v10113 = vunpack.c.h.b16 %v5068
    %v10114 = vunpack.c.l.b16 %v5069
    %v10115 = vunpack.c.h.b16 %v5069
    %v10116 = vunpack.c.l.b16 %v5070
    %v10117 = vunpack.c.h.b16 %v5070
    %v10118 = vunpack.c.l.b16 %v5071
    %v10119 = vunpack.c.h.b16 %v5071
    %v10120 = vunpack.c.l.b16 %v5072
    %v10121 = vunpack.c.h.b16 %v5072
    %v10122 = vunpack.c.l.b16 %v5073
    %v10123 = vunpack.c.h.b16 %v5073
    %v10124 = vunpack.c.l.b16 %v5074
    %v10125 = vunpack.c.h.b16 %v5074
    %v10126 = vunpack.c.l.b16 %v5075
    %v10127 = vunpack.c.h.b16 %v5075
    %v10128 = vunpack.c.l.b16 %v5076
    %v10129 = vunpack.c.h.b16 %v5076
    %v10130 = vunpack.c.l.b16 %v5077
    %v10131 = vunpack.c.h.b16 %v5077
    %v10132 = vunpack.c.l.b16 %v5078
    %v10133 = vunpack.c.h.b16 %v5078
    %v10134 = vunpack.c.l.b16 %v5079
    %v10135 = vunpack.c.h.b16 %v5079
    %v10136 = vunpack.c.l.b16 %v5080
    %v10137 = vunpack.c.h.b16 %v5080
    %v10138 = vunpack.c.l.b16 %v5081
    %v10139 = vunpack.c.h.b16 %v5081
    %v10140 = vunpack.c.l.b16 %v5082
    %v10141 = vunpack.c.h.b16 %v5082
    %v10142 = vunpack.c.l.b16 %v5083
    %v10143 = vunpack.c.h.b16 %v5083
    %v10144 = vunpack.c.l.b16 %v5084
    %v10145 = vunpack.c.h.b16 %v5084
    %v10146 = vunpack.c.l.b16 %v5085
    %v10147 = vunpack.c.h.b16 %v5085
    %v10148 = vunpack.c.l.b16 %v5086
    %v10149 = vunpack.c.h.b16 %v5086
    %v10150 = vunpack.c.l.b16 %v5087
    %v10151 = vunpack.c.h.b16 %v5087
    %v10152 = vunpack.c.l.b16 %v5088
    %v10153 = vunpack.c.h.b16 %v5088
    %v10154 = vunpack.c.l.b16 %v5089
    %v10155 = vunpack.c.h.b16 %v5089
    %v10156 = vunpack.c.l.b16 %v5090
    %v10157 = vunpack.c.h.b16 %v5090
    %v10158 = vunpack.c.l.b16 %v5091
    %v10159 = vunpack.c.h.b16 %v5091
    %v10160 = vunpack.c.l.b16 %v5092
    %v10161 = vunpack.c.h.b16 %v5092
    %v10162 = vunpack.c.l.b16 %v5093
    %v10163 = vunpack.c.h.b16 %v5093
    %v10164 = vunpack.c.l.b16 %v5094
    %v10165 = vunpack.c.h.b16 %v5094
    %v10166 = vunpack.c.l.b16 %v5095
    %v10167 = vunpack.c.h.b16 %v5095
    %v10168 = vunpack.c.l.b16 %v5096
    %v10169 = vunpack.c.h.b16 %v5096
    %v10170 = vunpack.c.l.b16 %v5097
    %v10171 = vunpack.c.h.b16 %v5097
    %v10172 = vunpack.c.l.b16 %v5098
    %v10173 = vunpack.c.h.b16 %v5098
    %v10174 = vunpack.c.l.b16 %v5099
    %v10175 = vunpack.c.h.b16 %v5099
    %v10176 = vunpack.c.l.b16 %v5100
    %v10177 = vunpack.c.h.b16 %v5100
    %v10178 = vunpack.c.l.b16 %v5101
    %v10179 = vunpack.c.h.b16 %v5101
    %v10180 = vunpack.c.l.b16 %v5102
    %v10181 = vunpack.c.h.b16 %v5102
    %v10182 = vunpack.c.l.b16 %v5103
    %v10183 = vunpack.c.h.b16 %v5103
    %v10184 = vunpack.c.l.b16 %v5104
    %v10185 = vunpack.c.h.b16 %v5104
    %v10186 = vunpack.c.l.b16 %v5105
    %v10187 = vunpack.c.h.b16 %v5105
    %v10188 = vunpack.c.l.b16 %v5106
    %v10189 = vunpack.c.h.b16 %v5106
    %v10190 = vunpack.c.l.b16 %v5107
    %v10191 = vunpack.c.h.b16 %v5107
    %v10192 = vunpack.c.l.b16 %v5108
    %v10193 = vunpack.c.h.b16 %v5108
    %v10194 = vunpack.c.l.b16 %v5109
    %v10195 = vunpack.c.h.b16 %v5109
    %v10196 = vunpack.c.l.b16 %v5110
    %v10197 = vunpack.c.h.b16 %v5110
    %v10198 = vunpack.c.l.b16 %v5111
    %v10199 = vunpack.c.h.b16 %v5111
    %v10200 = vunpack.c.l.b16 %v5112
    %v10201 = vunpack.c.h.b16 %v5112
    %v10202 = vunpack.c.l.b16 %v5113
    %v10203 = vunpack.c.h.b16 %v5113
    %v10204 = vunpack.c.l.b16 %v5114
    %v10205 = vunpack.c.h.b16 %v5114
    %v10206 = vunpack.c.l.b16 %v5115
    %v10207 = vunpack.c.h.b16 %v5115
    %v10208 = vunpack.c.l.b16 %v5116
    %v10209 = vunpack.c.h.b16 %v5116
    %v10210 = vunpack.c.l.b16 %v5117
    %v10211 = vunpack.c.h.b16 %v5117
    %v10212 = vunpack.c.l.b16 %v5118
    %v10213 = vunpack.c.h.b16 %v5118
    %v10214 = vunpack.c.l.b16 %v5119
    %v10215 = vunpack.c.h.b16 %v5119
    %v10216 = vunpack.c.l.b16 %v5120
    %v10217 = vunpack.c.h.b16 %v5120
    %v10218 = vunpack.c.l.b16 %v5121
    %v10219 = vunpack.c.h.b16 %v5121
    %v10220 = vunpack.c.l.b16 %v5122
    %v10221 = vunpack.c.h.b16 %v5122
    %v10222 = vunpack.c.l.b16 %v5123
    %v10223 = vunpack.c.h.b16 %v5123
    %v10224 = vunpack.c.l.b16 %v5124
    %v10225 = vunpack.c.h.b16 %v5124
    %v10226 = vunpack.c.l.b16 %v5125
    %v10227 = vunpack.c.h.b16 %v5125
    %v10228 = vunpack.c.l.b16 %v5126
    %v10229 = vunpack.c.h.b16 %v5126
    %v10230 = vunpack.c.l.b16 %v5127
    %v10231 = vunpack.c.h.b16 %v5127
    %v10232 = vunpack.c.l.b16 %v5128
    %v10233 = vunpack.c.h.b16 %v5128
    %v10234 = vunpack.c.l.b16 %v5129
    %v10235 = vunpack.c.h.b16 %v5129
    %v10236 = vunpack.c.l.b16 %v5130
    %v10237 = vunpack.c.h.b16 %v5130
    %v10238 = vunpack.c.l.b16 %v5131
    %v10239 = vunpack.c.h.b16 %v5131
    %v10240 = vunpack.c.l.b16 %v5132
    %v10241 = vunpack.c.h.b16 %v5132
    %v10242 = vunpack.c.l.b16 %v5133
    %v10243 = vunpack.c.h.b16 %v5133
    %v10244 = vunpack.c.l.b16 %v5134
    %v10245 = vunpack.c.h.b16 %v5134
    %v10246 = vunpack.c.l.b16 %v5135
    %v10247 = vunpack.c.h.b16 %v5135
    %v10248 = vunpack.c.l.b16 %v5136
    %v10249 = vunpack.c.h.b16 %v5136
    %v10250 = vunpack.c.l.b16 %v5137
    %v10251 = vunpack.c.h.b16 %v5137
    %v10252 = vunpack.c.l.b16 %v5138
    %v10253 = vunpack.c.h.b16 %v5138
    %v10254 = vunpack.c.l.b16 %v5139
    %v10255 = vunpack.c.h.b16 %v5139
    %v10256 = vunpack.c.l.b16 %v5140
    %v10257 = vunpack.c.h.b16 %v5140
    %v10258 = vunpack.c.l.b16 %v5141
    %v10259 = vunpack.c.h.b16 %v5141
    %v10260 = vunpack.c.l.b16 %v5142
    %v10261 = vunpack.c.h.b16 %v5142
    %v10262 = vunpack.c.l.b16 %v5143
    %v10263 = vunpack.c.h.b16 %v5143
    %v10264 = vunpack.c.l.b16 %v5144
    %v10265 = vunpack.c.h.b16 %v5144
    %v10266 = vunpack.c.l.b16 %v5145
    %v10267 = vunpack.c.h.b16 %v5145
    %v10268 = vunpack.c.l.b16 %v5146
    %v10269 = vunpack.c.h.b16 %v5146
    %v10270 = vunpack.c.l.b16 %v5147
    %v10271 = vunpack.c.h.b16 %v5147
    %v10272 = vunpack.c.l.b16 %v5148
    %v10273 = vunpack.c.h.b16 %v5148
    %v10274 = vunpack.c.l.b16 %v5149
    %v10275 = vunpack.c.h.b16 %v5149
    %v10276 = vunpack.c.l.b16 %v5150
    %v10277 = vunpack.c.h.b16 %v5150
    %v10278 = vunpack.c.l.b16 %v5151
    %v10279 = vunpack.c.h.b16 %v5151
    %v10280 = vunpack.c.l.b16 %v5152
    %v10281 = vunpack.c.h.b16 %v5152
    %v10282 = vunpack.c.l.b16 %v5153
    %v10283 = vunpack.c.h.b16 %v5153
    %v10284 = vunpack.c.l.b16 %v5154
    %v10285 = vunpack.c.h.b16 %v5154
    %v10286 = vunpack.c.l.b16 %v5155
    %v10287 = vunpack.c.h.b16 %v5155
    %v10288 = vunpack.c.l.b16 %v5156
    %v10289 = vunpack.c.h.b16 %v5156
    %v10290 = vunpack.c.l.b16 %v5157
    %v10291 = vunpack.c.h.b16 %v5157
    %v10292 = vunpack.c.l.b16 %v5158
    %v10293 = vunpack.c.h.b16 %v5158
    %v10294 = vunpack.c.l.b16 %v5159
    %v10295 = vunpack.c.h.b16 %v5159
    %v10296 = vunpack.c.l.b16 %v5160
    %v10297 = vunpack.c.h.b16 %v5160
    %v10298 = vunpack.c.l.b16 %v5161
    %v10299 = vunpack.c.h.b16 %v5161
    %v10300 = vunpack.c.l.b16 %v5162
    %v10301 = vunpack.c.h.b16 %v5162
    %v10302 = vunpack.c.l.b16 %v5163
    %v10303 = vunpack.c.h.b16 %v5163
    %v10304 = vunpack.c.l.b16 %v5164
    %v10305 = vunpack.c.h.b16 %v5164
    %v10306 = vunpack.c.l.b16 %v5165
    %v10307 = vunpack.c.h.b16 %v5165
    %v10308 = vunpack.c.l.b16 %v5166
    %v10309 = vunpack.c.h.b16 %v5166
    %v10310 = vunpack.c.l.b16 %v5167
    %v10311 = vunpack.c.h.b16 %v5167
    %v10312 = vunpack.c.l.b16 %v5168
    %v10313 = vunpack.c.h.b16 %v5168
    %v10314 = vunpack.c.l.b16 %v5169
    %v10315 = vunpack.c.h.b16 %v5169
    %v10316 = vunpack.c.l.b16 %v5170
    %v10317 = vunpack.c.h.b16 %v5170
    %v10318 = vunpack.c.l.b16 %v5171
    %v10319 = vunpack.c.h.b16 %v5171
    %v10320 = vunpack.c.l.b16 %v5172
    %v10321 = vunpack.c.h.b16 %v5172
    %v10322 = vunpack.c.l.b16 %v5173
    %v10323 = vunpack.c.h.b16 %v5173
    %v10324 = vunpack.c.l.b16 %v5174
    %v10325 = vunpack.c.h.b16 %v5174
    %v10326 = vunpack.c.l.b16 %v5175
    %v10327 = vunpack.c.h.b16 %v5175
    %v10328 = vunpack.c.l.b16 %v5176
    %v10329 = vunpack.c.h.b16 %v5176
    %v10330 = vunpack.c.l.b16 %v5177
    %v10331 = vunpack.c.h.b16 %v5177
    %v10332 = vunpack.c.l.b16 %v5178
    %v10333 = vunpack.c.h.b16 %v5178
    %v10334 = vunpack.c.l.b16 %v5179
    %v10335 = vunpack.c.h.b16 %v5179
    %v10336 = vunpack.c.l.b16 %v5180
    %v10337 = vunpack.c.h.b16 %v5180
    %v10338 = vunpack.c.l.b16 %v5181
    %v10339 = vunpack.c.h.b16 %v5181
    %v10340 = vunpack.c.l.b16 %v5182
    %v10341 = vunpack.c.h.b16 %v5182
    %v10342 = vunpack.c.l.b16 %v5183
    %v10343 = vunpack.c.h.b16 %v5183
    %v10344 = vunpack.c.l.b16 %v5184
    %v10345 = vunpack.c.h.b16 %v5184
    %v10346 = vunpack.c.l.b16 %v5185
    %v10347 = vunpack.c.h.b16 %v5185
    %v10348 = vunpack.c.l.b16 %v5186
    %v10349 = vunpack.c.h.b16 %v5186
    %v10350 = vunpack.c.l.b16 %v5187
    %v10351 = vunpack.c.h.b16 %v5187
    %v10352 = vunpack.c.l.b16 %v5188
    %v10353 = vunpack.c.h.b16 %v5188
    %v10354 = vunpack.c.l.b16 %v5189
    %v10355 = vunpack.c.h.b16 %v5189
    %v10356 = vunpack.c.l.b16 %v5190
    %v10357 = vunpack.c.h.b16 %v5190
    %v10358 = vunpack.c.l.b16 %v5191
    %v10359 = vunpack.c.h.b16 %v5191
    %v10360 = vunpack.c.l.b16 %v5192
    %v10361 = vunpack.c.h.b16 %v5192
    %v10362 = vunpack.c.l.b16 %v5193
    %v10363 = vunpack.c.h.b16 %v5193
    %v10364 = vunpack.c.l.b16 %v5194
    %v10365 = vunpack.c.h.b16 %v5194
    %v10366 = vunpack.c.l.b16 %v5195
    %v10367 = vunpack.c.h.b16 %v5195
    %v10368 = vunpack.c.l.b16 %v5196
    %v10369 = vunpack.c.h.b16 %v5196
    %v10370 = vunpack.c.l.b16 %v5197
    %v10371 = vunpack.c.h.b16 %v5197
    %v10372 = vunpack.c.l.b16 %v5198
    %v10373 = vunpack.c.h.b16 %v5198
    %v10374 = vunpack.c.l.b16 %v5199
    %v10375 = vunpack.c.h.b16 %v5199
    %v10376 = vunpack.c.l.b16 %v5200
    %v10377 = vunpack.c.h.b16 %v5200
    %v10378 = vunpack.c.l.b16 %v5201
    %v10379 = vunpack.c.h.b16 %v5201
    %v10380 = vunpack.c.l.b16 %v5202
    %v10381 = vunpack.c.h.b16 %v5202
    %v10382 = vunpack.c.l.b16 %v5203
    %v10383 = vunpack.c.h.b16 %v5203
    %v10384 = vunpack.c.l.b16 %v5204
    %v10385 = vunpack.c.h.b16 %v5204
    %v10386 = vunpack.c.l.b16 %v5205
    %v10387 = vunpack.c.h.b16 %v5205
    %v10388 = vunpack.c.l.b16 %v5206
    %v10389 = vunpack.c.h.b16 %v5206
    %v10390 = vunpack.c.l.b16 %v5207
    %v10391 = vunpack.c.h.b16 %v5207
    %v10392 = vunpack.c.l.b16 %v5208
    %v10393 = vunpack.c.h.b16 %v5208
    %v10394 = vunpack.c.l.b16 %v5209
    %v10395 = vunpack.c.h.b16 %v5209
    %v10396 = vunpack.c.l.b16 %v5210
    %v10397 = vunpack.c.h.b16 %v5210
    %v10398 = vunpack.c.l.b16 %v5211
    %v10399 = vunpack.c.h.b16 %v5211
    %v10400 = vunpack.c.l.b16 %v5212
    %v10401 = vunpack.c.h.b16 %v5212
    %v10402 = vunpack.c.l.b16 %v5213
    %v10403 = vunpack.c.h.b16 %v5213
    %v10404 = vunpack.c.l.b16 %v5214
    %v10405 = vunpack.c.h.b16 %v5214
    %v10406 = vunpack.c.l.b16 %v5215
    %v10407 = vunpack.c.h.b16 %v5215
    %v10408 = vunpack.c.l.b16 %v5216
    %v10409 = vunpack.c.h.b16 %v5216
    %v10410 = vunpack.c.l.b16 %v5217
    %v10411 = vunpack.c.h.b16 %v5217
    %v10412 = vunpack.c.l.b16 %v5218
    %v10413 = vunpack.c.h.b16 %v5218
    %v10414 = vunpack.c.l.b16 %v5219
    %v10415 = vunpack.c.h.b16 %v5219
    %v10416 = vunpack.c.l.b16 %v5220
    %v10417 = vunpack.c.h.b16 %v5220
    %v10418 = vunpack.c.l.b16 %v5221
    %v10419 = vunpack.c.h.b16 %v5221
    %v10420 = vunpack.c.l.b16 %v5222
    %v10421 = vunpack.c.h.b16 %v5222
    %v10422 = vunpack.c.l.b16 %v5223
    %v10423 = vunpack.c.h.b16 %v5223
    %v10424 = vunpack.c.l.b16 %v5224
    %v10425 = vunpack.c.h.b16 %v5224
    %v10426 = vunpack.c.l.b16 %v5225
    %v10427 = vunpack.c.h.b16 %v5225
    %v10428 = vunpack.c.l.b16 %v5226
    %v10429 = vunpack.c.h.b16 %v5226
    %v10430 = vunpack.c.l.b16 %v5227
    %v10431 = vunpack.c.h.b16 %v5227
    %v10432 = vunpack.c.l.b16 %v5228
    %v10433 = vunpack.c.h.b16 %v5228
    %v10434 = vunpack.c.l.b16 %v5229
    %v10435 = vunpack.c.h.b16 %v5229
    %v10436 = vunpack.c.l.b16 %v5230
    %v10437 = vunpack.c.h.b16 %v5230
    %v10438 = vunpack.c.l.b16 %v5231
    %v10439 = vunpack.c.h.b16 %v5231
    %v10440 = vunpack.c.l.b16 %v5232
    %v10441 = vunpack.c.h.b16 %v5232
    %v10442 = vunpack.c.l.b16 %v5233
    %v10443 = vunpack.c.h.b16 %v5233
    %v10444 = vunpack.c.l.b16 %v5234
    %v10445 = vunpack.c.h.b16 %v5234
    %v10446 = vunpack.c.l.b16 %v5235
    %v10447 = vunpack.c.h.b16 %v5235
    %v10448 = vunpack.c.l.b16 %v5236
    %v10449 = vunpack.c.h.b16 %v5236
    %v10450 = vunpack.c.l.b16 %v5237
    %v10451 = vunpack.c.h.b16 %v5237
    %v10452 = vunpack.c.l.b16 %v5238
    %v10453 = vunpack.c.h.b16 %v5238
    %v10454 = vunpack.c.l.b16 %v5239
    %v10455 = vunpack.c.h.b16 %v5239
    %v10456 = vunpack.c.l.b16 %v5240
    %v10457 = vunpack.c.h.b16 %v5240
    %v10458 = vunpack.c.l.b16 %v5241
    %v10459 = vunpack.c.h.b16 %v5241
    %v10460 = vunpack.c.l.b16 %v5242
    %v10461 = vunpack.c.h.b16 %v5242
    %v10462 = vunpack.c.l.b16 %v5243
    %v10463 = vunpack.c.h.b16 %v5243
    %v10464 = vunpack.c.l.b16 %v5244
    %v10465 = vunpack.c.h.b16 %v5244
    %v10466 = vunpack.c.l.b16 %v5245
    %v10467 = vunpack.c.h.b16 %v5245
    %v10468 = vunpack.c.l.b16 %v5246
    %v10469 = vunpack.c.h.b16 %v5246
    %v10470 = vunpack.c.l.b16 %v5247
    %v10471 = vunpack.c.h.b16 %v5247
    %v10472 = vunpack.c.l.b16 %v5248
    %v10473 = vunpack.c.h.b16 %v5248
    %v10474 = vunpack.c.l.b16 %v5249
    %v10475 = vunpack.c.h.b16 %v5249
    %v10476 = vunpack.c.l.b16 %v5250
    %v10477 = vunpack.c.h.b16 %v5250
    %v10478 = vunpack.c.l.b16 %v5251
    %v10479 = vunpack.c.h.b16 %v5251
    %v10480 = vunpack.c.l.b16 %v5252
    %v10481 = vunpack.c.h.b16 %v5252
    %v10482 = vunpack.c.l.b16 %v5253
    %v10483 = vunpack.c.h.b16 %v5253
    %v10484 = vunpack.c.l.b16 %v5254
    %v10485 = vunpack.c.h.b16 %v5254
    %v10486 = vunpack.c.l.b16 %v5255
    %v10487 = vunpack.c.h.b16 %v5255
    %v10488 = vunpack.c.l.b16 %v5256
    %v10489 = vunpack.c.h.b16 %v5256
    %v10490 = vunpack.c.l.b16 %v5257
    %v10491 = vunpack.c.h.b16 %v5257
    %v10492 = vunpack.c.l.b16 %v5258
    %v10493 = vunpack.c.h.b16 %v5258
    %v10494 = vunpack.c.l.b16 %v5259
    %v10495 = vunpack.c.h.b16 %v5259
    %v10496 = vunpack.c.l.b16 %v5260
    %v10497 = vunpack.c.h.b16 %v5260
    %v10498 = vunpack.c.l.b16 %v5261
    %v10499 = vunpack.c.h.b16 %v5261
    %v10500 = vunpack.c.l.b16 %v5262
    %v10501 = vunpack.c.h.b16 %v5262
    %v10502 = vunpack.c.l.b16 %v5263
    %v10503 = vunpack.c.h.b16 %v5263
    %v10504 = vunpack.c.l.b16 %v5264
    %v10505 = vunpack.c.h.b16 %v5264
    %v10506 = vunpack.c.l.b16 %v5265
    %v10507 = vunpack.c.h.b16 %v5265
    %v10508 = vunpack.c.l.b16 %v5266
    %v10509 = vunpack.c.h.b16 %v5266
    %v10510 = vunpack.c.l.b16 %v5267
    %v10511 = vunpack.c.h.b16 %v5267
    %v10512 = vunpack.c.l.b16 %v5268
    %v10513 = vunpack.c.h.b16 %v5268
    %v10514 = vunpack.c.l.b16 %v5269
    %v10515 = vunpack.c.h.b16 %v5269
    %v10516 = vunpack.c.l.b16 %v5270
    %v10517 = vunpack.c.h.b16 %v5270
    %v10518 = vunpack.c.l.b16 %v5271
    %v10519 = vunpack.c.h.b16 %v5271
    %v10520 = vunpack.c.l.b16 %v5272
    %v10521 = vunpack.c.h.b16 %v5272
    %v10522 = vunpack.c.l.b16 %v5273
    %v10523 = vunpack.c.h.b16 %v5273
    %v10524 = vunpack.c.l.b16 %v5274
    %v10525 = vunpack.c.h.b16 %v5274
    %v10526 = vunpack.c.l.b16 %v5275
    %v10527 = vunpack.c.h.b16 %v5275
    %v10528 = vunpack.c.l.b16 %v5276
    %v10529 = vunpack.c.h.b16 %v5276
    %v10530 = vunpack.c.l.b16 %v5277
    %v10531 = vunpack.c.h.b16 %v5277
    %v10532 = vunpack.c.l.b16 %v5278
    %v10533 = vunpack.c.h.b16 %v5278
    %v10534 = vunpack.c.l.b16 %v5279
    %v10535 = vunpack.c.h.b16 %v5279
    %v10536 = vunpack.c.l.b16 %v5280
    %v10537 = vunpack.c.h.b16 %v5280
    %v10538 = vunpack.c.l.b16 %v5281
    %v10539 = vunpack.c.h.b16 %v5281
    %v10540 = vunpack.c.l.b16 %v5282
    %v10541 = vunpack.c.h.b16 %v5282
    %v10542 = vunpack.c.l.b16 %v5283
    %v10543 = vunpack.c.h.b16 %v5283
    %v10544 = vunpack.c.l.b16 %v5284
    %v10545 = vunpack.c.h.b16 %v5284
    %v10546 = vunpack.c.l.b16 %v5285
    %v10547 = vunpack.c.h.b16 %v5285
    %v10548 = vunpack.c.l.b16 %v5286
    %v10549 = vunpack.c.h.b16 %v5286
    %v10550 = vunpack.c.l.b16 %v5287
    %v10551 = vunpack.c.h.b16 %v5287
    %v10552 = vunpack.c.l.b16 %v5288
    %v10553 = vunpack.c.h.b16 %v5288
    %v10554 = vunpack.c.l.b16 %v5289
    %v10555 = vunpack.c.h.b16 %v5289
    %v10556 = vunpack.c.l.b16 %v5290
    %v10557 = vunpack.c.h.b16 %v5290
    %v10558 = vunpack.c.l.b16 %v5291
    %v10559 = vunpack.c.h.b16 %v5291
    %v10560 = vunpack.c.l.b16 %v5292
    %v10561 = vunpack.c.h.b16 %v5292
    %v10562 = vunpack.c.l.b16 %v5293
    %v10563 = vunpack.c.h.b16 %v5293
    %v10564 = vunpack.c.l.b16 %v5294
    %v10565 = vunpack.c.h.b16 %v5294
    %v10566 = vunpack.c.l.b16 %v5295
    %v10567 = vunpack.c.h.b16 %v5295
    %v10568 = vpack.c.b16 %v9552, %v9544
    %v10569 = vpack.c.b16 %v9553, %v9545
    %v10570 = vpack.c.b16 %v9554, %v9546
    %v10571 = vpack.c.b16 %v9555, %v9547
    %v10572 = vpack.c.b16 %v9556, %v9548
    %v10573 = vpack.c.b16 %v9557, %v9549
    %v10574 = vpack.c.b16 %v9558, %v9550
    %v10575 = vpack.c.b16 %v9559, %v9551
    %v10576 = vpack.c.b16 %v9568, %v9560
    %v10577 = vpack.c.b16 %v9569, %v9561
    %v10578 = vpack.c.b16 %v9570, %v9562
    %v10579 = vpack.c.b16 %v9571, %v9563
    %v10580 = vpack.c.b16 %v9572, %v9564
    %v10581 = vpack.c.b16 %v9573, %v9565
    %v10582 = vpack.c.b16 %v9574, %v9566
    %v10583 = vpack.c.b16 %v9575, %v9567
    %v10584 = vpack.c.b16 %v9584, %v9576
    %v10585 = vpack.c.b16 %v9585, %v9577
    %v10586 = vpack.c.b16 %v9586, %v9578
    %v10587 = vpack.c.b16 %v9587, %v9579
    %v10588 = vpack.c.b16 %v9588, %v9580
    %v10589 = vpack.c.b16 %v9589, %v9581
    %v10590 = vpack.c.b16 %v9590, %v9582
    %v10591 = vpack.c.b16 %v9591, %v9583
    %v10592 = vpack.c.b16 %v9600, %v9592
    %v10593 = vpack.c.b16 %v9601, %v9593
    %v10594 = vpack.c.b16 %v9602, %v9594
    %v10595 = vpack.c.b16 %v9603, %v9595
    %v10596 = vpack.c.b16 %v9604, %v9596
    %v10597 = vpack.c.b16 %v9605, %v9597
    %v10598 = vpack.c.b16 %v9606, %v9598
    %v10599 = vpack.c.b16 %v9607, %v9599
    %v10600 = vpack.c.b16 %v9616, %v9608
    %v10601 = vpack.c.b16 %v9617, %v9609
    %v10602 = vpack.c.b16 %v9618, %v9610
    %v10603 = vpack.c.b16 %v9619, %v9611
    %v10604 = vpack.c.b16 %v9620, %v9612
    %v10605 = vpack.c.b16 %v9621, %v9613
    %v10606 = vpack.c.b16 %v9622, %v9614
    %v10607 = vpack.c.b16 %v9623, %v9615
    %v10608 = vpack.c.b16 %v9632, %v9624
    %v10609 = vpack.c.b16 %v9633, %v9625
    %v10610 = vpack.c.b16 %v9634, %v9626
    %v10611 = vpack.c.b16 %v9635, %v9627
    %v10612 = vpack.c.b16 %v9636, %v9628
    %v10613 = vpack.c.b16 %v9637, %v9629
    %v10614 = vpack.c.b16 %v9638, %v9630
    %v10615 = vpack.c.b16 %v9639, %v9631
    %v10616 = vpack.c.b16 %v9648, %v9640
    %v10617 = vpack.c.b16 %v9649, %v9641
    %v10618 = vpack.c.b16 %v9650, %v9642
    %v10619 = vpack.c.b16 %v9651, %v9643
    %v10620 = vpack.c.b16 %v9652, %v9644
    %v10621 = vpack.c.b16 %v9653, %v9645
    %v10622 = vpack.c.b16 %v9654, %v9646
    %v10623 = vpack.c.b16 %v9655, %v9647
    %v10624 = vpack.c.b16 %v9664, %v9656
    %v10625 = vpack.c.b16 %v9665, %v9657
    %v10626 = vpack.c.b16 %v9666, %v9658
    %v10627 = vpack.c.b16 %v9667, %v9659
    %v10628 = vpack.c.b16 %v9668, %v9660
    %v10629 = vpack.c.b16 %v9669, %v9661
    %v10630 = vpack.c.b16 %v9670, %v9662
    %v10631 = vpack.c.b16 %v9671, %v9663
    %v10632 = vpack.c.b16 %v9680, %v9672
    %v10633 = vpack.c.b16 %v9681, %v9673
    %v10634 = vpack.c.b16 %v9682, %v9674
    %v10635 = vpack.c.b16 %v9683, %v9675
    %v10636 = vpack.c.b16 %v9684, %v9676
    %v10637 = vpack.c.b16 %v9685, %v9677
    %v10638 = vpack.c.b16 %v9686, %v9678
    %v10639 = vpack.c.b16 %v9687, %v9679
    %v10640 = vpack.c.b16 %v9696, %v9688
    %v10641 = vpack.c.b16 %v9697, %v9689
    %v10642 = vpack.c.b16 %v9698, %v9690
    %v10643 = vpack.c.b16 %v9699, %v9691
    %v10644 = vpack.c.b16 %v9700, %v9692
    %v10645 = vpack.c.b16 %v9701, %v9693
    %v10646 = vpack.c.b16 %v9702, %v9694
    %v10647 = vpack.c.b16 %v9703, %v9695
    %v10648 = vpack.c.b16 %v9712, %v9704
    %v10649 = vpack.c.b16 %v9713, %v9705
    %v10650 = vpack.c.b16 %v9714, %v9706
    %v10651 = vpack.c.b16 %v9715, %v9707
    %v10652 = vpack.c.b16 %v9716, %v9708
    %v10653 = vpack.c.b16 %v9717, %v9709
    %v10654 = vpack.c.b16 %v9718, %v9710
    %v10655 = vpack.c.b16 %v9719, %v9711
    %v10656 = vpack.c.b16 %v9728, %v9720
    %v10657 = vpack.c.b16 %v9729, %v9721
    %v10658 = vpack.c.b16 %v9730, %v9722
    %v10659 = vpack.c.b16 %v9731, %v9723
    %v10660 = vpack.c.b16 %v9732, %v9724
    %v10661 = vpack.c.b16 %v9733, %v9725
    %v10662 = vpack.c.b16 %v9734, %v9726
    %v10663 = vpack.c.b16 %v9735, %v9727
    %v10664 = vpack.c.b16 %v9744, %v9736
    %v10665 = vpack.c.b16 %v9745, %v9737
    %v10666 = vpack.c.b16 %v9746, %v9738
    %v10667 = vpack.c.b16 %v9747, %v9739
    %v10668 = vpack.c.b16 %v9748, %v9740
    %v10669 = vpack.c.b16 %v9749, %v9741
    %v10670 = vpack.c.b16 %v9750, %v9742
    %v10671 = vpack.c.b16 %v9751, %v9743
    %v10672 = vpack.c.b16 %v9760, %v9752
    %v10673 = vpack.c.b16 %v9761, %v9753
    %v10674 = vpack.c.b16 %v9762, %v9754
    %v10675 = vpack.c.b16 %v9763, %v9755
    %v10676 = vpack.c.b16 %v9764, %v9756
    %v10677 = vpack.c.b16 %v9765, %v9757
    %v10678 = vpack.c.b16 %v9766, %v9758
    %v10679 = vpack.c.b16 %v9767, %v9759
    %v10680 = vpack.c.b16 %v9776, %v9768
    %v10681 = vpack.c.b16 %v9777, %v9769
    %v10682 = vpack.c.b16 %v9778, %v9770
    %v10683 = vpack.c.b16 %v9779, %v9771
    %v10684 = vpack.c.b16 %v9780, %v9772
    %v10685 = vpack.c.b16 %v9781, %v9773
    %v10686 = vpack.c.b16 %v9782, %v9774
    %v10687 = vpack.c.b16 %v9783, %v9775
    %v10688 = vpack.c.b16 %v9792, %v9784
    %v10689 = vpack.c.b16 %v9793, %v9785
    %v10690 = vpack.c.b16 %v9794, %v9786
    %v10691 = vpack.c.b16 %v9795, %v9787
    %v10692 = vpack.c.b16 %v9796, %v9788
    %v10693 = vpack.c.b16 %v9797, %v9789
    %v10694 = vpack.c.b16 %v9798, %v9790
    %v10695 = vpack.c.b16 %v9799, %v9791
    %v10696 = vpack.c.b16 %v9808, %v9800
    %v10697 = vpack.c.b16 %v9809, %v9801
    %v10698 = vpack.c.b16 %v9810, %v9802
    %v10699 = vpack.c.b16 %v9811, %v9803
    %v10700 = vpack.c.b16 %v9812, %v9804
    %v10701 = vpack.c.b16 %v9813, %v9805
    %v10702 = vpack.c.b16 %v9814, %v9806
    %v10703 = vpack.c.b16 %v9815, %v9807
    %v10704 = vpack.c.b16 %v9824, %v9816
    %v10705 = vpack.c.b16 %v9825, %v9817
    %v10706 = vpack.c.b16 %v9826, %v9818
    %v10707 = vpack.c.b16 %v9827, %v9819
    %v10708 = vpack.c.b16 %v9828, %v9820
    %v10709 = vpack.c.b16 %v9829, %v9821
    %v10710 = vpack.c.b16 %v9830, %v9822
    %v10711 = vpack.c.b16 %v9831, %v9823
    %v10712 = vpack.c.b16 %v9840, %v9832
    %v10713 = vpack.c.b16 %v9841, %v9833
    %v10714 = vpack.c.b16 %v9842, %v9834
    %v10715 = vpack.c.b16 %v9843, %v9835
    %v10716 = vpack.c.b16 %v9844, %v9836
    %v10717 = vpack.c.b16 %v9845, %v9837
    %v10718 = vpack.c.b16 %v9846, %v9838
    %v10719 = vpack.c.b16 %v9847, %v9839
    %v10720 = vpack.c.b16 %v9856, %v9848
    %v10721 = vpack.c.b16 %v9857, %v9849
    %v10722 = vpack.c.b16 %v9858, %v9850
    %v10723 = vpack.c.b16 %v9859, %v9851
    %v10724 = vpack.c.b16 %v9860, %v9852
    %v10725 = vpack.c.b16 %v9861, %v9853
    %v10726 = vpack.c.b16 %v9862, %v9854
    %v10727 = vpack.c.b16 %v9863, %v9855
    %v10728 = vpack.c.b16 %v9872, %v9864
    %v10729 = vpack.c.b16 %v9873, %v9865
    %v10730 = vpack.c.b16 %v9874, %v9866
    %v10731 = vpack.c.b16 %v9875, %v9867
    %v10732 = vpack.c.b16 %v9876, %v9868
    %v10733 = vpack.c.b16 %v9877, %v9869
    %v10734 = vpack.c.b16 %v9878, %v9870
    %v10735 = vpack.c.b16 %v9879, %v9871
    %v10736 = vpack.c.b16 %v9888, %v9880
    %v10737 = vpack.c.b16 %v9889, %v9881
    %v10738 = vpack.c.b16 %v9890, %v9882
    %v10739 = vpack.c.b16 %v9891, %v9883
    %v10740 = vpack.c.b16 %v9892, %v9884
    %v10741 = vpack.c.b16 %v9893, %v9885
    %v10742 = vpack.c.b16 %v9894, %v9886
    %v10743 = vpack.c.b16 %v9895, %v9887
    %v10744 = vpack.c.b16 %v9904, %v9896
    %v10745 = vpack.c.b16 %v9905, %v9897
    %v10746 = vpack.c.b16 %v9906, %v9898
    %v10747 = vpack.c.b16 %v9907, %v9899
    %v10748 = vpack.c.b16 %v9908, %v9900
    %v10749 = vpack.c.b16 %v9909, %v9901
    %v10750 = vpack.c.b16 %v9910, %v9902
    %v10751 = vpack.c.b16 %v9911, %v9903
    %v10752 = vpack.c.b16 %v9920, %v9912
    %v10753 = vpack.c.b16 %v9921, %v9913
    %v10754 = vpack.c.b16 %v9922, %v9914
    %v10755 = vpack.c.b16 %v9923, %v9915
    %v10756 = vpack.c.b16 %v9924, %v9916
    %v10757 = vpack.c.b16 %v9925, %v9917
    %v10758 = vpack.c.b16 %v9926, %v9918
    %v10759 = vpack.c.b16 %v9927, %v9919
    %v10760 = vpack.c.b16 %v9936, %v9928
    %v10761 = vpack.c.b16 %v9937, %v9929
    %v10762 = vpack.c.b16 %v9938, %v9930
    %v10763 = vpack.c.b16 %v9939, %v9931
    %v10764 = vpack.c.b16 %v9940, %v9932
    %v10765 = vpack.c.b16 %v9941, %v9933
    %v10766 = vpack.c.b16 %v9942, %v9934
    %v10767 = vpack.c.b16 %v9943, %v9935
    %v10768 = vpack.c.b16 %v9952, %v9944
    %v10769 = vpack.c.b16 %v9953, %v9945
    %v10770 = vpack.c.b16 %v9954, %v9946
    %v10771 = vpack.c.b16 %v9955, %v9947
    %v10772 = vpack.c.b16 %v9956, %v9948
    %v10773 = vpack.c.b16 %v9957, %v9949
    %v10774 = vpack.c.b16 %v9958, %v9950
    %v10775 = vpack.c.b16 %v9959, %v9951
    %v10776 = vpack.c.b16 %v9968, %v9960
    %v10777 = vpack.c.b16 %v9969, %v9961
    %v10778 = vpack.c.b16 %v9970, %v9962
    %v10779 = vpack.c.b16 %v9971, %v9963
    %v10780 = vpack.c.b16 %v9972, %v9964
    %v10781 = vpack.c.b16 %v9973, %v9965
    %v10782 = vpack.c.b16 %v9974, %v9966
    %v10783 = vpack.c.b16 %v9975, %v9967
    %v10784 = vpack.c.b16 %v9984, %v9976
    %v10785 = vpack.c.b16 %v9985, %v9977
    %v10786 = vpack.c.b16 %v9986, %v9978
    %v10787 = vpack.c.b16 %v9987, %v9979
    %v10788 = vpack.c.b16 %v9988, %v9980
    %v10789 = vpack.c.b16 %v9989, %v9981
    %v10790 = vpack.c.b16 %v9990, %v9982
    %v10791 = vpack.c.b16 %v9991, %v9983
    %v10792 = vpack.c.b16 %v10000, %v9992
    %v10793 = vpack.c.b16 %v10001, %v9993
    %v10794 = vpack.c.b16 %v10002, %v9994
    %v10795 = vpack.c.b16 %v10003, %v9995
    %v10796 = vpack.c.b16 %v10004, %v9996
    %v10797 = vpack.c.b16 %v10005, %v9997
    %v10798 = vpack.c.b16 %v10006, %v9998
    %v10799 = vpack.c.b16 %v10007, %v9999
    %v10800 = vpack.c.b16 %v10016, %v10008
    %v10801 = vpack.c.b16 %v10017, %v10009
    %v10802 = vpack.c.b16 %v10018, %v10010
    %v10803 = vpack.c.b16 %v10019, %v10011
    %v10804 = vpack.c.b16 %v10020, %v10012
    %v10805 = vpack.c.b16 %v10021, %v10013
    %v10806 = vpack.c.b16 %v10022, %v10014
    %v10807 = vpack.c.b16 %v10023, %v10015
    %v10808 = vpack.c.b16 %v10032, %v10024
    %v10809 = vpack.c.b16 %v10033, %v10025
    %v10810 = vpack.c.b16 %v10034, %v10026
    %v10811 = vpack.c.b16 %v10035, %v10027
    %v10812 = vpack.c.b16 %v10036, %v10028
    %v10813 = vpack.c.b16 %v10037, %v10029
    %v10814 = vpack.c.b16 %v10038, %v10030
    %v10815 = vpack.c.b16 %v10039, %v10031
    %v10816 = vpack.c.b16 %v10048, %v10040
    %v10817 = vpack.c.b16 %v10049, %v10041
    %v10818 = vpack.c.b16 %v10050, %v10042
    %v10819 = vpack.c.b16 %v10051, %v10043
    %v10820 = vpack.c.b16 %v10052, %v10044
    %v10821 = vpack.c.b16 %v10053, %v10045
    %v10822 = vpack.c.b16 %v10054, %v10046
    %v10823 = vpack.c.b16 %v10055, %v10047
    %v10824 = vpack.c.b16 %v10064, %v10056
    %v10825 = vpack.c.b16 %v10065, %v10057
    %v10826 = vpack.c.b16 %v10066, %v10058
    %v10827 = vpack.c.b16 %v10067, %v10059
    %v10828 = vpack.c.b16 %v10068, %v10060
    %v10829 = vpack.c.b16 %v10069, %v10061
    %v10830 = vpack.c.b16 %v10070, %v10062
    %v10831 = vpack.c.b16 %v10071, %v10063
    %v10832 = vpack.c.b16 %v10080, %v10072
    %v10833 = vpack.c.b16 %v10081, %v10073
    %v10834 = vpack.c.b16 %v10082, %v10074
    %v10835 = vpack.c.b16 %v10083, %v10075
    %v10836 = vpack.c.b16 %v10084, %v10076
    %v10837 = vpack.c.b16 %v10085, %v10077
    %v10838 = vpack.c.b16 %v10086, %v10078
    %v10839 = vpack.c.b16 %v10087, %v10079
    %v10840 = vpack.c.b16 %v10096, %v10088
    %v10841 = vpack.c.b16 %v10097, %v10089
    %v10842 = vpack.c.b16 %v10098, %v10090
    %v10843 = vpack.c.b16 %v10099, %v10091
    %v10844 = vpack.c.b16 %v10100, %v10092
    %v10845 = vpack.c.b16 %v10101, %v10093
    %v10846 = vpack.c.b16 %v10102, %v10094
    %v10847 = vpack.c.b16 %v10103, %v10095
    %v10848 = vpack.c.b16 %v10112, %v10104
    %v10849 = vpack.c.b16 %v10113, %v10105
    %v10850 = vpack.c.b16 %v10114, %v10106
    %v10851 = vpack.c.b16 %v10115, %v10107
    %v10852 = vpack.c.b16 %v10116, %v10108
    %v10853 = vpack.c.b16 %v10117, %v10109
    %v10854 = vpack.c.b16 %v10118, %v10110
    %v10855 = vpack.c.b16 %v10119, %v10111
    %v10856 = vpack.c.b16 %v10128, %v10120
    %v10857 = vpack.c.b16 %v10129, %v10121
    %v10858 = vpack.c.b16 %v10130, %v10122
    %v10859 = vpack.c.b16 %v10131, %v10123
    %v10860 = vpack.c.b16 %v10132, %v10124
    %v10861 = vpack.c.b16 %v10133, %v10125
    %v10862 = vpack.c.b16 %v10134, %v10126
    %v10863 = vpack.c.b16 %v10135, %v10127
    %v10864 = vpack.c.b16 %v10144, %v10136
    %v10865 = vpack.c.b16 %v10145, %v10137
    %v10866 = vpack.c.b16 %v10146, %v10138
    %v10867 = vpack.c.b16 %v10147, %v10139
    %v10868 = vpack.c.b16 %v10148, %v10140
    %v10869 = vpack.c.b16 %v10149, %v10141
    %v10870 = vpack.c.b16 %v10150, %v10142
    %v10871 = vpack.c.b16 %v10151, %v10143
    %v10872 = vpack.c.b16 %v10160, %v10152
    %v10873 = vpack.c.b16 %v10161, %v10153
    %v10874 = vpack.c.b16 %v10162, %v10154
    %v10875 = vpack.c.b16 %v10163, %v10155
    %v10876 = vpack.c.b16 %v10164, %v10156
    %v10877 = vpack.c.b16 %v10165, %v10157
    %v10878 = vpack.c.b16 %v10166, %v10158
    %v10879 = vpack.c.b16 %v10167, %v10159
    %v10880 = vpack.c.b16 %v10176, %v10168
    %v10881 = vpack.c.b16 %v10177, %v10169
    %v10882 = vpack.c.b16 %v10178, %v10170
    %v10883 = vpack.c.b16 %v10179, %v10171
    %v10884 = vpack.c.b16 %v10180, %v10172
    %v10885 = vpack.c.b16 %v10181, %v10173
    %v10886 = vpack.c.b16 %v10182, %v10174
    %v10887 = vpack.c.b16 %v10183, %v10175
    %v10888 = vpack.c.b16 %v10192, %v10184
    %v10889 = vpack.c.b16 %v10193, %v10185
    %v10890 = vpack.c.b16 %v10194, %v10186
    %v10891 = vpack.c.b16 %v10195, %v10187
    %v10892 = vpack.c.b16 %v10196, %v10188
    %v10893 = vpack.c.b16 %v10197, %v10189
    %v10894 = vpack.c.b16 %v10198, %v10190
    %v10895 = vpack.c.b16 %v10199, %v10191
    %v10896 = vpack.c.b16 %v10208, %v10200
    %v10897 = vpack.c.b16 %v10209, %v10201
    %v10898 = vpack.c.b16 %v10210, %v10202
    %v10899 = vpack.c.b16 %v10211, %v10203
    %v10900 = vpack.c.b16 %v10212, %v10204
    %v10901 = vpack.c.b16 %v10213, %v10205
    %v10902 = vpack.c.b16 %v10214, %v10206
    %v10903 = vpack.c.b16 %v10215, %v10207
    %v10904 = vpack.c.b16 %v10224, %v10216
    %v10905 = vpack.c.b16 %v10225, %v10217
    %v10906 = vpack.c.b16 %v10226, %v10218
    %v10907 = vpack.c.b16 %v10227, %v10219
    %v10908 = vpack.c.b16 %v10228, %v10220
    %v10909 = vpack.c.b16 %v10229, %v10221
    %v10910 = vpack.c.b16 %v10230, %v10222
    %v10911 = vpack.c.b16 %v10231, %v10223
    %v10912 = vpack.c.b16 %v10240, %v10232
    %v10913 = vpack.c.b16 %v10241, %v10233
    %v10914 = vpack.c.b16 %v10242, %v10234
    %v10915 = vpack.c.b16 %v10243, %v10235
    %v10916 = vpack.c.b16 %v10244, %v10236
    %v10917 = vpack.c.b16 %v10245, %v10237
    %v10918 = vpack.c.b16 %v10246, %v10238
    %v10919 = vpack.c.b16 %v10247, %v10239
    %v10920 = vpack.c.b16 %v10256, %v10248
    %v10921 = vpack.c.b16 %v10257, %v10249
    %v10922 = vpack.c.b16 %v10258, %v10250
    %v10923 = vpack.c.b16 %v10259, %v10251
    %v10924 = vpack.c.b16 %v10260, %v10252
    %v10925 = vpack.c.b16 %v10261, %v10253
    %v10926 = vpack.c.b16 %v10262, %v10254
    %v10927 = vpack.c.b16 %v10263, %v10255
    %v10928 = vpack.c.b16 %v10272, %v10264
    %v10929 = vpack.c.b16 %v10273, %v10265
    %v10930 = vpack.c.b16 %v10274, %v10266
    %v10931 = vpack.c.b16 %v10275, %v10267
    %v10932 = vpack.c.b16 %v10276, %v10268
    %v10933 = vpack.c.b16 %v10277, %v10269
    %v10934 = vpack.c.b16 %v10278, %v10270
    %v10935 = vpack.c.b16 %v10279, %v10271
    %v10936 = vpack.c.b16 %v10288, %v10280
    %v10937 = vpack.c.b16 %v10289, %v10281
    %v10938 = vpack.c.b16 %v10290, %v10282
    %v10939 = vpack.c.b16 %v10291, %v10283
    %v10940 = vpack.c.b16 %v10292, %v10284
    %v10941 = vpack.c.b16 %v10293, %v10285
    %v10942 = vpack.c.b16 %v10294, %v10286
    %v10943 = vpack.c.b16 %v10295, %v10287
    %v10944 = vpack.c.b16 %v10304, %v10296
    %v10945 = vpack.c.b16 %v10305, %v10297
    %v10946 = vpack.c.b16 %v10306, %v10298
    %v10947 = vpack.c.b16 %v10307, %v10299
    %v10948 = vpack.c.b16 %v10308, %v10300
    %v10949 = vpack.c.b16 %v10309, %v10301
    %v10950 = vpack.c.b16 %v10310, %v10302
    %v10951 = vpack.c.b16 %v10311, %v10303
    %v10952 = vpack.c.b16 %v10320, %v10312
    %v10953 = vpack.c.b16 %v10321, %v10313
    %v10954 = vpack.c.b16 %v10322, %v10314
    %v10955 = vpack.c.b16 %v10323, %v10315
    %v10956 = vpack.c.b16 %v10324, %v10316
    %v10957 = vpack.c.b16 %v10325, %v10317
    %v10958 = vpack.c.b16 %v10326, %v10318
    %v10959 = vpack.c.b16 %v10327, %v10319
    %v10960 = vpack.c.b16 %v10336, %v10328
    %v10961 = vpack.c.b16 %v10337, %v10329
    %v10962 = vpack.c.b16 %v10338, %v10330
    %v10963 = vpack.c.b16 %v10339, %v10331
    %v10964 = vpack.c.b16 %v10340, %v10332
    %v10965 = vpack.c.b16 %v10341, %v10333
    %v10966 = vpack.c.b16 %v10342, %v10334
    %v10967 = vpack.c.b16 %v10343, %v10335
    %v10968 = vpack.c.b16 %v10352, %v10344
    %v10969 = vpack.c.b16 %v10353, %v10345
    %v10970 = vpack.c.b16 %v10354, %v10346
    %v10971 = vpack.c.b16 %v10355, %v10347
    %v10972 = vpack.c.b16 %v10356, %v10348
    %v10973 = vpack.c.b16 %v10357, %v10349
    %v10974 = vpack.c.b16 %v10358, %v10350
    %v10975 = vpack.c.b16 %v10359, %v10351
    %v10976 = vpack.c.b16 %v10368, %v10360
    %v10977 = vpack.c.b16 %v10369, %v10361
    %v10978 = vpack.c.b16 %v10370, %v10362
    %v10979 = vpack.c.b16 %v10371, %v10363
    %v10980 = vpack.c.b16 %v10372, %v10364
    %v10981 = vpack.c.b16 %v10373, %v10365
    %v10982 = vpack.c.b16 %v10374, %v10366
    %v10983 = vpack.c.b16 %v10375, %v10367
    %v10984 = vpack.c.b16 %v10384, %v10376
    %v10985 = vpack.c.b16 %v10385, %v10377
    %v10986 = vpack.c.b16 %v10386, %v10378
    %v10987 = vpack.c.b16 %v10387, %v10379
    %v10988 = vpack.c.b16 %v10388, %v10380
    %v10989 = vpack.c.b16 %v10389, %v10381
    %v10990 = vpack.c.b16 %v10390, %v10382
    %v10991 = vpack.c.b16 %v10391, %v10383
    %v10992 = vpack.c.b16 %v10400, %v10392
    %v10993 = vpack.c.b16 %v10401, %v10393
    %v10994 = vpack.c.b16 %v10402, %v10394
    %v10995 = vpack.c.b16 %v10403, %v10395
    %v10996 = vpack.c.b16 %v10404, %v10396
    %v10997 = vpack.c.b16 %v10405, %v10397
    %v10998 = vpack.c.b16 %v10406, %v10398
    %v10999 = vpack.c.b16 %v10407, %v10399
    %v11000 = vpack.c.b16 %v10416, %v10408
    %v11001 = vpack.c.b16 %v10417, %v10409
    %v11002 = vpack.c.b16 %v10418, %v10410
    %v11003 = vpack.c.b16 %v10419, %v10411
    %v11004 = vpack.c.b16 %v10420, %v10412
    %v11005 = vpack.c.b16 %v10421, %v10413
    %v11006 = vpack.c.b16 %v10422, %v10414
    %v11007 = vpack.c.b16 %v10423, %v10415
    %v11008 = vpack.c.b16 %v10432, %v10424
    %v11009 = vpack.c.b16 %v10433, %v10425
    %v11010 = vpack.c.b16 %v10434, %v10426
    %v11011 = vpack.c.b16 %v10435, %v10427
    %v11012 = vpack.c.b16 %v10436, %v10428
    %v11013 = vpack.c.b16 %v10437, %v10429
    %v11014 = vpack.c.b16 %v10438, %v10430
    %v11015 = vpack.c.b16 %v10439, %v10431
    %v11016 = vpack.c.b16 %v10448, %v10440
    %v11017 = vpack.c.b16 %v10449, %v10441
    %v11018 = vpack.c.b16 %v10450, %v10442
    %v11019 = vpack.c.b16 %v10451, %v10443
    %v11020 = vpack.c.b16 %v10452, %v10444
    %v11021 = vpack.c.b16 %v10453, %v10445
    %v11022 = vpack.c.b16 %v10454, %v10446
    %v11023 = vpack.c.b16 %v10455, %v10447
    %v11024 = vpack.c.b16 %v10464, %v10456
    %v11025 = vpack.c.b16 %v10465, %v10457
    %v11026 = vpack.c.b16 %v10466, %v10458
    %v11027 = vpack.c.b16 %v10467, %v10459
    %v11028 = vpack.c.b16 %v10468, %v10460
    %v11029 = vpack.c.b16 %v10469, %v10461
    %v11030 = vpack.c.b16 %v10470, %v10462
    %v11031 = vpack.c.b16 %v10471, %v10463
    %v11032 = vpack.c.b16 %v10480, %v10472
    %v11033 = vpack.c.b16 %v10481, %v10473
    %v11034 = vpack.c.b16 %v10482, %v10474
    %v11035 = vpack.c.b16 %v10483, %v10475
    %v11036 = vpack.c.b16 %v10484, %v10476
    %v11037 = vpack.c.b16 %v10485, %v10477
    %v11038 = vpack.c.b16 %v10486, %v10478
    %v11039 = vpack.c.b16 %v10487, %v10479
    %v11040 = vpack.c.b16 %v10496, %v10488
    %v11041 = vpack.c.b16 %v10497, %v10489
    %v11042 = vpack.c.b16 %v10498, %v10490
    %v11043 = vpack.c.b16 %v10499, %v10491
    %v11044 = vpack.c.b16 %v10500, %v10492
    %v11045 = vpack.c.b16 %v10501, %v10493
    %v11046 = vpack.c.b16 %v10502, %v10494
    %v11047 = vpack.c.b16 %v10503, %v10495
    %v11048 = vpack.c.b16 %v10512, %v10504
    %v11049 = vpack.c.b16 %v10513, %v10505
    %v11050 = vpack.c.b16 %v10514, %v10506
    %v11051 = vpack.c.b16 %v10515, %v10507
    %v11052 = vpack.c.b16 %v10516, %v10508
    %v11053 = vpack.c.b16 %v10517, %v10509
    %v11054 = vpack.c.b16 %v10518, %v10510
    %v11055 = vpack.c.b16 %v10519, %v10511
    %v11056 = vpack.c.b16 %v10528, %v10520
    %v11057 = vpack.c.b16 %v10529, %v10521
    %v11058 = vpack.c.b16 %v10530, %v10522
    %v11059 = vpack.c.b16 %v10531, %v10523
    %v11060 = vpack.c.b16 %v10532, %v10524
    %v11061 = vpack.c.b16 %v10533, %v10525
    %v11062 = vpack.c.b16 %v10534, %v10526
    %v11063 = vpack.c.b16 %v10535, %v10527
    %v11064 = vpack.c.b16 %v10544, %v10536
    %v11065 = vpack.c.b16 %v10545, %v10537
    %v11066 = vpack.c.b16 %v10546, %v10538
    %v11067 = vpack.c.b16 %v10547, %v10539
    %v11068 = vpack.c.b16 %v10548, %v10540
    %v11069 = vpack.c.b16 %v10549, %v10541
    %v11070 = vpack.c.b16 %v10550, %v10542
    %v11071 = vpack.c.b16 %v10551, %v10543
    %v11072 = vpack.c.b16 %v10560, %v10552
    %v11073 = vpack.c.b16 %v10561, %v10553
    %v11074 = vpack.c.b16 %v10562, %v10554
    %v11075 = vpack.c.b16 %v10563, %v10555
    %v11076 = vpack.c.b16 %v10564, %v10556
    %v11077 = vpack.c.b16 %v10565, %v10557
    %v11078 = vpack.c.b16 %v10566, %v10558
    %v11079 = vpack.c.b16 %v10567, %v10559
    %11592 = vmatprep.subr.bf16.mxu0 %v10625
    %11593 = vmatpush1.bf16.msra.mxu0 %v10624
    %11594 = vmatprep.subr.bf16.mxu0 %v10617
    %11595 = vmatpush1.bf16.msra.mxu0 %v10616
    %11596 = vmatprep.subr.bf16.mxu0 %v10609
    %11597 = vmatpush1.bf16.msra.mxu0 %v10608
    %11598 = vmatprep.subr.bf16.mxu0 %v10601
    %11599 = vmatpush1.bf16.msra.mxu0 %v10600
    %11600 = vmatprep.subr.bf16.mxu0 %v10593
    %11601 = vmatpush1.bf16.msra.mxu0 %v10592
    %11602 = vmatprep.subr.bf16.mxu0 %v10585
    %11603 = vmatpush1.bf16.msra.mxu0 %v10584
    %11604 = vmatprep.subr.bf16.mxu0 %v10577
    %11605 = vmatpush1.bf16.msra.mxu0 %v10576
    %11606 = vmatprep.subr.bf16.mxu0 %v10569
    %11607 = vmatpush1.bf16.msra.mxu0 %v10568
    %11608 = vmatprep.subr.bf16.mxu0 %v10689
    %11609 = vmatpush2.bf16.msra.mxu0 %v10688
    %11610 = vmatprep.subr.bf16.mxu0 %v10681
    %11611 = vmatpush2.bf16.msra.mxu0 %v10680
    %11612 = vmatprep.subr.bf16.mxu0 %v10673
    %11613 = vmatpush2.bf16.msra.mxu0 %v10672
    %11614 = vmatprep.subr.bf16.mxu0 %v10665
    %11615 = vmatpush2.bf16.msra.mxu0 %v10664
    %11616 = vmatprep.subr.bf16.mxu0 %v10657
    %11617 = vmatpush2.bf16.msra.mxu0 %v10656
    %11618 = vmatprep.subr.bf16.mxu0 %v10649
    %11619 = vmatpush2.bf16.msra.mxu0 %v10648
    %11620 = vmatprep.subr.bf16.mxu0 %v10641
    %11621 = vmatpush2.bf16.msra.mxu0 %v10640
    %11622 = vmatprep.subr.bf16.mxu0 %v10633
    %11623 = vmatpush2.bf16.msra.mxu0 %v10632
    %11624 = vmatprep.mubr.bf16.mxu0 %v4777
    %11625 = vmatmul.mubr.bf16.gmra.mxu0 %v4776
    %v11626 = vpop.f32.mrf.mxu0
    %v11627 = vadd.f32 %v8534, %v11626
    %v11628 = vpop.f32.mrf.mxu0
    %v11629 = vadd.f32 %v8536, %v11628
    %v11630 = vpop.f32.mrf.mxu0
    %v11631 = vpop.f32.mrf.mxu0
    %11632 = vdwg.mxu0
    %11633 = vmatprep.subr.bf16.mxu0 %v10753
    %11634 = vmatpush1.bf16.msra.mxu0 %v10752
    %11635 = vmatprep.subr.bf16.mxu0 %v10745
    %11636 = vmatpush1.bf16.msra.mxu0 %v10744
    %11637 = vmatprep.subr.bf16.mxu0 %v10737
    %11638 = vmatpush1.bf16.msra.mxu0 %v10736
    %11639 = vmatprep.subr.bf16.mxu0 %v10729
    %11640 = vmatpush1.bf16.msra.mxu0 %v10728
    %11641 = vmatprep.subr.bf16.mxu0 %v10721
    %11642 = vmatpush1.bf16.msra.mxu0 %v10720
    %11643 = vmatprep.subr.bf16.mxu0 %v10713
    %11644 = vmatpush1.bf16.msra.mxu0 %v10712
    %11645 = vmatprep.subr.bf16.mxu0 %v10705
    %11646 = vmatpush1.bf16.msra.mxu0 %v10704
    %11647 = vmatprep.subr.bf16.mxu0 %v10697
    %11648 = vmatpush1.bf16.msra.mxu0 %v10696
    %11649 = vmatprep.subr.bf16.mxu0 %v10817
    %11650 = vmatpush2.bf16.msra.mxu0 %v10816
    %11651 = vmatprep.subr.bf16.mxu0 %v10809
    %11652 = vmatpush2.bf16.msra.mxu0 %v10808
    %11653 = vmatprep.subr.bf16.mxu0 %v10801
    %11654 = vmatpush2.bf16.msra.mxu0 %v10800
    %11655 = vmatprep.subr.bf16.mxu0 %v10793
    %11656 = vmatpush2.bf16.msra.mxu0 %v10792
    %11657 = vmatprep.subr.bf16.mxu0 %v10785
    %11658 = vmatpush2.bf16.msra.mxu0 %v10784
    %11659 = vmatprep.subr.bf16.mxu0 %v10777
    %11660 = vmatpush2.bf16.msra.mxu0 %v10776
    %11661 = vmatprep.subr.bf16.mxu0 %v10769
    %11662 = vmatpush2.bf16.msra.mxu0 %v10768
    %11663 = vmatprep.subr.bf16.mxu0 %v10761
    %11664 = vmatpush2.bf16.msra.mxu0 %v10760
    %11665 = vmatprep.mubr.bf16.mxu0 %v4779
    %11666 = vmatmul.mubr.bf16.gmra.mxu0 %v4778
    %v11667 = vpop.f32.mrf.mxu0
    %v11668 = vadd.f32 %v11627, %v11667
    %v11669 = vpop.f32.mrf.mxu0
    %v11670 = vadd.f32 %v11629, %v11669
    %v11671 = vpop.f32.mrf.mxu0
    %v11672 = vpop.f32.mrf.mxu0
    %11673 = vdwg.mxu0
    %11674 = vmatprep.subr.bf16.mxu0 %v10881
    %11675 = vmatpush1.bf16.msra.mxu0 %v10880
    %11676 = vmatprep.subr.bf16.mxu0 %v10873
    %11677 = vmatpush1.bf16.msra.mxu0 %v10872
    %11678 = vmatprep.subr.bf16.mxu0 %v10865
    %11679 = vmatpush1.bf16.msra.mxu0 %v10864
    %11680 = vmatprep.subr.bf16.mxu0 %v10857
    %11681 = vmatpush1.bf16.msra.mxu0 %v10856
    %11682 = vmatprep.subr.bf16.mxu0 %v10849
    %11683 = vmatpush1.bf16.msra.mxu0 %v10848
    %11684 = vmatprep.subr.bf16.mxu0 %v10841
    %11685 = vmatpush1.bf16.msra.mxu0 %v10840
    %11686 = vmatprep.subr.bf16.mxu0 %v10833
    %11687 = vmatpush1.bf16.msra.mxu0 %v10832
    %11688 = vmatprep.subr.bf16.mxu0 %v10825
    %11689 = vmatpush1.bf16.msra.mxu0 %v10824
    %11690 = vmatprep.subr.bf16.mxu0 %v10945
    %11691 = vmatpush2.bf16.msra.mxu0 %v10944
    %11692 = vmatprep.subr.bf16.mxu0 %v10937
    %11693 = vmatpush2.bf16.msra.mxu0 %v10936
    %11694 = vmatprep.subr.bf16.mxu0 %v10929
    %11695 = vmatpush2.bf16.msra.mxu0 %v10928
    %11696 = vmatprep.subr.bf16.mxu0 %v10921
    %11697 = vmatpush2.bf16.msra.mxu0 %v10920
    %11698 = vmatprep.subr.bf16.mxu0 %v10913
    %11699 = vmatpush2.bf16.msra.mxu0 %v10912
    %11700 = vmatprep.subr.bf16.mxu0 %v10905
    %11701 = vmatpush2.bf16.msra.mxu0 %v10904
    %11702 = vmatprep.subr.bf16.mxu0 %v10897
    %11703 = vmatpush2.bf16.msra.mxu0 %v10896
    %11704 = vmatprep.subr.bf16.mxu0 %v10889
    %11705 = vmatpush2.bf16.msra.mxu0 %v10888
    %11706 = vmatprep.mubr.bf16.mxu0 %v4781
    %11707 = vmatmul.mubr.bf16.gmra.mxu0 %v4780
    %v11708 = vpop.f32.mrf.mxu0
    %v11709 = vadd.f32 %v11668, %v11708
    %v11710 = vpop.f32.mrf.mxu0
    %v11711 = vadd.f32 %v11670, %v11710
    %v11712 = vpop.f32.mrf.mxu0
    %v11713 = vpop.f32.mrf.mxu0
    %11714 = vdwg.mxu0
    %11715 = vmatprep.subr.bf16.mxu0 %v11009
    %11716 = vmatpush1.bf16.msra.mxu0 %v11008
    %11717 = vmatprep.subr.bf16.mxu0 %v11001
    %11718 = vmatpush1.bf16.msra.mxu0 %v11000
    %11719 = vmatprep.subr.bf16.mxu0 %v10993
    %11720 = vmatpush1.bf16.msra.mxu0 %v10992
    %11721 = vmatprep.subr.bf16.mxu0 %v10985
    %11722 = vmatpush1.bf16.msra.mxu0 %v10984
    %11723 = vmatprep.subr.bf16.mxu0 %v10977
    %11724 = vmatpush1.bf16.msra.mxu0 %v10976
    %11725 = vmatprep.subr.bf16.mxu0 %v10969
    %11726 = vmatpush1.bf16.msra.mxu0 %v10968
    %11727 = vmatprep.subr.bf16.mxu0 %v10961
    %11728 = vmatpush1.bf16.msra.mxu0 %v10960
    %11729 = vmatprep.subr.bf16.mxu0 %v10953
    %11730 = vmatpush1.bf16.msra.mxu0 %v10952
    %11731 = vmatprep.subr.bf16.mxu0 %v11073
    %11732 = vmatpush2.bf16.msra.mxu0 %v11072
    %11733 = vmatprep.subr.bf16.mxu0 %v11065
    %11734 = vmatpush2.bf16.msra.mxu0 %v11064
    %11735 = vmatprep.subr.bf16.mxu0 %v11057
    %11736 = vmatpush2.bf16.msra.mxu0 %v11056
    %11737 = vmatprep.subr.bf16.mxu0 %v11049
    %11738 = vmatpush2.bf16.msra.mxu0 %v11048
    %11739 = vmatprep.subr.bf16.mxu0 %v11041
    %11740 = vmatpush2.bf16.msra.mxu0 %v11040
    %11741 = vmatprep.subr.bf16.mxu0 %v11033
    %11742 = vmatpush2.bf16.msra.mxu0 %v11032
    %11743 = vmatprep.subr.bf16.mxu0 %v11025
    %11744 = vmatpush2.bf16.msra.mxu0 %v11024
    %11745 = vmatprep.subr.bf16.mxu0 %v11017
    %11746 = vmatpush2.bf16.msra.mxu0 %v11016
    %11747 = vmatprep.mubr.bf16.mxu0 %v4783
    %11748 = vmatmul.mubr.bf16.gmra.mxu0 %v4782
    %v11749 = vpop.f32.mrf.mxu0
    %v11750 = vadd.f32 %v11709, %v11749
    %v11751 = vpop.f32.mrf.mxu0
    %v11752 = vadd.f32 %v11711, %v11751
    %v11753 = vpop.f32.mrf.mxu0
    %v11754 = vpop.f32.mrf.mxu0
    %11755 = vdwg.mxu0
    %11756 = vmatprep.subr.bf16.mxu0 %v10627
    %11757 = vmatpush1.bf16.msra.mxu0 %v10626
    %11758 = vmatprep.subr.bf16.mxu0 %v10619
    %11759 = vmatpush1.bf16.msra.mxu0 %v10618
    %11760 = vmatprep.subr.bf16.mxu0 %v10611
    %11761 = vmatpush1.bf16.msra.mxu0 %v10610
    %11762 = vmatprep.subr.bf16.mxu0 %v10603
    %11763 = vmatpush1.bf16.msra.mxu0 %v10602
    %11764 = vmatprep.subr.bf16.mxu0 %v10595
    %11765 = vmatpush1.bf16.msra.mxu0 %v10594
    %11766 = vmatprep.subr.bf16.mxu0 %v10587
    %11767 = vmatpush1.bf16.msra.mxu0 %v10586
    %11768 = vmatprep.subr.bf16.mxu0 %v10579
    %11769 = vmatpush1.bf16.msra.mxu0 %v10578
    %11770 = vmatprep.subr.bf16.mxu0 %v10571
    %11771 = vmatpush1.bf16.msra.mxu0 %v10570
    %11772 = vmatprep.subr.bf16.mxu0 %v10691
    %11773 = vmatpush2.bf16.msra.mxu0 %v10690
    %11774 = vmatprep.subr.bf16.mxu0 %v10683
    %11775 = vmatpush2.bf16.msra.mxu0 %v10682
    %11776 = vmatprep.subr.bf16.mxu0 %v10675
    %11777 = vmatpush2.bf16.msra.mxu0 %v10674
    %11778 = vmatprep.subr.bf16.mxu0 %v10667
    %11779 = vmatpush2.bf16.msra.mxu0 %v10666
    %11780 = vmatprep.subr.bf16.mxu0 %v10659
    %11781 = vmatpush2.bf16.msra.mxu0 %v10658
    %11782 = vmatprep.subr.bf16.mxu0 %v10651
    %11783 = vmatpush2.bf16.msra.mxu0 %v10650
    %11784 = vmatprep.subr.bf16.mxu0 %v10643
    %11785 = vmatpush2.bf16.msra.mxu0 %v10642
    %11786 = vmatprep.subr.bf16.mxu0 %v10635
    %11787 = vmatpush2.bf16.msra.mxu0 %v10634
    %11788 = vmatprep.mubr.bf16.mxu0 %v4777
    %11789 = vmatmul.mubr.bf16.gmra.mxu0 %v4776
    %v11790 = vpop.f32.mrf.mxu0
    %v11791 = vadd.f32 %v8698, %v11790
    %v11792 = vpop.f32.mrf.mxu0
    %v11793 = vadd.f32 %v8700, %v11792
    %v11794 = vpop.f32.mrf.mxu0
    %v11795 = vpop.f32.mrf.mxu0
    %11796 = vdwg.mxu0
    %11797 = vmatprep.subr.bf16.mxu0 %v10755
    %11798 = vmatpush1.bf16.msra.mxu0 %v10754
    %11799 = vmatprep.subr.bf16.mxu0 %v10747
    %11800 = vmatpush1.bf16.msra.mxu0 %v10746
    %11801 = vmatprep.subr.bf16.mxu0 %v10739
    %11802 = vmatpush1.bf16.msra.mxu0 %v10738
    %11803 = vmatprep.subr.bf16.mxu0 %v10731
    %11804 = vmatpush1.bf16.msra.mxu0 %v10730
    %11805 = vmatprep.subr.bf16.mxu0 %v10723
    %11806 = vmatpush1.bf16.msra.mxu0 %v10722
    %11807 = vmatprep.subr.bf16.mxu0 %v10715
    %11808 = vmatpush1.bf16.msra.mxu0 %v10714
    %11809 = vmatprep.subr.bf16.mxu0 %v10707
    %11810 = vmatpush1.bf16.msra.mxu0 %v10706
    %11811 = vmatprep.subr.bf16.mxu0 %v10699
    %11812 = vmatpush1.bf16.msra.mxu0 %v10698
    %11813 = vmatprep.subr.bf16.mxu0 %v10819
    %11814 = vmatpush2.bf16.msra.mxu0 %v10818
    %11815 = vmatprep.subr.bf16.mxu0 %v10811
    %11816 = vmatpush2.bf16.msra.mxu0 %v10810
    %11817 = vmatprep.subr.bf16.mxu0 %v10803
    %11818 = vmatpush2.bf16.msra.mxu0 %v10802
    %11819 = vmatprep.subr.bf16.mxu0 %v10795
    %11820 = vmatpush2.bf16.msra.mxu0 %v10794
    %11821 = vmatprep.subr.bf16.mxu0 %v10787
    %11822 = vmatpush2.bf16.msra.mxu0 %v10786
    %11823 = vmatprep.subr.bf16.mxu0 %v10779
    %11824 = vmatpush2.bf16.msra.mxu0 %v10778
    %11825 = vmatprep.subr.bf16.mxu0 %v10771
    %11826 = vmatpush2.bf16.msra.mxu0 %v10770
    %11827 = vmatprep.subr.bf16.mxu0 %v10763
    %11828 = vmatpush2.bf16.msra.mxu0 %v10762
    %11829 = vmatprep.mubr.bf16.mxu0 %v4779
    %11830 = vmatmul.mubr.bf16.gmra.mxu0 %v4778
    %v11831 = vpop.f32.mrf.mxu0
    %v11832 = vadd.f32 %v11791, %v11831
    %v11833 = vpop.f32.mrf.mxu0
    %v11834 = vadd.f32 %v11793, %v11833
    %v11835 = vpop.f32.mrf.mxu0
    %v11836 = vpop.f32.mrf.mxu0
    %11837 = vdwg.mxu0
    %11838 = vmatprep.subr.bf16.mxu0 %v10883
    %11839 = vmatpush1.bf16.msra.mxu0 %v10882
    %11840 = vmatprep.subr.bf16.mxu0 %v10875
    %11841 = vmatpush1.bf16.msra.mxu0 %v10874
    %11842 = vmatprep.subr.bf16.mxu0 %v10867
    %11843 = vmatpush1.bf16.msra.mxu0 %v10866
    %11844 = vmatprep.subr.bf16.mxu0 %v10859
    %11845 = vmatpush1.bf16.msra.mxu0 %v10858
    %11846 = vmatprep.subr.bf16.mxu0 %v10851
    %11847 = vmatpush1.bf16.msra.mxu0 %v10850
    %11848 = vmatprep.subr.bf16.mxu0 %v10843
    %11849 = vmatpush1.bf16.msra.mxu0 %v10842
    %11850 = vmatprep.subr.bf16.mxu0 %v10835
    %11851 = vmatpush1.bf16.msra.mxu0 %v10834
    %11852 = vmatprep.subr.bf16.mxu0 %v10827
    %11853 = vmatpush1.bf16.msra.mxu0 %v10826
    %11854 = vmatprep.subr.bf16.mxu0 %v10947
    %11855 = vmatpush2.bf16.msra.mxu0 %v10946
    %11856 = vmatprep.subr.bf16.mxu0 %v10939
    %11857 = vmatpush2.bf16.msra.mxu0 %v10938
    %11858 = vmatprep.subr.bf16.mxu0 %v10931
    %11859 = vmatpush2.bf16.msra.mxu0 %v10930
    %11860 = vmatprep.subr.bf16.mxu0 %v10923
    %11861 = vmatpush2.bf16.msra.mxu0 %v10922
    %11862 = vmatprep.subr.bf16.mxu0 %v10915
    %11863 = vmatpush2.bf16.msra.mxu0 %v10914
    %11864 = vmatprep.subr.bf16.mxu0 %v10907
    %11865 = vmatpush2.bf16.msra.mxu0 %v10906
    %11866 = vmatprep.subr.bf16.mxu0 %v10899
    %11867 = vmatpush2.bf16.msra.mxu0 %v10898
    %11868 = vmatprep.subr.bf16.mxu0 %v10891
    %11869 = vmatpush2.bf16.msra.mxu0 %v10890
    %11870 = vmatprep.mubr.bf16.mxu0 %v4781
    %11871 = vmatmul.mubr.bf16.gmra.mxu0 %v4780
    %v11872 = vpop.f32.mrf.mxu0
    %v11873 = vadd.f32 %v11832, %v11872
    %v11874 = vpop.f32.mrf.mxu0
    %v11875 = vadd.f32 %v11834, %v11874
    %v11876 = vpop.f32.mrf.mxu0
    %v11877 = vpop.f32.mrf.mxu0
    %11878 = vdwg.mxu0
    %11879 = vmatprep.subr.bf16.mxu0 %v11011
    %11880 = vmatpush1.bf16.msra.mxu0 %v11010
    %11881 = vmatprep.subr.bf16.mxu0 %v11003
    %11882 = vmatpush1.bf16.msra.mxu0 %v11002
    %11883 = vmatprep.subr.bf16.mxu0 %v10995
    %11884 = vmatpush1.bf16.msra.mxu0 %v10994
    %11885 = vmatprep.subr.bf16.mxu0 %v10987
    %11886 = vmatpush1.bf16.msra.mxu0 %v10986
    %11887 = vmatprep.subr.bf16.mxu0 %v10979
    %11888 = vmatpush1.bf16.msra.mxu0 %v10978
    %11889 = vmatprep.subr.bf16.mxu0 %v10971
    %11890 = vmatpush1.bf16.msra.mxu0 %v10970
    %11891 = vmatprep.subr.bf16.mxu0 %v10963
    %11892 = vmatpush1.bf16.msra.mxu0 %v10962
    %11893 = vmatprep.subr.bf16.mxu0 %v10955
    %11894 = vmatpush1.bf16.msra.mxu0 %v10954
    %11895 = vmatprep.subr.bf16.mxu0 %v11075
    %11896 = vmatpush2.bf16.msra.mxu0 %v11074
    %11897 = vmatprep.subr.bf16.mxu0 %v11067
    %11898 = vmatpush2.bf16.msra.mxu0 %v11066
    %11899 = vmatprep.subr.bf16.mxu0 %v11059
    %11900 = vmatpush2.bf16.msra.mxu0 %v11058
    %11901 = vmatprep.subr.bf16.mxu0 %v11051
    %11902 = vmatpush2.bf16.msra.mxu0 %v11050
    %11903 = vmatprep.subr.bf16.mxu0 %v11043
    %11904 = vmatpush2.bf16.msra.mxu0 %v11042
    %11905 = vmatprep.subr.bf16.mxu0 %v11035
    %11906 = vmatpush2.bf16.msra.mxu0 %v11034
    %11907 = vmatprep.subr.bf16.mxu0 %v11027
    %11908 = vmatpush2.bf16.msra.mxu0 %v11026
    %11909 = vmatprep.subr.bf16.mxu0 %v11019
    %11910 = vmatpush2.bf16.msra.mxu0 %v11018
    %11911 = vmatprep.mubr.bf16.mxu0 %v4783
    %11912 = vmatmul.mubr.bf16.gmra.mxu0 %v4782
    %v11913 = vpop.f32.mrf.mxu0
    %v11914 = vadd.f32 %v11873, %v11913
    %v11915 = vpop.f32.mrf.mxu0
    %v11916 = vadd.f32 %v11875, %v11915
    %v11917 = vpop.f32.mrf.mxu0
    %v11918 = vpop.f32.mrf.mxu0
    %11919 = vdwg.mxu0
    %11920 = vmatprep.subr.bf16.mxu0 %v10629
    %11921 = vmatpush1.bf16.msra.mxu0 %v10628
    %11922 = vmatprep.subr.bf16.mxu0 %v10621
    %11923 = vmatpush1.bf16.msra.mxu0 %v10620
    %11924 = vmatprep.subr.bf16.mxu0 %v10613
    %11925 = vmatpush1.bf16.msra.mxu0 %v10612
    %11926 = vmatprep.subr.bf16.mxu0 %v10605
    %11927 = vmatpush1.bf16.msra.mxu0 %v10604
    %11928 = vmatprep.subr.bf16.mxu0 %v10597
    %11929 = vmatpush1.bf16.msra.mxu0 %v10596
    %11930 = vmatprep.subr.bf16.mxu0 %v10589
    %11931 = vmatpush1.bf16.msra.mxu0 %v10588
    %11932 = vmatprep.subr.bf16.mxu0 %v10581
    %11933 = vmatpush1.bf16.msra.mxu0 %v10580
    %11934 = vmatprep.subr.bf16.mxu0 %v10573
    %11935 = vmatpush1.bf16.msra.mxu0 %v10572
    %11936 = vmatprep.subr.bf16.mxu0 %v10693
    %11937 = vmatpush2.bf16.msra.mxu0 %v10692
    %11938 = vmatprep.subr.bf16.mxu0 %v10685
    %11939 = vmatpush2.bf16.msra.mxu0 %v10684
    %11940 = vmatprep.subr.bf16.mxu0 %v10677
    %11941 = vmatpush2.bf16.msra.mxu0 %v10676
    %11942 = vmatprep.subr.bf16.mxu0 %v10669
    %11943 = vmatpush2.bf16.msra.mxu0 %v10668
    %11944 = vmatprep.subr.bf16.mxu0 %v10661
    %11945 = vmatpush2.bf16.msra.mxu0 %v10660
    %11946 = vmatprep.subr.bf16.mxu0 %v10653
    %11947 = vmatpush2.bf16.msra.mxu0 %v10652
    %11948 = vmatprep.subr.bf16.mxu0 %v10645
    %11949 = vmatpush2.bf16.msra.mxu0 %v10644
    %11950 = vmatprep.subr.bf16.mxu0 %v10637
    %11951 = vmatpush2.bf16.msra.mxu0 %v10636
    %11952 = vmatprep.mubr.bf16.mxu0 %v4777
    %11953 = vmatmul.mubr.bf16.gmra.mxu0 %v4776
    %v11954 = vpop.f32.mrf.mxu0
    %v11955 = vadd.f32 %v8862, %v11954
    %v11956 = vpop.f32.mrf.mxu0
    %v11957 = vadd.f32 %v8864, %v11956
    %v11958 = vpop.f32.mrf.mxu0
    %v11959 = vpop.f32.mrf.mxu0
    %11960 = vdwg.mxu0
    %11961 = vmatprep.subr.bf16.mxu0 %v10757
    %11962 = vmatpush1.bf16.msra.mxu0 %v10756
    %11963 = vmatprep.subr.bf16.mxu0 %v10749
    %11964 = vmatpush1.bf16.msra.mxu0 %v10748
    %11965 = vmatprep.subr.bf16.mxu0 %v10741
    %11966 = vmatpush1.bf16.msra.mxu0 %v10740
    %11967 = vmatprep.subr.bf16.mxu0 %v10733
    %11968 = vmatpush1.bf16.msra.mxu0 %v10732
    %11969 = vmatprep.subr.bf16.mxu0 %v10725
    %11970 = vmatpush1.bf16.msra.mxu0 %v10724
    %11971 = vmatprep.subr.bf16.mxu0 %v10717
    %11972 = vmatpush1.bf16.msra.mxu0 %v10716
    %11973 = vmatprep.subr.bf16.mxu0 %v10709
    %11974 = vmatpush1.bf16.msra.mxu0 %v10708
    %11975 = vmatprep.subr.bf16.mxu0 %v10701
    %11976 = vmatpush1.bf16.msra.mxu0 %v10700
    %11977 = vmatprep.subr.bf16.mxu0 %v10821
    %11978 = vmatpush2.bf16.msra.mxu0 %v10820
    %11979 = vmatprep.subr.bf16.mxu0 %v10813
    %11980 = vmatpush2.bf16.msra.mxu0 %v10812
    %11981 = vmatprep.subr.bf16.mxu0 %v10805
    %11982 = vmatpush2.bf16.msra.mxu0 %v10804
    %11983 = vmatprep.subr.bf16.mxu0 %v10797
    %11984 = vmatpush2.bf16.msra.mxu0 %v10796
    %11985 = vmatprep.subr.bf16.mxu0 %v10789
    %11986 = vmatpush2.bf16.msra.mxu0 %v10788
    %11987 = vmatprep.subr.bf16.mxu0 %v10781
    %11988 = vmatpush2.bf16.msra.mxu0 %v10780
    %11989 = vmatprep.subr.bf16.mxu0 %v10773
    %11990 = vmatpush2.bf16.msra.mxu0 %v10772
    %11991 = vmatprep.subr.bf16.mxu0 %v10765
    %11992 = vmatpush2.bf16.msra.mxu0 %v10764
    %11993 = vmatprep.mubr.bf16.mxu0 %v4779
    %11994 = vmatmul.mubr.bf16.gmra.mxu0 %v4778
    %v11995 = vpop.f32.mrf.mxu0
    %v11996 = vadd.f32 %v11955, %v11995
    %v11997 = vpop.f32.mrf.mxu0
    %v11998 = vadd.f32 %v11957, %v11997
    %v11999 = vpop.f32.mrf.mxu0
    %v12000 = vpop.f32.mrf.mxu0
    %12001 = vdwg.mxu0
    %12002 = vmatprep.subr.bf16.mxu0 %v10885
    %12003 = vmatpush1.bf16.msra.mxu0 %v10884
    %12004 = vmatprep.subr.bf16.mxu0 %v10877
    %12005 = vmatpush1.bf16.msra.mxu0 %v10876
    %12006 = vmatprep.subr.bf16.mxu0 %v10869
    %12007 = vmatpush1.bf16.msra.mxu0 %v10868
    %12008 = vmatprep.subr.bf16.mxu0 %v10861
    %12009 = vmatpush1.bf16.msra.mxu0 %v10860
    %12010 = vmatprep.subr.bf16.mxu0 %v10853
    %12011 = vmatpush1.bf16.msra.mxu0 %v10852
    %12012 = vmatprep.subr.bf16.mxu0 %v10845
    %12013 = vmatpush1.bf16.msra.mxu0 %v10844
    %12014 = vmatprep.subr.bf16.mxu0 %v10837
    %12015 = vmatpush1.bf16.msra.mxu0 %v10836
    %12016 = vmatprep.subr.bf16.mxu0 %v10829
    %12017 = vmatpush1.bf16.msra.mxu0 %v10828
    %12018 = vmatprep.subr.bf16.mxu0 %v10949
    %12019 = vmatpush2.bf16.msra.mxu0 %v10948
    %12020 = vmatprep.subr.bf16.mxu0 %v10941
    %12021 = vmatpush2.bf16.msra.mxu0 %v10940
    %12022 = vmatprep.subr.bf16.mxu0 %v10933
    %12023 = vmatpush2.bf16.msra.mxu0 %v10932
    %12024 = vmatprep.subr.bf16.mxu0 %v10925
    %12025 = vmatpush2.bf16.msra.mxu0 %v10924
    %12026 = vmatprep.subr.bf16.mxu0 %v10917
    %12027 = vmatpush2.bf16.msra.mxu0 %v10916
    %12028 = vmatprep.subr.bf16.mxu0 %v10909
    %12029 = vmatpush2.bf16.msra.mxu0 %v10908
    %12030 = vmatprep.subr.bf16.mxu0 %v10901
    %12031 = vmatpush2.bf16.msra.mxu0 %v10900
    %12032 = vmatprep.subr.bf16.mxu0 %v10893
    %12033 = vmatpush2.bf16.msra.mxu0 %v10892
    %12034 = vmatprep.mubr.bf16.mxu0 %v4781
    %12035 = vmatmul.mubr.bf16.gmra.mxu0 %v4780
    %v12036 = vpop.f32.mrf.mxu0
    %v12037 = vadd.f32 %v11996, %v12036
    %v12038 = vpop.f32.mrf.mxu0
    %v12039 = vadd.f32 %v11998, %v12038
    %v12040 = vpop.f32.mrf.mxu0
    %v12041 = vpop.f32.mrf.mxu0
    %12042 = vdwg.mxu0
    %12043 = vmatprep.subr.bf16.mxu0 %v11013
    %12044 = vmatpush1.bf16.msra.mxu0 %v11012
    %12045 = vmatprep.subr.bf16.mxu0 %v11005
    %12046 = vmatpush1.bf16.msra.mxu0 %v11004
    %12047 = vmatprep.subr.bf16.mxu0 %v10997
    %12048 = vmatpush1.bf16.msra.mxu0 %v10996
    %12049 = vmatprep.subr.bf16.mxu0 %v10989
    %12050 = vmatpush1.bf16.msra.mxu0 %v10988
    %12051 = vmatprep.subr.bf16.mxu0 %v10981
    %12052 = vmatpush1.bf16.msra.mxu0 %v10980
    %12053 = vmatprep.subr.bf16.mxu0 %v10973
    %12054 = vmatpush1.bf16.msra.mxu0 %v10972
    %12055 = vmatprep.subr.bf16.mxu0 %v10965
    %12056 = vmatpush1.bf16.msra.mxu0 %v10964
    %12057 = vmatprep.subr.bf16.mxu0 %v10957
    %12058 = vmatpush1.bf16.msra.mxu0 %v10956
    %12059 = vmatprep.subr.bf16.mxu0 %v11077
    %12060 = vmatpush2.bf16.msra.mxu0 %v11076
    %12061 = vmatprep.subr.bf16.mxu0 %v11069
    %12062 = vmatpush2.bf16.msra.mxu0 %v11068
    %12063 = vmatprep.subr.bf16.mxu0 %v11061
    %12064 = vmatpush2.bf16.msra.mxu0 %v11060
    %12065 = vmatprep.subr.bf16.mxu0 %v11053
    %12066 = vmatpush2.bf16.msra.mxu0 %v11052
    %12067 = vmatprep.subr.bf16.mxu0 %v11045
    %12068 = vmatpush2.bf16.msra.mxu0 %v11044
    %12069 = vmatprep.subr.bf16.mxu0 %v11037
    %12070 = vmatpush2.bf16.msra.mxu0 %v11036
    %12071 = vmatprep.subr.bf16.mxu0 %v11029
    %12072 = vmatpush2.bf16.msra.mxu0 %v11028
    %12073 = vmatprep.subr.bf16.mxu0 %v11021
    %12074 = vmatpush2.bf16.msra.mxu0 %v11020
    %12075 = vmatprep.mubr.bf16.mxu0 %v4783
    %12076 = vmatmul.mubr.bf16.gmra.mxu0 %v4782
    %v12077 = vpop.f32.mrf.mxu0
    %v12078 = vadd.f32 %v12037, %v12077
    %v12079 = vpop.f32.mrf.mxu0
    %v12080 = vadd.f32 %v12039, %v12079
    %v12081 = vpop.f32.mrf.mxu0
    %v12082 = vpop.f32.mrf.mxu0
    %12083 = vdwg.mxu0
    %12084 = vmatprep.subr.bf16.mxu0 %v10631
    %12085 = vmatpush1.bf16.msra.mxu0 %v10630
    %12086 = vmatprep.subr.bf16.mxu0 %v10623
    %12087 = vmatpush1.bf16.msra.mxu0 %v10622
    %12088 = vmatprep.subr.bf16.mxu0 %v10615
    %12089 = vmatpush1.bf16.msra.mxu0 %v10614
    %12090 = vmatprep.subr.bf16.mxu0 %v10607
    %12091 = vmatpush1.bf16.msra.mxu0 %v10606
    %12092 = vmatprep.subr.bf16.mxu0 %v10599
    %12093 = vmatpush1.bf16.msra.mxu0 %v10598
    %12094 = vmatprep.subr.bf16.mxu0 %v10591
    %12095 = vmatpush1.bf16.msra.mxu0 %v10590
    %12096 = vmatprep.subr.bf16.mxu0 %v10583
    %12097 = vmatpush1.bf16.msra.mxu0 %v10582
    %12098 = vmatprep.subr.bf16.mxu0 %v10575
    %12099 = vmatpush1.bf16.msra.mxu0 %v10574
    %12100 = vmatprep.subr.bf16.mxu0 %v10695
    %12101 = vmatpush2.bf16.msra.mxu0 %v10694
    %12102 = vmatprep.subr.bf16.mxu0 %v10687
    %12103 = vmatpush2.bf16.msra.mxu0 %v10686
    %12104 = vmatprep.subr.bf16.mxu0 %v10679
    %12105 = vmatpush2.bf16.msra.mxu0 %v10678
    %12106 = vmatprep.subr.bf16.mxu0 %v10671
    %12107 = vmatpush2.bf16.msra.mxu0 %v10670
    %12108 = vmatprep.subr.bf16.mxu0 %v10663
    %12109 = vmatpush2.bf16.msra.mxu0 %v10662
    %12110 = vmatprep.subr.bf16.mxu0 %v10655
    %12111 = vmatpush2.bf16.msra.mxu0 %v10654
    %12112 = vmatprep.subr.bf16.mxu0 %v10647
    %12113 = vmatpush2.bf16.msra.mxu0 %v10646
    %12114 = vmatprep.subr.bf16.mxu0 %v10639
    %12115 = vmatpush2.bf16.msra.mxu0 %v10638
    %12116 = vmatprep.mubr.bf16.mxu0 %v4777
    %12117 = vmatmul.mubr.bf16.gmra.mxu0 %v4776
    %v12118 = vpop.f32.mrf.mxu0
    %v12119 = vadd.f32 %v9026, %v12118
    %v12120 = vpop.f32.mrf.mxu0
    %v12121 = vadd.f32 %v9028, %v12120
    %v12122 = vpop.f32.mrf.mxu0
    %v12123 = vpop.f32.mrf.mxu0
    %12124 = vdwg.mxu0
    %12125 = vmatprep.subr.bf16.mxu0 %v10759
    %12126 = vmatpush1.bf16.msra.mxu0 %v10758
    %12127 = vmatprep.subr.bf16.mxu0 %v10751
    %12128 = vmatpush1.bf16.msra.mxu0 %v10750
    %12129 = vmatprep.subr.bf16.mxu0 %v10743
    %12130 = vmatpush1.bf16.msra.mxu0 %v10742
    %12131 = vmatprep.subr.bf16.mxu0 %v10735
    %12132 = vmatpush1.bf16.msra.mxu0 %v10734
    %12133 = vmatprep.subr.bf16.mxu0 %v10727
    %12134 = vmatpush1.bf16.msra.mxu0 %v10726
    %12135 = vmatprep.subr.bf16.mxu0 %v10719
    %12136 = vmatpush1.bf16.msra.mxu0 %v10718
    %12137 = vmatprep.subr.bf16.mxu0 %v10711
    %12138 = vmatpush1.bf16.msra.mxu0 %v10710
    %12139 = vmatprep.subr.bf16.mxu0 %v10703
    %12140 = vmatpush1.bf16.msra.mxu0 %v10702
    %12141 = vmatprep.subr.bf16.mxu0 %v10823
    %12142 = vmatpush2.bf16.msra.mxu0 %v10822
    %12143 = vmatprep.subr.bf16.mxu0 %v10815
    %12144 = vmatpush2.bf16.msra.mxu0 %v10814
    %12145 = vmatprep.subr.bf16.mxu0 %v10807
    %12146 = vmatpush2.bf16.msra.mxu0 %v10806
    %12147 = vmatprep.subr.bf16.mxu0 %v10799
    %12148 = vmatpush2.bf16.msra.mxu0 %v10798
    %12149 = vmatprep.subr.bf16.mxu0 %v10791
    %12150 = vmatpush2.bf16.msra.mxu0 %v10790
    %12151 = vmatprep.subr.bf16.mxu0 %v10783
    %12152 = vmatpush2.bf16.msra.mxu0 %v10782
    %12153 = vmatprep.subr.bf16.mxu0 %v10775
    %12154 = vmatpush2.bf16.msra.mxu0 %v10774
    %12155 = vmatprep.subr.bf16.mxu0 %v10767
    %12156 = vmatpush2.bf16.msra.mxu0 %v10766
    %12157 = vmatprep.mubr.bf16.mxu0 %v4779
    %12158 = vmatmul.mubr.bf16.gmra.mxu0 %v4778
    %v12159 = vpop.f32.mrf.mxu0
    %v12160 = vadd.f32 %v12119, %v12159
    %v12161 = vpop.f32.mrf.mxu0
    %v12162 = vadd.f32 %v12121, %v12161
    %v12163 = vpop.f32.mrf.mxu0
    %v12164 = vpop.f32.mrf.mxu0
    %12165 = vdwg.mxu0
    %12166 = vmatprep.subr.bf16.mxu0 %v10887
    %12167 = vmatpush1.bf16.msra.mxu0 %v10886
    %12168 = vmatprep.subr.bf16.mxu0 %v10879
    %12169 = vmatpush1.bf16.msra.mxu0 %v10878
    %12170 = vmatprep.subr.bf16.mxu0 %v10871
    %12171 = vmatpush1.bf16.msra.mxu0 %v10870
    %12172 = vmatprep.subr.bf16.mxu0 %v10863
    %12173 = vmatpush1.bf16.msra.mxu0 %v10862
    %12174 = vmatprep.subr.bf16.mxu0 %v10855
    %12175 = vmatpush1.bf16.msra.mxu0 %v10854
    %12176 = vmatprep.subr.bf16.mxu0 %v10847
    %12177 = vmatpush1.bf16.msra.mxu0 %v10846
    %12178 = vmatprep.subr.bf16.mxu0 %v10839
    %12179 = vmatpush1.bf16.msra.mxu0 %v10838
    %12180 = vmatprep.subr.bf16.mxu0 %v10831
    %12181 = vmatpush1.bf16.msra.mxu0 %v10830
    %12182 = vmatprep.subr.bf16.mxu0 %v10951
    %12183 = vmatpush2.bf16.msra.mxu0 %v10950
    %12184 = vmatprep.subr.bf16.mxu0 %v10943
    %12185 = vmatpush2.bf16.msra.mxu0 %v10942
    %12186 = vmatprep.subr.bf16.mxu0 %v10935
    %12187 = vmatpush2.bf16.msra.mxu0 %v10934
    %12188 = vmatprep.subr.bf16.mxu0 %v10927
    %12189 = vmatpush2.bf16.msra.mxu0 %v10926
    %12190 = vmatprep.subr.bf16.mxu0 %v10919
    %12191 = vmatpush2.bf16.msra.mxu0 %v10918
    %12192 = vmatprep.subr.bf16.mxu0 %v10911
    %12193 = vmatpush2.bf16.msra.mxu0 %v10910
    %12194 = vmatprep.subr.bf16.mxu0 %v10903
    %12195 = vmatpush2.bf16.msra.mxu0 %v10902
    %12196 = vmatprep.subr.bf16.mxu0 %v10895
    %12197 = vmatpush2.bf16.msra.mxu0 %v10894
    %12198 = vmatprep.mubr.bf16.mxu0 %v4781
    %12199 = vmatmul.mubr.bf16.gmra.mxu0 %v4780
    %v12200 = vpop.f32.mrf.mxu0
    %v12201 = vadd.f32 %v12160, %v12200
    %v12202 = vpop.f32.mrf.mxu0
    %v12203 = vadd.f32 %v12162, %v12202
    %v12204 = vpop.f32.mrf.mxu0
    %v12205 = vpop.f32.mrf.mxu0
    %12206 = vdwg.mxu0
    %12207 = vmatprep.subr.bf16.mxu0 %v11015
    %12208 = vmatpush1.bf16.msra.mxu0 %v11014
    %12209 = vmatprep.subr.bf16.mxu0 %v11007
    %12210 = vmatpush1.bf16.msra.mxu0 %v11006
    %12211 = vmatprep.subr.bf16.mxu0 %v10999
    %12212 = vmatpush1.bf16.msra.mxu0 %v10998
    %12213 = vmatprep.subr.bf16.mxu0 %v10991
    %12214 = vmatpush1.bf16.msra.mxu0 %v10990
    %12215 = vmatprep.subr.bf16.mxu0 %v10983
    %12216 = vmatpush1.bf16.msra.mxu0 %v10982
    %12217 = vmatprep.subr.bf16.mxu0 %v10975
    %12218 = vmatpush1.bf16.msra.mxu0 %v10974
    %12219 = vmatprep.subr.bf16.mxu0 %v10967
    %12220 = vmatpush1.bf16.msra.mxu0 %v10966
    %12221 = vmatprep.subr.bf16.mxu0 %v10959
    %12222 = vmatpush1.bf16.msra.mxu0 %v10958
    %12223 = vmatprep.subr.bf16.mxu0 %v11079
    %12224 = vmatpush2.bf16.msra.mxu0 %v11078
    %12225 = vmatprep.subr.bf16.mxu0 %v11071
    %12226 = vmatpush2.bf16.msra.mxu0 %v11070
    %12227 = vmatprep.subr.bf16.mxu0 %v11063
    %12228 = vmatpush2.bf16.msra.mxu0 %v11062
    %12229 = vmatprep.subr.bf16.mxu0 %v11055
    %12230 = vmatpush2.bf16.msra.mxu0 %v11054
    %12231 = vmatprep.subr.bf16.mxu0 %v11047
    %12232 = vmatpush2.bf16.msra.mxu0 %v11046
    %12233 = vmatprep.subr.bf16.mxu0 %v11039
    %12234 = vmatpush2.bf16.msra.mxu0 %v11038
    %12235 = vmatprep.subr.bf16.mxu0 %v11031
    %12236 = vmatpush2.bf16.msra.mxu0 %v11030
    %12237 = vmatprep.subr.bf16.mxu0 %v11023
    %12238 = vmatpush2.bf16.msra.mxu0 %v11022
    %12239 = vmatprep.mubr.bf16.mxu0 %v4783
    %12240 = vmatmul.mubr.bf16.gmra.mxu0 %v4782
    %v12241 = vpop.f32.mrf.mxu0
    %v12242 = vadd.f32 %v12201, %v12241
    %v12243 = vpop.f32.mrf.mxu0
    %v12244 = vadd.f32 %v12203, %v12243
    %v12245 = vpop.f32.mrf.mxu0
    %v12246 = vpop.f32.mrf.mxu0
    %12247 = vdwg.mxu0
    %v12248 = vld [vmem:[%s11] sm:$0xff]
    %v12250 = vlaneseq
    %v12251 = vshrl.u32 %v12250, 7
    %v12252 = vsub.s32 0, %v12251
    %v12253 = vrot.slane %v12248, %v12252
    %v12254 = vlaneseq
    %v12255 = vshrl.u32 %v12254, 7
    %v12256 = vsub.s32 1, %v12255
    %v12257 = vrot.slane %v12248, %v12256
    %v12258 = vlaneseq
    %v12259 = vshrl.u32 %v12258, 7
    %v12260 = vsub.s32 2, %v12259
    %v12261 = vrot.slane %v12248, %v12260
    %v12262 = vlaneseq
    %v12263 = vshrl.u32 %v12262, 7
    %v12264 = vsub.s32 3, %v12263
    %v12265 = vrot.slane %v12248, %v12264
    %v12266 = vlaneseq
    %v12267 = vshrl.u32 %v12266, 7
    %v12268 = vsub.s32 4, %v12267
    %v12269 = vrot.slane %v12248, %v12268
    %v12270 = vlaneseq
    %v12271 = vshrl.u32 %v12270, 7
    %v12272 = vsub.s32 5, %v12271
    %v12273 = vrot.slane %v12248, %v12272
    %v12274 = vlaneseq
    %v12275 = vshrl.u32 %v12274, 7
    %v12276 = vsub.s32 6, %v12275
    %v12277 = vrot.slane %v12248, %v12276
    %v12278 = vlaneseq
    %v12279 = vshrl.u32 %v12278, 7
    %v12280 = vsub.s32 7, %v12279
    %v12281 = vrot.slane %v12248, %v12280
    %v12290 = vadd.f32 %v11750, %v12253
    %v12291 = vadd.f32 %v11752, %v12257
    %v12292 = vadd.f32 %v11914, %v12261
    %v12293 = vadd.f32 %v11916, %v12265
    %v12294 = vadd.f32 %v12078, %v12269
    %v12295 = vadd.f32 %v12080, %v12273
    %v12296 = vadd.f32 %v12242, %v12277
    %v12297 = vadd.f32 %v12244, %v12281
    %v12298 = vxor.u32 %v12290, 2147483648
    %v12299 = vxor.u32 %v12291, 2147483648
    %v12300 = vxor.u32 %v12292, 2147483648
    %v12301 = vxor.u32 %v12293, 2147483648
    %v12302 = vxor.u32 %v12294, 2147483648
    %v12303 = vxor.u32 %v12295, 2147483648
    %v12304 = vxor.u32 %v12296, 2147483648
    %v12305 = vxor.u32 %v12297, 2147483648
    %v12306 = vmul.f32 %v12298, 1.442695
    %v12307 = vpow.pop %v12306
    %v12308 = vmul.f32 %v12299, 1.442695
    %v12309 = vpow.pop %v12308
    %v12310 = vmul.f32 %v12300, 1.442695
    %v12311 = vpow.pop %v12310
    %v12312 = vmul.f32 %v12301, 1.442695
    %v12313 = vpow.pop %v12312
    %v12314 = vmul.f32 %v12302, 1.442695
    %v12315 = vpow.pop %v12314
    %v12316 = vmul.f32 %v12303, 1.442695
    %v12317 = vpow.pop %v12316
    %v12318 = vmul.f32 %v12304, 1.442695
    %v12319 = vpow.pop %v12318
    %v12320 = vmul.f32 %v12305, 1.442695
    %v12321 = vpow.pop %v12320
    %v12322 = vadd.f32 %v12307, 1.0
    %v12323 = vadd.f32 %v12309, 1.0
    %v12324 = vadd.f32 %v12311, 1.0
    %v12325 = vadd.f32 %v12313, 1.0
    %v12326 = vadd.f32 %v12315, 1.0
    %v12327 = vadd.f32 %v12317, 1.0
    %v12328 = vadd.f32 %v12319, 1.0
    %v12329 = vadd.f32 %v12321, 1.0
    %v12330 = vrcp.pop %v12322
    %v12331 = vmul.f32 1.0, %v12330
    %v12332 = vrcp.pop %v12323
    %v12333 = vmul.f32 1.0, %v12332
    %v12334 = vrcp.pop %v12324
    %v12335 = vmul.f32 1.0, %v12334
    %v12336 = vrcp.pop %v12325
    %v12337 = vmul.f32 1.0, %v12336
    %v12338 = vrcp.pop %v12326
    %v12339 = vmul.f32 1.0, %v12338
    %v12340 = vrcp.pop %v12327
    %v12341 = vmul.f32 1.0, %v12340
    %v12342 = vrcp.pop %v12328
    %v12343 = vmul.f32 1.0, %v12342
    %v12344 = vrcp.pop %v12329
    %v12345 = vmul.f32 1.0, %v12344
    %v12346 = vmul.f32 %v12331, %v823
    %v12347 = vmul.f32 %v12333, %v825
    %v12348 = vmul.f32 %v12335, %v864
    %v12349 = vmul.f32 %v12337, %v866
    %v12350 = vmul.f32 %v12339, %v905
    %v12351 = vmul.f32 %v12341, %v907
    %v12352 = vmul.f32 %v12343, %v946
    %v12353 = vmul.f32 %v12345, %v948
    %v12354 = vsub.f32 1.0, %v12331
    %v12355 = vsub.f32 1.0, %v12333
    %v12356 = vsub.f32 1.0, %v12335
    %v12357 = vsub.f32 1.0, %v12337
    %v12358 = vsub.f32 1.0, %v12339
    %v12359 = vsub.f32 1.0, %v12341
    %v12360 = vsub.f32 1.0, %v12343
    %v12361 = vsub.f32 1.0, %v12345
    %v12362 = vmul.f32 %v12354, %v4278
    %v12363 = vmul.f32 %v12355, %v4280
    %v12364 = vmul.f32 %v12356, %v4442
    %v12365 = vmul.f32 %v12357, %v4444
    %v12366 = vmul.f32 %v12358, %v4606
    %v12367 = vmul.f32 %v12359, %v4608
    %v12368 = vmul.f32 %v12360, %v4770
    %v12369 = vmul.f32 %v12361, %v4772
    %v12370 = vadd.f32 %v12346, %v12362
    %v12371 = vadd.f32 %v12347, %v12363
    %v12372 = vadd.f32 %v12348, %v12364
    %v12373 = vadd.f32 %v12349, %v12365
    %v12374 = vadd.f32 %v12350, %v12366
    %v12375 = vadd.f32 %v12351, %v12367
    %v12376 = vadd.f32 %v12352, %v12368
    %v12377 = vadd.f32 %v12353, %v12369
    %v12378 = vmul.f32 %v12370, %v12370
    %v12379 = vmul.f32 %v12371, %v12371
    %v12380 = vmul.f32 %v12372, %v12372
    %v12381 = vmul.f32 %v12373, %v12373
    %v12382 = vmul.f32 %v12374, %v12374
    %v12383 = vmul.f32 %v12375, %v12375
    %v12384 = vmul.f32 %v12376, %v12376
    %v12385 = vmul.f32 %v12377, %v12377
    %v12386 = vsel %vm347, %v12378, 0.0
    %v12387 = vsel %vm347, %v12379, 0.0
    %v12388 = vadd.f32 %v12386, %v12387
    %v12389 = vsel %vm347, %v12380, 0.0
    %v12390 = vadd.f32 %v12388, %v12389
    %v12391 = vsel %vm347, %v12381, 0.0
    %v12392 = vadd.f32 %v12390, %v12391
    %v12393 = vsel %vm347, %v12382, 0.0
    %v12394 = vadd.f32 %v12392, %v12393
    %v12395 = vsel %vm347, %v12383, 0.0
    %v12396 = vadd.f32 %v12394, %v12395
    %v12397 = vsel %vm347, %v12384, 0.0
    %v12398 = vadd.f32 %v12396, %v12397
    %v12399 = vsel %vm347, %v12385, 0.0
    %v12400 = vadd.f32 %v12398, %v12399
    %12401 = vadd.xlane.f32.xlu0 %v12400
    %v12402 = vpop.xlane.xlu0 %12401
    %v12403 = vrsqrt.pop %v12402
    %v12404 = vmul.f32 %v12402, %v12403
    %vm12405 = vcmp.eq.f32.partialorder %v12402, inf
    %v12406 = vsel %vm12405, %v12402, %v12404
    %vm12407 = vcmp.eq.f32.partialorder %v12402, 0.0
    %v12408 = vand.u32 %v12402, 2147483648
    %v12409 = vsel %vm12407, %v12408, %v12406
    %v12410 = vadd.f32 %v12409, 1e-08
    %v12411 = vrcp.pop %v12410
    %v12412 = vmul.f32 %v12370, %v12411
    %v12413 = vmul.f32 %v12371, %v12411
    %v12414 = vmul.f32 %v12372, %v12411
    %v12415 = vmul.f32 %v12373, %v12411
    %v12416 = vmul.f32 %v12374, %v12411
    %v12417 = vmul.f32 %v12375, %v12411
    %v12418 = vmul.f32 %v12376, %v12411
    %v12419 = vmul.f32 %v12377, %v12411
    %v12428 = vcombine.low %v12412, %v12413
    %v12429 = vcombine.low %v12414, %v12415
    %v12431 = vunpack.c.l.s4 1983009808
    %v12432 = vunpack.c.0.s8 %v12431
    %v12433 = vlaneseq
    %v12434 = vshrl.u32 %v12433, 7
    %v12435 = vsub.s32 %v12432, %v12434
    %v12436 = vrot.slane %v12428, %v12435
    %v12438 = vunpack.c.l.s4 1983009808
    %v12439 = vunpack.c.0.s8 %v12438
    %v12440 = vlaneseq
    %v12441 = vshrl.u32 %v12440, 7
    %v12442 = vsub.s32 %v12439, %v12441
    %v12443 = vrot.slane %v12429, %v12442
    %v12444 = vcombine.low %v12436, %v12443
    %v12445 = vcombine.low %v12416, %v12417
    %v12446 = vcombine.low %v12418, %v12419
    %v12448 = vunpack.c.l.s4 1983009808
    %v12449 = vunpack.c.0.s8 %v12448
    %v12450 = vlaneseq
    %v12451 = vshrl.u32 %v12450, 7
    %v12452 = vsub.s32 %v12449, %v12451
    %v12453 = vrot.slane %v12445, %v12452
    %v12455 = vunpack.c.l.s4 1983009808
    %v12456 = vunpack.c.0.s8 %v12455
    %v12457 = vlaneseq
    %v12458 = vshrl.u32 %v12457, 7
    %v12459 = vsub.s32 %v12456, %v12458
    %v12460 = vrot.slane %v12446, %v12459
    %v12461 = vcombine.low %v12453, %v12460
    %12464 = vst [vmem:[#allocation2] sm:$0xff] %v12444
    %12465 = vst [vmem:[#allocation2 + $0x8] sm:$0xff] %v12461
    // Predicated region
    $region50: #{encoder_image_forward.7} parent=1 // pred_check
      _
    $region51: #{encoder_image_forward.7} parent=1 // pred_check_branch
      %12467 = sbr.rel (0) target = $region53
    $region52: #{encoder_image_forward.7} parent=1 // pred_region
      %s12469 = ssub.s32 256, 256
      %12470 = vsyncadd [#allocation3], %s12469
      %s12472 = sshll.u32 [#allocation2], 4
      %s12473 = int_to_ptr.vmem [resolvable:$true] %s12472
      %12475 = dma.vmem_to_hbm [thread:$0]  %s12473, 256, %s12, [#allocation3]
    $region53: #{encoder_image_forward.7} parent=1 // pred_fallthru
      _
    // Predicated region
    $region54: #{encoder_image_forward.7} parent=1 // pred_check
      _
    $region55: #{encoder_image_forward.7} parent=1 // pred_check_branch
      %12477 = sbr.rel (0) target = $region57
    $region56: #{encoder_image_forward.7} parent=1 // pred_region
      %12478 = dma.done [#allocation3], 256
    $region57: #{encoder_image_forward.7} parent=1 // pred_fallthru
      _
    %12479 = vsyncpa [#allocation3], 1

</llo_original>
